<compile_context>
chip_gen: v7x
topology: tpu7x:2x2x1
jax: 0.10.0
libtpu: 0.0.40
codegen_flags: <defaults>
</compile_context>

<pallas_src>
import numpy as np
import jax
import jax.numpy as jnp
from jax.experimental import pallas as pl
from jax.experimental.pallas import tpu as pltpu


# --------------------------------------------------------------------------------------
# Kernel A: im2col q/k/v conv (single deep MXU matmul) + packed cross-ROI attention
#           + per-ROI GroupNorm partial statistics.  One temporal slice per grid step.
# --------------------------------------------------------------------------------------
def _qkv_attention_kernel(x_ref, amask_ref, wqkv_ref, virt_ref, stat_ref,
                          pad_ref, col_ref):
    """Refs:
      x_ref    : (H, W, N, C)      f32   input features
      amask_ref: (g*N, g*N)        f32   additive mask: 0 = allowed, -1e30 = masked
      wqkv_ref : (K*K*C, 3C)       bf16  fused q/k/v conv weights, rows ordered (dy,dx,c)
      virt_ref : (H, W, N, C)      bf16  attention output ("virtual features")
      stat_ref : (N, 2C)           f32   partial GroupNorm sums: [:,:C]=sum, [:,C:]=sum^2
      pad_ref  : (Hp, Wp*N, C)     bf16  scratch: zero-padded conv input
      col_ref  : (S*N, K*K*C)      bf16  scratch: im2col patch matrix
    """
    H, W, N, C = x_ref.shape
    GN = amask_ref.shape[0]
    g = GN // N
    KKC = wqkv_ref.shape[0]
    K = int(round((KKC // C) ** 0.5))
    P = K // 2
    Hp = H + 2 * P
    WpN = (W + 2 * P) * N
    S = H * W
    cdt = pad_ref.dtype                      # bf16 MXU operand dtype
    scale = 1.0 / (C ** 0.5)

    # Zero only the halo strips (the interior is fully overwritten below).  Done every
    # grid step so the kernel is correct no matter how the T axis is scheduled across
    # TensorCores; the strips are tiny relative to the matmuls.
    if P > 0:
        pad_ref[:P, :, :] = jnp.zeros((P, WpN, C), cdt)
        pad_ref[Hp - P:, :, :] = jnp.zeros((P, WpN, C), cdt)
        pad_ref[:, :P * N, :] = jnp.zeros((Hp, P * N, C), cdt)
        pad_ref[:, WpN - P * N:, :] = jnp.zeros((Hp, P * N, C), cdt)
    pad_ref[P:P + H, P * N:(P + W) * N, :] = \
        x_ref[...].reshape(H, W * N, C).astype(cdt)

    # im2col: fill the (S*N, K*K*C) patch matrix with the K*K shifted windows (columns
    # ordered (dy, dx, c), rows ordered (h, w, n)), then run ONE deep bf16 MXU matmul
    # with f32 accumulation -- contraction depth K*K*C instead of C.
    t = 0
    for dy in range(K):
        for dx in range(K):
            col_ref[:, t * C:(t + 1) * C] = \
                pad_ref[dy:dy + H, dx * N:(dx + W) * N, :].reshape(S * N, C)
            t += 1
    qkv = jnp.dot(col_ref[...], wqkv_ref[...],
                  preferred_element_type=jnp.float32)              # (S*N, 3C) f32

    # Attention across ROIs of the same image, g spatial positions packed per MXU pass
    # (the block-diagonal mask keeps positions independent): each contraction is a
    # (g*N, C) x (C, g*N) / (g*N, g*N) x (g*N, C) matmul instead of an (N, C) x (C, N).
    r = qkv.astype(cdt).reshape(S // g, GN, 3 * C)
    q = r[:, :, 0 * C:1 * C]
    k = r[:, :, 1 * C:2 * C]
    v = r[:, :, 2 * C:3 * C]

    att = jnp.einsum("bpc,bqc->bpq", q, k,
                     preferred_element_type=jnp.float32) * scale   # (S//g, GN, GN)
    att = att + amask_ref[...][None, :, :]          # additive mask, kept in f32
    att = att - jnp.max(att, axis=2, keepdims=True)
    e = jnp.exp(att)                                # masked entries underflow to 0
    p = e * pl.reciprocal(jnp.sum(e, axis=2, keepdims=True), approx=True)
    virt = jnp.einsum("bpq,bqc->bpc", p.astype(cdt), v,
                      preferred_element_type=jnp.float32)           # (S//g, GN, C) f32

    vf = virt.reshape(S, N, C)
    # Per-(ROI, channel) partial GroupNorm sums in f32 *before* the bf16 cast; the tiny
    # (T, N, 2C) output is reduced by XLA, so the full virt tensor is never re-read.
    stat_ref[:, :C] = jnp.sum(vf, axis=0)
    stat_ref[:, C:] = jnp.sum(vf * vf, axis=0)
    virt_ref[...] = vf.reshape(H, W, N, C).astype(virt_ref.dtype)


# --------------------------------------------------------------------------------------
# Kernel B: GroupNorm (precomputed stats) + ReLU + final im2col conv + residual.
# --------------------------------------------------------------------------------------
def _norm_conv_residual_kernel(x_ref, virt_ref, gscale_ref, gshift_ref, wc_ref,
                               o_ref, pad_ref, col_ref):
    """Refs:
      x_ref     : (H, W, N, C)     f32   original input (residual branch)
      virt_ref  : (H, W, N, C)     bf16  attention output from kernel A
      gscale_ref: (N, C)           f32   gamma * rstd[n]
      gshift_ref: (N, C)           f32   beta - mean[n] * gamma * rstd[n]
      wc_ref    : (K*K*C, C)       bf16  final conv weights, rows ordered (dy,dx,c)
      o_ref     : (H, W, N, C)     f32   output (aliases x's HBM buffer)
      pad_ref   : (Hp, Wp*N, C)    bf16  scratch: zero-padded conv input
      col_ref   : (S*N, K*K*C)     bf16  scratch: im2col patch matrix
    """
    H, W, N, C = x_ref.shape
    KKC = wc_ref.shape[0]
    K = int(round((KKC // C) ** 0.5))
    P = K // 2
    Hp = H + 2 * P
    WpN = (W + 2 * P) * N
    S = H * W
    cdt = pad_ref.dtype

    # GroupNorm(1, C) with per-ROI statistics + affine params folded into a per-ROI
    # scale/shift (f32 elementwise math -- no bf16 VPU dependence), then ReLU.
    vn = (virt_ref[...].astype(jnp.float32) * gscale_ref[...][None, None, :, :]
          + gshift_ref[...][None, None, :, :])
    vn = jnp.maximum(vn, 0.0)

    if P > 0:
        pad_ref[:P, :, :] = jnp.zeros((P, WpN, C), cdt)
        pad_ref[Hp - P:, :, :] = jnp.zeros((P, WpN, C), cdt)
        pad_ref[:, :P * N, :] = jnp.zeros((Hp, P * N, C), cdt)
        pad_ref[:, WpN - P * N:, :] = jnp.zeros((Hp, P * N, C), cdt)
    pad_ref[P:P + H, P * N:(P + W) * N, :] = \
        vn.reshape(H, W * N, C).astype(cdt)

    t = 0
    for dy in range(K):
        for dx in range(K):
            col_ref[:, t * C:(t + 1) * C] = \
                pad_ref[dy:dy + H, dx * N:(dx + W) * N, :].reshape(S * N, C)
            t += 1
    conv = jnp.dot(col_ref[...], wc_ref[...],
                   preferred_element_type=jnp.float32)              # (S*N, C) f32

    o_ref[...] = x_ref[...] + conv.reshape(H, W, N, C)


# --------------------------------------------------------------------------------------
# Wrapper
# --------------------------------------------------------------------------------------
def _pick_group(S, N):
    """Pack g spatial positions per attention MXU pass (g | S, g*N kept modest)."""
    for g in (8, 4, 2, 1):
        if S % g == 0 and g * N <= 256:
            return g
    return 1


def _vmem_limit_bytes(*buffer_bytes):
    """Generation-aware scoped-VMEM request: generous double-buffering/temporary
    headroom, capped at ~75% of the physical VMEM of the chip being compiled for
    (v5e/v6e: 128 MiB, v7x: 64 MiB). Small estimates are not inflated."""
    need = 2 * sum(int(b) for b in buffer_bytes)     # double-buffered pipeline operands
    need = 2 * need + (8 << 20)                      # layout padding + in-kernel temps
    try:
        cap = pltpu.get_tpu_info().vmem_capacity_bytes
    except Exception:                                # pragma: no cover - old jax / CPU
        cap = 64 << 20                               # conservative (v7x) fallback
    return int(min(need, (3 * cap) // 4))


def hr2o_nl_pallas(x_ncthw, rois, params):
    """x_ncthw: (N, C, T, H, W) f32 (PyTorch layout). rois: (N, 5), rois[:,0] = image idx."""
    N, C, T, H, W = x_ncthw.shape
    K = params["wq"].shape[0]
    P = K // 2
    Hp, Wp = H + 2 * P, W + 2 * P
    S = H * W
    g = _pick_group(S, N)
    GN = g * N
    cdt = jnp.bfloat16

    # (N, C, T, H, W) -> (T, H, W, N, C): C on lanes, attention batch axis leading.
    x_cl = jnp.transpose(x_ncthw.astype(jnp.float32), (2, 3, 4, 0, 1))

    # Block-diagonal "same spatial position AND same image" additive mask (f32).
    ri = rois[:, 0].astype(jnp.int32)
    same = (ri[:, None] == ri[None, :]).astype(jnp.float32)          # (N, N)
    amask = (jnp.kron(jnp.eye(g, dtype=jnp.float32), same) - 1.0) * 1e30   # (GN, GN)

    # Conv weights pre-reshaped for the im2col matmuls: rows ordered (dy, dx, c).
    wqkv = jnp.concatenate([params["wq"], params["wk"], params["wv"]],
                           axis=-1).reshape(K * K * C, 3 * C).astype(cdt)
    wc = params["wc"].reshape(K * K * C, C).astype(cdt)

    blk = pl.BlockSpec((None, H, W, N, C), lambda t: (t, 0, 0, 0, 0))
    stat_blk = pl.BlockSpec((None, N, 2 * C), lambda t: (t, 0, 0))

    def full(shape):
        return pl.BlockSpec(shape, lambda t: (0,) * len(shape))

    # Tiny T: one core pipelining all steps beats 1 step/core on dual-TensorCore chips.
    dim_sem = ("arbitrary",) if T < 4 else ("parallel",)
    # TODO(synk): for large T with small per-step blocks, block 2 temporal slices per
    #             grid step to amortize per-step overhead and MXU fill/drain.

    pad_scr = pltpu.VMEM((Hp, Wp * N, C), cdt)
    col_scr = pltpu.VMEM((S * N, K * K * C), cdt)

    blk_f32 = H * W * N * C * 4
    blk_bf16 = H * W * N * C * 2
    pad_b = Hp * Wp * N * C * 2
    col_b = S * N * K * K * C * 2

    # ---- kernel A: im2col q/k/v conv + packed cross-ROI attention + partial stats -----
    virt, stats = pl.pallas_call(
        _qkv_attention_kernel,
        out_shape=(jax.ShapeDtypeStruct((T, H, W, N, C), cdt),
                   jax.ShapeDtypeStruct((T, N, 2 * C), jnp.float32)),
        grid=(T,),
        in_specs=[blk, full((GN, GN)), full((K * K * C, 3 * C))],
        out_specs=[blk, stat_blk],
        scratch_shapes=[pad_scr, col_scr],
        compiler_params=pltpu.CompilerParams(
            dimension_semantics=dim_sem,
            vmem_limit_bytes=_vmem_limit_bytes(
                blk_f32, blk_bf16, N * 2 * C * 4, GN * GN * 4,
                wqkv.size * 2, pad_b, col_b)),
    )(x_cl, amask, wqkv)

    # ---- GroupNorm(1, C) statistics: reduce only the tiny (T, N, 2C) partials in XLA --
    st = jnp.sum(stats, axis=0)                                      # (N, 2C)
    cnt = float(T * S * C)
    mean = jnp.sum(st[:, :C], axis=-1) / cnt                         # (N,)
    var = jnp.maximum(jnp.sum(st[:, C:], axis=-1) / cnt - mean * mean, 0.0)
    rstd = jax.lax.rsqrt(var + 1e-5)
    gscale = params["gamma"] * rstd[:, None]                         # (N, C)
    gshift = params["beta"] - mean[:, None] * gscale                 # (N, C)

    # ---- kernel B: normalize + ReLU + final conv + residual (output aliases x) --------
    # NOTE: the alias is safe because kernel B data-depends on kernel A via virt/gscale.
    out_cl = pl.pallas_call(
        _norm_conv_residual_kernel,
        out_shape=jax.ShapeDtypeStruct((T, H, W, N, C), jnp.float32),
        grid=(T,),
        in_specs=[blk, blk, full((N, C)), full((N, C)), full((K * K * C, C))],
        out_specs=blk,
        scratch_shapes=[pad_scr, col_scr],
        input_output_aliases={0: 0},
        compiler_params=pltpu.CompilerParams(
            dimension_semantics=dim_sem,
            vmem_limit_bytes=_vmem_limit_bytes(
                blk_f32, blk_bf16, blk_f32, 2 * N * C * 4,
                wc.size * 2, pad_b, col_b)),
    )(x_cl, virt, gscale, gshift, wc)

    return jnp.transpose(out_cl, (3, 4, 0, 1, 2))                    # -> (N, C, T, H, W)


# ----------------------- pure-JAX reference (for correctness check) ---------------------
def ref_forward(x, rois, p):
    N, C, T, H, W = x.shape
    ri = rois[:, 0].astype(jnp.int32)

    def conv(inp_ncthw, w):
        xi = jnp.transpose(inp_ncthw, (0, 2, 3, 4, 1)).reshape(N * T, H, W, C)
        o = jax.lax.conv_general_dilated(xi, w, (1, 1), "SAME",
                                         dimension_numbers=("NHWC", "HWIO", "NHWC"))
        return o.reshape(N, T, H, W, C)

    q = conv(x, p["wq"]).reshape(N, T * H * W, C)
    k = conv(x, p["wk"]).reshape(N, T * H * W, C)
    v = conv(x, p["wv"]).reshape(N, T * H * W, C)

    att = jnp.einsum("isc,jsc->ijs", q, k) / (C ** 0.5)
    mask = (ri[:, None] == ri[None, :]).astype(jnp.float32)
    att = jnp.where(mask[:, :, None] > 0, att, -1e30)
    att = jax.nn.softmax(att, axis=1)
    virt = jnp.einsum("ijs,jsc->isc", att, v)

    mean = virt.mean(axis=(1, 2), keepdims=True)
    var = ((virt - mean) ** 2).mean(axis=(1, 2), keepdims=True)
    vn = (virt - mean) / jnp.sqrt(var + 1e-5)
    vn = vn * p["gamma"][None, :, :] + p["beta"][None, :, :]
    vn = jax.nn.relu(vn).reshape(N, T, H, W, C)

    out_conv = conv(jnp.transpose(vn, (0, 4, 1, 2, 3)), p["wc"])
    out = jnp.transpose(x, (0, 2, 3, 4, 1)) + out_conv
    return jnp.transpose(out, (0, 4, 1, 2, 3))


def init_params(key, C, K=3):
    ks = jax.random.split(key, 4)

    def w(k):
        return jax.random.normal(k, (K, K, C, C), jnp.float32) * 0.02

    return dict(wq=w(ks[0]), wk=w(ks[1]), wv=w(ks[2]), wc=w(ks[3]),
                gamma=jnp.ones((1, C), jnp.float32),   # GroupNorm affine weight
                beta=jnp.zeros((1, C), jnp.float32))   # GroupNorm affine bias


if __name__ == "__main__":
    key = jax.random.PRNGKey(0)
    kx, kp, kr = jax.random.split(key, 3)

    # Small shapes consistent with the module: N rois, C channels, (T, H, W) spatial.
    N, C, T, H, W = 8, 64, 2, 8, 8
    x = jax.random.normal(kx, (N, C, T, H, W), jnp.float32)
    # rois: (N, 5); column 0 is the image index within the batch (2 rois per image).
    roi_inds = jnp.array([0, 0, 1, 1, 2, 2, 3, 3], jnp.float32)
    boxes = jax.random.uniform(kr, (N, 4), jnp.float32)
    rois = jnp.concatenate([roi_inds[:, None], boxes], axis=1)

    params = init_params(kp, C)

    fwd = jax.jit(hr2o_nl_pallas)
    out = jax.block_until_ready(fwd(x, rois, params))

    ref = ref_forward(x, rois, params)
    # bf16 MXU operands / bf16 virt round-trip with f32 accumulation & stats.
    np.testing.assert_allclose(np.asarray(out), np.asarray(ref), rtol=2e-2, atol=2e-2)

    print("KERNEL_OK")
</pallas_src>

<mosaic_0001>
module attributes {stable_mosaic.version = 11 : i64} {
  func.func @_qkv_attention_kernel(%arg0: i32, %arg1: memref<1x8x8x8x64xf32, #tpu.memory_space<vmem>>, %arg2: memref<64x64xf32, #tpu.memory_space<vmem>>, %arg3: memref<576x192xbf16, #tpu.memory_space<vmem>>, %arg4: memref<1x8x8x8x64xbf16, #tpu.memory_space<vmem>>, %arg5: memref<1x8x128xf32, #tpu.memory_space<vmem>>, %arg6: memref<10x80x64xbf16, #tpu.memory_space<vmem>>, %arg7: memref<512x576xbf16, #tpu.memory_space<vmem>>) attributes {dimension_semantics = [#tpu.dimension_semantics<arbitrary>], iteration_bounds = array<i64: 2>, scalar_prefetch = 0 : i64, scratch_operands = 2 : i64, tpu.core_type = #tpu.core_type<tc>, window_params = [{transform_indices = @transform_0, window_bounds = array<i64: 1, 8, 8, 8, 64>}, {pipeline_mode = #tpu.pipeline_mode<synchronous>, transform_indices = @transform_1, window_bounds = array<i64: 64, 64>}, {pipeline_mode = #tpu.pipeline_mode<synchronous>, transform_indices = @transform_2, window_bounds = array<i64: 576, 192>}, {transform_indices = @transform_3, window_bounds = array<i64: 1, 8, 8, 8, 64>}, {transform_indices = @transform_4, window_bounds = array<i64: 1, 8, 128>}]} {
    %cst = arith.constant 0.000000e+00 : bf16
    %0 = vector.broadcast %cst : bf16 to vector<1x80x64xbf16>
    %c0 = arith.constant 0 : index
    %c0_0 = arith.constant 0 : index
    %c0_1 = arith.constant 0 : index
    %1 = vector.load %arg6[%c0, %c0_0, %c0_1] : memref<10x80x64xbf16, #tpu.memory_space<vmem>>, vector<1x80x64xbf16>
    tpu.vector_store %arg6[%c0, %c0_0, %c0_1], %0 {strides = array<i32>} : memref<10x80x64xbf16, #tpu.memory_space<vmem>>, vector<1x80x64xbf16>,
    %cst_2 = arith.constant 0.000000e+00 : bf16
    %2 = vector.broadcast %cst_2 : bf16 to vector<1x80x64xbf16>
    %c9 = arith.constant 9 : index
    %c0_3 = arith.constant 0 : index
    %c0_4 = arith.constant 0 : index
    %3 = vector.load %arg6[%c9, %c0_3, %c0_4] : memref<10x80x64xbf16, #tpu.memory_space<vmem>>, vector<1x80x64xbf16>
    tpu.vector_store %arg6[%c9, %c0_3, %c0_4], %2 {strides = array<i32>} : memref<10x80x64xbf16, #tpu.memory_space<vmem>>, vector<1x80x64xbf16>,
    %cst_5 = arith.constant 0.000000e+00 : bf16
    %4 = vector.broadcast %cst_5 : bf16 to vector<10x8x64xbf16>
    %c0_6 = arith.constant 0 : index
    %c0_7 = arith.constant 0 : index
    %c0_8 = arith.constant 0 : index
    %5 = vector.load %arg6[%c0_6, %c0_7, %c0_8] : memref<10x80x64xbf16, #tpu.memory_space<vmem>>, vector<10x8x64xbf16>
    tpu.vector_store %arg6[%c0_6, %c0_7, %c0_8], %4 {strides = array<i32>} : memref<10x80x64xbf16, #tpu.memory_space<vmem>>, vector<10x8x64xbf16>,
    %cst_9 = arith.constant 0.000000e+00 : bf16
    %6 = vector.broadcast %cst_9 : bf16 to vector<10x8x64xbf16>
    %c0_10 = arith.constant 0 : index
    %c72 = arith.constant 72 : index
    %c0_11 = arith.constant 0 : index
    %7 = vector.load %arg6[%c0_10, %c72, %c0_11] : memref<10x80x64xbf16, #tpu.memory_space<vmem>>, vector<10x8x64xbf16>
    tpu.vector_store %arg6[%c0_10, %c72, %c0_11], %6 {strides = array<i32>} : memref<10x80x64xbf16, #tpu.memory_space<vmem>>, vector<10x8x64xbf16>,
    %c0_12 = arith.constant 0 : index
    %c0_13 = arith.constant 0 : index
    %c0_14 = arith.constant 0 : index
    %c0_15 = arith.constant 0 : index
    %c0_16 = arith.constant 0 : index
    %8 = vector.load %arg1[%c0_12, %c0_13, %c0_14, %c0_15, %c0_16] : memref<1x8x8x8x64xf32, #tpu.memory_space<vmem>>, vector<1x8x8x8x64xf32>
    %9 = vector.shape_cast %8 : vector<1x8x8x8x64xf32> to vector<8x8x8x64xf32>
    %10 = vector.shape_cast %9 : vector<8x8x8x64xf32> to vector<8x64x64xf32>
    %11 = arith.truncf %10 : vector<8x64x64xf32> to vector<8x64x64xbf16>
    %c1 = arith.constant 1 : index
    %c8 = arith.constant 8 : index
    %c0_17 = arith.constant 0 : index
    %12 = vector.load %arg6[%c1, %c8, %c0_17] : memref<10x80x64xbf16, #tpu.memory_space<vmem>>, vector<8x64x64xbf16>
    tpu.vector_store %arg6[%c1, %c8, %c0_17], %11 {strides = array<i32>} : memref<10x80x64xbf16, #tpu.memory_space<vmem>>, vector<8x64x64xbf16>,
    %c0_18 = arith.constant 0 : index
    %c0_19 = arith.constant 0 : index
    %c0_20 = arith.constant 0 : index
    %13 = vector.load %arg6[%c0_18, %c0_19, %c0_20] : memref<10x80x64xbf16, #tpu.memory_space<vmem>>, vector<8x64x64xbf16>
    %14 = vector.shape_cast %13 : vector<8x64x64xbf16> to vector<512x64xbf16>
    %c0_21 = arith.constant 0 : index
    %c0_22 = arith.constant 0 : index
    %15 = vector.load %arg7[%c0_21, %c0_22] : memref<512x576xbf16, #tpu.memory_space<vmem>>, vector<512x64xbf16>
    tpu.vector_store %arg7[%c0_21, %c0_22], %14 {strides = array<i32>} : memref<512x576xbf16, #tpu.memory_space<vmem>>, vector<512x64xbf16>,
    %c0_23 = arith.constant 0 : index
    %c8_24 = arith.constant 8 : index
    %c0_25 = arith.constant 0 : index
    %16 = vector.load %arg6[%c0_23, %c8_24, %c0_25] : memref<10x80x64xbf16, #tpu.memory_space<vmem>>, vector<8x64x64xbf16>
    %17 = vector.shape_cast %16 : vector<8x64x64xbf16> to vector<512x64xbf16>
    %c0_26 = arith.constant 0 : index
    %c64 = arith.constant 64 : index
    %18 = vector.load %arg7[%c0_26, %c64] : memref<512x576xbf16, #tpu.memory_space<vmem>>, vector<512x64xbf16>
    tpu.vector_store %arg7[%c0_26, %c64], %17 {strides = array<i32>} : memref<512x576xbf16, #tpu.memory_space<vmem>>, vector<512x64xbf16>,
    %c0_27 = arith.constant 0 : index
    %c16 = arith.constant 16 : index
    %c0_28 = arith.constant 0 : index
    %19 = vector.load %arg6[%c0_27, %c16, %c0_28] : memref<10x80x64xbf16, #tpu.memory_space<vmem>>, vector<8x64x64xbf16>
    %20 = vector.shape_cast %19 : vector<8x64x64xbf16> to vector<512x64xbf16>
    %c0_29 = arith.constant 0 : index
    %c128 = arith.constant 128 : index
    %21 = vector.load %arg7[%c0_29, %c128] : memref<512x576xbf16, #tpu.memory_space<vmem>>, vector<512x64xbf16>
    tpu.vector_store %arg7[%c0_29, %c128], %20 {strides = array<i32>} : memref<512x576xbf16, #tpu.memory_space<vmem>>, vector<512x64xbf16>,
    %c1_30 = arith.constant 1 : index
    %c0_31 = arith.constant 0 : index
    %c0_32 = arith.constant 0 : index
    %22 = vector.load %arg6[%c1_30, %c0_31, %c0_32] : memref<10x80x64xbf16, #tpu.memory_space<vmem>>, vector<8x64x64xbf16>
    %23 = vector.shape_cast %22 : vector<8x64x64xbf16> to vector<512x64xbf16>
    %c0_33 = arith.constant 0 : index
    %c192 = arith.constant 192 : index
    %24 = vector.load %arg7[%c0_33, %c192] : memref<512x576xbf16, #tpu.memory_space<vmem>>, vector<512x64xbf16>
    tpu.vector_store %arg7[%c0_33, %c192], %23 {strides = array<i32>} : memref<512x576xbf16, #tpu.memory_space<vmem>>, vector<512x64xbf16>,
    %c1_34 = arith.constant 1 : index
    %c8_35 = arith.constant 8 : index
    %c0_36 = arith.constant 0 : index
    %25 = vector.load %arg6[%c1_34, %c8_35, %c0_36] : memref<10x80x64xbf16, #tpu.memory_space<vmem>>, vector<8x64x64xbf16>
    %26 = vector.shape_cast %25 : vector<8x64x64xbf16> to vector<512x64xbf16>
    %c0_37 = arith.constant 0 : index
    %c256 = arith.constant 256 : index
    %27 = vector.load %arg7[%c0_37, %c256] : memref<512x576xbf16, #tpu.memory_space<vmem>>, vector<512x64xbf16>
    tpu.vector_store %arg7[%c0_37, %c256], %26 {strides = array<i32>} : memref<512x576xbf16, #tpu.memory_space<vmem>>, vector<512x64xbf16>,
    %c1_38 = arith.constant 1 : index
    %c16_39 = arith.constant 16 : index
    %c0_40 = arith.constant 0 : index
    %28 = vector.load %arg6[%c1_38, %c16_39, %c0_40] : memref<10x80x64xbf16, #tpu.memory_space<vmem>>, vector<8x64x64xbf16>
    %29 = vector.shape_cast %28 : vector<8x64x64xbf16> to vector<512x64xbf16>
    %c0_41 = arith.constant 0 : index
    %c320 = arith.constant 320 : index
    %30 = vector.load %arg7[%c0_41, %c320] : memref<512x576xbf16, #tpu.memory_space<vmem>>, vector<512x64xbf16>
    tpu.vector_store %arg7[%c0_41, %c320], %29 {strides = array<i32>} : memref<512x576xbf16, #tpu.memory_space<vmem>>, vector<512x64xbf16>,
    %c2 = arith.constant 2 : index
    %c0_42 = arith.constant 0 : index
    %c0_43 = arith.constant 0 : index
    %31 = vector.load %arg6[%c2, %c0_42, %c0_43] : memref<10x80x64xbf16, #tpu.memory_space<vmem>>, vector<8x64x64xbf16>
    %32 = vector.shape_cast %31 : vector<8x64x64xbf16> to vector<512x64xbf16>
    %c0_44 = arith.constant 0 : index
    %c384 = arith.constant 384 : index
    %33 = vector.load %arg7[%c0_44, %c384] : memref<512x576xbf16, #tpu.memory_space<vmem>>, vector<512x64xbf16>
    tpu.vector_store %arg7[%c0_44, %c384], %32 {strides = array<i32>} : memref<512x576xbf16, #tpu.memory_space<vmem>>, vector<512x64xbf16>,
    %c2_45 = arith.constant 2 : index
    %c8_46 = arith.constant 8 : index
    %c0_47 = arith.constant 0 : index
    %34 = vector.load %arg6[%c2_45, %c8_46, %c0_47] : memref<10x80x64xbf16, #tpu.memory_space<vmem>>, vector<8x64x64xbf16>
    %35 = vector.shape_cast %34 : vector<8x64x64xbf16> to vector<512x64xbf16>
    %c0_48 = arith.constant 0 : index
    %c448 = arith.constant 448 : index
    %36 = vector.load %arg7[%c0_48, %c448] : memref<512x576xbf16, #tpu.memory_space<vmem>>, vector<512x64xbf16>
    tpu.vector_store %arg7[%c0_48, %c448], %35 {strides = array<i32>} : memref<512x576xbf16, #tpu.memory_space<vmem>>, vector<512x64xbf16>,
    %c2_49 = arith.constant 2 : index
    %c16_50 = arith.constant 16 : index
    %c0_51 = arith.constant 0 : index
    %37 = vector.load %arg6[%c2_49, %c16_50, %c0_51] : memref<10x80x64xbf16, #tpu.memory_space<vmem>>, vector<8x64x64xbf16>
    %38 = vector.shape_cast %37 : vector<8x64x64xbf16> to vector<512x64xbf16>
    %c0_52 = arith.constant 0 : index
    %c512 = arith.constant 512 : index
    %39 = vector.load %arg7[%c0_52, %c512] : memref<512x576xbf16, #tpu.memory_space<vmem>>, vector<512x64xbf16>
    tpu.vector_store %arg7[%c0_52, %c512], %38 {strides = array<i32>} : memref<512x576xbf16, #tpu.memory_space<vmem>>, vector<512x64xbf16>,
    %c0_53 = arith.constant 0 : index
    %c0_54 = arith.constant 0 : index
    %40 = vector.load %arg7[%c0_53, %c0_54] : memref<512x576xbf16, #tpu.memory_space<vmem>>, vector<512x576xbf16>
    %c0_55 = arith.constant 0 : index
    %c0_56 = arith.constant 0 : index
    %41 = vector.load %arg3[%c0_55, %c0_56] : memref<576x192xbf16, #tpu.memory_space<vmem>>, vector<576x192xbf16>
    %cst_57 = arith.constant dense<0.000000e+00> : vector<512x192xf32>
    %42 = tpu.matmul %40, %41, %cst_57 {dimension_numbers = #tpu.dot_dimension_numbers<[1], [0], [0], [1], [0, 0, 1, 1], [], []>} : vector<512x576xbf16>, vector<576x192xbf16>, vector<512x192xf32> -> vector<512x192xf32>
    %43 = arith.truncf %42 : vector<512x192xf32> to vector<512x192xbf16>
    %44 = vector.shape_cast %43 : vector<512x192xbf16> to vector<8x64x192xbf16>
    %45 = vector.extract_strided_slice %44 {offsets = [0, 0, 0], sizes = [8, 64, 64], strides = [1, 1, 1]} : vector<8x64x192xbf16> to vector<8x64x64xbf16>
    %46 = vector.extract_strided_slice %44 {offsets = [0, 0, 64], sizes = [8, 64, 64], strides = [1, 1, 1]} : vector<8x64x192xbf16> to vector<8x64x64xbf16>
    %47 = vector.extract_strided_slice %44 {offsets = [0, 0, 128], sizes = [8, 64, 64], strides = [1, 1, 1]} : vector<8x64x192xbf16> to vector<8x64x64xbf16>
    "tpu.trace_start"() <{level = 10 : i32, message = "bpc,bqc->bpq"}> : () -> ()
    %cst_58 = arith.constant dense<0.000000e+00> : vector<8x64x64xf32>
    %48 = tpu.matmul %45, %46, %cst_58 {dimension_numbers = #tpu.dot_dimension_numbers<[2], [2], [1], [1], [0, 0, 0, 1, 1, 1], [0], [0]>} : vector<8x64x64xbf16>, vector<8x64x64xbf16>, vector<8x64x64xf32> -> vector<8x64x64xf32>
    "tpu.trace_stop"() : () -> ()
    %cst_59 = arith.constant 1.250000e-01 : f32
    %49 = vector.broadcast %cst_59 : f32 to vector<8x64x64xf32>
    %50 = arith.mulf %48, %49 : vector<8x64x64xf32>
    %c0_60 = arith.constant 0 : index
    %c0_61 = arith.constant 0 : index
    %51 = vector.load %arg2[%c0_60, %c0_61] : memref<64x64xf32, #tpu.memory_space<vmem>>, vector<64x64xf32>
    %52 = vector.shape_cast %51 : vector<64x64xf32> to vector<1x64x64xf32>
    %53 = vector.broadcast %52 : vector<1x64x64xf32> to vector<8x64x64xf32>
    %54 = arith.addf %50, %53 : vector<8x64x64xf32>
    %cst_62 = arith.constant dense<0xFF800000> : vector<8x64xf32>
    %55 = vector.multi_reduction <maximumf>, %54, %cst_62 [2] : vector<8x64x64xf32> to vector<8x64xf32>
    %56 = vector.shape_cast %55 : vector<8x64xf32> to vector<8x64x1xf32>
    %57 = vector.broadcast %56 : vector<8x64x1xf32> to vector<8x64x64xf32>
    %58 = arith.subf %54, %57 : vector<8x64x64xf32>
    %59 = math.exp %58 : vector<8x64x64xf32>
    %cst_63 = arith.constant dense<0.000000e+00> : vector<8x64xf32>
    %60 = vector.multi_reduction <add>, %59, %cst_63 [2] : vector<8x64x64xf32> to vector<8x64xf32>
    %61 = vector.shape_cast %60 : vector<8x64xf32> to vector<8x64x1xf32>
    %62 = tpu.reciprocal %61 {approx = true} : vector<8x64x1xf32> -> vector<8x64x1xf32>
    %63 = vector.broadcast %62 : vector<8x64x1xf32> to vector<8x64x64xf32>
    %64 = arith.mulf %59, %63 : vector<8x64x64xf32>
    %65 = arith.truncf %64 : vector<8x64x64xf32> to vector<8x64x64xbf16>
    "tpu.trace_start"() <{level = 10 : i32, message = "bpq,bqc->bpc"}> : () -> ()
    %cst_64 = arith.constant dense<0.000000e+00> : vector<8x64x64xf32>
    %66 = tpu.matmul %65, %47, %cst_64 {dimension_numbers = #tpu.dot_dimension_numbers<[2], [1], [1], [2], [0, 0, 0, 1, 1, 2], [0], [0]>} : vector<8x64x64xbf16>, vector<8x64x64xbf16>, vector<8x64x64xf32> -> vector<8x64x64xf32>
    "tpu.trace_stop"() : () -> ()
    %67 = vector.shape_cast %66 : vector<8x64x64xf32> to vector<64x8x64xf32>
    %cst_65 = arith.constant dense<0.000000e+00> : vector<8x64xf32>
    %68 = vector.multi_reduction <add>, %67, %cst_65 [0] : vector<64x8x64xf32> to vector<8x64xf32>
    %c0_66 = arith.constant 0 : index
    %c0_67 = arith.constant 0 : index
    %c0_68 = arith.constant 0 : index
    %69 = vector.load %arg5[%c0_66, %c0_67, %c0_68] : memref<1x8x128xf32, #tpu.memory_space<vmem>>, vector<1x8x64xf32>
    %70 = vector.shape_cast %69 : vector<1x8x64xf32> to vector<8x64xf32>
    %71 = vector.shape_cast %68 : vector<8x64xf32> to vector<1x8x64xf32>
    tpu.vector_store %arg5[%c0_66, %c0_67, %c0_68], %71 {strides = array<i32>} : memref<1x8x128xf32, #tpu.memory_space<vmem>>, vector<1x8x64xf32>,
    %72 = arith.mulf %67, %67 : vector<64x8x64xf32>
    %cst_69 = arith.constant dense<0.000000e+00> : vector<8x64xf32>
    %73 = vector.multi_reduction <add>, %72, %cst_69 [0] : vector<64x8x64xf32> to vector<8x64xf32>
    %c0_70 = arith.constant 0 : index
    %c0_71 = arith.constant 0 : index
    %c64_72 = arith.constant 64 : index
    %74 = vector.load %arg5[%c0_70, %c0_71, %c64_72] : memref<1x8x128xf32, #tpu.memory_space<vmem>>, vector<1x8x64xf32>
    %75 = vector.shape_cast %74 : vector<1x8x64xf32> to vector<8x64xf32>
    %76 = vector.shape_cast %73 : vector<8x64xf32> to vector<1x8x64xf32>
    tpu.vector_store %arg5[%c0_70, %c0_71, %c64_72], %76 {strides = array<i32>} : memref<1x8x128xf32, #tpu.memory_space<vmem>>, vector<1x8x64xf32>,
    %77 = vector.shape_cast %67 : vector<64x8x64xf32> to vector<8x8x8x64xf32>
    %78 = arith.truncf %77 : vector<8x8x8x64xf32> to vector<8x8x8x64xbf16>
    %c0_73 = arith.constant 0 : index
    %c0_74 = arith.constant 0 : index
    %c0_75 = arith.constant 0 : index
    %c0_76 = arith.constant 0 : index
    %c0_77 = arith.constant 0 : index
    %79 = vector.load %arg4[%c0_73, %c0_74, %c0_75, %c0_76, %c0_77] : memref<1x8x8x8x64xbf16, #tpu.memory_space<vmem>>, vector<1x8x8x8x64xbf16>
    %80 = vector.shape_cast %79 : vector<1x8x8x8x64xbf16> to vector<8x8x8x64xbf16>
    %81 = vector.shape_cast %78 : vector<8x8x8x64xbf16> to vector<1x8x8x8x64xbf16>
    tpu.vector_store %arg4[%c0_73, %c0_74, %c0_75, %c0_76, %c0_77], %81 {strides = array<i32>} : memref<1x8x8x8x64xbf16, #tpu.memory_space<vmem>>, vector<1x8x8x8x64xbf16>,
    return
  }
  func.func @transform_0(%arg0: i32) -> (i32, i32, i32, i32, i32) {
    %c0_i32 = arith.constant 0 : i32
    %c0_i32_0 = arith.constant 0 : i32
    %c0_i32_1 = arith.constant 0 : i32
    %c0_i32_2 = arith.constant 0 : i32
    %c0_i32_3 = arith.constant 0 : i32
    return %arg0, %c0_i32, %c0_i32_0, %c0_i32_1, %c0_i32_2 : i32, i32, i32, i32, i32
  }
  func.func @transform_1(%arg0: i32) -> (i32, i32) {
    %c0_i32 = arith.constant 0 : i32
    %c0_i32_0 = arith.constant 0 : i32
    %c0_i32_1 = arith.constant 0 : i32
    return %c0_i32, %c0_i32_0 : i32, i32
  }
  func.func @transform_2(%arg0: i32) -> (i32, i32) {
    %c0_i32 = arith.constant 0 : i32
    %c0_i32_0 = arith.constant 0 : i32
    %c0_i32_1 = arith.constant 0 : i32
    return %c0_i32, %c0_i32_0 : i32, i32
  }
  func.func @transform_3(%arg0: i32) -> (i32, i32, i32, i32, i32) {
    %c0_i32 = arith.constant 0 : i32
    %c0_i32_0 = arith.constant 0 : i32
    %c0_i32_1 = arith.constant 0 : i32
    %c0_i32_2 = arith.constant 0 : i32
    %c0_i32_3 = arith.constant 0 : i32
    return %arg0, %c0_i32, %c0_i32_0, %c0_i32_1, %c0_i32_2 : i32, i32, i32, i32, i32
  }
  func.func @transform_4(%arg0: i32) -> (i32, i32, i32) {
    %c0_i32 = arith.constant 0 : i32
    %c0_i32_0 = arith.constant 0 : i32
    %c0_i32_1 = arith.constant 0 : i32
    return %arg0, %c0_i32, %c0_i32_0 : i32, i32, i32
  }
}

module attributes {stable_mosaic.version = 11 : i64} {
  func.func @_norm_conv_residual_kernel(%arg0: i32, %arg1: memref<1x8x8x8x64xf32, #tpu.memory_space<vmem>>, %arg2: memref<1x8x8x8x64xbf16, #tpu.memory_space<vmem>>, %arg3: memref<8x64xf32, #tpu.memory_space<vmem>>, %arg4: memref<8x64xf32, #tpu.memory_space<vmem>>, %arg5: memref<576x64xbf16, #tpu.memory_space<vmem>>, %arg6: memref<1x8x8x8x64xf32, #tpu.memory_space<vmem>>, %arg7: memref<10x80x64xbf16, #tpu.memory_space<vmem>>, %arg8: memref<512x576xbf16, #tpu.memory_space<vmem>>) attributes {dimension_semantics = [#tpu.dimension_semantics<arbitrary>], iteration_bounds = array<i64: 2>, scalar_prefetch = 0 : i64, scratch_operands = 2 : i64, tpu.core_type = #tpu.core_type<tc>, window_params = [{transform_indices = @transform_0, window_bounds = array<i64: 1, 8, 8, 8, 64>}, {transform_indices = @transform_1, window_bounds = array<i64: 1, 8, 8, 8, 64>}, {pipeline_mode = #tpu.pipeline_mode<synchronous>, transform_indices = @transform_2, window_bounds = array<i64: 8, 64>}, {pipeline_mode = #tpu.pipeline_mode<synchronous>, transform_indices = @transform_3, window_bounds = array<i64: 8, 64>}, {pipeline_mode = #tpu.pipeline_mode<synchronous>, transform_indices = @transform_4, window_bounds = array<i64: 576, 64>}, {transform_indices = @transform_5, window_bounds = array<i64: 1, 8, 8, 8, 64>}]} {
    %c0 = arith.constant 0 : index
    %c0_0 = arith.constant 0 : index
    %c0_1 = arith.constant 0 : index
    %c0_2 = arith.constant 0 : index
    %c0_3 = arith.constant 0 : index
    %0 = vector.load %arg2[%c0, %c0_0, %c0_1, %c0_2, %c0_3] : memref<1x8x8x8x64xbf16, #tpu.memory_space<vmem>>, vector<1x8x8x8x64xbf16>
    %1 = vector.shape_cast %0 : vector<1x8x8x8x64xbf16> to vector<8x8x8x64xbf16>
    %2 = arith.extf %1 : vector<8x8x8x64xbf16> to vector<8x8x8x64xf32>
    %c0_4 = arith.constant 0 : index
    %c0_5 = arith.constant 0 : index
    %3 = vector.load %arg3[%c0_4, %c0_5] : memref<8x64xf32, #tpu.memory_space<vmem>>, vector<8x64xf32>
    %4 = vector.shape_cast %3 : vector<8x64xf32> to vector<1x1x8x64xf32>
    %5 = vector.broadcast %4 : vector<1x1x8x64xf32> to vector<8x8x8x64xf32>
    %6 = arith.mulf %2, %5 : vector<8x8x8x64xf32>
    %c0_6 = arith.constant 0 : index
    %c0_7 = arith.constant 0 : index
    %7 = vector.load %arg4[%c0_6, %c0_7] : memref<8x64xf32, #tpu.memory_space<vmem>>, vector<8x64xf32>
    %8 = vector.shape_cast %7 : vector<8x64xf32> to vector<1x1x8x64xf32>
    %9 = vector.broadcast %8 : vector<1x1x8x64xf32> to vector<8x8x8x64xf32>
    %10 = arith.addf %6, %9 : vector<8x8x8x64xf32>
    %cst = arith.constant 0.000000e+00 : f32
    %11 = vector.broadcast %cst : f32 to vector<8x8x8x64xf32>
    %12 = arith.maximumf %10, %11 : vector<8x8x8x64xf32>
    %cst_8 = arith.constant 0.000000e+00 : bf16
    %13 = vector.broadcast %cst_8 : bf16 to vector<1x80x64xbf16>
    %c0_9 = arith.constant 0 : index
    %c0_10 = arith.constant 0 : index
    %c0_11 = arith.constant 0 : index
    %14 = vector.load %arg7[%c0_9, %c0_10, %c0_11] : memref<10x80x64xbf16, #tpu.memory_space<vmem>>, vector<1x80x64xbf16>
    tpu.vector_store %arg7[%c0_9, %c0_10, %c0_11], %13 {strides = array<i32>} : memref<10x80x64xbf16, #tpu.memory_space<vmem>>, vector<1x80x64xbf16>,
    %cst_12 = arith.constant 0.000000e+00 : bf16
    %15 = vector.broadcast %cst_12 : bf16 to vector<1x80x64xbf16>
    %c9 = arith.constant 9 : index
    %c0_13 = arith.constant 0 : index
    %c0_14 = arith.constant 0 : index
    %16 = vector.load %arg7[%c9, %c0_13, %c0_14] : memref<10x80x64xbf16, #tpu.memory_space<vmem>>, vector<1x80x64xbf16>
    tpu.vector_store %arg7[%c9, %c0_13, %c0_14], %15 {strides = array<i32>} : memref<10x80x64xbf16, #tpu.memory_space<vmem>>, vector<1x80x64xbf16>,
    %cst_15 = arith.constant 0.000000e+00 : bf16
    %17 = vector.broadcast %cst_15 : bf16 to vector<10x8x64xbf16>
    %c0_16 = arith.constant 0 : index
    %c0_17 = arith.constant 0 : index
    %c0_18 = arith.constant 0 : index
    %18 = vector.load %arg7[%c0_16, %c0_17, %c0_18] : memref<10x80x64xbf16, #tpu.memory_space<vmem>>, vector<10x8x64xbf16>
    tpu.vector_store %arg7[%c0_16, %c0_17, %c0_18], %17 {strides = array<i32>} : memref<10x80x64xbf16, #tpu.memory_space<vmem>>, vector<10x8x64xbf16>,
    %cst_19 = arith.constant 0.000000e+00 : bf16
    %19 = vector.broadcast %cst_19 : bf16 to vector<10x8x64xbf16>
    %c0_20 = arith.constant 0 : index
    %c72 = arith.constant 72 : index
    %c0_21 = arith.constant 0 : index
    %20 = vector.load %arg7[%c0_20, %c72, %c0_21] : memref<10x80x64xbf16, #tpu.memory_space<vmem>>, vector<10x8x64xbf16>
    tpu.vector_store %arg7[%c0_20, %c72, %c0_21], %19 {strides = array<i32>} : memref<10x80x64xbf16, #tpu.memory_space<vmem>>, vector<10x8x64xbf16>,
    %21 = vector.shape_cast %12 : vector<8x8x8x64xf32> to vector<8x64x64xf32>
    %22 = arith.truncf %21 : vector<8x64x64xf32> to vector<8x64x64xbf16>
    %c1 = arith.constant 1 : index
    %c8 = arith.constant 8 : index
    %c0_22 = arith.constant 0 : index
    %23 = vector.load %arg7[%c1, %c8, %c0_22] : memref<10x80x64xbf16, #tpu.memory_space<vmem>>, vector<8x64x64xbf16>
    tpu.vector_store %arg7[%c1, %c8, %c0_22], %22 {strides = array<i32>} : memref<10x80x64xbf16, #tpu.memory_space<vmem>>, vector<8x64x64xbf16>,
    %c0_23 = arith.constant 0 : index
    %c0_24 = arith.constant 0 : index
    %c0_25 = arith.constant 0 : index
    %24 = vector.load %arg7[%c0_23, %c0_24, %c0_25] : memref<10x80x64xbf16, #tpu.memory_space<vmem>>, vector<8x64x64xbf16>
    %25 = vector.shape_cast %24 : vector<8x64x64xbf16> to vector<512x64xbf16>
    %c0_26 = arith.constant 0 : index
    %c0_27 = arith.constant 0 : index
    %26 = vector.load %arg8[%c0_26, %c0_27] : memref<512x576xbf16, #tpu.memory_space<vmem>>, vector<512x64xbf16>
    tpu.vector_store %arg8[%c0_26, %c0_27], %25 {strides = array<i32>} : memref<512x576xbf16, #tpu.memory_space<vmem>>, vector<512x64xbf16>,
    %c0_28 = arith.constant 0 : index
    %c8_29 = arith.constant 8 : index
    %c0_30 = arith.constant 0 : index
    %27 = vector.load %arg7[%c0_28, %c8_29, %c0_30] : memref<10x80x64xbf16, #tpu.memory_space<vmem>>, vector<8x64x64xbf16>
    %28 = vector.shape_cast %27 : vector<8x64x64xbf16> to vector<512x64xbf16>
    %c0_31 = arith.constant 0 : index
    %c64 = arith.constant 64 : index
    %29 = vector.load %arg8[%c0_31, %c64] : memref<512x576xbf16, #tpu.memory_space<vmem>>, vector<512x64xbf16>
    tpu.vector_store %arg8[%c0_31, %c64], %28 {strides = array<i32>} : memref<512x576xbf16, #tpu.memory_space<vmem>>, vector<512x64xbf16>,
    %c0_32 = arith.constant 0 : index
    %c16 = arith.constant 16 : index
    %c0_33 = arith.constant 0 : index
    %30 = vector.load %arg7[%c0_32, %c16, %c0_33] : memref<10x80x64xbf16, #tpu.memory_space<vmem>>, vector<8x64x64xbf16>
    %31 = vector.shape_cast %30 : vector<8x64x64xbf16> to vector<512x64xbf16>
    %c0_34 = arith.constant 0 : index
    %c128 = arith.constant 128 : index
    %32 = vector.load %arg8[%c0_34, %c128] : memref<512x576xbf16, #tpu.memory_space<vmem>>, vector<512x64xbf16>
    tpu.vector_store %arg8[%c0_34, %c128], %31 {strides = array<i32>} : memref<512x576xbf16, #tpu.memory_space<vmem>>, vector<512x64xbf16>,
    %c1_35 = arith.constant 1 : index
    %c0_36 = arith.constant 0 : index
    %c0_37 = arith.constant 0 : index
    %33 = vector.load %arg7[%c1_35, %c0_36, %c0_37] : memref<10x80x64xbf16, #tpu.memory_space<vmem>>, vector<8x64x64xbf16>
    %34 = vector.shape_cast %33 : vector<8x64x64xbf16> to vector<512x64xbf16>
    %c0_38 = arith.constant 0 : index
    %c192 = arith.constant 192 : index
    %35 = vector.load %arg8[%c0_38, %c192] : memref<512x576xbf16, #tpu.memory_space<vmem>>, vector<512x64xbf16>
    tpu.vector_store %arg8[%c0_38, %c192], %34 {strides = array<i32>} : memref<512x576xbf16, #tpu.memory_space<vmem>>, vector<512x64xbf16>,
    %c1_39 = arith.constant 1 : index
    %c8_40 = arith.constant 8 : index
    %c0_41 = arith.constant 0 : index
    %36 = vector.load %arg7[%c1_39, %c8_40, %c0_41] : memref<10x80x64xbf16, #tpu.memory_space<vmem>>, vector<8x64x64xbf16>
    %37 = vector.shape_cast %36 : vector<8x64x64xbf16> to vector<512x64xbf16>
    %c0_42 = arith.constant 0 : index
    %c256 = arith.constant 256 : index
    %38 = vector.load %arg8[%c0_42, %c256] : memref<512x576xbf16, #tpu.memory_space<vmem>>, vector<512x64xbf16>
    tpu.vector_store %arg8[%c0_42, %c256], %37 {strides = array<i32>} : memref<512x576xbf16, #tpu.memory_space<vmem>>, vector<512x64xbf16>,
    %c1_43 = arith.constant 1 : index
    %c16_44 = arith.constant 16 : index
    %c0_45 = arith.constant 0 : index
    %39 = vector.load %arg7[%c1_43, %c16_44, %c0_45] : memref<10x80x64xbf16, #tpu.memory_space<vmem>>, vector<8x64x64xbf16>
    %40 = vector.shape_cast %39 : vector<8x64x64xbf16> to vector<512x64xbf16>
    %c0_46 = arith.constant 0 : index
    %c320 = arith.constant 320 : index
    %41 = vector.load %arg8[%c0_46, %c320] : memref<512x576xbf16, #tpu.memory_space<vmem>>, vector<512x64xbf16>
    tpu.vector_store %arg8[%c0_46, %c320], %40 {strides = array<i32>} : memref<512x576xbf16, #tpu.memory_space<vmem>>, vector<512x64xbf16>,
    %c2 = arith.constant 2 : index
    %c0_47 = arith.constant 0 : index
    %c0_48 = arith.constant 0 : index
    %42 = vector.load %arg7[%c2, %c0_47, %c0_48] : memref<10x80x64xbf16, #tpu.memory_space<vmem>>, vector<8x64x64xbf16>
    %43 = vector.shape_cast %42 : vector<8x64x64xbf16> to vector<512x64xbf16>
    %c0_49 = arith.constant 0 : index
    %c384 = arith.constant 384 : index
    %44 = vector.load %arg8[%c0_49, %c384] : memref<512x576xbf16, #tpu.memory_space<vmem>>, vector<512x64xbf16>
    tpu.vector_store %arg8[%c0_49, %c384], %43 {strides = array<i32>} : memref<512x576xbf16, #tpu.memory_space<vmem>>, vector<512x64xbf16>,
    %c2_50 = arith.constant 2 : index
    %c8_51 = arith.constant 8 : index
    %c0_52 = arith.constant 0 : index
    %45 = vector.load %arg7[%c2_50, %c8_51, %c0_52] : memref<10x80x64xbf16, #tpu.memory_space<vmem>>, vector<8x64x64xbf16>
    %46 = vector.shape_cast %45 : vector<8x64x64xbf16> to vector<512x64xbf16>
    %c0_53 = arith.constant 0 : index
    %c448 = arith.constant 448 : index
    %47 = vector.load %arg8[%c0_53, %c448] : memref<512x576xbf16, #tpu.memory_space<vmem>>, vector<512x64xbf16>
    tpu.vector_store %arg8[%c0_53, %c448], %46 {strides = array<i32>} : memref<512x576xbf16, #tpu.memory_space<vmem>>, vector<512x64xbf16>,
    %c2_54 = arith.constant 2 : index
    %c16_55 = arith.constant 16 : index
    %c0_56 = arith.constant 0 : index
    %48 = vector.load %arg7[%c2_54, %c16_55, %c0_56] : memref<10x80x64xbf16, #tpu.memory_space<vmem>>, vector<8x64x64xbf16>
    %49 = vector.shape_cast %48 : vector<8x64x64xbf16> to vector<512x64xbf16>
    %c0_57 = arith.constant 0 : index
    %c512 = arith.constant 512 : index
    %50 = vector.load %arg8[%c0_57, %c512] : memref<512x576xbf16, #tpu.memory_space<vmem>>, vector<512x64xbf16>
    tpu.vector_store %arg8[%c0_57, %c512], %49 {strides = array<i32>} : memref<512x576xbf16, #tpu.memory_space<vmem>>, vector<512x64xbf16>,
    %c0_58 = arith.constant 0 : index
    %c0_59 = arith.constant 0 : index
    %51 = vector.load %arg8[%c0_58, %c0_59] : memref<512x576xbf16, #tpu.memory_space<vmem>>, vector<512x576xbf16>
    %c0_60 = arith.constant 0 : index
    %c0_61 = arith.constant 0 : index
    %52 = vector.load %arg5[%c0_60, %c0_61] : memref<576x64xbf16, #tpu.memory_space<vmem>>, vector<576x64xbf16>
    %cst_62 = arith.constant dense<0.000000e+00> : vector<512x64xf32>
    %53 = tpu.matmul %51, %52, %cst_62 {dimension_numbers = #tpu.dot_dimension_numbers<[1], [0], [0], [1], [0, 0, 1, 1], [], []>} : vector<512x576xbf16>, vector<576x64xbf16>, vector<512x64xf32> -> vector<512x64xf32>
    %c0_63 = arith.constant 0 : index
    %c0_64 = arith.constant 0 : index
    %c0_65 = arith.constant 0 : index
    %c0_66 = arith.constant 0 : index
    %c0_67 = arith.constant 0 : index
    %54 = vector.load %arg1[%c0_63, %c0_64, %c0_65, %c0_66, %c0_67] : memref<1x8x8x8x64xf32, #tpu.memory_space<vmem>>, vector<1x8x8x8x64xf32>
    %55 = vector.shape_cast %54 : vector<1x8x8x8x64xf32> to vector<8x8x8x64xf32>
    %56 = vector.shape_cast %53 : vector<512x64xf32> to vector<8x8x8x64xf32>
    %57 = arith.addf %55, %56 : vector<8x8x8x64xf32>
    %c0_68 = arith.constant 0 : index
    %c0_69 = arith.constant 0 : index
    %c0_70 = arith.constant 0 : index
    %c0_71 = arith.constant 0 : index
    %c0_72 = arith.constant 0 : index
    %58 = vector.load %arg6[%c0_68, %c0_69, %c0_70, %c0_71, %c0_72] : memref<1x8x8x8x64xf32, #tpu.memory_space<vmem>>, vector<1x8x8x8x64xf32>
    %59 = vector.shape_cast %58 : vector<1x8x8x8x64xf32> to vector<8x8x8x64xf32>
    %60 = vector.shape_cast %57 : vector<8x8x8x64xf32> to vector<1x8x8x8x64xf32>
    tpu.vector_store %arg6[%c0_68, %c0_69, %c0_70, %c0_71, %c0_72], %60 {strides = array<i32>} : memref<1x8x8x8x64xf32, #tpu.memory_space<vmem>>, vector<1x8x8x8x64xf32>,
    return
  }
  func.func @transform_0(%arg0: i32) -> (i32, i32, i32, i32, i32) {
    %c0_i32 = arith.constant 0 : i32
    %c0_i32_0 = arith.constant 0 : i32
    %c0_i32_1 = arith.constant 0 : i32
    %c0_i32_2 = arith.constant 0 : i32
    %c0_i32_3 = arith.constant 0 : i32
    return %arg0, %c0_i32, %c0_i32_0, %c0_i32_1, %c0_i32_2 : i32, i32, i32, i32, i32
  }
  func.func @transform_1(%arg0: i32) -> (i32, i32, i32, i32, i32) {
    %c0_i32 = arith.constant 0 : i32
    %c0_i32_0 = arith.constant 0 : i32
    %c0_i32_1 = arith.constant 0 : i32
    %c0_i32_2 = arith.constant 0 : i32
    %c0_i32_3 = arith.constant 0 : i32
    return %arg0, %c0_i32, %c0_i32_0, %c0_i32_1, %c0_i32_2 : i32, i32, i32, i32, i32
  }
  func.func @transform_2(%arg0: i32) -> (i32, i32) {
    %c0_i32 = arith.constant 0 : i32
    %c0_i32_0 = arith.constant 0 : i32
    %c0_i32_1 = arith.constant 0 : i32
    return %c0_i32, %c0_i32_0 : i32, i32
  }
  func.func @transform_3(%arg0: i32) -> (i32, i32) {
    %c0_i32 = arith.constant 0 : i32
    %c0_i32_0 = arith.constant 0 : i32
    %c0_i32_1 = arith.constant 0 : i32
    return %c0_i32, %c0_i32_0 : i32, i32
  }
  func.func @transform_4(%arg0: i32) -> (i32, i32) {
    %c0_i32 = arith.constant 0 : i32
    %c0_i32_0 = arith.constant 0 : i32
    %c0_i32_1 = arith.constant 0 : i32
    return %c0_i32, %c0_i32_0 : i32, i32
  }
  func.func @transform_5(%arg0: i32) -> (i32, i32, i32, i32, i32) {
    %c0_i32 = arith.constant 0 : i32
    %c0_i32_0 = arith.constant 0 : i32
    %c0_i32_1 = arith.constant 0 : i32
    %c0_i32_2 = arith.constant 0 : i32
    %c0_i32_3 = arith.constant 0 : i32
    return %arg0, %c0_i32, %c0_i32_0, %c0_i32_1, %c0_i32_2 : i32, i32, i32, i32, i32
  }
}

</mosaic_0001>

<llo_original>
// kernel: hr2o_nl_pallas.3
$region0: #{hr2o_nl_pallas.3}
  #allocation0 [shape = 'u32[]', space=smem, size = 0x4, offset = 0x4, fixed_abs, tag = 'smem constant byte address 0x4 - core index']
  #allocation1 [shape = 'u32[144,128]{1,0:T(1,128)}', space=vmem, size = 0x12000, scoped, tag = 'internal scratch']
  #allocation2 [shape = 'bf16[10,80,64]{2,1,0:T(16,128)(2,1)}', space=vmem, size = 0x32000, scoped, tag = 'scratch operand']
  #allocation3 [shape = 'bf16[512,576]{1,0:T(16,128)(2,1)}', space=vmem, size = 0xa0000, scoped, tag = 'scratch operand']
  %s0 = inlined_call_operand.vmem [shape: f32[2,8,8,8,64], index: 0, kind: input, shape index: {}, may-alias: {0,5}]
  %s1 = inlined_call_operand.vmem [shape: bf16[2,8,8,8,64], index: 1, kind: input, shape index: {}]
  %s2 = inlined_call_operand.vmem [shape: f32[8,64], index: 2, kind: input, shape index: {}]
  %s3 = inlined_call_operand.vmem [shape: f32[8,64], index: 3, kind: input, shape index: {}]
  %s4 = inlined_call_operand.vmem [shape: bf16[576,64], index: 4, kind: input, shape index: {}]
  %s5 = inlined_call_operand.vmem [shape: f32[2,8,8,8,64], index: 5, kind: output, shape index: {}, may-alias: {0,5}]
  %s6 = sld [smem:[#allocation0]]
  $region53: #{hr2o_nl_pallas.3} parent=0
    _
  %s8 = ssub.s32 1, %s6
  %s9 = scalar_select 0, %s8, %s6
  loop: start=0, step=1, limit=4
  $region2: #{hr2o_nl_pallas.3} parent=0 // loop_pre_header
    _
  $region3: #{hr2o_nl_pallas.3} parent=0 // loop_header
    %s11 = sphi 0, %s15
    %p12 = scmp.ge.s32.totalorder %s11, 4
    %s21 = sphi 0, %s23
    %s24 = sphi 0, %s21
    %s25 = sphi 0, %s24
    %s41 = sphi 0, %s25
    %s47 = sphi 0, %s49
    %s50 = sphi 0, %s47
    %s51 = sphi 0, %s50
    %s67 = sphi 0, %s51
    %s71 = sphi 0, %s71
    %s73 = sphi 0, %s71
    %s74 = sphi 0, %s73
    %s88 = sphi 0, %s74
    %s92 = sphi 0, %s92
    %s94 = sphi 0, %s92
    %s95 = sphi 0, %s94
    %s109 = sphi 0, %s95
    %s113 = sphi 0, %s113
    %s115 = sphi 0, %s113
    %s116 = sphi 0, %s115
    %s130 = sphi 0, %s116
    %s136 = sphi 0, %s138
    %s139 = sphi 0, %s136
    %s140 = sphi 0, %s139
    %s156 = sphi 0, %s140
  $region4: #{hr2o_nl_pallas.3} parent=0 // loop_header_branch
    %14 = sbr.rel (%p12) target = $region8
  $region5: #{hr2o_nl_pallas.3} parent=0 // loop_body
    %s16 = ssub.s32 %s11, 1
    %s17 = ssub.s32 %s11, 2
    %s18 = sadd.s32 %s11, 1
    %s19 = ssub.s32 %s11, %s18
    %p20 = scmp.eq.s32.totalorder %s19, 0
    %s22 = sadd.s32 %s21, 1
    %s23 = scalar_select %p20, %s21, %s22
    %p26 = pneg %p20
    %p27 = scmp.eq.s32.totalorder %s11, 1
    %p28 = por %p26, %p27
    %p29 = scmp.ne.s32.totalorder %s21, %s24
    %p30 = scmp.eq.s32.totalorder %s11, 0
    %p31 = por %p29, %p30
    %p32 = scmp.ne.s32.totalorder %s21, %s24
    %p33 = scmp.eq.s32.totalorder %s16, 1
    %p34 = por %p32, %p33
    %p35 = scmp.ne.s32.totalorder %s24, %s25
    %p36 = scmp.eq.s32.totalorder %s16, 0
    %p37 = por %p35, %p36
    %p38 = scmp.ne.s32.totalorder %s24, %s25
    %p39 = scmp.eq.s32.totalorder %s17, 1
    %p40 = por %p38, %p39
    %p42 = scmp.ne.s32.totalorder %s25, %s41
    %p43 = scmp.eq.s32.totalorder %s17, 0
    %p44 = por %p42, %p43
    %s45 = ssub.s32 %s11, %s18
    %p46 = scmp.eq.s32.totalorder %s45, 0
    %s48 = sadd.s32 %s47, 1
    %s49 = scalar_select %p46, %s47, %s48
    %p52 = pneg %p46
    %p53 = scmp.eq.s32.totalorder %s11, 1
    %p54 = por %p52, %p53
    %p55 = scmp.ne.s32.totalorder %s47, %s50
    %p56 = scmp.eq.s32.totalorder %s11, 0
    %p57 = por %p55, %p56
    %p58 = scmp.ne.s32.totalorder %s47, %s50
    %p59 = scmp.eq.s32.totalorder %s16, 1
    %p60 = por %p58, %p59
    %p61 = scmp.ne.s32.totalorder %s50, %s51
    %p62 = scmp.eq.s32.totalorder %s16, 0
    %p63 = por %p61, %p62
    %p64 = scmp.ne.s32.totalorder %s50, %s51
    %p65 = scmp.eq.s32.totalorder %s17, 1
    %p66 = por %p64, %p65
    %p68 = scmp.ne.s32.totalorder %s51, %s67
    %p69 = scmp.eq.s32.totalorder %s17, 0
    %p70 = por %p68, %p69
    %s72 = sadd.s32 %s71, 1
    %p75 = scmp.eq.s32.totalorder %s11, 1
    %p76 = scmp.ne.s32.totalorder %s71, %s73
    %p77 = scmp.eq.s32.totalorder %s11, 0
    %p78 = por %p76, %p77
    %p79 = scmp.ne.s32.totalorder %s71, %s73
    %p80 = scmp.eq.s32.totalorder %s16, 1
    %p81 = por %p79, %p80
    %p82 = scmp.ne.s32.totalorder %s73, %s74
    %p83 = scmp.eq.s32.totalorder %s16, 0
    %p84 = por %p82, %p83
    %p85 = scmp.ne.s32.totalorder %s73, %s74
    %p86 = scmp.eq.s32.totalorder %s17, 1
    %p87 = por %p85, %p86
    %p89 = scmp.ne.s32.totalorder %s74, %s88
    %p90 = scmp.eq.s32.totalorder %s17, 0
    %p91 = por %p89, %p90
    %s93 = sadd.s32 %s92, 1
    %p96 = scmp.eq.s32.totalorder %s11, 1
    %p97 = scmp.ne.s32.totalorder %s92, %s94
    %p98 = scmp.eq.s32.totalorder %s11, 0
    %p99 = por %p97, %p98
    %p100 = scmp.ne.s32.totalorder %s92, %s94
    %p101 = scmp.eq.s32.totalorder %s16, 1
    %p102 = por %p100, %p101
    %p103 = scmp.ne.s32.totalorder %s94, %s95
    %p104 = scmp.eq.s32.totalorder %s16, 0
    %p105 = por %p103, %p104
    %p106 = scmp.ne.s32.totalorder %s94, %s95
    %p107 = scmp.eq.s32.totalorder %s17, 1
    %p108 = por %p106, %p107
    %p110 = scmp.ne.s32.totalorder %s95, %s109
    %p111 = scmp.eq.s32.totalorder %s17, 0
    %p112 = por %p110, %p111
    %s114 = sadd.s32 %s113, 1
    %p117 = scmp.eq.s32.totalorder %s11, 1
    %p118 = scmp.ne.s32.totalorder %s113, %s115
    %p119 = scmp.eq.s32.totalorder %s11, 0
    %p120 = por %p118, %p119
    %p121 = scmp.ne.s32.totalorder %s113, %s115
    %p122 = scmp.eq.s32.totalorder %s16, 1
    %p123 = por %p121, %p122
    %p124 = scmp.ne.s32.totalorder %s115, %s116
    %p125 = scmp.eq.s32.totalorder %s16, 0
    %p126 = por %p124, %p125
    %p127 = scmp.ne.s32.totalorder %s115, %s116
    %p128 = scmp.eq.s32.totalorder %s17, 1
    %p129 = por %p127, %p128
    %p131 = scmp.ne.s32.totalorder %s116, %s130
    %p132 = scmp.eq.s32.totalorder %s17, 0
    %p133 = por %p131, %p132
    %s134 = ssub.s32 %s11, %s18
    %p135 = scmp.eq.s32.totalorder %s134, 0
    %s137 = sadd.s32 %s136, 1
    %s138 = scalar_select %p135, %s136, %s137
    %p141 = pneg %p135
    %p142 = scmp.eq.s32.totalorder %s11, 1
    %p143 = por %p141, %p142
    %p144 = scmp.ne.s32.totalorder %s136, %s139
    %p145 = scmp.eq.s32.totalorder %s11, 0
    %p146 = por %p144, %p145
    %p147 = scmp.ne.s32.totalorder %s136, %s139
    %p148 = scmp.eq.s32.totalorder %s16, 1
    %p149 = por %p147, %p148
    %p150 = scmp.ne.s32.totalorder %s139, %s140
    %p151 = scmp.eq.s32.totalorder %s16, 0
    %p152 = por %p150, %p151
    %p153 = scmp.ne.s32.totalorder %s139, %s140
    %p154 = scmp.eq.s32.totalorder %s17, 1
    %p155 = por %p153, %p154
    %p157 = scmp.ne.s32.totalorder %s140, %s156
    %p158 = scmp.eq.s32.totalorder %s17, 0
    %p159 = por %p157, %p158
    %p160 = scmp.le.s32.totalorder 1, %s11
    %p161 = scmp.lt.s32.totalorder %s11, 3
    %p162 = pnand %p160, %p161
    %p163 = pneg %p162
    // Predicated region
    $region9: #{hr2o_nl_pallas.3} parent=5 // pred_check
      _
    $region10: #{hr2o_nl_pallas.3} parent=5 // pred_check_branch
      %165 = sbr.rel (%p162) target = $region12
    $region11: #{hr2o_nl_pallas.3} parent=5 // pred_region
      %s166 = ssub.s32 %s11, 1
      // Predicated region
      $region13: #{hr2o_nl_pallas.3} parent=11 // pred_check
        %p167 = pneg %p84
      $region14: #{hr2o_nl_pallas.3} parent=11 // pred_check_branch
        %169 = sbr.rel (%p167) target = $region16
      $region15: #{hr2o_nl_pallas.3} parent=11 // pred_region
        _
      $region16: #{hr2o_nl_pallas.3} parent=11 // pred_fallthru
        _
      // Predicated region
      $region17: #{hr2o_nl_pallas.3} parent=11 // pred_check
        %p170 = pneg %p105
      $region18: #{hr2o_nl_pallas.3} parent=11 // pred_check_branch
        %172 = sbr.rel (%p170) target = $region20
      $region19: #{hr2o_nl_pallas.3} parent=11 // pred_region
        _
      $region20: #{hr2o_nl_pallas.3} parent=11 // pred_fallthru
        _
      // Predicated region
      $region21: #{hr2o_nl_pallas.3} parent=11 // pred_check
        %p173 = pneg %p126
      $region22: #{hr2o_nl_pallas.3} parent=11 // pred_check_branch
        %175 = sbr.rel (%p173) target = $region24
      $region23: #{hr2o_nl_pallas.3} parent=11 // pred_region
        _
      $region24: #{hr2o_nl_pallas.3} parent=11 // pred_fallthru
        _
    $region12: #{hr2o_nl_pallas.3} parent=5 // pred_fallthru
      _
    %p176 = scmp.lt.s32.totalorder %s11, 2
    // Predicated region
    $region25: #{hr2o_nl_pallas.3} parent=5 // pred_check
      %p177 = pneg %p176
    $region26: #{hr2o_nl_pallas.3} parent=5 // pred_check_branch
      %179 = sbr.rel (%p177) target = $region28
    $region27: #{hr2o_nl_pallas.3} parent=5 // pred_region
      // Predicated region
      $region29: #{hr2o_nl_pallas.3} parent=27 // pred_check
        %p180 = pneg %p31
      $region30: #{hr2o_nl_pallas.3} parent=27 // pred_check_branch
        %182 = sbr.rel (%p180) target = $region32
      $region31: #{hr2o_nl_pallas.3} parent=27 // pred_region
        %p183 = scmp.lt.s32.totalorder %s11, 1
        %s184 = scalar_select %p183, %s11, 1
        %s185 = smul.addr %s184, 64
        %s186 = smul.addr %s185, 8
        %s187 = scalar_lea.vmem %s0, %s186
      $region32: #{hr2o_nl_pallas.3} parent=27 // pred_fallthru
        _
      // Predicated region
      $region33: #{hr2o_nl_pallas.3} parent=27 // pred_check
        %p188 = pneg %p57
      $region34: #{hr2o_nl_pallas.3} parent=27 // pred_check_branch
        %190 = sbr.rel (%p188) target = $region36
      $region35: #{hr2o_nl_pallas.3} parent=27 // pred_region
        %p191 = scmp.lt.s32.totalorder %s11, 1
        %s192 = scalar_select %p191, %s11, 1
        %s193 = smul.addr %s192, 64
        %s194 = smul.addr %s193, 4
        %s195 = scalar_lea.vmem %s1, %s194
      $region36: #{hr2o_nl_pallas.3} parent=27 // pred_fallthru
        _
    $region28: #{hr2o_nl_pallas.3} parent=5 // pred_fallthru
      _
    %p196 = scmp.le.s32.totalorder 1, %s11
    %p197 = scmp.lt.s32.totalorder %s11, 3
    %p198 = pnand %p196, %p197
    %p199 = pneg %p198
    // Predicated region
    $region37: #{hr2o_nl_pallas.3} parent=5 // pred_check
      _
    $region38: #{hr2o_nl_pallas.3} parent=5 // pred_check_branch
      %201 = sbr.rel (%p198) target = $region40
    $region39: #{hr2o_nl_pallas.3} parent=5 // pred_region
      %s202 = ssub.s32 %s11, 1
      %p203 = scmp.lt.s32.totalorder %s16, 1
      %s204 = scalar_select %p203, %s16, 1
      %s205 = smul.addr %s204, 64
      %s206 = smul.addr %s205, 8
      %s207 = scalar_lea.vmem %s0, %s206
      %p208 = pneg %p37
      %p209 = pneg %p34
      %p210 = scmp.lt.s32.totalorder %s16, 1
      %s211 = scalar_select %p210, %s16, 1
      %s212 = smul.addr %s211, 64
      %s213 = smul.addr %s212, 4
      %s214 = scalar_lea.vmem %s1, %s213
      %p215 = pneg %p63
      %p216 = pneg %p60
      %p217 = pneg %p84
      %p218 = pneg %p81
      %p219 = pneg %p105
      %p220 = pneg %p102
      %p221 = pneg %p126
      %p222 = pneg %p123
      %p223 = pneg %p152
      %p224 = pneg %p149
      %p225 = scmp.lt.s32.totalorder %s16, 1
      %s226 = scalar_select %p225, %s16, 1
      %s227 = smul.addr %s226, 64
      %s228 = smul.addr %s227, 8
      %s229 = scalar_lea.vmem %s5, %s228
      %p230 = scmp.lt.s32.totalorder %s16, 1
      %s231 = scalar_select %p230, %s16, 1
      %s232 = smul.addr %s231, 64
      %s233 = smul.addr %s232, 8
      %s234 = scalar_lea.vmem %s0, %s233
      %p235 = scmp.lt.s32.totalorder %s16, 1
      %s236 = scalar_select %p235, %s16, 1
      %s237 = smul.addr %s236, 64
      %s238 = smul.addr %s237, 4
      %s239 = scalar_lea.vmem %s1, %s238
      %p240 = scmp.lt.s32.totalorder %s16, 1
      %s241 = scalar_select %p240, %s16, 1
      %s242 = smul.addr %s241, 64
      %s243 = smul.addr %s242, 8
      %s244 = scalar_lea.vmem %s5, %s243
      %v246 = vld [vmem:[%s239] sm:$0xf]
      %v247 = vld [vmem:[%s239 + $0x4] sm:$0xf]
      %v248 = vld [vmem:[%s239 + $0x8] sm:$0xf]
      %v249 = vld [vmem:[%s239 + $0xc] sm:$0xf]
      %v250 = vld [vmem:[%s239 + $0x10] sm:$0xf]
      %v251 = vld [vmem:[%s239 + $0x14] sm:$0xf]
      %v252 = vld [vmem:[%s239 + $0x18] sm:$0xf]
      %v253 = vld [vmem:[%s239 + $0x1c] sm:$0xf]
      %v254 = vld [vmem:[%s239 + $0x20] sm:$0xf]
      %v255 = vld [vmem:[%s239 + $0x24] sm:$0xf]
      %v256 = vld [vmem:[%s239 + $0x28] sm:$0xf]
      %v257 = vld [vmem:[%s239 + $0x2c] sm:$0xf]
      %v258 = vld [vmem:[%s239 + $0x30] sm:$0xf]
      %v259 = vld [vmem:[%s239 + $0x34] sm:$0xf]
      %v260 = vld [vmem:[%s239 + $0x38] sm:$0xf]
      %v261 = vld [vmem:[%s239 + $0x3c] sm:$0xf]
      %v262 = vld [vmem:[%s239 + $0x40] sm:$0xf]
      %v263 = vld [vmem:[%s239 + $0x44] sm:$0xf]
      %v264 = vld [vmem:[%s239 + $0x48] sm:$0xf]
      %v265 = vld [vmem:[%s239 + $0x4c] sm:$0xf]
      %v266 = vld [vmem:[%s239 + $0x50] sm:$0xf]
      %v267 = vld [vmem:[%s239 + $0x54] sm:$0xf]
      %v268 = vld [vmem:[%s239 + $0x58] sm:$0xf]
      %v269 = vld [vmem:[%s239 + $0x5c] sm:$0xf]
      %v270 = vld [vmem:[%s239 + $0x60] sm:$0xf]
      %v271 = vld [vmem:[%s239 + $0x64] sm:$0xf]
      %v272 = vld [vmem:[%s239 + $0x68] sm:$0xf]
      %v273 = vld [vmem:[%s239 + $0x6c] sm:$0xf]
      %v274 = vld [vmem:[%s239 + $0x70] sm:$0xf]
      %v275 = vld [vmem:[%s239 + $0x74] sm:$0xf]
      %v276 = vld [vmem:[%s239 + $0x78] sm:$0xf]
      %v277 = vld [vmem:[%s239 + $0x7c] sm:$0xf]
      %v278 = vld [vmem:[%s239 + $0x80] sm:$0xf]
      %v279 = vld [vmem:[%s239 + $0x84] sm:$0xf]
      %v280 = vld [vmem:[%s239 + $0x88] sm:$0xf]
      %v281 = vld [vmem:[%s239 + $0x8c] sm:$0xf]
      %v282 = vld [vmem:[%s239 + $0x90] sm:$0xf]
      %v283 = vld [vmem:[%s239 + $0x94] sm:$0xf]
      %v284 = vld [vmem:[%s239 + $0x98] sm:$0xf]
      %v285 = vld [vmem:[%s239 + $0x9c] sm:$0xf]
      %v286 = vld [vmem:[%s239 + $0xa0] sm:$0xf]
      %v287 = vld [vmem:[%s239 + $0xa4] sm:$0xf]
      %v288 = vld [vmem:[%s239 + $0xa8] sm:$0xf]
      %v289 = vld [vmem:[%s239 + $0xac] sm:$0xf]
      %v290 = vld [vmem:[%s239 + $0xb0] sm:$0xf]
      %v291 = vld [vmem:[%s239 + $0xb4] sm:$0xf]
      %v292 = vld [vmem:[%s239 + $0xb8] sm:$0xf]
      %v293 = vld [vmem:[%s239 + $0xbc] sm:$0xf]
      %v294 = vld [vmem:[%s239 + $0xc0] sm:$0xf]
      %v295 = vld [vmem:[%s239 + $0xc4] sm:$0xf]
      %v296 = vld [vmem:[%s239 + $0xc8] sm:$0xf]
      %v297 = vld [vmem:[%s239 + $0xcc] sm:$0xf]
      %v298 = vld [vmem:[%s239 + $0xd0] sm:$0xf]
      %v299 = vld [vmem:[%s239 + $0xd4] sm:$0xf]
      %v300 = vld [vmem:[%s239 + $0xd8] sm:$0xf]
      %v301 = vld [vmem:[%s239 + $0xdc] sm:$0xf]
      %v302 = vld [vmem:[%s239 + $0xe0] sm:$0xf]
      %v303 = vld [vmem:[%s239 + $0xe4] sm:$0xf]
      %v304 = vld [vmem:[%s239 + $0xe8] sm:$0xf]
      %v305 = vld [vmem:[%s239 + $0xec] sm:$0xf]
      %v306 = vld [vmem:[%s239 + $0xf0] sm:$0xf]
      %v307 = vld [vmem:[%s239 + $0xf4] sm:$0xf]
      %v308 = vld [vmem:[%s239 + $0xf8] sm:$0xf]
      %v309 = vld [vmem:[%s239 + $0xfc] sm:$0xf]
      %v310 = vunpack.c.l.bf16 %v246
      %v311 = vunpack.c.l.bf16 %v247
      %v312 = vunpack.c.l.bf16 %v248
      %v313 = vunpack.c.l.bf16 %v249
      %v314 = vunpack.c.l.bf16 %v250
      %v315 = vunpack.c.l.bf16 %v251
      %v316 = vunpack.c.l.bf16 %v252
      %v317 = vunpack.c.l.bf16 %v253
      %v318 = vunpack.c.l.bf16 %v254
      %v319 = vunpack.c.l.bf16 %v255
      %v320 = vunpack.c.l.bf16 %v256
      %v321 = vunpack.c.l.bf16 %v257
      %v322 = vunpack.c.l.bf16 %v258
      %v323 = vunpack.c.l.bf16 %v259
      %v324 = vunpack.c.l.bf16 %v260
      %v325 = vunpack.c.l.bf16 %v261
      %v326 = vunpack.c.l.bf16 %v262
      %v327 = vunpack.c.l.bf16 %v263
      %v328 = vunpack.c.l.bf16 %v264
      %v329 = vunpack.c.l.bf16 %v265
      %v330 = vunpack.c.l.bf16 %v266
      %v331 = vunpack.c.l.bf16 %v267
      %v332 = vunpack.c.l.bf16 %v268
      %v333 = vunpack.c.l.bf16 %v269
      %v334 = vunpack.c.l.bf16 %v270
      %v335 = vunpack.c.l.bf16 %v271
      %v336 = vunpack.c.l.bf16 %v272
      %v337 = vunpack.c.l.bf16 %v273
      %v338 = vunpack.c.l.bf16 %v274
      %v339 = vunpack.c.l.bf16 %v275
      %v340 = vunpack.c.l.bf16 %v276
      %v341 = vunpack.c.l.bf16 %v277
      %v342 = vunpack.c.l.bf16 %v278
      %v343 = vunpack.c.l.bf16 %v279
      %v344 = vunpack.c.l.bf16 %v280
      %v345 = vunpack.c.l.bf16 %v281
      %v346 = vunpack.c.l.bf16 %v282
      %v347 = vunpack.c.l.bf16 %v283
      %v348 = vunpack.c.l.bf16 %v284
      %v349 = vunpack.c.l.bf16 %v285
      %v350 = vunpack.c.l.bf16 %v286
      %v351 = vunpack.c.l.bf16 %v287
      %v352 = vunpack.c.l.bf16 %v288
      %v353 = vunpack.c.l.bf16 %v289
      %v354 = vunpack.c.l.bf16 %v290
      %v355 = vunpack.c.l.bf16 %v291
      %v356 = vunpack.c.l.bf16 %v292
      %v357 = vunpack.c.l.bf16 %v293
      %v358 = vunpack.c.l.bf16 %v294
      %v359 = vunpack.c.l.bf16 %v295
      %v360 = vunpack.c.l.bf16 %v296
      %v361 = vunpack.c.l.bf16 %v297
      %v362 = vunpack.c.l.bf16 %v298
      %v363 = vunpack.c.l.bf16 %v299
      %v364 = vunpack.c.l.bf16 %v300
      %v365 = vunpack.c.l.bf16 %v301
      %v366 = vunpack.c.l.bf16 %v302
      %v367 = vunpack.c.l.bf16 %v303
      %v368 = vunpack.c.l.bf16 %v304
      %v369 = vunpack.c.l.bf16 %v305
      %v370 = vunpack.c.l.bf16 %v306
      %v371 = vunpack.c.l.bf16 %v307
      %v372 = vunpack.c.l.bf16 %v308
      %v373 = vunpack.c.l.bf16 %v309
      %v374 = vld [vmem:[%s2] sm:$0xff]
      %v375 = vmul.f32 %v310, %v374
      %v376 = vmul.f32 %v311, %v374
      %v377 = vmul.f32 %v312, %v374
      %v378 = vmul.f32 %v313, %v374
      %v379 = vmul.f32 %v314, %v374
      %v380 = vmul.f32 %v315, %v374
      %v381 = vmul.f32 %v316, %v374
      %v382 = vmul.f32 %v317, %v374
      %v383 = vmul.f32 %v318, %v374
      %v384 = vmul.f32 %v319, %v374
      %v385 = vmul.f32 %v320, %v374
      %v386 = vmul.f32 %v321, %v374
      %v387 = vmul.f32 %v322, %v374
      %v388 = vmul.f32 %v323, %v374
      %v389 = vmul.f32 %v324, %v374
      %v390 = vmul.f32 %v325, %v374
      %v391 = vmul.f32 %v326, %v374
      %v392 = vmul.f32 %v327, %v374
      %v393 = vmul.f32 %v328, %v374
      %v394 = vmul.f32 %v329, %v374
      %v395 = vmul.f32 %v330, %v374
      %v396 = vmul.f32 %v331, %v374
      %v397 = vmul.f32 %v332, %v374
      %v398 = vmul.f32 %v333, %v374
      %v399 = vmul.f32 %v334, %v374
      %v400 = vmul.f32 %v335, %v374
      %v401 = vmul.f32 %v336, %v374
      %v402 = vmul.f32 %v337, %v374
      %v403 = vmul.f32 %v338, %v374
      %v404 = vmul.f32 %v339, %v374
      %v405 = vmul.f32 %v340, %v374
      %v406 = vmul.f32 %v341, %v374
      %v407 = vmul.f32 %v342, %v374
      %v408 = vmul.f32 %v343, %v374
      %v409 = vmul.f32 %v344, %v374
      %v410 = vmul.f32 %v345, %v374
      %v411 = vmul.f32 %v346, %v374
      %v412 = vmul.f32 %v347, %v374
      %v413 = vmul.f32 %v348, %v374
      %v414 = vmul.f32 %v349, %v374
      %v415 = vmul.f32 %v350, %v374
      %v416 = vmul.f32 %v351, %v374
      %v417 = vmul.f32 %v352, %v374
      %v418 = vmul.f32 %v353, %v374
      %v419 = vmul.f32 %v354, %v374
      %v420 = vmul.f32 %v355, %v374
      %v421 = vmul.f32 %v356, %v374
      %v422 = vmul.f32 %v357, %v374
      %v423 = vmul.f32 %v358, %v374
      %v424 = vmul.f32 %v359, %v374
      %v425 = vmul.f32 %v360, %v374
      %v426 = vmul.f32 %v361, %v374
      %v427 = vmul.f32 %v362, %v374
      %v428 = vmul.f32 %v363, %v374
      %v429 = vmul.f32 %v364, %v374
      %v430 = vmul.f32 %v365, %v374
      %v431 = vmul.f32 %v366, %v374
      %v432 = vmul.f32 %v367, %v374
      %v433 = vmul.f32 %v368, %v374
      %v434 = vmul.f32 %v369, %v374
      %v435 = vmul.f32 %v370, %v374
      %v436 = vmul.f32 %v371, %v374
      %v437 = vmul.f32 %v372, %v374
      %v438 = vmul.f32 %v373, %v374
      %v439 = vld [vmem:[%s3] sm:$0xff]
      %v440 = vadd.f32 %v375, %v439
      %v441 = vadd.f32 %v376, %v439
      %v442 = vadd.f32 %v377, %v439
      %v443 = vadd.f32 %v378, %v439
      %v444 = vadd.f32 %v379, %v439
      %v445 = vadd.f32 %v380, %v439
      %v446 = vadd.f32 %v381, %v439
      %v447 = vadd.f32 %v382, %v439
      %v448 = vadd.f32 %v383, %v439
      %v449 = vadd.f32 %v384, %v439
      %v450 = vadd.f32 %v385, %v439
      %v451 = vadd.f32 %v386, %v439
      %v452 = vadd.f32 %v387, %v439
      %v453 = vadd.f32 %v388, %v439
      %v454 = vadd.f32 %v389, %v439
      %v455 = vadd.f32 %v390, %v439
      %v456 = vadd.f32 %v391, %v439
      %v457 = vadd.f32 %v392, %v439
      %v458 = vadd.f32 %v393, %v439
      %v459 = vadd.f32 %v394, %v439
      %v460 = vadd.f32 %v395, %v439
      %v461 = vadd.f32 %v396, %v439
      %v462 = vadd.f32 %v397, %v439
      %v463 = vadd.f32 %v398, %v439
      %v464 = vadd.f32 %v399, %v439
      %v465 = vadd.f32 %v400, %v439
      %v466 = vadd.f32 %v401, %v439
      %v467 = vadd.f32 %v402, %v439
      %v468 = vadd.f32 %v403, %v439
      %v469 = vadd.f32 %v404, %v439
      %v470 = vadd.f32 %v405, %v439
      %v471 = vadd.f32 %v406, %v439
      %v472 = vadd.f32 %v407, %v439
      %v473 = vadd.f32 %v408, %v439
      %v474 = vadd.f32 %v409, %v439
      %v475 = vadd.f32 %v410, %v439
      %v476 = vadd.f32 %v411, %v439
      %v477 = vadd.f32 %v412, %v439
      %v478 = vadd.f32 %v413, %v439
      %v479 = vadd.f32 %v414, %v439
      %v480 = vadd.f32 %v415, %v439
      %v481 = vadd.f32 %v416, %v439
      %v482 = vadd.f32 %v417, %v439
      %v483 = vadd.f32 %v418, %v439
      %v484 = vadd.f32 %v419, %v439
      %v485 = vadd.f32 %v420, %v439
      %v486 = vadd.f32 %v421, %v439
      %v487 = vadd.f32 %v422, %v439
      %v488 = vadd.f32 %v423, %v439
      %v489 = vadd.f32 %v424, %v439
      %v490 = vadd.f32 %v425, %v439
      %v491 = vadd.f32 %v426, %v439
      %v492 = vadd.f32 %v427, %v439
      %v493 = vadd.f32 %v428, %v439
      %v494 = vadd.f32 %v429, %v439
      %v495 = vadd.f32 %v430, %v439
      %v496 = vadd.f32 %v431, %v439
      %v497 = vadd.f32 %v432, %v439
      %v498 = vadd.f32 %v433, %v439
      %v499 = vadd.f32 %v434, %v439
      %v500 = vadd.f32 %v435, %v439
      %v501 = vadd.f32 %v436, %v439
      %v502 = vadd.f32 %v437, %v439
      %v503 = vadd.f32 %v438, %v439
      %v504 = vmax.f32 %v440, 0.0
      %v505 = vmax.f32 %v441, 0.0
      %v506 = vmax.f32 %v442, 0.0
      %v507 = vmax.f32 %v443, 0.0
      %v508 = vmax.f32 %v444, 0.0
      %v509 = vmax.f32 %v445, 0.0
      %v510 = vmax.f32 %v446, 0.0
      %v511 = vmax.f32 %v447, 0.0
      %v512 = vmax.f32 %v448, 0.0
      %v513 = vmax.f32 %v449, 0.0
      %v514 = vmax.f32 %v450, 0.0
      %v515 = vmax.f32 %v451, 0.0
      %v516 = vmax.f32 %v452, 0.0
      %v517 = vmax.f32 %v453, 0.0
      %v518 = vmax.f32 %v454, 0.0
      %v519 = vmax.f32 %v455, 0.0
      %v520 = vmax.f32 %v456, 0.0
      %v521 = vmax.f32 %v457, 0.0
      %v522 = vmax.f32 %v458, 0.0
      %v523 = vmax.f32 %v459, 0.0
      %v524 = vmax.f32 %v460, 0.0
      %v525 = vmax.f32 %v461, 0.0
      %v526 = vmax.f32 %v462, 0.0
      %v527 = vmax.f32 %v463, 0.0
      %v528 = vmax.f32 %v464, 0.0
      %v529 = vmax.f32 %v465, 0.0
      %v530 = vmax.f32 %v466, 0.0
      %v531 = vmax.f32 %v467, 0.0
      %v532 = vmax.f32 %v468, 0.0
      %v533 = vmax.f32 %v469, 0.0
      %v534 = vmax.f32 %v470, 0.0
      %v535 = vmax.f32 %v471, 0.0
      %v536 = vmax.f32 %v472, 0.0
      %v537 = vmax.f32 %v473, 0.0
      %v538 = vmax.f32 %v474, 0.0
      %v539 = vmax.f32 %v475, 0.0
      %v540 = vmax.f32 %v476, 0.0
      %v541 = vmax.f32 %v477, 0.0
      %v542 = vmax.f32 %v478, 0.0
      %v543 = vmax.f32 %v479, 0.0
      %v544 = vmax.f32 %v480, 0.0
      %v545 = vmax.f32 %v481, 0.0
      %v546 = vmax.f32 %v482, 0.0
      %v547 = vmax.f32 %v483, 0.0
      %v548 = vmax.f32 %v484, 0.0
      %v549 = vmax.f32 %v485, 0.0
      %v550 = vmax.f32 %v486, 0.0
      %v551 = vmax.f32 %v487, 0.0
      %v552 = vmax.f32 %v488, 0.0
      %v553 = vmax.f32 %v489, 0.0
      %v554 = vmax.f32 %v490, 0.0
      %v555 = vmax.f32 %v491, 0.0
      %v556 = vmax.f32 %v492, 0.0
      %v557 = vmax.f32 %v493, 0.0
      %v558 = vmax.f32 %v494, 0.0
      %v559 = vmax.f32 %v495, 0.0
      %v560 = vmax.f32 %v496, 0.0
      %v561 = vmax.f32 %v497, 0.0
      %v562 = vmax.f32 %v498, 0.0
      %v563 = vmax.f32 %v499, 0.0
      %v564 = vmax.f32 %v500, 0.0
      %v565 = vmax.f32 %v501, 0.0
      %v566 = vmax.f32 %v502, 0.0
      %v567 = vmax.f32 %v503, 0.0
      %vm568 = vcmask 523264
      %569 = vst.msk [vmem:[#allocation2] sm:$0xff] %vm568, 0
      %570 = vst.msk [vmem:[#allocation2 + $0x8] sm:$0xff] %vm568, 0
      %571 = vst.msk [vmem:[#allocation2 + $0x10] sm:$0xff] %vm568, 0
      %572 = vst.msk [vmem:[#allocation2 + $0x18] sm:$0xff] %vm568, 0
      %573 = vst.msk [vmem:[#allocation2 + $0x20] sm:$0xff] %vm568, 0
      %s574 = scalar_lea.vmem [#allocation2], 360
      %575 = vst.msk [vmem:[%s574] sm:$0xff] %vm568, 0
      %576 = vst.msk [vmem:[%s574 + $0x8] sm:$0xff] %vm568, 0
      %577 = vst.msk [vmem:[%s574 + $0x10] sm:$0xff] %vm568, 0
      %578 = vst.msk [vmem:[%s574 + $0x18] sm:$0xff] %vm568, 0
      %579 = vst.msk [vmem:[%s574 + $0x20] sm:$0xff] %vm568, 0
      %vm580 = vcmask 519168
      %581 = vst.msk [vmem:[#allocation2] sm:$0xf] %vm580, 0
      %582 = vst.msk [vmem:[#allocation2 + $0x28] sm:$0xf] %vm580, 0
      %583 = vst.msk [vmem:[#allocation2 + $0x50] sm:$0xf] %vm580, 0
      %584 = vst.msk [vmem:[#allocation2 + $0x78] sm:$0xf] %vm580, 0
      %585 = vst.msk [vmem:[#allocation2 + $0xa0] sm:$0xf] %vm580, 0
      %586 = vst.msk [vmem:[#allocation2 + $0xc8] sm:$0xf] %vm580, 0
      %587 = vst.msk [vmem:[#allocation2 + $0xf0] sm:$0xf] %vm580, 0
      %588 = vst.msk [vmem:[#allocation2 + $0x118] sm:$0xf] %vm580, 0
      %589 = vst.msk [vmem:[#allocation2 + $0x140] sm:$0xf] %vm580, 0
      %590 = vst.msk [vmem:[#allocation2 + $0x168] sm:$0xf] %vm580, 0
      %vm591 = vcmask 523268
      %592 = vst.msk [vmem:[#allocation2 + $0x20] sm:$0xf0] %vm591, 0
      %593 = vst.msk [vmem:[#allocation2 + $0x48] sm:$0xf0] %vm591, 0
      %594 = vst.msk [vmem:[#allocation2 + $0x70] sm:$0xf0] %vm591, 0
      %595 = vst.msk [vmem:[#allocation2 + $0x98] sm:$0xf0] %vm591, 0
      %596 = vst.msk [vmem:[#allocation2 + $0xc0] sm:$0xf0] %vm591, 0
      %597 = vst.msk [vmem:[#allocation2 + $0xe8] sm:$0xf0] %vm591, 0
      %598 = vst.msk [vmem:[#allocation2 + $0x110] sm:$0xf0] %vm591, 0
      %599 = vst.msk [vmem:[#allocation2 + $0x138] sm:$0xf0] %vm591, 0
      %600 = vst.msk [vmem:[#allocation2 + $0x160] sm:$0xf0] %vm591, 0
      %601 = vst.msk [vmem:[#allocation2 + $0x188] sm:$0xf0] %vm591, 0
      %v602 = vpack.c.bf16 %v505, %v504
      %v603 = vpack.c.bf16 %v507, %v506
      %v604 = vpack.c.bf16 %v509, %v508
      %v605 = vpack.c.bf16 %v511, %v510
      %v606 = vpack.c.bf16 %v513, %v512
      %v607 = vpack.c.bf16 %v515, %v514
      %v608 = vpack.c.bf16 %v517, %v516
      %v609 = vpack.c.bf16 %v519, %v518
      %v610 = vpack.c.bf16 %v521, %v520
      %v611 = vpack.c.bf16 %v523, %v522
      %v612 = vpack.c.bf16 %v525, %v524
      %v613 = vpack.c.bf16 %v527, %v526
      %v614 = vpack.c.bf16 %v529, %v528
      %v615 = vpack.c.bf16 %v531, %v530
      %v616 = vpack.c.bf16 %v533, %v532
      %v617 = vpack.c.bf16 %v535, %v534
      %v618 = vpack.c.bf16 %v537, %v536
      %v619 = vpack.c.bf16 %v539, %v538
      %v620 = vpack.c.bf16 %v541, %v540
      %v621 = vpack.c.bf16 %v543, %v542
      %v622 = vpack.c.bf16 %v545, %v544
      %v623 = vpack.c.bf16 %v547, %v546
      %v624 = vpack.c.bf16 %v549, %v548
      %v625 = vpack.c.bf16 %v551, %v550
      %v626 = vpack.c.bf16 %v553, %v552
      %v627 = vpack.c.bf16 %v555, %v554
      %v628 = vpack.c.bf16 %v557, %v556
      %v629 = vpack.c.bf16 %v559, %v558
      %v630 = vpack.c.bf16 %v561, %v560
      %v631 = vpack.c.bf16 %v563, %v562
      %v632 = vpack.c.bf16 %v565, %v564
      %v633 = vpack.c.bf16 %v567, %v566
      %vm666 = vcmask 1043456
      %v667 = vrot.slane %v602, 4
      %v668 = vrot.slane %v603, 4
      %v669 = vsel %vm666, %v667, %v668
      %v670 = vrot.slane %v604, 4
      %v671 = vsel %vm666, %v668, %v670
      %v672 = vrot.slane %v605, 4
      %v673 = vsel %vm666, %v670, %v672
      %v674 = vrot.slane %v606, 4
      %v675 = vrot.slane %v607, 4
      %v676 = vsel %vm666, %v674, %v675
      %v677 = vrot.slane %v608, 4
      %v678 = vsel %vm666, %v675, %v677
      %v679 = vrot.slane %v609, 4
      %v680 = vsel %vm666, %v677, %v679
      %v681 = vrot.slane %v610, 4
      %v682 = vrot.slane %v611, 4
      %v683 = vsel %vm666, %v681, %v682
      %v684 = vrot.slane %v612, 4
      %v685 = vsel %vm666, %v682, %v684
      %v686 = vrot.slane %v613, 4
      %v687 = vsel %vm666, %v684, %v686
      %v688 = vrot.slane %v614, 4
      %v689 = vrot.slane %v615, 4
      %v690 = vsel %vm666, %v688, %v689
      %v691 = vrot.slane %v616, 4
      %v692 = vsel %vm666, %v689, %v691
      %v693 = vrot.slane %v617, 4
      %v694 = vsel %vm666, %v691, %v693
      %v695 = vrot.slane %v618, 4
      %v696 = vrot.slane %v619, 4
      %v697 = vsel %vm666, %v695, %v696
      %v698 = vrot.slane %v620, 4
      %v699 = vsel %vm666, %v696, %v698
      %v700 = vrot.slane %v621, 4
      %v701 = vsel %vm666, %v698, %v700
      %v702 = vrot.slane %v622, 4
      %v703 = vrot.slane %v623, 4
      %v704 = vsel %vm666, %v702, %v703
      %v705 = vrot.slane %v624, 4
      %v706 = vsel %vm666, %v703, %v705
      %v707 = vrot.slane %v625, 4
      %v708 = vsel %vm666, %v705, %v707
      %v709 = vrot.slane %v626, 4
      %v710 = vrot.slane %v627, 4
      %v711 = vsel %vm666, %v709, %v710
      %v712 = vrot.slane %v628, 4
      %v713 = vsel %vm666, %v710, %v712
      %v714 = vrot.slane %v629, 4
      %v715 = vsel %vm666, %v712, %v714
      %v716 = vrot.slane %v630, 4
      %v717 = vrot.slane %v631, 4
      %v718 = vsel %vm666, %v716, %v717
      %v719 = vrot.slane %v632, 4
      %v720 = vsel %vm666, %v717, %v719
      %v721 = vrot.slane %v633, 4
      %v722 = vsel %vm666, %v719, %v721
      %s763 = scalar_lea.vmem [#allocation2], 40
      %764 = vst.msk [vmem:[%s763] sm:$0xf0] %vm591, %v667
      %765 = vst.msk [vmem:[%s763 + $0x8] sm:$0xff] %vm568, %v669
      %766 = vst.msk [vmem:[%s763 + $0x10] sm:$0xff] %vm568, %v671
      %767 = vst.msk [vmem:[%s763 + $0x18] sm:$0xff] %vm568, %v673
      %768 = vst.msk [vmem:[%s763 + $0x20] sm:$0xf] %vm580, %v672
      %769 = vst.msk [vmem:[%s763 + $0x28] sm:$0xf0] %vm591, %v674
      %770 = vst.msk [vmem:[%s763 + $0x30] sm:$0xff] %vm568, %v676
      %771 = vst.msk [vmem:[%s763 + $0x38] sm:$0xff] %vm568, %v678
      %772 = vst.msk [vmem:[%s763 + $0x40] sm:$0xff] %vm568, %v680
      %773 = vst.msk [vmem:[%s763 + $0x48] sm:$0xf] %vm580, %v679
      %774 = vst.msk [vmem:[%s763 + $0x50] sm:$0xf0] %vm591, %v681
      %775 = vst.msk [vmem:[%s763 + $0x58] sm:$0xff] %vm568, %v683
      %776 = vst.msk [vmem:[%s763 + $0x60] sm:$0xff] %vm568, %v685
      %777 = vst.msk [vmem:[%s763 + $0x68] sm:$0xff] %vm568, %v687
      %778 = vst.msk [vmem:[%s763 + $0x70] sm:$0xf] %vm580, %v686
      %779 = vst.msk [vmem:[%s763 + $0x78] sm:$0xf0] %vm591, %v688
      %780 = vst.msk [vmem:[%s763 + $0x80] sm:$0xff] %vm568, %v690
      %781 = vst.msk [vmem:[%s763 + $0x88] sm:$0xff] %vm568, %v692
      %782 = vst.msk [vmem:[%s763 + $0x90] sm:$0xff] %vm568, %v694
      %783 = vst.msk [vmem:[%s763 + $0x98] sm:$0xf] %vm580, %v693
      %784 = vst.msk [vmem:[%s763 + $0xa0] sm:$0xf0] %vm591, %v695
      %785 = vst.msk [vmem:[%s763 + $0xa8] sm:$0xff] %vm568, %v697
      %786 = vst.msk [vmem:[%s763 + $0xb0] sm:$0xff] %vm568, %v699
      %787 = vst.msk [vmem:[%s763 + $0xb8] sm:$0xff] %vm568, %v701
      %788 = vst.msk [vmem:[%s763 + $0xc0] sm:$0xf] %vm580, %v700
      %789 = vst.msk [vmem:[%s763 + $0xc8] sm:$0xf0] %vm591, %v702
      %790 = vst.msk [vmem:[%s763 + $0xd0] sm:$0xff] %vm568, %v704
      %791 = vst.msk [vmem:[%s763 + $0xd8] sm:$0xff] %vm568, %v706
      %792 = vst.msk [vmem:[%s763 + $0xe0] sm:$0xff] %vm568, %v708
      %793 = vst.msk [vmem:[%s763 + $0xe8] sm:$0xf] %vm580, %v707
      %794 = vst.msk [vmem:[%s763 + $0xf0] sm:$0xf0] %vm591, %v709
      %795 = vst.msk [vmem:[%s763 + $0xf8] sm:$0xff] %vm568, %v711
      %796 = vst.msk [vmem:[%s763 + $0x100] sm:$0xff] %vm568, %v713
      %797 = vst.msk [vmem:[%s763 + $0x108] sm:$0xff] %vm568, %v715
      %798 = vst.msk [vmem:[%s763 + $0x110] sm:$0xf] %vm580, %v714
      %799 = vst.msk [vmem:[%s763 + $0x118] sm:$0xf0] %vm591, %v716
      %800 = vst.msk [vmem:[%s763 + $0x120] sm:$0xff] %vm568, %v718
      %801 = vst.msk [vmem:[%s763 + $0x128] sm:$0xff] %vm568, %v720
      %802 = vst.msk [vmem:[%s763 + $0x130] sm:$0xff] %vm568, %v722
      %803 = vst.msk [vmem:[%s763 + $0x138] sm:$0xf] %vm580, %v721
      %v804 = vld [vmem:[#allocation2] sm:$0xff]
      %v805 = vld [vmem:[#allocation2 + $0x8] sm:$0xff]
      %v806 = vld [vmem:[#allocation2 + $0x10] sm:$0xff]
      %v807 = vld [vmem:[#allocation2 + $0x18] sm:$0xff]
      %v808 = vld [vmem:[#allocation2 + $0x28] sm:$0xff]
      %v809 = vld [vmem:[#allocation2 + $0x30] sm:$0xff]
      %v810 = vld [vmem:[#allocation2 + $0x38] sm:$0xff]
      %v811 = vld [vmem:[#allocation2 + $0x40] sm:$0xff]
      %v812 = vld [vmem:[#allocation2 + $0x50] sm:$0xff]
      %v813 = vld [vmem:[#allocation2 + $0x58] sm:$0xff]
      %v814 = vld [vmem:[#allocation2 + $0x60] sm:$0xff]
      %v815 = vld [vmem:[#allocation2 + $0x68] sm:$0xff]
      %v816 = vld [vmem:[#allocation2 + $0x78] sm:$0xff]
      %v817 = vld [vmem:[#allocation2 + $0x80] sm:$0xff]
      %v818 = vld [vmem:[#allocation2 + $0x88] sm:$0xff]
      %v819 = vld [vmem:[#allocation2 + $0x90] sm:$0xff]
      %v820 = vld [vmem:[#allocation2 + $0xa0] sm:$0xff]
      %v821 = vld [vmem:[#allocation2 + $0xa8] sm:$0xff]
      %v822 = vld [vmem:[#allocation2 + $0xb0] sm:$0xff]
      %v823 = vld [vmem:[#allocation2 + $0xb8] sm:$0xff]
      %v824 = vld [vmem:[#allocation2 + $0xc8] sm:$0xff]
      %v825 = vld [vmem:[#allocation2 + $0xd0] sm:$0xff]
      %v826 = vld [vmem:[#allocation2 + $0xd8] sm:$0xff]
      %v827 = vld [vmem:[#allocation2 + $0xe0] sm:$0xff]
      %v828 = vld [vmem:[#allocation2 + $0xf0] sm:$0xff]
      %v829 = vld [vmem:[#allocation2 + $0xf8] sm:$0xff]
      %v830 = vld [vmem:[#allocation2 + $0x100] sm:$0xff]
      %v831 = vld [vmem:[#allocation2 + $0x108] sm:$0xff]
      %v832 = vld [vmem:[#allocation2 + $0x118] sm:$0xff]
      %v833 = vld [vmem:[#allocation2 + $0x120] sm:$0xff]
      %v834 = vld [vmem:[#allocation2 + $0x128] sm:$0xff]
      %v835 = vld [vmem:[#allocation2 + $0x130] sm:$0xff]
      %836 = vst.msk [vmem:[#allocation3] sm:$0xff] %vm568, %v804
      %837 = vst.msk [vmem:[#allocation3 + $0x28] sm:$0xff] %vm568, %v805
      %838 = vst.msk [vmem:[#allocation3 + $0x50] sm:$0xff] %vm568, %v806
      %839 = vst.msk [vmem:[#allocation3 + $0x78] sm:$0xff] %vm568, %v807
      %840 = vst.msk [vmem:[#allocation3 + $0xa0] sm:$0xff] %vm568, %v808
      %841 = vst.msk [vmem:[#allocation3 + $0xc8] sm:$0xff] %vm568, %v809
      %842 = vst.msk [vmem:[#allocation3 + $0xf0] sm:$0xff] %vm568, %v810
      %843 = vst.msk [vmem:[#allocation3 + $0x118] sm:$0xff] %vm568, %v811
      %844 = vst.msk [vmem:[#allocation3 + $0x140] sm:$0xff] %vm568, %v812
      %845 = vst.msk [vmem:[#allocation3 + $0x168] sm:$0xff] %vm568, %v813
      %846 = vst.msk [vmem:[#allocation3 + $0x190] sm:$0xff] %vm568, %v814
      %847 = vst.msk [vmem:[#allocation3 + $0x1b8] sm:$0xff] %vm568, %v815
      %848 = vst.msk [vmem:[#allocation3 + $0x1e0] sm:$0xff] %vm568, %v816
      %849 = vst.msk [vmem:[#allocation3 + $0x208] sm:$0xff] %vm568, %v817
      %850 = vst.msk [vmem:[#allocation3 + $0x230] sm:$0xff] %vm568, %v818
      %851 = vst.msk [vmem:[#allocation3 + $0x258] sm:$0xff] %vm568, %v819
      %852 = vst.msk [vmem:[#allocation3 + $0x280] sm:$0xff] %vm568, %v820
      %853 = vst.msk [vmem:[#allocation3 + $0x2a8] sm:$0xff] %vm568, %v821
      %854 = vst.msk [vmem:[#allocation3 + $0x2d0] sm:$0xff] %vm568, %v822
      %855 = vst.msk [vmem:[#allocation3 + $0x2f8] sm:$0xff] %vm568, %v823
      %856 = vst.msk [vmem:[#allocation3 + $0x320] sm:$0xff] %vm568, %v824
      %857 = vst.msk [vmem:[#allocation3 + $0x348] sm:$0xff] %vm568, %v825
      %858 = vst.msk [vmem:[#allocation3 + $0x370] sm:$0xff] %vm568, %v826
      %859 = vst.msk [vmem:[#allocation3 + $0x398] sm:$0xff] %vm568, %v827
      %860 = vst.msk [vmem:[#allocation3 + $0x3c0] sm:$0xff] %vm568, %v828
      %861 = vst.msk [vmem:[#allocation3 + $0x3e8] sm:$0xff] %vm568, %v829
      %862 = vst.msk [vmem:[#allocation3 + $0x410] sm:$0xff] %vm568, %v830
      %863 = vst.msk [vmem:[#allocation3 + $0x438] sm:$0xff] %vm568, %v831
      %864 = vst.msk [vmem:[#allocation3 + $0x460] sm:$0xff] %vm568, %v832
      %865 = vst.msk [vmem:[#allocation3 + $0x488] sm:$0xff] %vm568, %v833
      %866 = vst.msk [vmem:[#allocation3 + $0x4b0] sm:$0xff] %vm568, %v834
      %867 = vst.msk [vmem:[#allocation3 + $0x4d8] sm:$0xff] %vm568, %v835
      %v868 = vld [vmem:[#allocation2] sm:$0xf0]
      %v869 = vld [vmem:[#allocation2 + $0x8] sm:$0xff]
      %v870 = vld [vmem:[#allocation2 + $0x10] sm:$0xff]
      %v871 = vld [vmem:[#allocation2 + $0x18] sm:$0xff]
      %v872 = vld [vmem:[#allocation2 + $0x20] sm:$0xf]
      %v873 = vld [vmem:[#allocation2 + $0x28] sm:$0xf0]
      %v874 = vld [vmem:[#allocation2 + $0x30] sm:$0xff]
      %v875 = vld [vmem:[#allocation2 + $0x38] sm:$0xff]
      %v876 = vld [vmem:[#allocation2 + $0x40] sm:$0xff]
      %v877 = vld [vmem:[#allocation2 + $0x48] sm:$0xf]
      %v878 = vld [vmem:[#allocation2 + $0x50] sm:$0xf0]
      %v879 = vld [vmem:[#allocation2 + $0x58] sm:$0xff]
      %v880 = vld [vmem:[#allocation2 + $0x60] sm:$0xff]
      %v881 = vld [vmem:[#allocation2 + $0x68] sm:$0xff]
      %v882 = vld [vmem:[#allocation2 + $0x70] sm:$0xf]
      %v883 = vld [vmem:[#allocation2 + $0x78] sm:$0xf0]
      %v884 = vld [vmem:[#allocation2 + $0x80] sm:$0xff]
      %v885 = vld [vmem:[#allocation2 + $0x88] sm:$0xff]
      %v886 = vld [vmem:[#allocation2 + $0x90] sm:$0xff]
      %v887 = vld [vmem:[#allocation2 + $0x98] sm:$0xf]
      %v888 = vld [vmem:[#allocation2 + $0xa0] sm:$0xf0]
      %v889 = vld [vmem:[#allocation2 + $0xa8] sm:$0xff]
      %v890 = vld [vmem:[#allocation2 + $0xb0] sm:$0xff]
      %v891 = vld [vmem:[#allocation2 + $0xb8] sm:$0xff]
      %v892 = vld [vmem:[#allocation2 + $0xc0] sm:$0xf]
      %v893 = vld [vmem:[#allocation2 + $0xc8] sm:$0xf0]
      %v894 = vld [vmem:[#allocation2 + $0xd0] sm:$0xff]
      %v895 = vld [vmem:[#allocation2 + $0xd8] sm:$0xff]
      %v896 = vld [vmem:[#allocation2 + $0xe0] sm:$0xff]
      %v897 = vld [vmem:[#allocation2 + $0xe8] sm:$0xf]
      %v898 = vld [vmem:[#allocation2 + $0xf0] sm:$0xf0]
      %v899 = vld [vmem:[#allocation2 + $0xf8] sm:$0xff]
      %v900 = vld [vmem:[#allocation2 + $0x100] sm:$0xff]
      %v901 = vld [vmem:[#allocation2 + $0x108] sm:$0xff]
      %v902 = vld [vmem:[#allocation2 + $0x110] sm:$0xf]
      %v903 = vld [vmem:[#allocation2 + $0x118] sm:$0xf0]
      %v904 = vld [vmem:[#allocation2 + $0x120] sm:$0xff]
      %v905 = vld [vmem:[#allocation2 + $0x128] sm:$0xff]
      %v906 = vld [vmem:[#allocation2 + $0x130] sm:$0xff]
      %v907 = vld [vmem:[#allocation2 + $0x138] sm:$0xf]
      %v948 = vrot.slane %v868, 4
      %v949 = vrot.slane %v869, 4
      %v950 = vsel %vm666, %v948, %v949
      %v951 = vrot.slane %v870, 4
      %v952 = vsel %vm666, %v949, %v951
      %v953 = vrot.slane %v871, 4
      %v954 = vsel %vm666, %v951, %v953
      %v955 = vrot.slane %v872, 4
      %v956 = vsel %vm666, %v953, %v955
      %v957 = vrot.slane %v873, 4
      %v958 = vrot.slane %v874, 4
      %v959 = vsel %vm666, %v957, %v958
      %v960 = vrot.slane %v875, 4
      %v961 = vsel %vm666, %v958, %v960
      %v962 = vrot.slane %v876, 4
      %v963 = vsel %vm666, %v960, %v962
      %v964 = vrot.slane %v877, 4
      %v965 = vsel %vm666, %v962, %v964
      %v966 = vrot.slane %v878, 4
      %v967 = vrot.slane %v879, 4
      %v968 = vsel %vm666, %v966, %v967
      %v969 = vrot.slane %v880, 4
      %v970 = vsel %vm666, %v967, %v969
      %v971 = vrot.slane %v881, 4
      %v972 = vsel %vm666, %v969, %v971
      %v973 = vrot.slane %v882, 4
      %v974 = vsel %vm666, %v971, %v973
      %v975 = vrot.slane %v883, 4
      %v976 = vrot.slane %v884, 4
      %v977 = vsel %vm666, %v975, %v976
      %v978 = vrot.slane %v885, 4
      %v979 = vsel %vm666, %v976, %v978
      %v980 = vrot.slane %v886, 4
      %v981 = vsel %vm666, %v978, %v980
      %v982 = vrot.slane %v887, 4
      %v983 = vsel %vm666, %v980, %v982
      %v984 = vrot.slane %v888, 4
      %v985 = vrot.slane %v889, 4
      %v986 = vsel %vm666, %v984, %v985
      %v987 = vrot.slane %v890, 4
      %v988 = vsel %vm666, %v985, %v987
      %v989 = vrot.slane %v891, 4
      %v990 = vsel %vm666, %v987, %v989
      %v991 = vrot.slane %v892, 4
      %v992 = vsel %vm666, %v989, %v991
      %v993 = vrot.slane %v893, 4
      %v994 = vrot.slane %v894, 4
      %v995 = vsel %vm666, %v993, %v994
      %v996 = vrot.slane %v895, 4
      %v997 = vsel %vm666, %v994, %v996
      %v998 = vrot.slane %v896, 4
      %v999 = vsel %vm666, %v996, %v998
      %v1000 = vrot.slane %v897, 4
      %v1001 = vsel %vm666, %v998, %v1000
      %v1002 = vrot.slane %v898, 4
      %v1003 = vrot.slane %v899, 4
      %v1004 = vsel %vm666, %v1002, %v1003
      %v1005 = vrot.slane %v900, 4
      %v1006 = vsel %vm666, %v1003, %v1005
      %v1007 = vrot.slane %v901, 4
      %v1008 = vsel %vm666, %v1005, %v1007
      %v1009 = vrot.slane %v902, 4
      %v1010 = vsel %vm666, %v1007, %v1009
      %v1011 = vrot.slane %v903, 4
      %v1012 = vrot.slane %v904, 4
      %v1013 = vsel %vm666, %v1011, %v1012
      %v1014 = vrot.slane %v905, 4
      %v1015 = vsel %vm666, %v1012, %v1014
      %v1016 = vrot.slane %v906, 4
      %v1017 = vsel %vm666, %v1014, %v1016
      %v1018 = vrot.slane %v907, 4
      %v1019 = vsel %vm666, %v1016, %v1018
      %1020 = vrot.lane.b32.xlu0 %v950, 64
      %v1021 = vpop.permute.xlu0 %1020
      %1022 = vrot.lane.b32.xlu0 %v952, 64
      %v1023 = vpop.permute.xlu0 %1022
      %1024 = vrot.lane.b32.xlu0 %v954, 64
      %v1025 = vpop.permute.xlu0 %1024
      %1026 = vrot.lane.b32.xlu0 %v956, 64
      %v1027 = vpop.permute.xlu0 %1026
      %1028 = vrot.lane.b32.xlu0 %v959, 64
      %v1029 = vpop.permute.xlu0 %1028
      %1030 = vrot.lane.b32.xlu0 %v961, 64
      %v1031 = vpop.permute.xlu0 %1030
      %1032 = vrot.lane.b32.xlu0 %v963, 64
      %v1033 = vpop.permute.xlu0 %1032
      %1034 = vrot.lane.b32.xlu0 %v965, 64
      %v1035 = vpop.permute.xlu0 %1034
      %1036 = vrot.lane.b32.xlu0 %v968, 64
      %v1037 = vpop.permute.xlu0 %1036
      %1038 = vrot.lane.b32.xlu0 %v970, 64
      %v1039 = vpop.permute.xlu0 %1038
      %1040 = vrot.lane.b32.xlu0 %v972, 64
      %v1041 = vpop.permute.xlu0 %1040
      %1042 = vrot.lane.b32.xlu0 %v974, 64
      %v1043 = vpop.permute.xlu0 %1042
      %1044 = vrot.lane.b32.xlu0 %v977, 64
      %v1045 = vpop.permute.xlu0 %1044
      %1046 = vrot.lane.b32.xlu0 %v979, 64
      %v1047 = vpop.permute.xlu0 %1046
      %1048 = vrot.lane.b32.xlu0 %v981, 64
      %v1049 = vpop.permute.xlu0 %1048
      %1050 = vrot.lane.b32.xlu0 %v983, 64
      %v1051 = vpop.permute.xlu0 %1050
      %1052 = vrot.lane.b32.xlu0 %v986, 64
      %v1053 = vpop.permute.xlu0 %1052
      %1054 = vrot.lane.b32.xlu0 %v988, 64
      %v1055 = vpop.permute.xlu0 %1054
      %1056 = vrot.lane.b32.xlu0 %v990, 64
      %v1057 = vpop.permute.xlu0 %1056
      %1058 = vrot.lane.b32.xlu0 %v992, 64
      %v1059 = vpop.permute.xlu0 %1058
      %1060 = vrot.lane.b32.xlu0 %v995, 64
      %v1061 = vpop.permute.xlu0 %1060
      %1062 = vrot.lane.b32.xlu0 %v997, 64
      %v1063 = vpop.permute.xlu0 %1062
      %1064 = vrot.lane.b32.xlu0 %v999, 64
      %v1065 = vpop.permute.xlu0 %1064
      %1066 = vrot.lane.b32.xlu0 %v1001, 64
      %v1067 = vpop.permute.xlu0 %1066
      %1068 = vrot.lane.b32.xlu0 %v1004, 64
      %v1069 = vpop.permute.xlu0 %1068
      %1070 = vrot.lane.b32.xlu0 %v1006, 64
      %v1071 = vpop.permute.xlu0 %1070
      %1072 = vrot.lane.b32.xlu0 %v1008, 64
      %v1073 = vpop.permute.xlu0 %1072
      %1074 = vrot.lane.b32.xlu0 %v1010, 64
      %v1075 = vpop.permute.xlu0 %1074
      %1076 = vrot.lane.b32.xlu0 %v1013, 64
      %v1077 = vpop.permute.xlu0 %1076
      %1078 = vrot.lane.b32.xlu0 %v1015, 64
      %v1079 = vpop.permute.xlu0 %1078
      %1080 = vrot.lane.b32.xlu0 %v1017, 64
      %v1081 = vpop.permute.xlu0 %1080
      %1082 = vrot.lane.b32.xlu0 %v1019, 64
      %v1083 = vpop.permute.xlu0 %1082
      %vm1116 = vcmask 1048064
      %1117 = vst.msk [vmem:[#allocation3] sm:$0xff] %vm1116, %v1021
      %1118 = vst.msk [vmem:[#allocation3 + $0x28] sm:$0xff] %vm1116, %v1023
      %1119 = vst.msk [vmem:[#allocation3 + $0x50] sm:$0xff] %vm1116, %v1025
      %1120 = vst.msk [vmem:[#allocation3 + $0x78] sm:$0xff] %vm1116, %v1027
      %1121 = vst.msk [vmem:[#allocation3 + $0xa0] sm:$0xff] %vm1116, %v1029
      %1122 = vst.msk [vmem:[#allocation3 + $0xc8] sm:$0xff] %vm1116, %v1031
      %1123 = vst.msk [vmem:[#allocation3 + $0xf0] sm:$0xff] %vm1116, %v1033
      %1124 = vst.msk [vmem:[#allocation3 + $0x118] sm:$0xff] %vm1116, %v1035
      %1125 = vst.msk [vmem:[#allocation3 + $0x140] sm:$0xff] %vm1116, %v1037
      %1126 = vst.msk [vmem:[#allocation3 + $0x168] sm:$0xff] %vm1116, %v1039
      %1127 = vst.msk [vmem:[#allocation3 + $0x190] sm:$0xff] %vm1116, %v1041
      %1128 = vst.msk [vmem:[#allocation3 + $0x1b8] sm:$0xff] %vm1116, %v1043
      %1129 = vst.msk [vmem:[#allocation3 + $0x1e0] sm:$0xff] %vm1116, %v1045
      %1130 = vst.msk [vmem:[#allocation3 + $0x208] sm:$0xff] %vm1116, %v1047
      %1131 = vst.msk [vmem:[#allocation3 + $0x230] sm:$0xff] %vm1116, %v1049
      %1132 = vst.msk [vmem:[#allocation3 + $0x258] sm:$0xff] %vm1116, %v1051
      %1133 = vst.msk [vmem:[#allocation3 + $0x280] sm:$0xff] %vm1116, %v1053
      %1134 = vst.msk [vmem:[#allocation3 + $0x2a8] sm:$0xff] %vm1116, %v1055
      %1135 = vst.msk [vmem:[#allocation3 + $0x2d0] sm:$0xff] %vm1116, %v1057
      %1136 = vst.msk [vmem:[#allocation3 + $0x2f8] sm:$0xff] %vm1116, %v1059
      %1137 = vst.msk [vmem:[#allocation3 + $0x320] sm:$0xff] %vm1116, %v1061
      %1138 = vst.msk [vmem:[#allocation3 + $0x348] sm:$0xff] %vm1116, %v1063
      %1139 = vst.msk [vmem:[#allocation3 + $0x370] sm:$0xff] %vm1116, %v1065
      %1140 = vst.msk [vmem:[#allocation3 + $0x398] sm:$0xff] %vm1116, %v1067
      %1141 = vst.msk [vmem:[#allocation3 + $0x3c0] sm:$0xff] %vm1116, %v1069
      %1142 = vst.msk [vmem:[#allocation3 + $0x3e8] sm:$0xff] %vm1116, %v1071
      %1143 = vst.msk [vmem:[#allocation3 + $0x410] sm:$0xff] %vm1116, %v1073
      %1144 = vst.msk [vmem:[#allocation3 + $0x438] sm:$0xff] %vm1116, %v1075
      %1145 = vst.msk [vmem:[#allocation3 + $0x460] sm:$0xff] %vm1116, %v1077
      %1146 = vst.msk [vmem:[#allocation3 + $0x488] sm:$0xff] %vm1116, %v1079
      %1147 = vst.msk [vmem:[#allocation3 + $0x4b0] sm:$0xff] %vm1116, %v1081
      %1148 = vst.msk [vmem:[#allocation3 + $0x4d8] sm:$0xff] %vm1116, %v1083
      %v1149 = vld [vmem:[#allocation2 + $0x8] sm:$0xff]
      %v1150 = vld [vmem:[#allocation2 + $0x10] sm:$0xff]
      %v1151 = vld [vmem:[#allocation2 + $0x18] sm:$0xff]
      %v1152 = vld [vmem:[#allocation2 + $0x20] sm:$0xff]
      %v1153 = vld [vmem:[#allocation2 + $0x30] sm:$0xff]
      %v1154 = vld [vmem:[#allocation2 + $0x38] sm:$0xff]
      %v1155 = vld [vmem:[#allocation2 + $0x40] sm:$0xff]
      %v1156 = vld [vmem:[#allocation2 + $0x48] sm:$0xff]
      %v1157 = vld [vmem:[#allocation2 + $0x58] sm:$0xff]
      %v1158 = vld [vmem:[#allocation2 + $0x60] sm:$0xff]
      %v1159 = vld [vmem:[#allocation2 + $0x68] sm:$0xff]
      %v1160 = vld [vmem:[#allocation2 + $0x70] sm:$0xff]
      %v1161 = vld [vmem:[#allocation2 + $0x80] sm:$0xff]
      %v1162 = vld [vmem:[#allocation2 + $0x88] sm:$0xff]
      %v1163 = vld [vmem:[#allocation2 + $0x90] sm:$0xff]
      %v1164 = vld [vmem:[#allocation2 + $0x98] sm:$0xff]
      %v1165 = vld [vmem:[#allocation2 + $0xa8] sm:$0xff]
      %v1166 = vld [vmem:[#allocation2 + $0xb0] sm:$0xff]
      %v1167 = vld [vmem:[#allocation2 + $0xb8] sm:$0xff]
      %v1168 = vld [vmem:[#allocation2 + $0xc0] sm:$0xff]
      %v1169 = vld [vmem:[#allocation2 + $0xd0] sm:$0xff]
      %v1170 = vld [vmem:[#allocation2 + $0xd8] sm:$0xff]
      %v1171 = vld [vmem:[#allocation2 + $0xe0] sm:$0xff]
      %v1172 = vld [vmem:[#allocation2 + $0xe8] sm:$0xff]
      %v1173 = vld [vmem:[#allocation2 + $0xf8] sm:$0xff]
      %v1174 = vld [vmem:[#allocation2 + $0x100] sm:$0xff]
      %v1175 = vld [vmem:[#allocation2 + $0x108] sm:$0xff]
      %v1176 = vld [vmem:[#allocation2 + $0x110] sm:$0xff]
      %v1177 = vld [vmem:[#allocation2 + $0x120] sm:$0xff]
      %v1178 = vld [vmem:[#allocation2 + $0x128] sm:$0xff]
      %v1179 = vld [vmem:[#allocation2 + $0x130] sm:$0xff]
      %v1180 = vld [vmem:[#allocation2 + $0x138] sm:$0xff]
      %1181 = vst.msk [vmem:[#allocation3 + $0x8] sm:$0xff] %vm568, %v1149
      %1182 = vst.msk [vmem:[#allocation3 + $0x30] sm:$0xff] %vm568, %v1150
      %1183 = vst.msk [vmem:[#allocation3 + $0x58] sm:$0xff] %vm568, %v1151
      %1184 = vst.msk [vmem:[#allocation3 + $0x80] sm:$0xff] %vm568, %v1152
      %1185 = vst.msk [vmem:[#allocation3 + $0xa8] sm:$0xff] %vm568, %v1153
      %1186 = vst.msk [vmem:[#allocation3 + $0xd0] sm:$0xff] %vm568, %v1154
      %1187 = vst.msk [vmem:[#allocation3 + $0xf8] sm:$0xff] %vm568, %v1155
      %1188 = vst.msk [vmem:[#allocation3 + $0x120] sm:$0xff] %vm568, %v1156
      %1189 = vst.msk [vmem:[#allocation3 + $0x148] sm:$0xff] %vm568, %v1157
      %1190 = vst.msk [vmem:[#allocation3 + $0x170] sm:$0xff] %vm568, %v1158
      %1191 = vst.msk [vmem:[#allocation3 + $0x198] sm:$0xff] %vm568, %v1159
      %1192 = vst.msk [vmem:[#allocation3 + $0x1c0] sm:$0xff] %vm568, %v1160
      %1193 = vst.msk [vmem:[#allocation3 + $0x1e8] sm:$0xff] %vm568, %v1161
      %1194 = vst.msk [vmem:[#allocation3 + $0x210] sm:$0xff] %vm568, %v1162
      %1195 = vst.msk [vmem:[#allocation3 + $0x238] sm:$0xff] %vm568, %v1163
      %1196 = vst.msk [vmem:[#allocation3 + $0x260] sm:$0xff] %vm568, %v1164
      %1197 = vst.msk [vmem:[#allocation3 + $0x288] sm:$0xff] %vm568, %v1165
      %1198 = vst.msk [vmem:[#allocation3 + $0x2b0] sm:$0xff] %vm568, %v1166
      %1199 = vst.msk [vmem:[#allocation3 + $0x2d8] sm:$0xff] %vm568, %v1167
      %1200 = vst.msk [vmem:[#allocation3 + $0x300] sm:$0xff] %vm568, %v1168
      %1201 = vst.msk [vmem:[#allocation3 + $0x328] sm:$0xff] %vm568, %v1169
      %1202 = vst.msk [vmem:[#allocation3 + $0x350] sm:$0xff] %vm568, %v1170
      %1203 = vst.msk [vmem:[#allocation3 + $0x378] sm:$0xff] %vm568, %v1171
      %1204 = vst.msk [vmem:[#allocation3 + $0x3a0] sm:$0xff] %vm568, %v1172
      %1205 = vst.msk [vmem:[#allocation3 + $0x3c8] sm:$0xff] %vm568, %v1173
      %1206 = vst.msk [vmem:[#allocation3 + $0x3f0] sm:$0xff] %vm568, %v1174
      %1207 = vst.msk [vmem:[#allocation3 + $0x418] sm:$0xff] %vm568, %v1175
      %1208 = vst.msk [vmem:[#allocation3 + $0x440] sm:$0xff] %vm568, %v1176
      %1209 = vst.msk [vmem:[#allocation3 + $0x468] sm:$0xff] %vm568, %v1177
      %1210 = vst.msk [vmem:[#allocation3 + $0x490] sm:$0xff] %vm568, %v1178
      %1211 = vst.msk [vmem:[#allocation3 + $0x4b8] sm:$0xff] %vm568, %v1179
      %1212 = vst.msk [vmem:[#allocation3 + $0x4e0] sm:$0xff] %vm568, %v1180
      %v1213 = vld [vmem:[%s763] sm:$0xff]
      %v1214 = vld [vmem:[%s763 + $0x8] sm:$0xff]
      %v1215 = vld [vmem:[%s763 + $0x10] sm:$0xff]
      %v1216 = vld [vmem:[%s763 + $0x18] sm:$0xff]
      %v1217 = vld [vmem:[%s763 + $0x28] sm:$0xff]
      %v1218 = vld [vmem:[%s763 + $0x30] sm:$0xff]
      %v1219 = vld [vmem:[%s763 + $0x38] sm:$0xff]
      %v1220 = vld [vmem:[%s763 + $0x40] sm:$0xff]
      %v1221 = vld [vmem:[%s763 + $0x50] sm:$0xff]
      %v1222 = vld [vmem:[%s763 + $0x58] sm:$0xff]
      %v1223 = vld [vmem:[%s763 + $0x60] sm:$0xff]
      %v1224 = vld [vmem:[%s763 + $0x68] sm:$0xff]
      %v1225 = vld [vmem:[%s763 + $0x78] sm:$0xff]
      %v1226 = vld [vmem:[%s763 + $0x80] sm:$0xff]
      %v1227 = vld [vmem:[%s763 + $0x88] sm:$0xff]
      %v1228 = vld [vmem:[%s763 + $0x90] sm:$0xff]
      %v1229 = vld [vmem:[%s763 + $0xa0] sm:$0xff]
      %v1230 = vld [vmem:[%s763 + $0xa8] sm:$0xff]
      %v1231 = vld [vmem:[%s763 + $0xb0] sm:$0xff]
      %v1232 = vld [vmem:[%s763 + $0xb8] sm:$0xff]
      %v1233 = vld [vmem:[%s763 + $0xc8] sm:$0xff]
      %v1234 = vld [vmem:[%s763 + $0xd0] sm:$0xff]
      %v1235 = vld [vmem:[%s763 + $0xd8] sm:$0xff]
      %v1236 = vld [vmem:[%s763 + $0xe0] sm:$0xff]
      %v1237 = vld [vmem:[%s763 + $0xf0] sm:$0xff]
      %v1238 = vld [vmem:[%s763 + $0xf8] sm:$0xff]
      %v1239 = vld [vmem:[%s763 + $0x100] sm:$0xff]
      %v1240 = vld [vmem:[%s763 + $0x108] sm:$0xff]
      %v1241 = vld [vmem:[%s763 + $0x118] sm:$0xff]
      %v1242 = vld [vmem:[%s763 + $0x120] sm:$0xff]
      %v1243 = vld [vmem:[%s763 + $0x128] sm:$0xff]
      %v1244 = vld [vmem:[%s763 + $0x130] sm:$0xff]
      %1277 = vrot.lane.b32.xlu0 %v1213, 64
      %v1278 = vpop.permute.xlu0 %1277
      %1279 = vrot.lane.b32.xlu0 %v1214, 64
      %v1280 = vpop.permute.xlu0 %1279
      %1281 = vrot.lane.b32.xlu0 %v1215, 64
      %v1282 = vpop.permute.xlu0 %1281
      %1283 = vrot.lane.b32.xlu0 %v1216, 64
      %v1284 = vpop.permute.xlu0 %1283
      %1285 = vrot.lane.b32.xlu0 %v1217, 64
      %v1286 = vpop.permute.xlu0 %1285
      %1287 = vrot.lane.b32.xlu0 %v1218, 64
      %v1288 = vpop.permute.xlu0 %1287
      %1289 = vrot.lane.b32.xlu0 %v1219, 64
      %v1290 = vpop.permute.xlu0 %1289
      %1291 = vrot.lane.b32.xlu0 %v1220, 64
      %v1292 = vpop.permute.xlu0 %1291
      %1293 = vrot.lane.b32.xlu0 %v1221, 64
      %v1294 = vpop.permute.xlu0 %1293
      %1295 = vrot.lane.b32.xlu0 %v1222, 64
      %v1296 = vpop.permute.xlu0 %1295
      %1297 = vrot.lane.b32.xlu0 %v1223, 64
      %v1298 = vpop.permute.xlu0 %1297
      %1299 = vrot.lane.b32.xlu0 %v1224, 64
      %v1300 = vpop.permute.xlu0 %1299
      %1301 = vrot.lane.b32.xlu0 %v1225, 64
      %v1302 = vpop.permute.xlu0 %1301
      %1303 = vrot.lane.b32.xlu0 %v1226, 64
      %v1304 = vpop.permute.xlu0 %1303
      %1305 = vrot.lane.b32.xlu0 %v1227, 64
      %v1306 = vpop.permute.xlu0 %1305
      %1307 = vrot.lane.b32.xlu0 %v1228, 64
      %v1308 = vpop.permute.xlu0 %1307
      %1309 = vrot.lane.b32.xlu0 %v1229, 64
      %v1310 = vpop.permute.xlu0 %1309
      %1311 = vrot.lane.b32.xlu0 %v1230, 64
      %v1312 = vpop.permute.xlu0 %1311
      %1313 = vrot.lane.b32.xlu0 %v1231, 64
      %v1314 = vpop.permute.xlu0 %1313
      %1315 = vrot.lane.b32.xlu0 %v1232, 64
      %v1316 = vpop.permute.xlu0 %1315
      %1317 = vrot.lane.b32.xlu0 %v1233, 64
      %v1318 = vpop.permute.xlu0 %1317
      %1319 = vrot.lane.b32.xlu0 %v1234, 64
      %v1320 = vpop.permute.xlu0 %1319
      %1321 = vrot.lane.b32.xlu0 %v1235, 64
      %v1322 = vpop.permute.xlu0 %1321
      %1323 = vrot.lane.b32.xlu0 %v1236, 64
      %v1324 = vpop.permute.xlu0 %1323
      %1325 = vrot.lane.b32.xlu0 %v1237, 64
      %v1326 = vpop.permute.xlu0 %1325
      %1327 = vrot.lane.b32.xlu0 %v1238, 64
      %v1328 = vpop.permute.xlu0 %1327
      %1329 = vrot.lane.b32.xlu0 %v1239, 64
      %v1330 = vpop.permute.xlu0 %1329
      %1331 = vrot.lane.b32.xlu0 %v1240, 64
      %v1332 = vpop.permute.xlu0 %1331
      %1333 = vrot.lane.b32.xlu0 %v1241, 64
      %v1334 = vpop.permute.xlu0 %1333
      %1335 = vrot.lane.b32.xlu0 %v1242, 64
      %v1336 = vpop.permute.xlu0 %1335
      %1337 = vrot.lane.b32.xlu0 %v1243, 64
      %v1338 = vpop.permute.xlu0 %1337
      %1339 = vrot.lane.b32.xlu0 %v1244, 64
      %v1340 = vpop.permute.xlu0 %1339
      %1373 = vst.msk [vmem:[#allocation3 + $0x8] sm:$0xff] %vm1116, %v1278
      %1374 = vst.msk [vmem:[#allocation3 + $0x30] sm:$0xff] %vm1116, %v1280
      %1375 = vst.msk [vmem:[#allocation3 + $0x58] sm:$0xff] %vm1116, %v1282
      %1376 = vst.msk [vmem:[#allocation3 + $0x80] sm:$0xff] %vm1116, %v1284
      %1377 = vst.msk [vmem:[#allocation3 + $0xa8] sm:$0xff] %vm1116, %v1286
      %1378 = vst.msk [vmem:[#allocation3 + $0xd0] sm:$0xff] %vm1116, %v1288
      %1379 = vst.msk [vmem:[#allocation3 + $0xf8] sm:$0xff] %vm1116, %v1290
      %1380 = vst.msk [vmem:[#allocation3 + $0x120] sm:$0xff] %vm1116, %v1292
      %1381 = vst.msk [vmem:[#allocation3 + $0x148] sm:$0xff] %vm1116, %v1294
      %1382 = vst.msk [vmem:[#allocation3 + $0x170] sm:$0xff] %vm1116, %v1296
      %1383 = vst.msk [vmem:[#allocation3 + $0x198] sm:$0xff] %vm1116, %v1298
      %1384 = vst.msk [vmem:[#allocation3 + $0x1c0] sm:$0xff] %vm1116, %v1300
      %1385 = vst.msk [vmem:[#allocation3 + $0x1e8] sm:$0xff] %vm1116, %v1302
      %1386 = vst.msk [vmem:[#allocation3 + $0x210] sm:$0xff] %vm1116, %v1304
      %1387 = vst.msk [vmem:[#allocation3 + $0x238] sm:$0xff] %vm1116, %v1306
      %1388 = vst.msk [vmem:[#allocation3 + $0x260] sm:$0xff] %vm1116, %v1308
      %1389 = vst.msk [vmem:[#allocation3 + $0x288] sm:$0xff] %vm1116, %v1310
      %1390 = vst.msk [vmem:[#allocation3 + $0x2b0] sm:$0xff] %vm1116, %v1312
      %1391 = vst.msk [vmem:[#allocation3 + $0x2d8] sm:$0xff] %vm1116, %v1314
      %1392 = vst.msk [vmem:[#allocation3 + $0x300] sm:$0xff] %vm1116, %v1316
      %1393 = vst.msk [vmem:[#allocation3 + $0x328] sm:$0xff] %vm1116, %v1318
      %1394 = vst.msk [vmem:[#allocation3 + $0x350] sm:$0xff] %vm1116, %v1320
      %1395 = vst.msk [vmem:[#allocation3 + $0x378] sm:$0xff] %vm1116, %v1322
      %1396 = vst.msk [vmem:[#allocation3 + $0x3a0] sm:$0xff] %vm1116, %v1324
      %1397 = vst.msk [vmem:[#allocation3 + $0x3c8] sm:$0xff] %vm1116, %v1326
      %1398 = vst.msk [vmem:[#allocation3 + $0x3f0] sm:$0xff] %vm1116, %v1328
      %1399 = vst.msk [vmem:[#allocation3 + $0x418] sm:$0xff] %vm1116, %v1330
      %1400 = vst.msk [vmem:[#allocation3 + $0x440] sm:$0xff] %vm1116, %v1332
      %1401 = vst.msk [vmem:[#allocation3 + $0x468] sm:$0xff] %vm1116, %v1334
      %1402 = vst.msk [vmem:[#allocation3 + $0x490] sm:$0xff] %vm1116, %v1336
      %1403 = vst.msk [vmem:[#allocation3 + $0x4b8] sm:$0xff] %vm1116, %v1338
      %1404 = vst.msk [vmem:[#allocation3 + $0x4e0] sm:$0xff] %vm1116, %v1340
      %v1405 = vld [vmem:[%s763] sm:$0xf0]
      %v1406 = vld [vmem:[%s763 + $0x8] sm:$0xff]
      %v1407 = vld [vmem:[%s763 + $0x10] sm:$0xff]
      %v1408 = vld [vmem:[%s763 + $0x18] sm:$0xff]
      %v1409 = vld [vmem:[%s763 + $0x20] sm:$0xf]
      %v1410 = vld [vmem:[%s763 + $0x28] sm:$0xf0]
      %v1411 = vld [vmem:[%s763 + $0x30] sm:$0xff]
      %v1412 = vld [vmem:[%s763 + $0x38] sm:$0xff]
      %v1413 = vld [vmem:[%s763 + $0x40] sm:$0xff]
      %v1414 = vld [vmem:[%s763 + $0x48] sm:$0xf]
      %v1415 = vld [vmem:[%s763 + $0x50] sm:$0xf0]
      %v1416 = vld [vmem:[%s763 + $0x58] sm:$0xff]
      %v1417 = vld [vmem:[%s763 + $0x60] sm:$0xff]
      %v1418 = vld [vmem:[%s763 + $0x68] sm:$0xff]
      %v1419 = vld [vmem:[%s763 + $0x70] sm:$0xf]
      %v1420 = vld [vmem:[%s763 + $0x78] sm:$0xf0]
      %v1421 = vld [vmem:[%s763 + $0x80] sm:$0xff]
      %v1422 = vld [vmem:[%s763 + $0x88] sm:$0xff]
      %v1423 = vld [vmem:[%s763 + $0x90] sm:$0xff]
      %v1424 = vld [vmem:[%s763 + $0x98] sm:$0xf]
      %v1425 = vld [vmem:[%s763 + $0xa0] sm:$0xf0]
      %v1426 = vld [vmem:[%s763 + $0xa8] sm:$0xff]
      %v1427 = vld [vmem:[%s763 + $0xb0] sm:$0xff]
      %v1428 = vld [vmem:[%s763 + $0xb8] sm:$0xff]
      %v1429 = vld [vmem:[%s763 + $0xc0] sm:$0xf]
      %v1430 = vld [vmem:[%s763 + $0xc8] sm:$0xf0]
      %v1431 = vld [vmem:[%s763 + $0xd0] sm:$0xff]
      %v1432 = vld [vmem:[%s763 + $0xd8] sm:$0xff]
      %v1433 = vld [vmem:[%s763 + $0xe0] sm:$0xff]
      %v1434 = vld [vmem:[%s763 + $0xe8] sm:$0xf]
      %v1435 = vld [vmem:[%s763 + $0xf0] sm:$0xf0]
      %v1436 = vld [vmem:[%s763 + $0xf8] sm:$0xff]
      %v1437 = vld [vmem:[%s763 + $0x100] sm:$0xff]
      %v1438 = vld [vmem:[%s763 + $0x108] sm:$0xff]
      %v1439 = vld [vmem:[%s763 + $0x110] sm:$0xf]
      %v1440 = vld [vmem:[%s763 + $0x118] sm:$0xf0]
      %v1441 = vld [vmem:[%s763 + $0x120] sm:$0xff]
      %v1442 = vld [vmem:[%s763 + $0x128] sm:$0xff]
      %v1443 = vld [vmem:[%s763 + $0x130] sm:$0xff]
      %v1444 = vld [vmem:[%s763 + $0x138] sm:$0xf]
      %v1485 = vrot.slane %v1405, 4
      %v1486 = vrot.slane %v1406, 4
      %v1487 = vsel %vm666, %v1485, %v1486
      %v1488 = vrot.slane %v1407, 4
      %v1489 = vsel %vm666, %v1486, %v1488
      %v1490 = vrot.slane %v1408, 4
      %v1491 = vsel %vm666, %v1488, %v1490
      %v1492 = vrot.slane %v1409, 4
      %v1493 = vsel %vm666, %v1490, %v1492
      %v1494 = vrot.slane %v1410, 4
      %v1495 = vrot.slane %v1411, 4
      %v1496 = vsel %vm666, %v1494, %v1495
      %v1497 = vrot.slane %v1412, 4
      %v1498 = vsel %vm666, %v1495, %v1497
      %v1499 = vrot.slane %v1413, 4
      %v1500 = vsel %vm666, %v1497, %v1499
      %v1501 = vrot.slane %v1414, 4
      %v1502 = vsel %vm666, %v1499, %v1501
      %v1503 = vrot.slane %v1415, 4
      %v1504 = vrot.slane %v1416, 4
      %v1505 = vsel %vm666, %v1503, %v1504
      %v1506 = vrot.slane %v1417, 4
      %v1507 = vsel %vm666, %v1504, %v1506
      %v1508 = vrot.slane %v1418, 4
      %v1509 = vsel %vm666, %v1506, %v1508
      %v1510 = vrot.slane %v1419, 4
      %v1511 = vsel %vm666, %v1508, %v1510
      %v1512 = vrot.slane %v1420, 4
      %v1513 = vrot.slane %v1421, 4
      %v1514 = vsel %vm666, %v1512, %v1513
      %v1515 = vrot.slane %v1422, 4
      %v1516 = vsel %vm666, %v1513, %v1515
      %v1517 = vrot.slane %v1423, 4
      %v1518 = vsel %vm666, %v1515, %v1517
      %v1519 = vrot.slane %v1424, 4
      %v1520 = vsel %vm666, %v1517, %v1519
      %v1521 = vrot.slane %v1425, 4
      %v1522 = vrot.slane %v1426, 4
      %v1523 = vsel %vm666, %v1521, %v1522
      %v1524 = vrot.slane %v1427, 4
      %v1525 = vsel %vm666, %v1522, %v1524
      %v1526 = vrot.slane %v1428, 4
      %v1527 = vsel %vm666, %v1524, %v1526
      %v1528 = vrot.slane %v1429, 4
      %v1529 = vsel %vm666, %v1526, %v1528
      %v1530 = vrot.slane %v1430, 4
      %v1531 = vrot.slane %v1431, 4
      %v1532 = vsel %vm666, %v1530, %v1531
      %v1533 = vrot.slane %v1432, 4
      %v1534 = vsel %vm666, %v1531, %v1533
      %v1535 = vrot.slane %v1433, 4
      %v1536 = vsel %vm666, %v1533, %v1535
      %v1537 = vrot.slane %v1434, 4
      %v1538 = vsel %vm666, %v1535, %v1537
      %v1539 = vrot.slane %v1435, 4
      %v1540 = vrot.slane %v1436, 4
      %v1541 = vsel %vm666, %v1539, %v1540
      %v1542 = vrot.slane %v1437, 4
      %v1543 = vsel %vm666, %v1540, %v1542
      %v1544 = vrot.slane %v1438, 4
      %v1545 = vsel %vm666, %v1542, %v1544
      %v1546 = vrot.slane %v1439, 4
      %v1547 = vsel %vm666, %v1544, %v1546
      %v1548 = vrot.slane %v1440, 4
      %v1549 = vrot.slane %v1441, 4
      %v1550 = vsel %vm666, %v1548, %v1549
      %v1551 = vrot.slane %v1442, 4
      %v1552 = vsel %vm666, %v1549, %v1551
      %v1553 = vrot.slane %v1443, 4
      %v1554 = vsel %vm666, %v1551, %v1553
      %v1555 = vrot.slane %v1444, 4
      %v1556 = vsel %vm666, %v1553, %v1555
      %1589 = vst.msk [vmem:[#allocation3 + $0x10] sm:$0xff] %vm568, %v1487
      %1590 = vst.msk [vmem:[#allocation3 + $0x38] sm:$0xff] %vm568, %v1489
      %1591 = vst.msk [vmem:[#allocation3 + $0x60] sm:$0xff] %vm568, %v1491
      %1592 = vst.msk [vmem:[#allocation3 + $0x88] sm:$0xff] %vm568, %v1493
      %1593 = vst.msk [vmem:[#allocation3 + $0xb0] sm:$0xff] %vm568, %v1496
      %1594 = vst.msk [vmem:[#allocation3 + $0xd8] sm:$0xff] %vm568, %v1498
      %1595 = vst.msk [vmem:[#allocation3 + $0x100] sm:$0xff] %vm568, %v1500
      %1596 = vst.msk [vmem:[#allocation3 + $0x128] sm:$0xff] %vm568, %v1502
      %1597 = vst.msk [vmem:[#allocation3 + $0x150] sm:$0xff] %vm568, %v1505
      %1598 = vst.msk [vmem:[#allocation3 + $0x178] sm:$0xff] %vm568, %v1507
      %1599 = vst.msk [vmem:[#allocation3 + $0x1a0] sm:$0xff] %vm568, %v1509
      %1600 = vst.msk [vmem:[#allocation3 + $0x1c8] sm:$0xff] %vm568, %v1511
      %1601 = vst.msk [vmem:[#allocation3 + $0x1f0] sm:$0xff] %vm568, %v1514
      %1602 = vst.msk [vmem:[#allocation3 + $0x218] sm:$0xff] %vm568, %v1516
      %1603 = vst.msk [vmem:[#allocation3 + $0x240] sm:$0xff] %vm568, %v1518
      %1604 = vst.msk [vmem:[#allocation3 + $0x268] sm:$0xff] %vm568, %v1520
      %1605 = vst.msk [vmem:[#allocation3 + $0x290] sm:$0xff] %vm568, %v1523
      %1606 = vst.msk [vmem:[#allocation3 + $0x2b8] sm:$0xff] %vm568, %v1525
      %1607 = vst.msk [vmem:[#allocation3 + $0x2e0] sm:$0xff] %vm568, %v1527
      %1608 = vst.msk [vmem:[#allocation3 + $0x308] sm:$0xff] %vm568, %v1529
      %1609 = vst.msk [vmem:[#allocation3 + $0x330] sm:$0xff] %vm568, %v1532
      %1610 = vst.msk [vmem:[#allocation3 + $0x358] sm:$0xff] %vm568, %v1534
      %1611 = vst.msk [vmem:[#allocation3 + $0x380] sm:$0xff] %vm568, %v1536
      %1612 = vst.msk [vmem:[#allocation3 + $0x3a8] sm:$0xff] %vm568, %v1538
      %1613 = vst.msk [vmem:[#allocation3 + $0x3d0] sm:$0xff] %vm568, %v1541
      %1614 = vst.msk [vmem:[#allocation3 + $0x3f8] sm:$0xff] %vm568, %v1543
      %1615 = vst.msk [vmem:[#allocation3 + $0x420] sm:$0xff] %vm568, %v1545
      %1616 = vst.msk [vmem:[#allocation3 + $0x448] sm:$0xff] %vm568, %v1547
      %1617 = vst.msk [vmem:[#allocation3 + $0x470] sm:$0xff] %vm568, %v1550
      %1618 = vst.msk [vmem:[#allocation3 + $0x498] sm:$0xff] %vm568, %v1552
      %1619 = vst.msk [vmem:[#allocation3 + $0x4c0] sm:$0xff] %vm568, %v1554
      %1620 = vst.msk [vmem:[#allocation3 + $0x4e8] sm:$0xff] %vm568, %v1556
      %v1621 = vld [vmem:[%s763 + $0x8] sm:$0xff]
      %v1622 = vld [vmem:[%s763 + $0x10] sm:$0xff]
      %v1623 = vld [vmem:[%s763 + $0x18] sm:$0xff]
      %v1624 = vld [vmem:[%s763 + $0x20] sm:$0xff]
      %v1625 = vld [vmem:[%s763 + $0x30] sm:$0xff]
      %v1626 = vld [vmem:[%s763 + $0x38] sm:$0xff]
      %v1627 = vld [vmem:[%s763 + $0x40] sm:$0xff]
      %v1628 = vld [vmem:[%s763 + $0x48] sm:$0xff]
      %v1629 = vld [vmem:[%s763 + $0x58] sm:$0xff]
      %v1630 = vld [vmem:[%s763 + $0x60] sm:$0xff]
      %v1631 = vld [vmem:[%s763 + $0x68] sm:$0xff]
      %v1632 = vld [vmem:[%s763 + $0x70] sm:$0xff]
      %v1633 = vld [vmem:[%s763 + $0x80] sm:$0xff]
      %v1634 = vld [vmem:[%s763 + $0x88] sm:$0xff]
      %v1635 = vld [vmem:[%s763 + $0x90] sm:$0xff]
      %v1636 = vld [vmem:[%s763 + $0x98] sm:$0xff]
      %v1637 = vld [vmem:[%s763 + $0xa8] sm:$0xff]
      %v1638 = vld [vmem:[%s763 + $0xb0] sm:$0xff]
      %v1639 = vld [vmem:[%s763 + $0xb8] sm:$0xff]
      %v1640 = vld [vmem:[%s763 + $0xc0] sm:$0xff]
      %v1641 = vld [vmem:[%s763 + $0xd0] sm:$0xff]
      %v1642 = vld [vmem:[%s763 + $0xd8] sm:$0xff]
      %v1643 = vld [vmem:[%s763 + $0xe0] sm:$0xff]
      %v1644 = vld [vmem:[%s763 + $0xe8] sm:$0xff]
      %v1645 = vld [vmem:[%s763 + $0xf8] sm:$0xff]
      %v1646 = vld [vmem:[%s763 + $0x100] sm:$0xff]
      %v1647 = vld [vmem:[%s763 + $0x108] sm:$0xff]
      %v1648 = vld [vmem:[%s763 + $0x110] sm:$0xff]
      %v1649 = vld [vmem:[%s763 + $0x120] sm:$0xff]
      %v1650 = vld [vmem:[%s763 + $0x128] sm:$0xff]
      %v1651 = vld [vmem:[%s763 + $0x130] sm:$0xff]
      %v1652 = vld [vmem:[%s763 + $0x138] sm:$0xff]
      %1685 = vrot.lane.b32.xlu0 %v1621, 64
      %v1686 = vpop.permute.xlu0 %1685
      %1687 = vrot.lane.b32.xlu0 %v1622, 64
      %v1688 = vpop.permute.xlu0 %1687
      %1689 = vrot.lane.b32.xlu0 %v1623, 64
      %v1690 = vpop.permute.xlu0 %1689
      %1691 = vrot.lane.b32.xlu0 %v1624, 64
      %v1692 = vpop.permute.xlu0 %1691
      %1693 = vrot.lane.b32.xlu0 %v1625, 64
      %v1694 = vpop.permute.xlu0 %1693
      %1695 = vrot.lane.b32.xlu0 %v1626, 64
      %v1696 = vpop.permute.xlu0 %1695
      %1697 = vrot.lane.b32.xlu0 %v1627, 64
      %v1698 = vpop.permute.xlu0 %1697
      %1699 = vrot.lane.b32.xlu0 %v1628, 64
      %v1700 = vpop.permute.xlu0 %1699
      %1701 = vrot.lane.b32.xlu0 %v1629, 64
      %v1702 = vpop.permute.xlu0 %1701
      %1703 = vrot.lane.b32.xlu0 %v1630, 64
      %v1704 = vpop.permute.xlu0 %1703
      %1705 = vrot.lane.b32.xlu0 %v1631, 64
      %v1706 = vpop.permute.xlu0 %1705
      %1707 = vrot.lane.b32.xlu0 %v1632, 64
      %v1708 = vpop.permute.xlu0 %1707
      %1709 = vrot.lane.b32.xlu0 %v1633, 64
      %v1710 = vpop.permute.xlu0 %1709
      %1711 = vrot.lane.b32.xlu0 %v1634, 64
      %v1712 = vpop.permute.xlu0 %1711
      %1713 = vrot.lane.b32.xlu0 %v1635, 64
      %v1714 = vpop.permute.xlu0 %1713
      %1715 = vrot.lane.b32.xlu0 %v1636, 64
      %v1716 = vpop.permute.xlu0 %1715
      %1717 = vrot.lane.b32.xlu0 %v1637, 64
      %v1718 = vpop.permute.xlu0 %1717
      %1719 = vrot.lane.b32.xlu0 %v1638, 64
      %v1720 = vpop.permute.xlu0 %1719
      %1721 = vrot.lane.b32.xlu0 %v1639, 64
      %v1722 = vpop.permute.xlu0 %1721
      %1723 = vrot.lane.b32.xlu0 %v1640, 64
      %v1724 = vpop.permute.xlu0 %1723
      %1725 = vrot.lane.b32.xlu0 %v1641, 64
      %v1726 = vpop.permute.xlu0 %1725
      %1727 = vrot.lane.b32.xlu0 %v1642, 64
      %v1728 = vpop.permute.xlu0 %1727
      %1729 = vrot.lane.b32.xlu0 %v1643, 64
      %v1730 = vpop.permute.xlu0 %1729
      %1731 = vrot.lane.b32.xlu0 %v1644, 64
      %v1732 = vpop.permute.xlu0 %1731
      %1733 = vrot.lane.b32.xlu0 %v1645, 64
      %v1734 = vpop.permute.xlu0 %1733
      %1735 = vrot.lane.b32.xlu0 %v1646, 64
      %v1736 = vpop.permute.xlu0 %1735
      %1737 = vrot.lane.b32.xlu0 %v1647, 64
      %v1738 = vpop.permute.xlu0 %1737
      %1739 = vrot.lane.b32.xlu0 %v1648, 64
      %v1740 = vpop.permute.xlu0 %1739
      %1741 = vrot.lane.b32.xlu0 %v1649, 64
      %v1742 = vpop.permute.xlu0 %1741
      %1743 = vrot.lane.b32.xlu0 %v1650, 64
      %v1744 = vpop.permute.xlu0 %1743
      %1745 = vrot.lane.b32.xlu0 %v1651, 64
      %v1746 = vpop.permute.xlu0 %1745
      %1747 = vrot.lane.b32.xlu0 %v1652, 64
      %v1748 = vpop.permute.xlu0 %1747
      %1781 = vst.msk [vmem:[#allocation3 + $0x10] sm:$0xff] %vm1116, %v1686
      %1782 = vst.msk [vmem:[#allocation3 + $0x38] sm:$0xff] %vm1116, %v1688
      %1783 = vst.msk [vmem:[#allocation3 + $0x60] sm:$0xff] %vm1116, %v1690
      %1784 = vst.msk [vmem:[#allocation3 + $0x88] sm:$0xff] %vm1116, %v1692
      %1785 = vst.msk [vmem:[#allocation3 + $0xb0] sm:$0xff] %vm1116, %v1694
      %1786 = vst.msk [vmem:[#allocation3 + $0xd8] sm:$0xff] %vm1116, %v1696
      %1787 = vst.msk [vmem:[#allocation3 + $0x100] sm:$0xff] %vm1116, %v1698
      %1788 = vst.msk [vmem:[#allocation3 + $0x128] sm:$0xff] %vm1116, %v1700
      %1789 = vst.msk [vmem:[#allocation3 + $0x150] sm:$0xff] %vm1116, %v1702
      %1790 = vst.msk [vmem:[#allocation3 + $0x178] sm:$0xff] %vm1116, %v1704
      %1791 = vst.msk [vmem:[#allocation3 + $0x1a0] sm:$0xff] %vm1116, %v1706
      %1792 = vst.msk [vmem:[#allocation3 + $0x1c8] sm:$0xff] %vm1116, %v1708
      %1793 = vst.msk [vmem:[#allocation3 + $0x1f0] sm:$0xff] %vm1116, %v1710
      %1794 = vst.msk [vmem:[#allocation3 + $0x218] sm:$0xff] %vm1116, %v1712
      %1795 = vst.msk [vmem:[#allocation3 + $0x240] sm:$0xff] %vm1116, %v1714
      %1796 = vst.msk [vmem:[#allocation3 + $0x268] sm:$0xff] %vm1116, %v1716
      %1797 = vst.msk [vmem:[#allocation3 + $0x290] sm:$0xff] %vm1116, %v1718
      %1798 = vst.msk [vmem:[#allocation3 + $0x2b8] sm:$0xff] %vm1116, %v1720
      %1799 = vst.msk [vmem:[#allocation3 + $0x2e0] sm:$0xff] %vm1116, %v1722
      %1800 = vst.msk [vmem:[#allocation3 + $0x308] sm:$0xff] %vm1116, %v1724
      %1801 = vst.msk [vmem:[#allocation3 + $0x330] sm:$0xff] %vm1116, %v1726
      %1802 = vst.msk [vmem:[#allocation3 + $0x358] sm:$0xff] %vm1116, %v1728
      %1803 = vst.msk [vmem:[#allocation3 + $0x380] sm:$0xff] %vm1116, %v1730
      %1804 = vst.msk [vmem:[#allocation3 + $0x3a8] sm:$0xff] %vm1116, %v1732
      %1805 = vst.msk [vmem:[#allocation3 + $0x3d0] sm:$0xff] %vm1116, %v1734
      %1806 = vst.msk [vmem:[#allocation3 + $0x3f8] sm:$0xff] %vm1116, %v1736
      %1807 = vst.msk [vmem:[#allocation3 + $0x420] sm:$0xff] %vm1116, %v1738
      %1808 = vst.msk [vmem:[#allocation3 + $0x448] sm:$0xff] %vm1116, %v1740
      %1809 = vst.msk [vmem:[#allocation3 + $0x470] sm:$0xff] %vm1116, %v1742
      %1810 = vst.msk [vmem:[#allocation3 + $0x498] sm:$0xff] %vm1116, %v1744
      %1811 = vst.msk [vmem:[#allocation3 + $0x4c0] sm:$0xff] %vm1116, %v1746
      %1812 = vst.msk [vmem:[#allocation3 + $0x4e8] sm:$0xff] %vm1116, %v1748
      %s1813 = scalar_lea.vmem [#allocation2], 80
      %v1814 = vld [vmem:[%s1813] sm:$0xff]
      %v1815 = vld [vmem:[%s1813 + $0x8] sm:$0xff]
      %v1816 = vld [vmem:[%s1813 + $0x10] sm:$0xff]
      %v1817 = vld [vmem:[%s1813 + $0x18] sm:$0xff]
      %v1818 = vld [vmem:[%s1813 + $0x28] sm:$0xff]
      %v1819 = vld [vmem:[%s1813 + $0x30] sm:$0xff]
      %v1820 = vld [vmem:[%s1813 + $0x38] sm:$0xff]
      %v1821 = vld [vmem:[%s1813 + $0x40] sm:$0xff]
      %v1822 = vld [vmem:[%s1813 + $0x50] sm:$0xff]
      %v1823 = vld [vmem:[%s1813 + $0x58] sm:$0xff]
      %v1824 = vld [vmem:[%s1813 + $0x60] sm:$0xff]
      %v1825 = vld [vmem:[%s1813 + $0x68] sm:$0xff]
      %v1826 = vld [vmem:[%s1813 + $0x78] sm:$0xff]
      %v1827 = vld [vmem:[%s1813 + $0x80] sm:$0xff]
      %v1828 = vld [vmem:[%s1813 + $0x88] sm:$0xff]
      %v1829 = vld [vmem:[%s1813 + $0x90] sm:$0xff]
      %v1830 = vld [vmem:[%s1813 + $0xa0] sm:$0xff]
      %v1831 = vld [vmem:[%s1813 + $0xa8] sm:$0xff]
      %v1832 = vld [vmem:[%s1813 + $0xb0] sm:$0xff]
      %v1833 = vld [vmem:[%s1813 + $0xb8] sm:$0xff]
      %v1834 = vld [vmem:[%s1813 + $0xc8] sm:$0xff]
      %v1835 = vld [vmem:[%s1813 + $0xd0] sm:$0xff]
      %v1836 = vld [vmem:[%s1813 + $0xd8] sm:$0xff]
      %v1837 = vld [vmem:[%s1813 + $0xe0] sm:$0xff]
      %v1838 = vld [vmem:[%s1813 + $0xf0] sm:$0xff]
      %v1839 = vld [vmem:[%s1813 + $0xf8] sm:$0xff]
      %v1840 = vld [vmem:[%s1813 + $0x100] sm:$0xff]
      %v1841 = vld [vmem:[%s1813 + $0x108] sm:$0xff]
      %v1842 = vld [vmem:[%s1813 + $0x118] sm:$0xff]
      %v1843 = vld [vmem:[%s1813 + $0x120] sm:$0xff]
      %v1844 = vld [vmem:[%s1813 + $0x128] sm:$0xff]
      %v1845 = vld [vmem:[%s1813 + $0x130] sm:$0xff]
      %1846 = vst.msk [vmem:[#allocation3 + $0x18] sm:$0xff] %vm568, %v1814
      %1847 = vst.msk [vmem:[#allocation3 + $0x40] sm:$0xff] %vm568, %v1815
      %1848 = vst.msk [vmem:[#allocation3 + $0x68] sm:$0xff] %vm568, %v1816
      %1849 = vst.msk [vmem:[#allocation3 + $0x90] sm:$0xff] %vm568, %v1817
      %1850 = vst.msk [vmem:[#allocation3 + $0xb8] sm:$0xff] %vm568, %v1818
      %1851 = vst.msk [vmem:[#allocation3 + $0xe0] sm:$0xff] %vm568, %v1819
      %1852 = vst.msk [vmem:[#allocation3 + $0x108] sm:$0xff] %vm568, %v1820
      %1853 = vst.msk [vmem:[#allocation3 + $0x130] sm:$0xff] %vm568, %v1821
      %1854 = vst.msk [vmem:[#allocation3 + $0x158] sm:$0xff] %vm568, %v1822
      %1855 = vst.msk [vmem:[#allocation3 + $0x180] sm:$0xff] %vm568, %v1823
      %1856 = vst.msk [vmem:[#allocation3 + $0x1a8] sm:$0xff] %vm568, %v1824
      %1857 = vst.msk [vmem:[#allocation3 + $0x1d0] sm:$0xff] %vm568, %v1825
      %1858 = vst.msk [vmem:[#allocation3 + $0x1f8] sm:$0xff] %vm568, %v1826
      %1859 = vst.msk [vmem:[#allocation3 + $0x220] sm:$0xff] %vm568, %v1827
      %1860 = vst.msk [vmem:[#allocation3 + $0x248] sm:$0xff] %vm568, %v1828
      %1861 = vst.msk [vmem:[#allocation3 + $0x270] sm:$0xff] %vm568, %v1829
      %1862 = vst.msk [vmem:[#allocation3 + $0x298] sm:$0xff] %vm568, %v1830
      %1863 = vst.msk [vmem:[#allocation3 + $0x2c0] sm:$0xff] %vm568, %v1831
      %1864 = vst.msk [vmem:[#allocation3 + $0x2e8] sm:$0xff] %vm568, %v1832
      %1865 = vst.msk [vmem:[#allocation3 + $0x310] sm:$0xff] %vm568, %v1833
      %1866 = vst.msk [vmem:[#allocation3 + $0x338] sm:$0xff] %vm568, %v1834
      %1867 = vst.msk [vmem:[#allocation3 + $0x360] sm:$0xff] %vm568, %v1835
      %1868 = vst.msk [vmem:[#allocation3 + $0x388] sm:$0xff] %vm568, %v1836
      %1869 = vst.msk [vmem:[#allocation3 + $0x3b0] sm:$0xff] %vm568, %v1837
      %1870 = vst.msk [vmem:[#allocation3 + $0x3d8] sm:$0xff] %vm568, %v1838
      %1871 = vst.msk [vmem:[#allocation3 + $0x400] sm:$0xff] %vm568, %v1839
      %1872 = vst.msk [vmem:[#allocation3 + $0x428] sm:$0xff] %vm568, %v1840
      %1873 = vst.msk [vmem:[#allocation3 + $0x450] sm:$0xff] %vm568, %v1841
      %1874 = vst.msk [vmem:[#allocation3 + $0x478] sm:$0xff] %vm568, %v1842
      %1875 = vst.msk [vmem:[#allocation3 + $0x4a0] sm:$0xff] %vm568, %v1843
      %1876 = vst.msk [vmem:[#allocation3 + $0x4c8] sm:$0xff] %vm568, %v1844
      %1877 = vst.msk [vmem:[#allocation3 + $0x4f0] sm:$0xff] %vm568, %v1845
      %v1878 = vld [vmem:[%s1813] sm:$0xf0]
      %v1879 = vld [vmem:[%s1813 + $0x8] sm:$0xff]
      %v1880 = vld [vmem:[%s1813 + $0x10] sm:$0xff]
      %v1881 = vld [vmem:[%s1813 + $0x18] sm:$0xff]
      %v1882 = vld [vmem:[%s1813 + $0x20] sm:$0xf]
      %v1883 = vld [vmem:[%s1813 + $0x28] sm:$0xf0]
      %v1884 = vld [vmem:[%s1813 + $0x30] sm:$0xff]
      %v1885 = vld [vmem:[%s1813 + $0x38] sm:$0xff]
      %v1886 = vld [vmem:[%s1813 + $0x40] sm:$0xff]
      %v1887 = vld [vmem:[%s1813 + $0x48] sm:$0xf]
      %v1888 = vld [vmem:[%s1813 + $0x50] sm:$0xf0]
      %v1889 = vld [vmem:[%s1813 + $0x58] sm:$0xff]
      %v1890 = vld [vmem:[%s1813 + $0x60] sm:$0xff]
      %v1891 = vld [vmem:[%s1813 + $0x68] sm:$0xff]
      %v1892 = vld [vmem:[%s1813 + $0x70] sm:$0xf]
      %v1893 = vld [vmem:[%s1813 + $0x78] sm:$0xf0]
      %v1894 = vld [vmem:[%s1813 + $0x80] sm:$0xff]
      %v1895 = vld [vmem:[%s1813 + $0x88] sm:$0xff]
      %v1896 = vld [vmem:[%s1813 + $0x90] sm:$0xff]
      %v1897 = vld [vmem:[%s1813 + $0x98] sm:$0xf]
      %v1898 = vld [vmem:[%s1813 + $0xa0] sm:$0xf0]
      %v1899 = vld [vmem:[%s1813 + $0xa8] sm:$0xff]
      %v1900 = vld [vmem:[%s1813 + $0xb0] sm:$0xff]
      %v1901 = vld [vmem:[%s1813 + $0xb8] sm:$0xff]
      %v1902 = vld [vmem:[%s1813 + $0xc0] sm:$0xf]
      %v1903 = vld [vmem:[%s1813 + $0xc8] sm:$0xf0]
      %v1904 = vld [vmem:[%s1813 + $0xd0] sm:$0xff]
      %v1905 = vld [vmem:[%s1813 + $0xd8] sm:$0xff]
      %v1906 = vld [vmem:[%s1813 + $0xe0] sm:$0xff]
      %v1907 = vld [vmem:[%s1813 + $0xe8] sm:$0xf]
      %v1908 = vld [vmem:[%s1813 + $0xf0] sm:$0xf0]
      %v1909 = vld [vmem:[%s1813 + $0xf8] sm:$0xff]
      %v1910 = vld [vmem:[%s1813 + $0x100] sm:$0xff]
      %v1911 = vld [vmem:[%s1813 + $0x108] sm:$0xff]
      %v1912 = vld [vmem:[%s1813 + $0x110] sm:$0xf]
      %v1913 = vld [vmem:[%s1813 + $0x118] sm:$0xf0]
      %v1914 = vld [vmem:[%s1813 + $0x120] sm:$0xff]
      %v1915 = vld [vmem:[%s1813 + $0x128] sm:$0xff]
      %v1916 = vld [vmem:[%s1813 + $0x130] sm:$0xff]
      %v1917 = vld [vmem:[%s1813 + $0x138] sm:$0xf]
      %v1958 = vrot.slane %v1878, 4
      %v1959 = vrot.slane %v1879, 4
      %v1960 = vsel %vm666, %v1958, %v1959
      %v1961 = vrot.slane %v1880, 4
      %v1962 = vsel %vm666, %v1959, %v1961
      %v1963 = vrot.slane %v1881, 4
      %v1964 = vsel %vm666, %v1961, %v1963
      %v1965 = vrot.slane %v1882, 4
      %v1966 = vsel %vm666, %v1963, %v1965
      %v1967 = vrot.slane %v1883, 4
      %v1968 = vrot.slane %v1884, 4
      %v1969 = vsel %vm666, %v1967, %v1968
      %v1970 = vrot.slane %v1885, 4
      %v1971 = vsel %vm666, %v1968, %v1970
      %v1972 = vrot.slane %v1886, 4
      %v1973 = vsel %vm666, %v1970, %v1972
      %v1974 = vrot.slane %v1887, 4
      %v1975 = vsel %vm666, %v1972, %v1974
      %v1976 = vrot.slane %v1888, 4
      %v1977 = vrot.slane %v1889, 4
      %v1978 = vsel %vm666, %v1976, %v1977
      %v1979 = vrot.slane %v1890, 4
      %v1980 = vsel %vm666, %v1977, %v1979
      %v1981 = vrot.slane %v1891, 4
      %v1982 = vsel %vm666, %v1979, %v1981
      %v1983 = vrot.slane %v1892, 4
      %v1984 = vsel %vm666, %v1981, %v1983
      %v1985 = vrot.slane %v1893, 4
      %v1986 = vrot.slane %v1894, 4
      %v1987 = vsel %vm666, %v1985, %v1986
      %v1988 = vrot.slane %v1895, 4
      %v1989 = vsel %vm666, %v1986, %v1988
      %v1990 = vrot.slane %v1896, 4
      %v1991 = vsel %vm666, %v1988, %v1990
      %v1992 = vrot.slane %v1897, 4
      %v1993 = vsel %vm666, %v1990, %v1992
      %v1994 = vrot.slane %v1898, 4
      %v1995 = vrot.slane %v1899, 4
      %v1996 = vsel %vm666, %v1994, %v1995
      %v1997 = vrot.slane %v1900, 4
      %v1998 = vsel %vm666, %v1995, %v1997
      %v1999 = vrot.slane %v1901, 4
      %v2000 = vsel %vm666, %v1997, %v1999
      %v2001 = vrot.slane %v1902, 4
      %v2002 = vsel %vm666, %v1999, %v2001
      %v2003 = vrot.slane %v1903, 4
      %v2004 = vrot.slane %v1904, 4
      %v2005 = vsel %vm666, %v2003, %v2004
      %v2006 = vrot.slane %v1905, 4
      %v2007 = vsel %vm666, %v2004, %v2006
      %v2008 = vrot.slane %v1906, 4
      %v2009 = vsel %vm666, %v2006, %v2008
      %v2010 = vrot.slane %v1907, 4
      %v2011 = vsel %vm666, %v2008, %v2010
      %v2012 = vrot.slane %v1908, 4
      %v2013 = vrot.slane %v1909, 4
      %v2014 = vsel %vm666, %v2012, %v2013
      %v2015 = vrot.slane %v1910, 4
      %v2016 = vsel %vm666, %v2013, %v2015
      %v2017 = vrot.slane %v1911, 4
      %v2018 = vsel %vm666, %v2015, %v2017
      %v2019 = vrot.slane %v1912, 4
      %v2020 = vsel %vm666, %v2017, %v2019
      %v2021 = vrot.slane %v1913, 4
      %v2022 = vrot.slane %v1914, 4
      %v2023 = vsel %vm666, %v2021, %v2022
      %v2024 = vrot.slane %v1915, 4
      %v2025 = vsel %vm666, %v2022, %v2024
      %v2026 = vrot.slane %v1916, 4
      %v2027 = vsel %vm666, %v2024, %v2026
      %v2028 = vrot.slane %v1917, 4
      %v2029 = vsel %vm666, %v2026, %v2028
      %2030 = vrot.lane.b32.xlu0 %v1960, 64
      %v2031 = vpop.permute.xlu0 %2030
      %2032 = vrot.lane.b32.xlu0 %v1962, 64
      %v2033 = vpop.permute.xlu0 %2032
      %2034 = vrot.lane.b32.xlu0 %v1964, 64
      %v2035 = vpop.permute.xlu0 %2034
      %2036 = vrot.lane.b32.xlu0 %v1966, 64
      %v2037 = vpop.permute.xlu0 %2036
      %2038 = vrot.lane.b32.xlu0 %v1969, 64
      %v2039 = vpop.permute.xlu0 %2038
      %2040 = vrot.lane.b32.xlu0 %v1971, 64
      %v2041 = vpop.permute.xlu0 %2040
      %2042 = vrot.lane.b32.xlu0 %v1973, 64
      %v2043 = vpop.permute.xlu0 %2042
      %2044 = vrot.lane.b32.xlu0 %v1975, 64
      %v2045 = vpop.permute.xlu0 %2044
      %2046 = vrot.lane.b32.xlu0 %v1978, 64
      %v2047 = vpop.permute.xlu0 %2046
      %2048 = vrot.lane.b32.xlu0 %v1980, 64
      %v2049 = vpop.permute.xlu0 %2048
      %2050 = vrot.lane.b32.xlu0 %v1982, 64
      %v2051 = vpop.permute.xlu0 %2050
      %2052 = vrot.lane.b32.xlu0 %v1984, 64
      %v2053 = vpop.permute.xlu0 %2052
      %2054 = vrot.lane.b32.xlu0 %v1987, 64
      %v2055 = vpop.permute.xlu0 %2054
      %2056 = vrot.lane.b32.xlu0 %v1989, 64
      %v2057 = vpop.permute.xlu0 %2056
      %2058 = vrot.lane.b32.xlu0 %v1991, 64
      %v2059 = vpop.permute.xlu0 %2058
      %2060 = vrot.lane.b32.xlu0 %v1993, 64
      %v2061 = vpop.permute.xlu0 %2060
      %2062 = vrot.lane.b32.xlu0 %v1996, 64
      %v2063 = vpop.permute.xlu0 %2062
      %2064 = vrot.lane.b32.xlu0 %v1998, 64
      %v2065 = vpop.permute.xlu0 %2064
      %2066 = vrot.lane.b32.xlu0 %v2000, 64
      %v2067 = vpop.permute.xlu0 %2066
      %2068 = vrot.lane.b32.xlu0 %v2002, 64
      %v2069 = vpop.permute.xlu0 %2068
      %2070 = vrot.lane.b32.xlu0 %v2005, 64
      %v2071 = vpop.permute.xlu0 %2070
      %2072 = vrot.lane.b32.xlu0 %v2007, 64
      %v2073 = vpop.permute.xlu0 %2072
      %2074 = vrot.lane.b32.xlu0 %v2009, 64
      %v2075 = vpop.permute.xlu0 %2074
      %2076 = vrot.lane.b32.xlu0 %v2011, 64
      %v2077 = vpop.permute.xlu0 %2076
      %2078 = vrot.lane.b32.xlu0 %v2014, 64
      %v2079 = vpop.permute.xlu0 %2078
      %2080 = vrot.lane.b32.xlu0 %v2016, 64
      %v2081 = vpop.permute.xlu0 %2080
      %2082 = vrot.lane.b32.xlu0 %v2018, 64
      %v2083 = vpop.permute.xlu0 %2082
      %2084 = vrot.lane.b32.xlu0 %v2020, 64
      %v2085 = vpop.permute.xlu0 %2084
      %2086 = vrot.lane.b32.xlu0 %v2023, 64
      %v2087 = vpop.permute.xlu0 %2086
      %2088 = vrot.lane.b32.xlu0 %v2025, 64
      %v2089 = vpop.permute.xlu0 %2088
      %2090 = vrot.lane.b32.xlu0 %v2027, 64
      %v2091 = vpop.permute.xlu0 %2090
      %2092 = vrot.lane.b32.xlu0 %v2029, 64
      %v2093 = vpop.permute.xlu0 %2092
      %2126 = vst.msk [vmem:[#allocation3 + $0x18] sm:$0xff] %vm1116, %v2031
      %2127 = vst.msk [vmem:[#allocation3 + $0x40] sm:$0xff] %vm1116, %v2033
      %2128 = vst.msk [vmem:[#allocation3 + $0x68] sm:$0xff] %vm1116, %v2035
      %2129 = vst.msk [vmem:[#allocation3 + $0x90] sm:$0xff] %vm1116, %v2037
      %2130 = vst.msk [vmem:[#allocation3 + $0xb8] sm:$0xff] %vm1116, %v2039
      %2131 = vst.msk [vmem:[#allocation3 + $0xe0] sm:$0xff] %vm1116, %v2041
      %2132 = vst.msk [vmem:[#allocation3 + $0x108] sm:$0xff] %vm1116, %v2043
      %2133 = vst.msk [vmem:[#allocation3 + $0x130] sm:$0xff] %vm1116, %v2045
      %2134 = vst.msk [vmem:[#allocation3 + $0x158] sm:$0xff] %vm1116, %v2047
      %2135 = vst.msk [vmem:[#allocation3 + $0x180] sm:$0xff] %vm1116, %v2049
      %2136 = vst.msk [vmem:[#allocation3 + $0x1a8] sm:$0xff] %vm1116, %v2051
      %2137 = vst.msk [vmem:[#allocation3 + $0x1d0] sm:$0xff] %vm1116, %v2053
      %2138 = vst.msk [vmem:[#allocation3 + $0x1f8] sm:$0xff] %vm1116, %v2055
      %2139 = vst.msk [vmem:[#allocation3 + $0x220] sm:$0xff] %vm1116, %v2057
      %2140 = vst.msk [vmem:[#allocation3 + $0x248] sm:$0xff] %vm1116, %v2059
      %2141 = vst.msk [vmem:[#allocation3 + $0x270] sm:$0xff] %vm1116, %v2061
      %2142 = vst.msk [vmem:[#allocation3 + $0x298] sm:$0xff] %vm1116, %v2063
      %2143 = vst.msk [vmem:[#allocation3 + $0x2c0] sm:$0xff] %vm1116, %v2065
      %2144 = vst.msk [vmem:[#allocation3 + $0x2e8] sm:$0xff] %vm1116, %v2067
      %2145 = vst.msk [vmem:[#allocation3 + $0x310] sm:$0xff] %vm1116, %v2069
      %2146 = vst.msk [vmem:[#allocation3 + $0x338] sm:$0xff] %vm1116, %v2071
      %2147 = vst.msk [vmem:[#allocation3 + $0x360] sm:$0xff] %vm1116, %v2073
      %2148 = vst.msk [vmem:[#allocation3 + $0x388] sm:$0xff] %vm1116, %v2075
      %2149 = vst.msk [vmem:[#allocation3 + $0x3b0] sm:$0xff] %vm1116, %v2077
      %2150 = vst.msk [vmem:[#allocation3 + $0x3d8] sm:$0xff] %vm1116, %v2079
      %2151 = vst.msk [vmem:[#allocation3 + $0x400] sm:$0xff] %vm1116, %v2081
      %2152 = vst.msk [vmem:[#allocation3 + $0x428] sm:$0xff] %vm1116, %v2083
      %2153 = vst.msk [vmem:[#allocation3 + $0x450] sm:$0xff] %vm1116, %v2085
      %2154 = vst.msk [vmem:[#allocation3 + $0x478] sm:$0xff] %vm1116, %v2087
      %2155 = vst.msk [vmem:[#allocation3 + $0x4a0] sm:$0xff] %vm1116, %v2089
      %2156 = vst.msk [vmem:[#allocation3 + $0x4c8] sm:$0xff] %vm1116, %v2091
      %2157 = vst.msk [vmem:[#allocation3 + $0x4f0] sm:$0xff] %vm1116, %v2093
      %v2158 = vld [vmem:[%s1813 + $0x8] sm:$0xff]
      %v2159 = vld [vmem:[%s1813 + $0x10] sm:$0xff]
      %v2160 = vld [vmem:[%s1813 + $0x18] sm:$0xff]
      %v2161 = vld [vmem:[%s1813 + $0x20] sm:$0xff]
      %v2162 = vld [vmem:[%s1813 + $0x30] sm:$0xff]
      %v2163 = vld [vmem:[%s1813 + $0x38] sm:$0xff]
      %v2164 = vld [vmem:[%s1813 + $0x40] sm:$0xff]
      %v2165 = vld [vmem:[%s1813 + $0x48] sm:$0xff]
      %v2166 = vld [vmem:[%s1813 + $0x58] sm:$0xff]
      %v2167 = vld [vmem:[%s1813 + $0x60] sm:$0xff]
      %v2168 = vld [vmem:[%s1813 + $0x68] sm:$0xff]
      %v2169 = vld [vmem:[%s1813 + $0x70] sm:$0xff]
      %v2170 = vld [vmem:[%s1813 + $0x80] sm:$0xff]
      %v2171 = vld [vmem:[%s1813 + $0x88] sm:$0xff]
      %v2172 = vld [vmem:[%s1813 + $0x90] sm:$0xff]
      %v2173 = vld [vmem:[%s1813 + $0x98] sm:$0xff]
      %v2174 = vld [vmem:[%s1813 + $0xa8] sm:$0xff]
      %v2175 = vld [vmem:[%s1813 + $0xb0] sm:$0xff]
      %v2176 = vld [vmem:[%s1813 + $0xb8] sm:$0xff]
      %v2177 = vld [vmem:[%s1813 + $0xc0] sm:$0xff]
      %v2178 = vld [vmem:[%s1813 + $0xd0] sm:$0xff]
      %v2179 = vld [vmem:[%s1813 + $0xd8] sm:$0xff]
      %v2180 = vld [vmem:[%s1813 + $0xe0] sm:$0xff]
      %v2181 = vld [vmem:[%s1813 + $0xe8] sm:$0xff]
      %v2182 = vld [vmem:[%s1813 + $0xf8] sm:$0xff]
      %v2183 = vld [vmem:[%s1813 + $0x100] sm:$0xff]
      %v2184 = vld [vmem:[%s1813 + $0x108] sm:$0xff]
      %v2185 = vld [vmem:[%s1813 + $0x110] sm:$0xff]
      %v2186 = vld [vmem:[%s1813 + $0x120] sm:$0xff]
      %v2187 = vld [vmem:[%s1813 + $0x128] sm:$0xff]
      %v2188 = vld [vmem:[%s1813 + $0x130] sm:$0xff]
      %v2189 = vld [vmem:[%s1813 + $0x138] sm:$0xff]
      %2190 = vst.msk [vmem:[#allocation3 + $0x20] sm:$0xff] %vm568, %v2158
      %2191 = vst.msk [vmem:[#allocation3 + $0x48] sm:$0xff] %vm568, %v2159
      %2192 = vst.msk [vmem:[#allocation3 + $0x70] sm:$0xff] %vm568, %v2160
      %2193 = vst.msk [vmem:[#allocation3 + $0x98] sm:$0xff] %vm568, %v2161
      %2194 = vst.msk [vmem:[#allocation3 + $0xc0] sm:$0xff] %vm568, %v2162
      %2195 = vst.msk [vmem:[#allocation3 + $0xe8] sm:$0xff] %vm568, %v2163
      %2196 = vst.msk [vmem:[#allocation3 + $0x110] sm:$0xff] %vm568, %v2164
      %2197 = vst.msk [vmem:[#allocation3 + $0x138] sm:$0xff] %vm568, %v2165
      %2198 = vst.msk [vmem:[#allocation3 + $0x160] sm:$0xff] %vm568, %v2166
      %2199 = vst.msk [vmem:[#allocation3 + $0x188] sm:$0xff] %vm568, %v2167
      %2200 = vst.msk [vmem:[#allocation3 + $0x1b0] sm:$0xff] %vm568, %v2168
      %2201 = vst.msk [vmem:[#allocation3 + $0x1d8] sm:$0xff] %vm568, %v2169
      %2202 = vst.msk [vmem:[#allocation3 + $0x200] sm:$0xff] %vm568, %v2170
      %2203 = vst.msk [vmem:[#allocation3 + $0x228] sm:$0xff] %vm568, %v2171
      %2204 = vst.msk [vmem:[#allocation3 + $0x250] sm:$0xff] %vm568, %v2172
      %2205 = vst.msk [vmem:[#allocation3 + $0x278] sm:$0xff] %vm568, %v2173
      %2206 = vst.msk [vmem:[#allocation3 + $0x2a0] sm:$0xff] %vm568, %v2174
      %2207 = vst.msk [vmem:[#allocation3 + $0x2c8] sm:$0xff] %vm568, %v2175
      %2208 = vst.msk [vmem:[#allocation3 + $0x2f0] sm:$0xff] %vm568, %v2176
      %2209 = vst.msk [vmem:[#allocation3 + $0x318] sm:$0xff] %vm568, %v2177
      %2210 = vst.msk [vmem:[#allocation3 + $0x340] sm:$0xff] %vm568, %v2178
      %2211 = vst.msk [vmem:[#allocation3 + $0x368] sm:$0xff] %vm568, %v2179
      %2212 = vst.msk [vmem:[#allocation3 + $0x390] sm:$0xff] %vm568, %v2180
      %2213 = vst.msk [vmem:[#allocation3 + $0x3b8] sm:$0xff] %vm568, %v2181
      %2214 = vst.msk [vmem:[#allocation3 + $0x3e0] sm:$0xff] %vm568, %v2182
      %2215 = vst.msk [vmem:[#allocation3 + $0x408] sm:$0xff] %vm568, %v2183
      %2216 = vst.msk [vmem:[#allocation3 + $0x430] sm:$0xff] %vm568, %v2184
      %2217 = vst.msk [vmem:[#allocation3 + $0x458] sm:$0xff] %vm568, %v2185
      %2218 = vst.msk [vmem:[#allocation3 + $0x480] sm:$0xff] %vm568, %v2186
      %2219 = vst.msk [vmem:[#allocation3 + $0x4a8] sm:$0xff] %vm568, %v2187
      %2220 = vst.msk [vmem:[#allocation3 + $0x4d0] sm:$0xff] %vm568, %v2188
      %2221 = vst.msk [vmem:[#allocation3 + $0x4f8] sm:$0xff] %vm568, %v2189
      %v2222 = vld [vmem:[#allocation3] sm:$0xff]
      %v2223 = vld [vmem:[#allocation3 + $0x8] sm:$0xff]
      %v2224 = vld [vmem:[#allocation3 + $0x10] sm:$0xff]
      %v2225 = vld [vmem:[#allocation3 + $0x18] sm:$0xff]
      %v2226 = vld [vmem:[#allocation3 + $0x20] sm:$0xff]
      %v2227 = vld [vmem:[#allocation3 + $0x28] sm:$0xff]
      %v2228 = vld [vmem:[#allocation3 + $0x30] sm:$0xff]
      %v2229 = vld [vmem:[#allocation3 + $0x38] sm:$0xff]
      %v2230 = vld [vmem:[#allocation3 + $0x40] sm:$0xff]
      %v2231 = vld [vmem:[#allocation3 + $0x48] sm:$0xff]
      %v2232 = vld [vmem:[#allocation3 + $0x50] sm:$0xff]
      %v2233 = vld [vmem:[#allocation3 + $0x58] sm:$0xff]
      %v2234 = vld [vmem:[#allocation3 + $0x60] sm:$0xff]
      %v2235 = vld [vmem:[#allocation3 + $0x68] sm:$0xff]
      %v2236 = vld [vmem:[#allocation3 + $0x70] sm:$0xff]
      %v2237 = vld [vmem:[#allocation3 + $0x78] sm:$0xff]
      %v2238 = vld [vmem:[#allocation3 + $0x80] sm:$0xff]
      %v2239 = vld [vmem:[#allocation3 + $0x88] sm:$0xff]
      %v2240 = vld [vmem:[#allocation3 + $0x90] sm:$0xff]
      %v2241 = vld [vmem:[#allocation3 + $0x98] sm:$0xff]
      %v2242 = vld [vmem:[#allocation3 + $0xa0] sm:$0xff]
      %v2243 = vld [vmem:[#allocation3 + $0xa8] sm:$0xff]
      %v2244 = vld [vmem:[#allocation3 + $0xb0] sm:$0xff]
      %v2245 = vld [vmem:[#allocation3 + $0xb8] sm:$0xff]
      %v2246 = vld [vmem:[#allocation3 + $0xc0] sm:$0xff]
      %v2247 = vld [vmem:[#allocation3 + $0xc8] sm:$0xff]
      %v2248 = vld [vmem:[#allocation3 + $0xd0] sm:$0xff]
      %v2249 = vld [vmem:[#allocation3 + $0xd8] sm:$0xff]
      %v2250 = vld [vmem:[#allocation3 + $0xe0] sm:$0xff]
      %v2251 = vld [vmem:[#allocation3 + $0xe8] sm:$0xff]
      %v2252 = vld [vmem:[#allocation3 + $0xf0] sm:$0xff]
      %v2253 = vld [vmem:[#allocation3 + $0xf8] sm:$0xff]
      %v2254 = vld [vmem:[#allocation3 + $0x100] sm:$0xff]
      %v2255 = vld [vmem:[#allocation3 + $0x108] sm:$0xff]
      %v2256 = vld [vmem:[#allocation3 + $0x110] sm:$0xff]
      %v2257 = vld [vmem:[#allocation3 + $0x118] sm:$0xff]
      %v2258 = vld [vmem:[#allocation3 + $0x120] sm:$0xff]
      %v2259 = vld [vmem:[#allocation3 + $0x128] sm:$0xff]
      %v2260 = vld [vmem:[#allocation3 + $0x130] sm:$0xff]
      %v2261 = vld [vmem:[#allocation3 + $0x138] sm:$0xff]
      %v2262 = vld [vmem:[#allocation3 + $0x140] sm:$0xff]
      %v2263 = vld [vmem:[#allocation3 + $0x148] sm:$0xff]
      %v2264 = vld [vmem:[#allocation3 + $0x150] sm:$0xff]
      %v2265 = vld [vmem:[#allocation3 + $0x158] sm:$0xff]
      %v2266 = vld [vmem:[#allocation3 + $0x160] sm:$0xff]
      %v2267 = vld [vmem:[#allocation3 + $0x168] sm:$0xff]
      %v2268 = vld [vmem:[#allocation3 + $0x170] sm:$0xff]
      %v2269 = vld [vmem:[#allocation3 + $0x178] sm:$0xff]
      %v2270 = vld [vmem:[#allocation3 + $0x180] sm:$0xff]
      %v2271 = vld [vmem:[#allocation3 + $0x188] sm:$0xff]
      %v2272 = vld [vmem:[#allocation3 + $0x190] sm:$0xff]
      %v2273 = vld [vmem:[#allocation3 + $0x198] sm:$0xff]
      %v2274 = vld [vmem:[#allocation3 + $0x1a0] sm:$0xff]
      %v2275 = vld [vmem:[#allocation3 + $0x1a8] sm:$0xff]
      %v2276 = vld [vmem:[#allocation3 + $0x1b0] sm:$0xff]
      %v2277 = vld [vmem:[#allocation3 + $0x1b8] sm:$0xff]
      %v2278 = vld [vmem:[#allocation3 + $0x1c0] sm:$0xff]
      %v2279 = vld [vmem:[#allocation3 + $0x1c8] sm:$0xff]
      %v2280 = vld [vmem:[#allocation3 + $0x1d0] sm:$0xff]
      %v2281 = vld [vmem:[#allocation3 + $0x1d8] sm:$0xff]
      %v2282 = vld [vmem:[#allocation3 + $0x1e0] sm:$0xff]
      %v2283 = vld [vmem:[#allocation3 + $0x1e8] sm:$0xff]
      %v2284 = vld [vmem:[#allocation3 + $0x1f0] sm:$0xff]
      %v2285 = vld [vmem:[#allocation3 + $0x1f8] sm:$0xff]
      %v2286 = vld [vmem:[#allocation3 + $0x200] sm:$0xff]
      %v2287 = vld [vmem:[#allocation3 + $0x208] sm:$0xff]
      %v2288 = vld [vmem:[#allocation3 + $0x210] sm:$0xff]
      %v2289 = vld [vmem:[#allocation3 + $0x218] sm:$0xff]
      %v2290 = vld [vmem:[#allocation3 + $0x220] sm:$0xff]
      %v2291 = vld [vmem:[#allocation3 + $0x228] sm:$0xff]
      %v2292 = vld [vmem:[#allocation3 + $0x230] sm:$0xff]
      %v2293 = vld [vmem:[#allocation3 + $0x238] sm:$0xff]
      %v2294 = vld [vmem:[#allocation3 + $0x240] sm:$0xff]
      %v2295 = vld [vmem:[#allocation3 + $0x248] sm:$0xff]
      %v2296 = vld [vmem:[#allocation3 + $0x250] sm:$0xff]
      %v2297 = vld [vmem:[#allocation3 + $0x258] sm:$0xff]
      %v2298 = vld [vmem:[#allocation3 + $0x260] sm:$0xff]
      %v2299 = vld [vmem:[#allocation3 + $0x268] sm:$0xff]
      %v2300 = vld [vmem:[#allocation3 + $0x270] sm:$0xff]
      %v2301 = vld [vmem:[#allocation3 + $0x278] sm:$0xff]
      %v2302 = vld [vmem:[#allocation3 + $0x280] sm:$0xff]
      %v2303 = vld [vmem:[#allocation3 + $0x288] sm:$0xff]
      %v2304 = vld [vmem:[#allocation3 + $0x290] sm:$0xff]
      %v2305 = vld [vmem:[#allocation3 + $0x298] sm:$0xff]
      %v2306 = vld [vmem:[#allocation3 + $0x2a0] sm:$0xff]
      %v2307 = vld [vmem:[#allocation3 + $0x2a8] sm:$0xff]
      %v2308 = vld [vmem:[#allocation3 + $0x2b0] sm:$0xff]
      %v2309 = vld [vmem:[#allocation3 + $0x2b8] sm:$0xff]
      %v2310 = vld [vmem:[#allocation3 + $0x2c0] sm:$0xff]
      %v2311 = vld [vmem:[#allocation3 + $0x2c8] sm:$0xff]
      %v2312 = vld [vmem:[#allocation3 + $0x2d0] sm:$0xff]
      %v2313 = vld [vmem:[#allocation3 + $0x2d8] sm:$0xff]
      %v2314 = vld [vmem:[#allocation3 + $0x2e0] sm:$0xff]
      %v2315 = vld [vmem:[#allocation3 + $0x2e8] sm:$0xff]
      %v2316 = vld [vmem:[#allocation3 + $0x2f0] sm:$0xff]
      %v2317 = vld [vmem:[#allocation3 + $0x2f8] sm:$0xff]
      %v2318 = vld [vmem:[#allocation3 + $0x300] sm:$0xff]
      %v2319 = vld [vmem:[#allocation3 + $0x308] sm:$0xff]
      %v2320 = vld [vmem:[#allocation3 + $0x310] sm:$0xff]
      %v2321 = vld [vmem:[#allocation3 + $0x318] sm:$0xff]
      %v2322 = vld [vmem:[#allocation3 + $0x320] sm:$0xff]
      %v2323 = vld [vmem:[#allocation3 + $0x328] sm:$0xff]
      %v2324 = vld [vmem:[#allocation3 + $0x330] sm:$0xff]
      %v2325 = vld [vmem:[#allocation3 + $0x338] sm:$0xff]
      %v2326 = vld [vmem:[#allocation3 + $0x340] sm:$0xff]
      %v2327 = vld [vmem:[#allocation3 + $0x348] sm:$0xff]
      %v2328 = vld [vmem:[#allocation3 + $0x350] sm:$0xff]
      %v2329 = vld [vmem:[#allocation3 + $0x358] sm:$0xff]
      %v2330 = vld [vmem:[#allocation3 + $0x360] sm:$0xff]
      %v2331 = vld [vmem:[#allocation3 + $0x368] sm:$0xff]
      %v2332 = vld [vmem:[#allocation3 + $0x370] sm:$0xff]
      %v2333 = vld [vmem:[#allocation3 + $0x378] sm:$0xff]
      %v2334 = vld [vmem:[#allocation3 + $0x380] sm:$0xff]
      %v2335 = vld [vmem:[#allocation3 + $0x388] sm:$0xff]
      %v2336 = vld [vmem:[#allocation3 + $0x390] sm:$0xff]
      %v2337 = vld [vmem:[#allocation3 + $0x398] sm:$0xff]
      %v2338 = vld [vmem:[#allocation3 + $0x3a0] sm:$0xff]
      %v2339 = vld [vmem:[#allocation3 + $0x3a8] sm:$0xff]
      %v2340 = vld [vmem:[#allocation3 + $0x3b0] sm:$0xff]
      %v2341 = vld [vmem:[#allocation3 + $0x3b8] sm:$0xff]
      %v2342 = vld [vmem:[#allocation3 + $0x3c0] sm:$0xff]
      %v2343 = vld [vmem:[#allocation3 + $0x3c8] sm:$0xff]
      %v2344 = vld [vmem:[#allocation3 + $0x3d0] sm:$0xff]
      %v2345 = vld [vmem:[#allocation3 + $0x3d8] sm:$0xff]
      %v2346 = vld [vmem:[#allocation3 + $0x3e0] sm:$0xff]
      %v2347 = vld [vmem:[#allocation3 + $0x3e8] sm:$0xff]
      %v2348 = vld [vmem:[#allocation3 + $0x3f0] sm:$0xff]
      %v2349 = vld [vmem:[#allocation3 + $0x3f8] sm:$0xff]
      %v2350 = vld [vmem:[#allocation3 + $0x400] sm:$0xff]
      %v2351 = vld [vmem:[#allocation3 + $0x408] sm:$0xff]
      %v2352 = vld [vmem:[#allocation3 + $0x410] sm:$0xff]
      %v2353 = vld [vmem:[#allocation3 + $0x418] sm:$0xff]
      %v2354 = vld [vmem:[#allocation3 + $0x420] sm:$0xff]
      %v2355 = vld [vmem:[#allocation3 + $0x428] sm:$0xff]
      %v2356 = vld [vmem:[#allocation3 + $0x430] sm:$0xff]
      %v2357 = vld [vmem:[#allocation3 + $0x438] sm:$0xff]
      %v2358 = vld [vmem:[#allocation3 + $0x440] sm:$0xff]
      %v2359 = vld [vmem:[#allocation3 + $0x448] sm:$0xff]
      %v2360 = vld [vmem:[#allocation3 + $0x450] sm:$0xff]
      %v2361 = vld [vmem:[#allocation3 + $0x458] sm:$0xff]
      %v2362 = vld [vmem:[#allocation3 + $0x460] sm:$0xff]
      %v2363 = vld [vmem:[#allocation3 + $0x468] sm:$0xff]
      %v2364 = vld [vmem:[#allocation3 + $0x470] sm:$0xff]
      %v2365 = vld [vmem:[#allocation3 + $0x478] sm:$0xff]
      %v2366 = vld [vmem:[#allocation3 + $0x480] sm:$0xff]
      %v2367 = vld [vmem:[#allocation3 + $0x488] sm:$0xff]
      %v2368 = vld [vmem:[#allocation3 + $0x490] sm:$0xff]
      %v2369 = vld [vmem:[#allocation3 + $0x498] sm:$0xff]
      %v2370 = vld [vmem:[#allocation3 + $0x4a0] sm:$0xff]
      %v2371 = vld [vmem:[#allocation3 + $0x4a8] sm:$0xff]
      %v2372 = vld [vmem:[#allocation3 + $0x4b0] sm:$0xff]
      %v2373 = vld [vmem:[#allocation3 + $0x4b8] sm:$0xff]
      %v2374 = vld [vmem:[#allocation3 + $0x4c0] sm:$0xff]
      %v2375 = vld [vmem:[#allocation3 + $0x4c8] sm:$0xff]
      %v2376 = vld [vmem:[#allocation3 + $0x4d0] sm:$0xff]
      %v2377 = vld [vmem:[#allocation3 + $0x4d8] sm:$0xff]
      %v2378 = vld [vmem:[#allocation3 + $0x4e0] sm:$0xff]
      %v2379 = vld [vmem:[#allocation3 + $0x4e8] sm:$0xff]
      %v2380 = vld [vmem:[#allocation3 + $0x4f0] sm:$0xff]
      %v2381 = vld [vmem:[#allocation3 + $0x4f8] sm:$0xff]
      %v2382 = vld [vmem:[%s4] sm:$0xf]
      %v2383 = vld [vmem:[%s4 + $0x4] sm:$0xf]
      %v2384 = vld [vmem:[%s4 + $0x8] sm:$0xf]
      %v2385 = vld [vmem:[%s4 + $0xc] sm:$0xf]
      %v2386 = vld [vmem:[%s4 + $0x10] sm:$0xf]
      %v2387 = vld [vmem:[%s4 + $0x14] sm:$0xf]
      %v2388 = vld [vmem:[%s4 + $0x18] sm:$0xf]
      %v2389 = vld [vmem:[%s4 + $0x1c] sm:$0xf]
      %v2390 = vld [vmem:[%s4 + $0x20] sm:$0xf]
      %v2391 = vld [vmem:[%s4 + $0x24] sm:$0xf]
      %v2392 = vld [vmem:[%s4 + $0x28] sm:$0xf]
      %v2393 = vld [vmem:[%s4 + $0x2c] sm:$0xf]
      %v2394 = vld [vmem:[%s4 + $0x30] sm:$0xf]
      %v2395 = vld [vmem:[%s4 + $0x34] sm:$0xf]
      %v2396 = vld [vmem:[%s4 + $0x38] sm:$0xf]
      %v2397 = vld [vmem:[%s4 + $0x3c] sm:$0xf]
      %v2398 = vld [vmem:[%s4 + $0x40] sm:$0xf]
      %v2399 = vld [vmem:[%s4 + $0x44] sm:$0xf]
      %v2400 = vld [vmem:[%s4 + $0x48] sm:$0xf]
      %v2401 = vld [vmem:[%s4 + $0x4c] sm:$0xf]
      %v2402 = vld [vmem:[%s4 + $0x50] sm:$0xf]
      %v2403 = vld [vmem:[%s4 + $0x54] sm:$0xf]
      %v2404 = vld [vmem:[%s4 + $0x58] sm:$0xf]
      %v2405 = vld [vmem:[%s4 + $0x5c] sm:$0xf]
      %v2406 = vld [vmem:[%s4 + $0x60] sm:$0xf]
      %v2407 = vld [vmem:[%s4 + $0x64] sm:$0xf]
      %v2408 = vld [vmem:[%s4 + $0x68] sm:$0xf]
      %v2409 = vld [vmem:[%s4 + $0x6c] sm:$0xf]
      %v2410 = vld [vmem:[%s4 + $0x70] sm:$0xf]
      %v2411 = vld [vmem:[%s4 + $0x74] sm:$0xf]
      %v2412 = vld [vmem:[%s4 + $0x78] sm:$0xf]
      %v2413 = vld [vmem:[%s4 + $0x7c] sm:$0xf]
      %v2414 = vld [vmem:[%s4 + $0x80] sm:$0xf]
      %v2415 = vld [vmem:[%s4 + $0x84] sm:$0xf]
      %v2416 = vld [vmem:[%s4 + $0x88] sm:$0xf]
      %v2417 = vld [vmem:[%s4 + $0x8c] sm:$0xf]
      %v2418 = vld [vmem:[%s4 + $0x90] sm:$0xf]
      %v2419 = vld [vmem:[%s4 + $0x94] sm:$0xf]
      %v2420 = vld [vmem:[%s4 + $0x98] sm:$0xf]
      %v2421 = vld [vmem:[%s4 + $0x9c] sm:$0xf]
      %v2422 = vld [vmem:[%s4 + $0xa0] sm:$0xf]
      %v2423 = vld [vmem:[%s4 + $0xa4] sm:$0xf]
      %v2424 = vld [vmem:[%s4 + $0xa8] sm:$0xf]
      %v2425 = vld [vmem:[%s4 + $0xac] sm:$0xf]
      %v2426 = vld [vmem:[%s4 + $0xb0] sm:$0xf]
      %v2427 = vld [vmem:[%s4 + $0xb4] sm:$0xf]
      %v2428 = vld [vmem:[%s4 + $0xb8] sm:$0xf]
      %v2429 = vld [vmem:[%s4 + $0xbc] sm:$0xf]
      %v2430 = vld [vmem:[%s4 + $0xc0] sm:$0xf]
      %v2431 = vld [vmem:[%s4 + $0xc4] sm:$0xf]
      %v2432 = vld [vmem:[%s4 + $0xc8] sm:$0xf]
      %v2433 = vld [vmem:[%s4 + $0xcc] sm:$0xf]
      %v2434 = vld [vmem:[%s4 + $0xd0] sm:$0xf]
      %v2435 = vld [vmem:[%s4 + $0xd4] sm:$0xf]
      %v2436 = vld [vmem:[%s4 + $0xd8] sm:$0xf]
      %v2437 = vld [vmem:[%s4 + $0xdc] sm:$0xf]
      %v2438 = vld [vmem:[%s4 + $0xe0] sm:$0xf]
      %v2439 = vld [vmem:[%s4 + $0xe4] sm:$0xf]
      %v2440 = vld [vmem:[%s4 + $0xe8] sm:$0xf]
      %v2441 = vld [vmem:[%s4 + $0xec] sm:$0xf]
      %v2442 = vld [vmem:[%s4 + $0xf0] sm:$0xf]
      %v2443 = vld [vmem:[%s4 + $0xf4] sm:$0xf]
      %v2444 = vld [vmem:[%s4 + $0xf8] sm:$0xf]
      %v2445 = vld [vmem:[%s4 + $0xfc] sm:$0xf]
      %v2446 = vld [vmem:[%s4 + $0x100] sm:$0xf]
      %v2447 = vld [vmem:[%s4 + $0x104] sm:$0xf]
      %v2448 = vld [vmem:[%s4 + $0x108] sm:$0xf]
      %v2449 = vld [vmem:[%s4 + $0x10c] sm:$0xf]
      %v2450 = vld [vmem:[%s4 + $0x110] sm:$0xf]
      %v2451 = vld [vmem:[%s4 + $0x114] sm:$0xf]
      %v2452 = vld [vmem:[%s4 + $0x118] sm:$0xf]
      %v2453 = vld [vmem:[%s4 + $0x11c] sm:$0xf]
      %v2526 = vunpack.c.l.b16 %v2382
      %v2527 = vunpack.c.l.b16 %v2383
      %v2528 = vunpack.c.l.b16 %v2384
      %v2529 = vunpack.c.l.b16 %v2385
      %v2530 = vunpack.c.l.b16 %v2386
      %v2531 = vunpack.c.l.b16 %v2387
      %v2532 = vunpack.c.l.b16 %v2388
      %v2533 = vunpack.c.l.b16 %v2389
      %v2534 = vunpack.c.l.b16 %v2390
      %v2535 = vunpack.c.l.b16 %v2391
      %v2536 = vunpack.c.l.b16 %v2392
      %v2537 = vunpack.c.l.b16 %v2393
      %v2538 = vunpack.c.l.b16 %v2394
      %v2539 = vunpack.c.l.b16 %v2395
      %v2540 = vunpack.c.l.b16 %v2396
      %v2541 = vunpack.c.l.b16 %v2397
      %v2542 = vunpack.c.l.b16 %v2398
      %v2543 = vunpack.c.l.b16 %v2399
      %v2544 = vunpack.c.l.b16 %v2400
      %v2545 = vunpack.c.l.b16 %v2401
      %v2546 = vunpack.c.l.b16 %v2402
      %v2547 = vunpack.c.l.b16 %v2403
      %v2548 = vunpack.c.l.b16 %v2404
      %v2549 = vunpack.c.l.b16 %v2405
      %v2550 = vunpack.c.l.b16 %v2406
      %v2551 = vunpack.c.l.b16 %v2407
      %v2552 = vunpack.c.l.b16 %v2408
      %v2553 = vunpack.c.l.b16 %v2409
      %v2554 = vunpack.c.l.b16 %v2410
      %v2555 = vunpack.c.l.b16 %v2411
      %v2556 = vunpack.c.l.b16 %v2412
      %v2557 = vunpack.c.l.b16 %v2413
      %v2558 = vunpack.c.l.b16 %v2414
      %v2559 = vunpack.c.l.b16 %v2415
      %v2560 = vunpack.c.l.b16 %v2416
      %v2561 = vunpack.c.l.b16 %v2417
      %v2562 = vunpack.c.l.b16 %v2418
      %v2563 = vunpack.c.l.b16 %v2419
      %v2564 = vunpack.c.l.b16 %v2420
      %v2565 = vunpack.c.l.b16 %v2421
      %v2566 = vunpack.c.l.b16 %v2422
      %v2567 = vunpack.c.l.b16 %v2423
      %v2568 = vunpack.c.l.b16 %v2424
      %v2569 = vunpack.c.l.b16 %v2425
      %v2570 = vunpack.c.l.b16 %v2426
      %v2571 = vunpack.c.l.b16 %v2427
      %v2572 = vunpack.c.l.b16 %v2428
      %v2573 = vunpack.c.l.b16 %v2429
      %v2574 = vunpack.c.l.b16 %v2430
      %v2575 = vunpack.c.l.b16 %v2431
      %v2576 = vunpack.c.l.b16 %v2432
      %v2577 = vunpack.c.l.b16 %v2433
      %v2578 = vunpack.c.l.b16 %v2434
      %v2579 = vunpack.c.l.b16 %v2435
      %v2580 = vunpack.c.l.b16 %v2436
      %v2581 = vunpack.c.l.b16 %v2437
      %v2582 = vunpack.c.l.b16 %v2438
      %v2583 = vunpack.c.l.b16 %v2439
      %v2584 = vunpack.c.l.b16 %v2440
      %v2585 = vunpack.c.l.b16 %v2441
      %v2586 = vunpack.c.l.b16 %v2442
      %v2587 = vunpack.c.l.b16 %v2443
      %v2588 = vunpack.c.l.b16 %v2444
      %v2589 = vunpack.c.l.b16 %v2445
      %v2590 = vunpack.c.l.b16 %v2446
      %v2591 = vunpack.c.l.b16 %v2447
      %v2592 = vunpack.c.l.b16 %v2448
      %v2593 = vunpack.c.l.b16 %v2449
      %v2594 = vunpack.c.l.b16 %v2450
      %v2595 = vunpack.c.l.b16 %v2451
      %v2596 = vunpack.c.l.b16 %v2452
      %v2597 = vunpack.c.l.b16 %v2453
      %v2598 = vpack.c.b16 %v2527, %v2526
      %v2599 = vpack.c.b16 %v2529, %v2528
      %v2600 = vpack.c.b16 %v2531, %v2530
      %v2601 = vpack.c.b16 %v2533, %v2532
      %v2602 = vpack.c.b16 %v2535, %v2534
      %v2603 = vpack.c.b16 %v2537, %v2536
      %v2604 = vpack.c.b16 %v2539, %v2538
      %v2605 = vpack.c.b16 %v2541, %v2540
      %v2606 = vpack.c.b16 %v2543, %v2542
      %v2607 = vpack.c.b16 %v2545, %v2544
      %v2608 = vpack.c.b16 %v2547, %v2546
      %v2609 = vpack.c.b16 %v2549, %v2548
      %v2610 = vpack.c.b16 %v2551, %v2550
      %v2611 = vpack.c.b16 %v2553, %v2552
      %v2612 = vpack.c.b16 %v2555, %v2554
      %v2613 = vpack.c.b16 %v2557, %v2556
      %v2614 = vpack.c.b16 %v2559, %v2558
      %v2615 = vpack.c.b16 %v2561, %v2560
      %v2616 = vpack.c.b16 %v2563, %v2562
      %v2617 = vpack.c.b16 %v2565, %v2564
      %v2618 = vpack.c.b16 %v2567, %v2566
      %v2619 = vpack.c.b16 %v2569, %v2568
      %v2620 = vpack.c.b16 %v2571, %v2570
      %v2621 = vpack.c.b16 %v2573, %v2572
      %v2622 = vpack.c.b16 %v2575, %v2574
      %v2623 = vpack.c.b16 %v2577, %v2576
      %v2624 = vpack.c.b16 %v2579, %v2578
      %v2625 = vpack.c.b16 %v2581, %v2580
      %v2626 = vpack.c.b16 %v2583, %v2582
      %v2627 = vpack.c.b16 %v2585, %v2584
      %v2628 = vpack.c.b16 %v2587, %v2586
      %v2629 = vpack.c.b16 %v2589, %v2588
      %v2630 = vpack.c.b16 %v2591, %v2590
      %v2631 = vpack.c.b16 %v2593, %v2592
      %v2632 = vpack.c.b16 %v2595, %v2594
      %v2633 = vpack.c.b16 %v2597, %v2596
      %v2671 = vsel %vm568, %v2226, 0
      %v2674 = vsel %vm568, %v2231, 0
      %v2677 = vsel %vm568, %v2236, 0
      %v2680 = vsel %vm568, %v2241, 0
      %v2683 = vsel %vm568, %v2246, 0
      %v2686 = vsel %vm568, %v2251, 0
      %v2689 = vsel %vm568, %v2256, 0
      %v2692 = vsel %vm568, %v2261, 0
      %v2695 = vsel %vm568, %v2266, 0
      %v2698 = vsel %vm568, %v2271, 0
      %v2701 = vsel %vm568, %v2276, 0
      %v2704 = vsel %vm568, %v2281, 0
      %v2707 = vsel %vm568, %v2286, 0
      %v2710 = vsel %vm568, %v2291, 0
      %v2713 = vsel %vm568, %v2296, 0
      %v2716 = vsel %vm568, %v2301, 0
      %v2719 = vsel %vm568, %v2306, 0
      %v2722 = vsel %vm568, %v2311, 0
      %v2725 = vsel %vm568, %v2316, 0
      %v2728 = vsel %vm568, %v2321, 0
      %v2731 = vsel %vm568, %v2326, 0
      %v2734 = vsel %vm568, %v2331, 0
      %v2737 = vsel %vm568, %v2336, 0
      %v2740 = vsel %vm568, %v2341, 0
      %v2743 = vsel %vm568, %v2346, 0
      %v2746 = vsel %vm568, %v2351, 0
      %v2749 = vsel %vm568, %v2356, 0
      %v2752 = vsel %vm568, %v2361, 0
      %v2755 = vsel %vm568, %v2366, 0
      %v2758 = vsel %vm568, %v2371, 0
      %v2761 = vsel %vm568, %v2376, 0
      %v2764 = vsel %vm568, %v2381, 0
      %2766 = vmatprep.subr.bf16.mxu0 0
      %2767 = vmatpush1.bf16.msra.mxu0 %v2598
      %2768 = vmatprep.subr.bf16.mxu0 0
      %2769 = vmatpush1.bf16.msra.mxu0 %v2599
      %2770 = vmatprep.subr.bf16.mxu0 0
      %2771 = vmatpush1.bf16.msra.mxu0 %v2600
      %2772 = vmatprep.subr.bf16.mxu0 0
      %2773 = vmatpush1.bf16.msra.mxu0 %v2601
      %2774 = vmatprep.subr.bf16.mxu0 0
      %2775 = vmatpush1.bf16.msra.mxu0 %v2602
      %2776 = vmatprep.subr.bf16.mxu0 0
      %2777 = vmatpush1.bf16.msra.mxu0 %v2603
      %2778 = vmatprep.subr.bf16.mxu0 0
      %2779 = vmatpush1.bf16.msra.mxu0 %v2604
      %2780 = vmatprep.subr.bf16.mxu0 0
      %2781 = vmatpush1.bf16.msra.mxu0 %v2605
      %2782 = vmatprep.subr.bf16.mxu0 0
      %2783 = vmatpush1.bf16.msra.mxu0 %v2606
      %2784 = vmatprep.subr.bf16.mxu0 0
      %2785 = vmatpush1.bf16.msra.mxu0 %v2607
      %2786 = vmatprep.subr.bf16.mxu0 0
      %2787 = vmatpush1.bf16.msra.mxu0 %v2608
      %2788 = vmatprep.subr.bf16.mxu0 0
      %2789 = vmatpush1.bf16.msra.mxu0 %v2609
      %2790 = vmatprep.subr.bf16.mxu0 0
      %2791 = vmatpush1.bf16.msra.mxu0 %v2610
      %2792 = vmatprep.subr.bf16.mxu0 0
      %2793 = vmatpush1.bf16.msra.mxu0 %v2611
      %2794 = vmatprep.subr.bf16.mxu0 0
      %2795 = vmatpush1.bf16.msra.mxu0 %v2612
      %2796 = vmatprep.subr.bf16.mxu0 0
      %2797 = vmatpush1.bf16.msra.mxu0 %v2613
      %2798 = vmatprep.mubr.bf16.mxu0 %v2223
      %2799 = vmatmul.mubr.bf16.gmra.mrb[0].mxu0 %v2222
      %v2800 = vpop.f32.mrb[0].mxu0
      %v2801 = vadd.f32 0.0, %v2800
      %v2802 = vpop.f32.mrb[0].mxu0
      %v2803 = vpop.f32.mrb[0].mxu0
      %v2804 = vadd.f32 0.0, %v2803
      %v2805 = vpop.f32.mrb[0].mxu0
      %2806 = vmatprep.mubr.bf16.mxu0 %v2228
      %2807 = vmatmul.mubr.bf16.gmra.mrb[0].mxu0 %v2227
      %v2808 = vpop.f32.mrb[0].mxu0
      %v2809 = vadd.f32 0.0, %v2808
      %v2810 = vpop.f32.mrb[0].mxu0
      %v2811 = vpop.f32.mrb[0].mxu0
      %v2812 = vadd.f32 0.0, %v2811
      %v2813 = vpop.f32.mrb[0].mxu0
      %2814 = vmatprep.mubr.bf16.mxu0 %v2233
      %2815 = vmatmul.mubr.bf16.gmra.mrb[0].mxu0 %v2232
      %v2816 = vpop.f32.mrb[0].mxu0
      %v2817 = vadd.f32 0.0, %v2816
      %v2818 = vpop.f32.mrb[0].mxu0
      %v2819 = vpop.f32.mrb[0].mxu0
      %v2820 = vadd.f32 0.0, %v2819
      %v2821 = vpop.f32.mrb[0].mxu0
      %2822 = vmatprep.mubr.bf16.mxu0 %v2238
      %2823 = vmatmul.mubr.bf16.gmra.mrb[0].mxu0 %v2237
      %v2824 = vpop.f32.mrb[0].mxu0
      %v2825 = vadd.f32 0.0, %v2824
      %v2826 = vpop.f32.mrb[0].mxu0
      %v2827 = vpop.f32.mrb[0].mxu0
      %v2828 = vadd.f32 0.0, %v2827
      %v2829 = vpop.f32.mrb[0].mxu0
      %2830 = vmatprep.mubr.bf16.mxu0 %v2243
      %2831 = vmatmul.mubr.bf16.gmra.mrb[0].mxu0 %v2242
      %v2832 = vpop.f32.mrb[0].mxu0
      %v2833 = vadd.f32 0.0, %v2832
      %v2834 = vpop.f32.mrb[0].mxu0
      %v2835 = vpop.f32.mrb[0].mxu0
      %v2836 = vadd.f32 0.0, %v2835
      %v2837 = vpop.f32.mrb[0].mxu0
      %2838 = vmatprep.mubr.bf16.mxu0 %v2248
      %2839 = vmatmul.mubr.bf16.gmra.mrb[0].mxu0 %v2247
      %v2840 = vpop.f32.mrb[0].mxu0
      %v2841 = vadd.f32 0.0, %v2840
      %v2842 = vpop.f32.mrb[0].mxu0
      %v2843 = vpop.f32.mrb[0].mxu0
      %v2844 = vadd.f32 0.0, %v2843
      %v2845 = vpop.f32.mrb[0].mxu0
      %2846 = vmatprep.mubr.bf16.mxu0 %v2253
      %2847 = vmatmul.mubr.bf16.gmra.mrb[0].mxu0 %v2252
      %v2848 = vpop.f32.mrb[0].mxu0
      %v2849 = vadd.f32 0.0, %v2848
      %v2850 = vpop.f32.mrb[0].mxu0
      %v2851 = vpop.f32.mrb[0].mxu0
      %v2852 = vadd.f32 0.0, %v2851
      %v2853 = vpop.f32.mrb[0].mxu0
      %2854 = vmatprep.mubr.bf16.mxu0 %v2258
      %2855 = vmatmul.mubr.bf16.gmra.mrb[0].mxu0 %v2257
      %v2856 = vpop.f32.mrb[0].mxu0
      %v2857 = vadd.f32 0.0, %v2856
      %v2858 = vpop.f32.mrb[0].mxu0
      %v2859 = vpop.f32.mrb[0].mxu0
      %v2860 = vadd.f32 0.0, %v2859
      %v2861 = vpop.f32.mrb[0].mxu0
      %2862 = vmatprep.mubr.bf16.mxu0 %v2263
      %2863 = vmatmul.mubr.bf16.gmra.mrb[0].mxu0 %v2262
      %v2864 = vpop.f32.mrb[0].mxu0
      %v2865 = vadd.f32 0.0, %v2864
      %v2866 = vpop.f32.mrb[0].mxu0
      %v2867 = vpop.f32.mrb[0].mxu0
      %v2868 = vadd.f32 0.0, %v2867
      %v2869 = vpop.f32.mrb[0].mxu0
      %2870 = vmatprep.mubr.bf16.mxu0 %v2268
      %2871 = vmatmul.mubr.bf16.gmra.mrb[0].mxu0 %v2267
      %v2872 = vpop.f32.mrb[0].mxu0
      %v2873 = vadd.f32 0.0, %v2872
      %v2874 = vpop.f32.mrb[0].mxu0
      %v2875 = vpop.f32.mrb[0].mxu0
      %v2876 = vadd.f32 0.0, %v2875
      %v2877 = vpop.f32.mrb[0].mxu0
      %2878 = vmatprep.mubr.bf16.mxu0 %v2273
      %2879 = vmatmul.mubr.bf16.gmra.mrb[0].mxu0 %v2272
      %v2880 = vpop.f32.mrb[0].mxu0
      %v2881 = vadd.f32 0.0, %v2880
      %v2882 = vpop.f32.mrb[0].mxu0
      %v2883 = vpop.f32.mrb[0].mxu0
      %v2884 = vadd.f32 0.0, %v2883
      %v2885 = vpop.f32.mrb[0].mxu0
      %2886 = vmatprep.mubr.bf16.mxu0 %v2278
      %2887 = vmatmul.mubr.bf16.gmra.mrb[0].mxu0 %v2277
      %v2888 = vpop.f32.mrb[0].mxu0
      %v2889 = vadd.f32 0.0, %v2888
      %v2890 = vpop.f32.mrb[0].mxu0
      %v2891 = vpop.f32.mrb[0].mxu0
      %v2892 = vadd.f32 0.0, %v2891
      %v2893 = vpop.f32.mrb[0].mxu0
      %2894 = vmatprep.mubr.bf16.mxu0 %v2283
      %2895 = vmatmul.mubr.bf16.gmra.mrb[0].mxu0 %v2282
      %v2896 = vpop.f32.mrb[0].mxu0
      %v2897 = vadd.f32 0.0, %v2896
      %v2898 = vpop.f32.mrb[0].mxu0
      %v2899 = vpop.f32.mrb[0].mxu0
      %v2900 = vadd.f32 0.0, %v2899
      %v2901 = vpop.f32.mrb[0].mxu0
      %2902 = vmatprep.mubr.bf16.mxu0 %v2288
      %2903 = vmatmul.mubr.bf16.gmra.mrb[0].mxu0 %v2287
      %v2904 = vpop.f32.mrb[0].mxu0
      %v2905 = vadd.f32 0.0, %v2904
      %v2906 = vpop.f32.mrb[0].mxu0
      %v2907 = vpop.f32.mrb[0].mxu0
      %v2908 = vadd.f32 0.0, %v2907
      %v2909 = vpop.f32.mrb[0].mxu0
      %2910 = vmatprep.mubr.bf16.mxu0 %v2293
      %2911 = vmatmul.mubr.bf16.gmra.mrb[0].mxu0 %v2292
      %v2912 = vpop.f32.mrb[0].mxu0
      %v2913 = vadd.f32 0.0, %v2912
      %v2914 = vpop.f32.mrb[0].mxu0
      %v2915 = vpop.f32.mrb[0].mxu0
      %v2916 = vadd.f32 0.0, %v2915
      %v2917 = vpop.f32.mrb[0].mxu0
      %2918 = vmatprep.mubr.bf16.mxu0 %v2298
      %2919 = vmatmul.mubr.bf16.gmra.mrb[0].mxu0 %v2297
      %v2920 = vpop.f32.mrb[0].mxu0
      %v2921 = vadd.f32 0.0, %v2920
      %v2922 = vpop.f32.mrb[0].mxu0
      %v2923 = vpop.f32.mrb[0].mxu0
      %v2924 = vadd.f32 0.0, %v2923
      %v2925 = vpop.f32.mrb[0].mxu0
      %2926 = vmatprep.mubr.bf16.mxu0 %v2303
      %2927 = vmatmul.mubr.bf16.gmra.mrb[0].mxu0 %v2302
      %v2928 = vpop.f32.mrb[0].mxu0
      %v2929 = vadd.f32 0.0, %v2928
      %v2930 = vpop.f32.mrb[0].mxu0
      %v2931 = vpop.f32.mrb[0].mxu0
      %v2932 = vadd.f32 0.0, %v2931
      %v2933 = vpop.f32.mrb[0].mxu0
      %2934 = vmatprep.mubr.bf16.mxu0 %v2308
      %2935 = vmatmul.mubr.bf16.gmra.mrb[0].mxu0 %v2307
      %v2936 = vpop.f32.mrb[0].mxu0
      %v2937 = vadd.f32 0.0, %v2936
      %v2938 = vpop.f32.mrb[0].mxu0
      %v2939 = vpop.f32.mrb[0].mxu0
      %v2940 = vadd.f32 0.0, %v2939
      %v2941 = vpop.f32.mrb[0].mxu0
      %2942 = vmatprep.mubr.bf16.mxu0 %v2313
      %2943 = vmatmul.mubr.bf16.gmra.mrb[0].mxu0 %v2312
      %v2944 = vpop.f32.mrb[0].mxu0
      %v2945 = vadd.f32 0.0, %v2944
      %v2946 = vpop.f32.mrb[0].mxu0
      %v2947 = vpop.f32.mrb[0].mxu0
      %v2948 = vadd.f32 0.0, %v2947
      %v2949 = vpop.f32.mrb[0].mxu0
      %2950 = vmatprep.mubr.bf16.mxu0 %v2318
      %2951 = vmatmul.mubr.bf16.gmra.mrb[0].mxu0 %v2317
      %v2952 = vpop.f32.mrb[0].mxu0
      %v2953 = vadd.f32 0.0, %v2952
      %v2954 = vpop.f32.mrb[0].mxu0
      %v2955 = vpop.f32.mrb[0].mxu0
      %v2956 = vadd.f32 0.0, %v2955
      %v2957 = vpop.f32.mrb[0].mxu0
      %2958 = vmatprep.mubr.bf16.mxu0 %v2323
      %2959 = vmatmul.mubr.bf16.gmra.mrb[0].mxu0 %v2322
      %v2960 = vpop.f32.mrb[0].mxu0
      %v2961 = vadd.f32 0.0, %v2960
      %v2962 = vpop.f32.mrb[0].mxu0
      %v2963 = vpop.f32.mrb[0].mxu0
      %v2964 = vadd.f32 0.0, %v2963
      %v2965 = vpop.f32.mrb[0].mxu0
      %2966 = vmatprep.mubr.bf16.mxu0 %v2328
      %2967 = vmatmul.mubr.bf16.gmra.mrb[0].mxu0 %v2327
      %v2968 = vpop.f32.mrb[0].mxu0
      %v2969 = vadd.f32 0.0, %v2968
      %v2970 = vpop.f32.mrb[0].mxu0
      %v2971 = vpop.f32.mrb[0].mxu0
      %v2972 = vadd.f32 0.0, %v2971
      %v2973 = vpop.f32.mrb[0].mxu0
      %2974 = vmatprep.mubr.bf16.mxu0 %v2333
      %2975 = vmatmul.mubr.bf16.gmra.mrb[0].mxu0 %v2332
      %v2976 = vpop.f32.mrb[0].mxu0
      %v2977 = vadd.f32 0.0, %v2976
      %v2978 = vpop.f32.mrb[0].mxu0
      %v2979 = vpop.f32.mrb[0].mxu0
      %v2980 = vadd.f32 0.0, %v2979
      %v2981 = vpop.f32.mrb[0].mxu0
      %2982 = vmatprep.mubr.bf16.mxu0 %v2338
      %2983 = vmatmul.mubr.bf16.gmra.mrb[0].mxu0 %v2337
      %v2984 = vpop.f32.mrb[0].mxu0
      %v2985 = vadd.f32 0.0, %v2984
      %v2986 = vpop.f32.mrb[0].mxu0
      %v2987 = vpop.f32.mrb[0].mxu0
      %v2988 = vadd.f32 0.0, %v2987
      %v2989 = vpop.f32.mrb[0].mxu0
      %2990 = vmatprep.mubr.bf16.mxu0 %v2343
      %2991 = vmatmul.mubr.bf16.gmra.mrb[0].mxu0 %v2342
      %v2992 = vpop.f32.mrb[0].mxu0
      %v2993 = vadd.f32 0.0, %v2992
      %v2994 = vpop.f32.mrb[0].mxu0
      %v2995 = vpop.f32.mrb[0].mxu0
      %v2996 = vadd.f32 0.0, %v2995
      %v2997 = vpop.f32.mrb[0].mxu0
      %2998 = vmatprep.mubr.bf16.mxu0 %v2348
      %2999 = vmatmul.mubr.bf16.gmra.mrb[0].mxu0 %v2347
      %v3000 = vpop.f32.mrb[0].mxu0
      %v3001 = vadd.f32 0.0, %v3000
      %v3002 = vpop.f32.mrb[0].mxu0
      %v3003 = vpop.f32.mrb[0].mxu0
      %v3004 = vadd.f32 0.0, %v3003
      %v3005 = vpop.f32.mrb[0].mxu0
      %3006 = vmatprep.mubr.bf16.mxu0 %v2353
      %3007 = vmatmul.mubr.bf16.gmra.mrb[0].mxu0 %v2352
      %v3008 = vpop.f32.mrb[0].mxu0
      %v3009 = vadd.f32 0.0, %v3008
      %v3010 = vpop.f32.mrb[0].mxu0
      %v3011 = vpop.f32.mrb[0].mxu0
      %v3012 = vadd.f32 0.0, %v3011
      %v3013 = vpop.f32.mrb[0].mxu0
      %3014 = vmatprep.mubr.bf16.mxu0 %v2358
      %3015 = vmatmul.mubr.bf16.gmra.mrb[0].mxu0 %v2357
      %v3016 = vpop.f32.mrb[0].mxu0
      %v3017 = vadd.f32 0.0, %v3016
      %v3018 = vpop.f32.mrb[0].mxu0
      %v3019 = vpop.f32.mrb[0].mxu0
      %v3020 = vadd.f32 0.0, %v3019
      %v3021 = vpop.f32.mrb[0].mxu0
      %3022 = vmatprep.mubr.bf16.mxu0 %v2363
      %3023 = vmatmul.mubr.bf16.gmra.mrb[0].mxu0 %v2362
      %v3024 = vpop.f32.mrb[0].mxu0
      %v3025 = vadd.f32 0.0, %v3024
      %v3026 = vpop.f32.mrb[0].mxu0
      %v3027 = vpop.f32.mrb[0].mxu0
      %v3028 = vadd.f32 0.0, %v3027
      %v3029 = vpop.f32.mrb[0].mxu0
      %3030 = vmatprep.mubr.bf16.mxu0 %v2368
      %3031 = vmatmul.mubr.bf16.gmra.mrb[0].mxu0 %v2367
      %v3032 = vpop.f32.mrb[0].mxu0
      %v3033 = vadd.f32 0.0, %v3032
      %v3034 = vpop.f32.mrb[0].mxu0
      %v3035 = vpop.f32.mrb[0].mxu0
      %v3036 = vadd.f32 0.0, %v3035
      %v3037 = vpop.f32.mrb[0].mxu0
      %3038 = vmatprep.mubr.bf16.mxu0 %v2373
      %3039 = vmatmul.mubr.bf16.gmra.mrb[0].mxu0 %v2372
      %v3040 = vpop.f32.mrb[0].mxu0
      %v3041 = vadd.f32 0.0, %v3040
      %v3042 = vpop.f32.mrb[0].mxu0
      %v3043 = vpop.f32.mrb[0].mxu0
      %v3044 = vadd.f32 0.0, %v3043
      %v3045 = vpop.f32.mrb[0].mxu0
      %3046 = vmatprep.mubr.bf16.mxu0 %v2378
      %3047 = vmatmul.mubr.bf16.gmra.mrb[0].mxu0 %v2377
      %v3048 = vpop.f32.mrb[0].mxu0
      %v3049 = vadd.f32 0.0, %v3048
      %v3050 = vpop.f32.mrb[0].mxu0
      %v3051 = vpop.f32.mrb[0].mxu0
      %v3052 = vadd.f32 0.0, %v3051
      %v3053 = vpop.f32.mrb[0].mxu0
      %3054 = vdwg.mxu0
      %3055 = vmatprep.subr.bf16.mxu0 0
      %3056 = vmatpush1.bf16.msra.mxu0 %v2614
      %3057 = vmatprep.subr.bf16.mxu0 0
      %3058 = vmatpush1.bf16.msra.mxu0 %v2615
      %3059 = vmatprep.subr.bf16.mxu0 0
      %3060 = vmatpush1.bf16.msra.mxu0 %v2616
      %3061 = vmatprep.subr.bf16.mxu0 0
      %3062 = vmatpush1.bf16.msra.mxu0 %v2617
      %3063 = vmatprep.subr.bf16.mxu0 0
      %3064 = vmatpush1.bf16.msra.mxu0 %v2618
      %3065 = vmatprep.subr.bf16.mxu0 0
      %3066 = vmatpush1.bf16.msra.mxu0 %v2619
      %3067 = vmatprep.subr.bf16.mxu0 0
      %3068 = vmatpush1.bf16.msra.mxu0 %v2620
      %3069 = vmatprep.subr.bf16.mxu0 0
      %3070 = vmatpush1.bf16.msra.mxu0 %v2621
      %3071 = vmatprep.subr.bf16.mxu0 0
      %3072 = vmatpush1.bf16.msra.mxu0 %v2622
      %3073 = vmatprep.subr.bf16.mxu0 0
      %3074 = vmatpush1.bf16.msra.mxu0 %v2623
      %3075 = vmatprep.subr.bf16.mxu0 0
      %3076 = vmatpush1.bf16.msra.mxu0 %v2624
      %3077 = vmatprep.subr.bf16.mxu0 0
      %3078 = vmatpush1.bf16.msra.mxu0 %v2625
      %3079 = vmatprep.subr.bf16.mxu0 0
      %3080 = vmatpush1.bf16.msra.mxu0 %v2626
      %3081 = vmatprep.subr.bf16.mxu0 0
      %3082 = vmatpush1.bf16.msra.mxu0 %v2627
      %3083 = vmatprep.subr.bf16.mxu0 0
      %3084 = vmatpush1.bf16.msra.mxu0 %v2628
      %3085 = vmatprep.subr.bf16.mxu0 0
      %3086 = vmatpush1.bf16.msra.mxu0 %v2629
      %3087 = vmatprep.mubr.bf16.mxu0 %v2225
      %3088 = vmatmul.mubr.bf16.gmra.mrb[0].mxu0 %v2224
      %v3089 = vpop.f32.mrb[0].mxu0
      %v3090 = vadd.f32 %v2801, %v3089
      %v3091 = vpop.f32.mrb[0].mxu0
      %v3092 = vpop.f32.mrb[0].mxu0
      %v3093 = vadd.f32 %v2804, %v3092
      %v3094 = vpop.f32.mrb[0].mxu0
      %3095 = vmatprep.mubr.bf16.mxu0 %v2230
      %3096 = vmatmul.mubr.bf16.gmra.mrb[0].mxu0 %v2229
      %v3097 = vpop.f32.mrb[0].mxu0
      %v3098 = vadd.f32 %v2809, %v3097
      %v3099 = vpop.f32.mrb[0].mxu0
      %v3100 = vpop.f32.mrb[0].mxu0
      %v3101 = vadd.f32 %v2812, %v3100
      %v3102 = vpop.f32.mrb[0].mxu0
      %3103 = vmatprep.mubr.bf16.mxu0 %v2235
      %3104 = vmatmul.mubr.bf16.gmra.mrb[0].mxu0 %v2234
      %v3105 = vpop.f32.mrb[0].mxu0
      %v3106 = vadd.f32 %v2817, %v3105
      %v3107 = vpop.f32.mrb[0].mxu0
      %v3108 = vpop.f32.mrb[0].mxu0
      %v3109 = vadd.f32 %v2820, %v3108
      %v3110 = vpop.f32.mrb[0].mxu0
      %3111 = vmatprep.mubr.bf16.mxu0 %v2240
      %3112 = vmatmul.mubr.bf16.gmra.mrb[0].mxu0 %v2239
      %v3113 = vpop.f32.mrb[0].mxu0
      %v3114 = vadd.f32 %v2825, %v3113
      %v3115 = vpop.f32.mrb[0].mxu0
      %v3116 = vpop.f32.mrb[0].mxu0
      %v3117 = vadd.f32 %v2828, %v3116
      %v3118 = vpop.f32.mrb[0].mxu0
      %3119 = vmatprep.mubr.bf16.mxu0 %v2245
      %3120 = vmatmul.mubr.bf16.gmra.mrb[0].mxu0 %v2244
      %v3121 = vpop.f32.mrb[0].mxu0
      %v3122 = vadd.f32 %v2833, %v3121
      %v3123 = vpop.f32.mrb[0].mxu0
      %v3124 = vpop.f32.mrb[0].mxu0
      %v3125 = vadd.f32 %v2836, %v3124
      %v3126 = vpop.f32.mrb[0].mxu0
      %3127 = vmatprep.mubr.bf16.mxu0 %v2250
      %3128 = vmatmul.mubr.bf16.gmra.mrb[0].mxu0 %v2249
      %v3129 = vpop.f32.mrb[0].mxu0
      %v3130 = vadd.f32 %v2841, %v3129
      %v3131 = vpop.f32.mrb[0].mxu0
      %v3132 = vpop.f32.mrb[0].mxu0
      %v3133 = vadd.f32 %v2844, %v3132
      %v3134 = vpop.f32.mrb[0].mxu0
      %3135 = vmatprep.mubr.bf16.mxu0 %v2255
      %3136 = vmatmul.mubr.bf16.gmra.mrb[0].mxu0 %v2254
      %v3137 = vpop.f32.mrb[0].mxu0
      %v3138 = vadd.f32 %v2849, %v3137
      %v3139 = vpop.f32.mrb[0].mxu0
      %v3140 = vpop.f32.mrb[0].mxu0
      %v3141 = vadd.f32 %v2852, %v3140
      %v3142 = vpop.f32.mrb[0].mxu0
      %3143 = vmatprep.mubr.bf16.mxu0 %v2260
      %3144 = vmatmul.mubr.bf16.gmra.mrb[0].mxu0 %v2259
      %v3145 = vpop.f32.mrb[0].mxu0
      %v3146 = vadd.f32 %v2857, %v3145
      %v3147 = vpop.f32.mrb[0].mxu0
      %v3148 = vpop.f32.mrb[0].mxu0
      %v3149 = vadd.f32 %v2860, %v3148
      %v3150 = vpop.f32.mrb[0].mxu0
      %3151 = vmatprep.mubr.bf16.mxu0 %v2265
      %3152 = vmatmul.mubr.bf16.gmra.mrb[0].mxu0 %v2264
      %v3153 = vpop.f32.mrb[0].mxu0
      %v3154 = vadd.f32 %v2865, %v3153
      %v3155 = vpop.f32.mrb[0].mxu0
      %v3156 = vpop.f32.mrb[0].mxu0
      %v3157 = vadd.f32 %v2868, %v3156
      %v3158 = vpop.f32.mrb[0].mxu0
      %3159 = vmatprep.mubr.bf16.mxu0 %v2270
      %3160 = vmatmul.mubr.bf16.gmra.mrb[0].mxu0 %v2269
      %v3161 = vpop.f32.mrb[0].mxu0
      %v3162 = vadd.f32 %v2873, %v3161
      %v3163 = vpop.f32.mrb[0].mxu0
      %v3164 = vpop.f32.mrb[0].mxu0
      %v3165 = vadd.f32 %v2876, %v3164
      %v3166 = vpop.f32.mrb[0].mxu0
      %3167 = vmatprep.mubr.bf16.mxu0 %v2275
      %3168 = vmatmul.mubr.bf16.gmra.mrb[0].mxu0 %v2274
      %v3169 = vpop.f32.mrb[0].mxu0
      %v3170 = vadd.f32 %v2881, %v3169
      %v3171 = vpop.f32.mrb[0].mxu0
      %v3172 = vpop.f32.mrb[0].mxu0
      %v3173 = vadd.f32 %v2884, %v3172
      %v3174 = vpop.f32.mrb[0].mxu0
      %3175 = vmatprep.mubr.bf16.mxu0 %v2280
      %3176 = vmatmul.mubr.bf16.gmra.mrb[0].mxu0 %v2279
      %v3177 = vpop.f32.mrb[0].mxu0
      %v3178 = vadd.f32 %v2889, %v3177
      %v3179 = vpop.f32.mrb[0].mxu0
      %v3180 = vpop.f32.mrb[0].mxu0
      %v3181 = vadd.f32 %v2892, %v3180
      %v3182 = vpop.f32.mrb[0].mxu0
      %3183 = vmatprep.mubr.bf16.mxu0 %v2285
      %3184 = vmatmul.mubr.bf16.gmra.mrb[0].mxu0 %v2284
      %v3185 = vpop.f32.mrb[0].mxu0
      %v3186 = vadd.f32 %v2897, %v3185
      %v3187 = vpop.f32.mrb[0].mxu0
      %v3188 = vpop.f32.mrb[0].mxu0
      %v3189 = vadd.f32 %v2900, %v3188
      %v3190 = vpop.f32.mrb[0].mxu0
      %3191 = vmatprep.mubr.bf16.mxu0 %v2290
      %3192 = vmatmul.mubr.bf16.gmra.mrb[0].mxu0 %v2289
      %v3193 = vpop.f32.mrb[0].mxu0
      %v3194 = vadd.f32 %v2905, %v3193
      %v3195 = vpop.f32.mrb[0].mxu0
      %v3196 = vpop.f32.mrb[0].mxu0
      %v3197 = vadd.f32 %v2908, %v3196
      %v3198 = vpop.f32.mrb[0].mxu0
      %3199 = vmatprep.mubr.bf16.mxu0 %v2295
      %3200 = vmatmul.mubr.bf16.gmra.mrb[0].mxu0 %v2294
      %v3201 = vpop.f32.mrb[0].mxu0
      %v3202 = vadd.f32 %v2913, %v3201
      %v3203 = vpop.f32.mrb[0].mxu0
      %v3204 = vpop.f32.mrb[0].mxu0
      %v3205 = vadd.f32 %v2916, %v3204
      %v3206 = vpop.f32.mrb[0].mxu0
      %3207 = vmatprep.mubr.bf16.mxu0 %v2300
      %3208 = vmatmul.mubr.bf16.gmra.mrb[0].mxu0 %v2299
      %v3209 = vpop.f32.mrb[0].mxu0
      %v3210 = vadd.f32 %v2921, %v3209
      %v3211 = vpop.f32.mrb[0].mxu0
      %v3212 = vpop.f32.mrb[0].mxu0
      %v3213 = vadd.f32 %v2924, %v3212
      %v3214 = vpop.f32.mrb[0].mxu0
      %3215 = vmatprep.mubr.bf16.mxu0 %v2305
      %3216 = vmatmul.mubr.bf16.gmra.mrb[0].mxu0 %v2304
      %v3217 = vpop.f32.mrb[0].mxu0
      %v3218 = vadd.f32 %v2929, %v3217
      %v3219 = vpop.f32.mrb[0].mxu0
      %v3220 = vpop.f32.mrb[0].mxu0
      %v3221 = vadd.f32 %v2932, %v3220
      %v3222 = vpop.f32.mrb[0].mxu0
      %3223 = vmatprep.mubr.bf16.mxu0 %v2310
      %3224 = vmatmul.mubr.bf16.gmra.mrb[0].mxu0 %v2309
      %v3225 = vpop.f32.mrb[0].mxu0
      %v3226 = vadd.f32 %v2937, %v3225
      %v3227 = vpop.f32.mrb[0].mxu0
      %v3228 = vpop.f32.mrb[0].mxu0
      %v3229 = vadd.f32 %v2940, %v3228
      %v3230 = vpop.f32.mrb[0].mxu0
      %3231 = vmatprep.mubr.bf16.mxu0 %v2315
      %3232 = vmatmul.mubr.bf16.gmra.mrb[0].mxu0 %v2314
      %v3233 = vpop.f32.mrb[0].mxu0
      %v3234 = vadd.f32 %v2945, %v3233
      %v3235 = vpop.f32.mrb[0].mxu0
      %v3236 = vpop.f32.mrb[0].mxu0
      %v3237 = vadd.f32 %v2948, %v3236
      %v3238 = vpop.f32.mrb[0].mxu0
      %3239 = vmatprep.mubr.bf16.mxu0 %v2320
      %3240 = vmatmul.mubr.bf16.gmra.mrb[0].mxu0 %v2319
      %v3241 = vpop.f32.mrb[0].mxu0
      %v3242 = vadd.f32 %v2953, %v3241
      %v3243 = vpop.f32.mrb[0].mxu0
      %v3244 = vpop.f32.mrb[0].mxu0
      %v3245 = vadd.f32 %v2956, %v3244
      %v3246 = vpop.f32.mrb[0].mxu0
      %3247 = vmatprep.mubr.bf16.mxu0 %v2325
      %3248 = vmatmul.mubr.bf16.gmra.mrb[0].mxu0 %v2324
      %v3249 = vpop.f32.mrb[0].mxu0
      %v3250 = vadd.f32 %v2961, %v3249
      %v3251 = vpop.f32.mrb[0].mxu0
      %v3252 = vpop.f32.mrb[0].mxu0
      %v3253 = vadd.f32 %v2964, %v3252
      %v3254 = vpop.f32.mrb[0].mxu0
      %3255 = vmatprep.mubr.bf16.mxu0 %v2330
      %3256 = vmatmul.mubr.bf16.gmra.mrb[0].mxu0 %v2329
      %v3257 = vpop.f32.mrb[0].mxu0
      %v3258 = vadd.f32 %v2969, %v3257
      %v3259 = vpop.f32.mrb[0].mxu0
      %v3260 = vpop.f32.mrb[0].mxu0
      %v3261 = vadd.f32 %v2972, %v3260
      %v3262 = vpop.f32.mrb[0].mxu0
      %3263 = vmatprep.mubr.bf16.mxu0 %v2335
      %3264 = vmatmul.mubr.bf16.gmra.mrb[0].mxu0 %v2334
      %v3265 = vpop.f32.mrb[0].mxu0
      %v3266 = vadd.f32 %v2977, %v3265
      %v3267 = vpop.f32.mrb[0].mxu0
      %v3268 = vpop.f32.mrb[0].mxu0
      %v3269 = vadd.f32 %v2980, %v3268
      %v3270 = vpop.f32.mrb[0].mxu0
      %3271 = vmatprep.mubr.bf16.mxu0 %v2340
      %3272 = vmatmul.mubr.bf16.gmra.mrb[0].mxu0 %v2339
      %v3273 = vpop.f32.mrb[0].mxu0
      %v3274 = vadd.f32 %v2985, %v3273
      %v3275 = vpop.f32.mrb[0].mxu0
      %v3276 = vpop.f32.mrb[0].mxu0
      %v3277 = vadd.f32 %v2988, %v3276
      %v3278 = vpop.f32.mrb[0].mxu0
      %3279 = vmatprep.mubr.bf16.mxu0 %v2345
      %3280 = vmatmul.mubr.bf16.gmra.mrb[0].mxu0 %v2344
      %v3281 = vpop.f32.mrb[0].mxu0
      %v3282 = vadd.f32 %v2993, %v3281
      %v3283 = vpop.f32.mrb[0].mxu0
      %v3284 = vpop.f32.mrb[0].mxu0
      %v3285 = vadd.f32 %v2996, %v3284
      %v3286 = vpop.f32.mrb[0].mxu0
      %3287 = vmatprep.mubr.bf16.mxu0 %v2350
      %3288 = vmatmul.mubr.bf16.gmra.mrb[0].mxu0 %v2349
      %v3289 = vpop.f32.mrb[0].mxu0
      %v3290 = vadd.f32 %v3001, %v3289
      %v3291 = vpop.f32.mrb[0].mxu0
      %v3292 = vpop.f32.mrb[0].mxu0
      %v3293 = vadd.f32 %v3004, %v3292
      %v3294 = vpop.f32.mrb[0].mxu0
      %3295 = vmatprep.mubr.bf16.mxu0 %v2355
      %3296 = vmatmul.mubr.bf16.gmra.mrb[0].mxu0 %v2354
      %v3297 = vpop.f32.mrb[0].mxu0
      %v3298 = vadd.f32 %v3009, %v3297
      %v3299 = vpop.f32.mrb[0].mxu0
      %v3300 = vpop.f32.mrb[0].mxu0
      %v3301 = vadd.f32 %v3012, %v3300
      %v3302 = vpop.f32.mrb[0].mxu0
      %3303 = vmatprep.mubr.bf16.mxu0 %v2360
      %3304 = vmatmul.mubr.bf16.gmra.mrb[0].mxu0 %v2359
      %v3305 = vpop.f32.mrb[0].mxu0
      %v3306 = vadd.f32 %v3017, %v3305
      %v3307 = vpop.f32.mrb[0].mxu0
      %v3308 = vpop.f32.mrb[0].mxu0
      %v3309 = vadd.f32 %v3020, %v3308
      %v3310 = vpop.f32.mrb[0].mxu0
      %3311 = vmatprep.mubr.bf16.mxu0 %v2365
      %3312 = vmatmul.mubr.bf16.gmra.mrb[0].mxu0 %v2364
      %v3313 = vpop.f32.mrb[0].mxu0
      %v3314 = vadd.f32 %v3025, %v3313
      %v3315 = vpop.f32.mrb[0].mxu0
      %v3316 = vpop.f32.mrb[0].mxu0
      %v3317 = vadd.f32 %v3028, %v3316
      %v3318 = vpop.f32.mrb[0].mxu0
      %3319 = vmatprep.mubr.bf16.mxu0 %v2370
      %3320 = vmatmul.mubr.bf16.gmra.mrb[0].mxu0 %v2369
      %v3321 = vpop.f32.mrb[0].mxu0
      %v3322 = vadd.f32 %v3033, %v3321
      %v3323 = vpop.f32.mrb[0].mxu0
      %v3324 = vpop.f32.mrb[0].mxu0
      %v3325 = vadd.f32 %v3036, %v3324
      %v3326 = vpop.f32.mrb[0].mxu0
      %3327 = vmatprep.mubr.bf16.mxu0 %v2375
      %3328 = vmatmul.mubr.bf16.gmra.mrb[0].mxu0 %v2374
      %v3329 = vpop.f32.mrb[0].mxu0
      %v3330 = vadd.f32 %v3041, %v3329
      %v3331 = vpop.f32.mrb[0].mxu0
      %v3332 = vpop.f32.mrb[0].mxu0
      %v3333 = vadd.f32 %v3044, %v3332
      %v3334 = vpop.f32.mrb[0].mxu0
      %3335 = vmatprep.mubr.bf16.mxu0 %v2380
      %3336 = vmatmul.mubr.bf16.gmra.mrb[0].mxu0 %v2379
      %v3337 = vpop.f32.mrb[0].mxu0
      %v3338 = vadd.f32 %v3049, %v3337
      %v3339 = vpop.f32.mrb[0].mxu0
      %v3340 = vpop.f32.mrb[0].mxu0
      %v3341 = vadd.f32 %v3052, %v3340
      %v3342 = vpop.f32.mrb[0].mxu0
      %3343 = vdwg.mxu0
      %3344 = vmatprep.subr.bf16.mxu0 0
      %3345 = vmatpush1.bf16.msra.mxu0 %v2630
      %3346 = vmatprep.subr.bf16.mxu0 0
      %3347 = vmatpush1.bf16.msra.mxu0 %v2631
      %3348 = vmatprep.subr.bf16.mxu0 0
      %3349 = vmatpush1.bf16.msra.mxu0 %v2632
      %3350 = vmatprep.subr.bf16.mxu0 0
      %3351 = vmatpush1.bf16.msra.mxu0 %v2633
      %3352 = vmatprep.subr.bf16.mxu0 0
      %3353 = vmatpush1.bf16.msra.mxu0 0
      %3354 = vmatprep.subr.bf16.mxu0 0
      %3355 = vmatpush1.bf16.msra.mxu0 0
      %3356 = vmatprep.subr.bf16.mxu0 0
      %3357 = vmatpush1.bf16.msra.mxu0 0
      %3358 = vmatprep.subr.bf16.mxu0 0
      %3359 = vmatpush1.bf16.msra.mxu0 0
      %3360 = vmatprep.subr.bf16.mxu0 0
      %3361 = vmatpush1.bf16.msra.mxu0 0
      %3362 = vmatprep.subr.bf16.mxu0 0
      %3363 = vmatpush1.bf16.msra.mxu0 0
      %3364 = vmatprep.subr.bf16.mxu0 0
      %3365 = vmatpush1.bf16.msra.mxu0 0
      %3366 = vmatprep.subr.bf16.mxu0 0
      %3367 = vmatpush1.bf16.msra.mxu0 0
      %3368 = vmatprep.subr.bf16.mxu0 0
      %3369 = vmatpush1.bf16.msra.mxu0 0
      %3370 = vmatprep.subr.bf16.mxu0 0
      %3371 = vmatpush1.bf16.msra.mxu0 0
      %3372 = vmatprep.subr.bf16.mxu0 0
      %3373 = vmatpush1.bf16.msra.mxu0 0
      %3374 = vmatprep.subr.bf16.mxu0 0
      %3375 = vmatpush1.bf16.msra.mxu0 0
      %3376 = vmatprep.mubr.bf16.mxu0 0
      %3377 = vmatmul.mubr.bf16.gmra.mrb[0].mxu0 %v2671
      %v3378 = vpop.f32.mrb[0].mxu0
      %v3379 = vadd.f32 %v3090, %v3378
      %v3380 = vpop.f32.mrb[0].mxu0
      %v3381 = vpop.f32.mrb[0].mxu0
      %v3382 = vadd.f32 %v3093, %v3381
      %v3383 = vpop.f32.mrb[0].mxu0
      %3384 = vmatprep.mubr.bf16.mxu0 0
      %3385 = vmatmul.mubr.bf16.gmra.mrb[0].mxu0 %v2674
      %v3386 = vpop.f32.mrb[0].mxu0
      %v3387 = vadd.f32 %v3098, %v3386
      %v3388 = vpop.f32.mrb[0].mxu0
      %v3389 = vpop.f32.mrb[0].mxu0
      %v3390 = vadd.f32 %v3101, %v3389
      %v3391 = vpop.f32.mrb[0].mxu0
      %3392 = vmatprep.mubr.bf16.mxu0 0
      %3393 = vmatmul.mubr.bf16.gmra.mrb[0].mxu0 %v2677
      %v3394 = vpop.f32.mrb[0].mxu0
      %v3395 = vadd.f32 %v3106, %v3394
      %v3396 = vpop.f32.mrb[0].mxu0
      %v3397 = vpop.f32.mrb[0].mxu0
      %v3398 = vadd.f32 %v3109, %v3397
      %v3399 = vpop.f32.mrb[0].mxu0
      %3400 = vmatprep.mubr.bf16.mxu0 0
      %3401 = vmatmul.mubr.bf16.gmra.mrb[0].mxu0 %v2680
      %v3402 = vpop.f32.mrb[0].mxu0
      %v3403 = vadd.f32 %v3114, %v3402
      %v3404 = vpop.f32.mrb[0].mxu0
      %v3405 = vpop.f32.mrb[0].mxu0
      %v3406 = vadd.f32 %v3117, %v3405
      %v3407 = vpop.f32.mrb[0].mxu0
      %3408 = vmatprep.mubr.bf16.mxu0 0
      %3409 = vmatmul.mubr.bf16.gmra.mrb[0].mxu0 %v2683
      %v3410 = vpop.f32.mrb[0].mxu0
      %v3411 = vadd.f32 %v3122, %v3410
      %v3412 = vpop.f32.mrb[0].mxu0
      %v3413 = vpop.f32.mrb[0].mxu0
      %v3414 = vadd.f32 %v3125, %v3413
      %v3415 = vpop.f32.mrb[0].mxu0
      %3416 = vmatprep.mubr.bf16.mxu0 0
      %3417 = vmatmul.mubr.bf16.gmra.mrb[0].mxu0 %v2686
      %v3418 = vpop.f32.mrb[0].mxu0
      %v3419 = vadd.f32 %v3130, %v3418
      %v3420 = vpop.f32.mrb[0].mxu0
      %v3421 = vpop.f32.mrb[0].mxu0
      %v3422 = vadd.f32 %v3133, %v3421
      %v3423 = vpop.f32.mrb[0].mxu0
      %3424 = vmatprep.mubr.bf16.mxu0 0
      %3425 = vmatmul.mubr.bf16.gmra.mrb[0].mxu0 %v2689
      %v3426 = vpop.f32.mrb[0].mxu0
      %v3427 = vadd.f32 %v3138, %v3426
      %v3428 = vpop.f32.mrb[0].mxu0
      %v3429 = vpop.f32.mrb[0].mxu0
      %v3430 = vadd.f32 %v3141, %v3429
      %v3431 = vpop.f32.mrb[0].mxu0
      %3432 = vmatprep.mubr.bf16.mxu0 0
      %3433 = vmatmul.mubr.bf16.gmra.mrb[0].mxu0 %v2692
      %v3434 = vpop.f32.mrb[0].mxu0
      %v3435 = vadd.f32 %v3146, %v3434
      %v3436 = vpop.f32.mrb[0].mxu0
      %v3437 = vpop.f32.mrb[0].mxu0
      %v3438 = vadd.f32 %v3149, %v3437
      %v3439 = vpop.f32.mrb[0].mxu0
      %3440 = vmatprep.mubr.bf16.mxu0 0
      %3441 = vmatmul.mubr.bf16.gmra.mrb[0].mxu0 %v2695
      %v3442 = vpop.f32.mrb[0].mxu0
      %v3443 = vadd.f32 %v3154, %v3442
      %v3444 = vpop.f32.mrb[0].mxu0
      %v3445 = vpop.f32.mrb[0].mxu0
      %v3446 = vadd.f32 %v3157, %v3445
      %v3447 = vpop.f32.mrb[0].mxu0
      %3448 = vmatprep.mubr.bf16.mxu0 0
      %3449 = vmatmul.mubr.bf16.gmra.mrb[0].mxu0 %v2698
      %v3450 = vpop.f32.mrb[0].mxu0
      %v3451 = vadd.f32 %v3162, %v3450
      %v3452 = vpop.f32.mrb[0].mxu0
      %v3453 = vpop.f32.mrb[0].mxu0
      %v3454 = vadd.f32 %v3165, %v3453
      %v3455 = vpop.f32.mrb[0].mxu0
      %3456 = vmatprep.mubr.bf16.mxu0 0
      %3457 = vmatmul.mubr.bf16.gmra.mrb[0].mxu0 %v2701
      %v3458 = vpop.f32.mrb[0].mxu0
      %v3459 = vadd.f32 %v3170, %v3458
      %v3460 = vpop.f32.mrb[0].mxu0
      %v3461 = vpop.f32.mrb[0].mxu0
      %v3462 = vadd.f32 %v3173, %v3461
      %v3463 = vpop.f32.mrb[0].mxu0
      %3464 = vmatprep.mubr.bf16.mxu0 0
      %3465 = vmatmul.mubr.bf16.gmra.mrb[0].mxu0 %v2704
      %v3466 = vpop.f32.mrb[0].mxu0
      %v3467 = vadd.f32 %v3178, %v3466
      %v3468 = vpop.f32.mrb[0].mxu0
      %v3469 = vpop.f32.mrb[0].mxu0
      %v3470 = vadd.f32 %v3181, %v3469
      %v3471 = vpop.f32.mrb[0].mxu0
      %3472 = vmatprep.mubr.bf16.mxu0 0
      %3473 = vmatmul.mubr.bf16.gmra.mrb[0].mxu0 %v2707
      %v3474 = vpop.f32.mrb[0].mxu0
      %v3475 = vadd.f32 %v3186, %v3474
      %v3476 = vpop.f32.mrb[0].mxu0
      %v3477 = vpop.f32.mrb[0].mxu0
      %v3478 = vadd.f32 %v3189, %v3477
      %v3479 = vpop.f32.mrb[0].mxu0
      %3480 = vmatprep.mubr.bf16.mxu0 0
      %3481 = vmatmul.mubr.bf16.gmra.mrb[0].mxu0 %v2710
      %v3482 = vpop.f32.mrb[0].mxu0
      %v3483 = vadd.f32 %v3194, %v3482
      %v3484 = vpop.f32.mrb[0].mxu0
      %v3485 = vpop.f32.mrb[0].mxu0
      %v3486 = vadd.f32 %v3197, %v3485
      %v3487 = vpop.f32.mrb[0].mxu0
      %3488 = vmatprep.mubr.bf16.mxu0 0
      %3489 = vmatmul.mubr.bf16.gmra.mrb[0].mxu0 %v2713
      %v3490 = vpop.f32.mrb[0].mxu0
      %v3491 = vadd.f32 %v3202, %v3490
      %v3492 = vpop.f32.mrb[0].mxu0
      %v3493 = vpop.f32.mrb[0].mxu0
      %v3494 = vadd.f32 %v3205, %v3493
      %v3495 = vpop.f32.mrb[0].mxu0
      %3496 = vmatprep.mubr.bf16.mxu0 0
      %3497 = vmatmul.mubr.bf16.gmra.mrb[0].mxu0 %v2716
      %v3498 = vpop.f32.mrb[0].mxu0
      %v3499 = vadd.f32 %v3210, %v3498
      %v3500 = vpop.f32.mrb[0].mxu0
      %v3501 = vpop.f32.mrb[0].mxu0
      %v3502 = vadd.f32 %v3213, %v3501
      %v3503 = vpop.f32.mrb[0].mxu0
      %3504 = vmatprep.mubr.bf16.mxu0 0
      %3505 = vmatmul.mubr.bf16.gmra.mrb[0].mxu0 %v2719
      %v3506 = vpop.f32.mrb[0].mxu0
      %v3507 = vadd.f32 %v3218, %v3506
      %v3508 = vpop.f32.mrb[0].mxu0
      %v3509 = vpop.f32.mrb[0].mxu0
      %v3510 = vadd.f32 %v3221, %v3509
      %v3511 = vpop.f32.mrb[0].mxu0
      %3512 = vmatprep.mubr.bf16.mxu0 0
      %3513 = vmatmul.mubr.bf16.gmra.mrb[0].mxu0 %v2722
      %v3514 = vpop.f32.mrb[0].mxu0
      %v3515 = vadd.f32 %v3226, %v3514
      %v3516 = vpop.f32.mrb[0].mxu0
      %v3517 = vpop.f32.mrb[0].mxu0
      %v3518 = vadd.f32 %v3229, %v3517
      %v3519 = vpop.f32.mrb[0].mxu0
      %3520 = vmatprep.mubr.bf16.mxu0 0
      %3521 = vmatmul.mubr.bf16.gmra.mrb[0].mxu0 %v2725
      %v3522 = vpop.f32.mrb[0].mxu0
      %v3523 = vadd.f32 %v3234, %v3522
      %v3524 = vpop.f32.mrb[0].mxu0
      %v3525 = vpop.f32.mrb[0].mxu0
      %v3526 = vadd.f32 %v3237, %v3525
      %v3527 = vpop.f32.mrb[0].mxu0
      %3528 = vmatprep.mubr.bf16.mxu0 0
      %3529 = vmatmul.mubr.bf16.gmra.mrb[0].mxu0 %v2728
      %v3530 = vpop.f32.mrb[0].mxu0
      %v3531 = vadd.f32 %v3242, %v3530
      %v3532 = vpop.f32.mrb[0].mxu0
      %v3533 = vpop.f32.mrb[0].mxu0
      %v3534 = vadd.f32 %v3245, %v3533
      %v3535 = vpop.f32.mrb[0].mxu0
      %3536 = vmatprep.mubr.bf16.mxu0 0
      %3537 = vmatmul.mubr.bf16.gmra.mrb[0].mxu0 %v2731
      %v3538 = vpop.f32.mrb[0].mxu0
      %v3539 = vadd.f32 %v3250, %v3538
      %v3540 = vpop.f32.mrb[0].mxu0
      %v3541 = vpop.f32.mrb[0].mxu0
      %v3542 = vadd.f32 %v3253, %v3541
      %v3543 = vpop.f32.mrb[0].mxu0
      %3544 = vmatprep.mubr.bf16.mxu0 0
      %3545 = vmatmul.mubr.bf16.gmra.mrb[0].mxu0 %v2734
      %v3546 = vpop.f32.mrb[0].mxu0
      %v3547 = vadd.f32 %v3258, %v3546
      %v3548 = vpop.f32.mrb[0].mxu0
      %v3549 = vpop.f32.mrb[0].mxu0
      %v3550 = vadd.f32 %v3261, %v3549
      %v3551 = vpop.f32.mrb[0].mxu0
      %3552 = vmatprep.mubr.bf16.mxu0 0
      %3553 = vmatmul.mubr.bf16.gmra.mrb[0].mxu0 %v2737
      %v3554 = vpop.f32.mrb[0].mxu0
      %v3555 = vadd.f32 %v3266, %v3554
      %v3556 = vpop.f32.mrb[0].mxu0
      %v3557 = vpop.f32.mrb[0].mxu0
      %v3558 = vadd.f32 %v3269, %v3557
      %v3559 = vpop.f32.mrb[0].mxu0
      %3560 = vmatprep.mubr.bf16.mxu0 0
      %3561 = vmatmul.mubr.bf16.gmra.mrb[0].mxu0 %v2740
      %v3562 = vpop.f32.mrb[0].mxu0
      %v3563 = vadd.f32 %v3274, %v3562
      %v3564 = vpop.f32.mrb[0].mxu0
      %v3565 = vpop.f32.mrb[0].mxu0
      %v3566 = vadd.f32 %v3277, %v3565
      %v3567 = vpop.f32.mrb[0].mxu0
      %3568 = vmatprep.mubr.bf16.mxu0 0
      %3569 = vmatmul.mubr.bf16.gmra.mrb[0].mxu0 %v2743
      %v3570 = vpop.f32.mrb[0].mxu0
      %v3571 = vadd.f32 %v3282, %v3570
      %v3572 = vpop.f32.mrb[0].mxu0
      %v3573 = vpop.f32.mrb[0].mxu0
      %v3574 = vadd.f32 %v3285, %v3573
      %v3575 = vpop.f32.mrb[0].mxu0
      %3576 = vmatprep.mubr.bf16.mxu0 0
      %3577 = vmatmul.mubr.bf16.gmra.mrb[0].mxu0 %v2746
      %v3578 = vpop.f32.mrb[0].mxu0
      %v3579 = vadd.f32 %v3290, %v3578
      %v3580 = vpop.f32.mrb[0].mxu0
      %v3581 = vpop.f32.mrb[0].mxu0
      %v3582 = vadd.f32 %v3293, %v3581
      %v3583 = vpop.f32.mrb[0].mxu0
      %3584 = vmatprep.mubr.bf16.mxu0 0
      %3585 = vmatmul.mubr.bf16.gmra.mrb[0].mxu0 %v2749
      %v3586 = vpop.f32.mrb[0].mxu0
      %v3587 = vadd.f32 %v3298, %v3586
      %v3588 = vpop.f32.mrb[0].mxu0
      %v3589 = vpop.f32.mrb[0].mxu0
      %v3590 = vadd.f32 %v3301, %v3589
      %v3591 = vpop.f32.mrb[0].mxu0
      %3592 = vmatprep.mubr.bf16.mxu0 0
      %3593 = vmatmul.mubr.bf16.gmra.mrb[0].mxu0 %v2752
      %v3594 = vpop.f32.mrb[0].mxu0
      %v3595 = vadd.f32 %v3306, %v3594
      %v3596 = vpop.f32.mrb[0].mxu0
      %v3597 = vpop.f32.mrb[0].mxu0
      %v3598 = vadd.f32 %v3309, %v3597
      %v3599 = vpop.f32.mrb[0].mxu0
      %3600 = vmatprep.mubr.bf16.mxu0 0
      %3601 = vmatmul.mubr.bf16.gmra.mrb[0].mxu0 %v2755
      %v3602 = vpop.f32.mrb[0].mxu0
      %v3603 = vadd.f32 %v3314, %v3602
      %v3604 = vpop.f32.mrb[0].mxu0
      %v3605 = vpop.f32.mrb[0].mxu0
      %v3606 = vadd.f32 %v3317, %v3605
      %v3607 = vpop.f32.mrb[0].mxu0
      %3608 = vmatprep.mubr.bf16.mxu0 0
      %3609 = vmatmul.mubr.bf16.gmra.mrb[0].mxu0 %v2758
      %v3610 = vpop.f32.mrb[0].mxu0
      %v3611 = vadd.f32 %v3322, %v3610
      %v3612 = vpop.f32.mrb[0].mxu0
      %v3613 = vpop.f32.mrb[0].mxu0
      %v3614 = vadd.f32 %v3325, %v3613
      %v3615 = vpop.f32.mrb[0].mxu0
      %3616 = vmatprep.mubr.bf16.mxu0 0
      %3617 = vmatmul.mubr.bf16.gmra.mrb[0].mxu0 %v2761
      %v3618 = vpop.f32.mrb[0].mxu0
      %v3619 = vadd.f32 %v3330, %v3618
      %v3620 = vpop.f32.mrb[0].mxu0
      %v3621 = vpop.f32.mrb[0].mxu0
      %v3622 = vadd.f32 %v3333, %v3621
      %v3623 = vpop.f32.mrb[0].mxu0
      %3624 = vmatprep.mubr.bf16.mxu0 0
      %3625 = vmatmul.mubr.bf16.gmra.mrb[0].mxu0 %v2764
      %v3626 = vpop.f32.mrb[0].mxu0
      %v3627 = vadd.f32 %v3338, %v3626
      %v3628 = vpop.f32.mrb[0].mxu0
      %v3629 = vpop.f32.mrb[0].mxu0
      %v3630 = vadd.f32 %v3341, %v3629
      %v3631 = vpop.f32.mrb[0].mxu0
      %3632 = vdwg.mxu0
      %v3633 = vld [vmem:[%s234] sm:$0xff]
      %v3634 = vld [vmem:[%s234 + $0x8] sm:$0xff]
      %v3635 = vld [vmem:[%s234 + $0x10] sm:$0xff]
      %v3636 = vld [vmem:[%s234 + $0x18] sm:$0xff]
      %v3637 = vld [vmem:[%s234 + $0x20] sm:$0xff]
      %v3638 = vld [vmem:[%s234 + $0x28] sm:$0xff]
      %v3639 = vld [vmem:[%s234 + $0x30] sm:$0xff]
      %v3640 = vld [vmem:[%s234 + $0x38] sm:$0xff]
      %v3641 = vld [vmem:[%s234 + $0x40] sm:$0xff]
      %v3642 = vld [vmem:[%s234 + $0x48] sm:$0xff]
      %v3643 = vld [vmem:[%s234 + $0x50] sm:$0xff]
      %v3644 = vld [vmem:[%s234 + $0x58] sm:$0xff]
      %v3645 = vld [vmem:[%s234 + $0x60] sm:$0xff]
      %v3646 = vld [vmem:[%s234 + $0x68] sm:$0xff]
      %v3647 = vld [vmem:[%s234 + $0x70] sm:$0xff]
      %v3648 = vld [vmem:[%s234 + $0x78] sm:$0xff]
      %v3649 = vld [vmem:[%s234 + $0x80] sm:$0xff]
      %v3650 = vld [vmem:[%s234 + $0x88] sm:$0xff]
      %v3651 = vld [vmem:[%s234 + $0x90] sm:$0xff]
      %v3652 = vld [vmem:[%s234 + $0x98] sm:$0xff]
      %v3653 = vld [vmem:[%s234 + $0xa0] sm:$0xff]
      %v3654 = vld [vmem:[%s234 + $0xa8] sm:$0xff]
      %v3655 = vld [vmem:[%s234 + $0xb0] sm:$0xff]
      %v3656 = vld [vmem:[%s234 + $0xb8] sm:$0xff]
      %v3657 = vld [vmem:[%s234 + $0xc0] sm:$0xff]
      %v3658 = vld [vmem:[%s234 + $0xc8] sm:$0xff]
      %v3659 = vld [vmem:[%s234 + $0xd0] sm:$0xff]
      %v3660 = vld [vmem:[%s234 + $0xd8] sm:$0xff]
      %v3661 = vld [vmem:[%s234 + $0xe0] sm:$0xff]
      %v3662 = vld [vmem:[%s234 + $0xe8] sm:$0xff]
      %v3663 = vld [vmem:[%s234 + $0xf0] sm:$0xff]
      %v3664 = vld [vmem:[%s234 + $0xf8] sm:$0xff]
      %v3665 = vld [vmem:[%s234 + $0x100] sm:$0xff]
      %v3666 = vld [vmem:[%s234 + $0x108] sm:$0xff]
      %v3667 = vld [vmem:[%s234 + $0x110] sm:$0xff]
      %v3668 = vld [vmem:[%s234 + $0x118] sm:$0xff]
      %v3669 = vld [vmem:[%s234 + $0x120] sm:$0xff]
      %v3670 = vld [vmem:[%s234 + $0x128] sm:$0xff]
      %v3671 = vld [vmem:[%s234 + $0x130] sm:$0xff]
      %v3672 = vld [vmem:[%s234 + $0x138] sm:$0xff]
      %v3673 = vld [vmem:[%s234 + $0x140] sm:$0xff]
      %v3674 = vld [vmem:[%s234 + $0x148] sm:$0xff]
      %v3675 = vld [vmem:[%s234 + $0x150] sm:$0xff]
      %v3676 = vld [vmem:[%s234 + $0x158] sm:$0xff]
      %v3677 = vld [vmem:[%s234 + $0x160] sm:$0xff]
      %v3678 = vld [vmem:[%s234 + $0x168] sm:$0xff]
      %v3679 = vld [vmem:[%s234 + $0x170] sm:$0xff]
      %v3680 = vld [vmem:[%s234 + $0x178] sm:$0xff]
      %v3681 = vld [vmem:[%s234 + $0x180] sm:$0xff]
      %v3682 = vld [vmem:[%s234 + $0x188] sm:$0xff]
      %v3683 = vld [vmem:[%s234 + $0x190] sm:$0xff]
      %v3684 = vld [vmem:[%s234 + $0x198] sm:$0xff]
      %v3685 = vld [vmem:[%s234 + $0x1a0] sm:$0xff]
      %v3686 = vld [vmem:[%s234 + $0x1a8] sm:$0xff]
      %v3687 = vld [vmem:[%s234 + $0x1b0] sm:$0xff]
      %v3688 = vld [vmem:[%s234 + $0x1b8] sm:$0xff]
      %v3689 = vld [vmem:[%s234 + $0x1c0] sm:$0xff]
      %v3690 = vld [vmem:[%s234 + $0x1c8] sm:$0xff]
      %v3691 = vld [vmem:[%s234 + $0x1d0] sm:$0xff]
      %v3692 = vld [vmem:[%s234 + $0x1d8] sm:$0xff]
      %v3693 = vld [vmem:[%s234 + $0x1e0] sm:$0xff]
      %v3694 = vld [vmem:[%s234 + $0x1e8] sm:$0xff]
      %v3695 = vld [vmem:[%s234 + $0x1f0] sm:$0xff]
      %v3696 = vld [vmem:[%s234 + $0x1f8] sm:$0xff]
      %v3697 = vadd.f32 %v3633, %v3379
      %v3698 = vadd.f32 %v3634, %v3382
      %v3699 = vadd.f32 %v3635, %v3387
      %v3700 = vadd.f32 %v3636, %v3390
      %v3701 = vadd.f32 %v3637, %v3395
      %v3702 = vadd.f32 %v3638, %v3398
      %v3703 = vadd.f32 %v3639, %v3403
      %v3704 = vadd.f32 %v3640, %v3406
      %v3705 = vadd.f32 %v3641, %v3411
      %v3706 = vadd.f32 %v3642, %v3414
      %v3707 = vadd.f32 %v3643, %v3419
      %v3708 = vadd.f32 %v3644, %v3422
      %v3709 = vadd.f32 %v3645, %v3427
      %v3710 = vadd.f32 %v3646, %v3430
      %v3711 = vadd.f32 %v3647, %v3435
      %v3712 = vadd.f32 %v3648, %v3438
      %v3713 = vadd.f32 %v3649, %v3443
      %v3714 = vadd.f32 %v3650, %v3446
      %v3715 = vadd.f32 %v3651, %v3451
      %v3716 = vadd.f32 %v3652, %v3454
      %v3717 = vadd.f32 %v3653, %v3459
      %v3718 = vadd.f32 %v3654, %v3462
      %v3719 = vadd.f32 %v3655, %v3467
      %v3720 = vadd.f32 %v3656, %v3470
      %v3721 = vadd.f32 %v3657, %v3475
      %v3722 = vadd.f32 %v3658, %v3478
      %v3723 = vadd.f32 %v3659, %v3483
      %v3724 = vadd.f32 %v3660, %v3486
      %v3725 = vadd.f32 %v3661, %v3491
      %v3726 = vadd.f32 %v3662, %v3494
      %v3727 = vadd.f32 %v3663, %v3499
      %v3728 = vadd.f32 %v3664, %v3502
      %v3729 = vadd.f32 %v3665, %v3507
      %v3730 = vadd.f32 %v3666, %v3510
      %v3731 = vadd.f32 %v3667, %v3515
      %v3732 = vadd.f32 %v3668, %v3518
      %v3733 = vadd.f32 %v3669, %v3523
      %v3734 = vadd.f32 %v3670, %v3526
      %v3735 = vadd.f32 %v3671, %v3531
      %v3736 = vadd.f32 %v3672, %v3534
      %v3737 = vadd.f32 %v3673, %v3539
      %v3738 = vadd.f32 %v3674, %v3542
      %v3739 = vadd.f32 %v3675, %v3547
      %v3740 = vadd.f32 %v3676, %v3550
      %v3741 = vadd.f32 %v3677, %v3555
      %v3742 = vadd.f32 %v3678, %v3558
      %v3743 = vadd.f32 %v3679, %v3563
      %v3744 = vadd.f32 %v3680, %v3566
      %v3745 = vadd.f32 %v3681, %v3571
      %v3746 = vadd.f32 %v3682, %v3574
      %v3747 = vadd.f32 %v3683, %v3579
      %v3748 = vadd.f32 %v3684, %v3582
      %v3749 = vadd.f32 %v3685, %v3587
      %v3750 = vadd.f32 %v3686, %v3590
      %v3751 = vadd.f32 %v3687, %v3595
      %v3752 = vadd.f32 %v3688, %v3598
      %v3753 = vadd.f32 %v3689, %v3603
      %v3754 = vadd.f32 %v3690, %v3606
      %v3755 = vadd.f32 %v3691, %v3611
      %v3756 = vadd.f32 %v3692, %v3614
      %v3757 = vadd.f32 %v3693, %v3619
      %v3758 = vadd.f32 %v3694, %v3622
      %v3759 = vadd.f32 %v3695, %v3627
      %v3760 = vadd.f32 %v3696, %v3630
      %3761 = vst.msk [vmem:[%s244] sm:$0xff] %vm568, %v3697
      %3762 = vst.msk [vmem:[%s244 + $0x8] sm:$0xff] %vm568, %v3698
      %3763 = vst.msk [vmem:[%s244 + $0x10] sm:$0xff] %vm568, %v3699
      %3764 = vst.msk [vmem:[%s244 + $0x18] sm:$0xff] %vm568, %v3700
      %3765 = vst.msk [vmem:[%s244 + $0x20] sm:$0xff] %vm568, %v3701
      %3766 = vst.msk [vmem:[%s244 + $0x28] sm:$0xff] %vm568, %v3702
      %3767 = vst.msk [vmem:[%s244 + $0x30] sm:$0xff] %vm568, %v3703
      %3768 = vst.msk [vmem:[%s244 + $0x38] sm:$0xff] %vm568, %v3704
      %3769 = vst.msk [vmem:[%s244 + $0x40] sm:$0xff] %vm568, %v3705
      %3770 = vst.msk [vmem:[%s244 + $0x48] sm:$0xff] %vm568, %v3706
      %3771 = vst.msk [vmem:[%s244 + $0x50] sm:$0xff] %vm568, %v3707
      %3772 = vst.msk [vmem:[%s244 + $0x58] sm:$0xff] %vm568, %v3708
      %3773 = vst.msk [vmem:[%s244 + $0x60] sm:$0xff] %vm568, %v3709
      %3774 = vst.msk [vmem:[%s244 + $0x68] sm:$0xff] %vm568, %v3710
      %3775 = vst.msk [vmem:[%s244 + $0x70] sm:$0xff] %vm568, %v3711
      %3776 = vst.msk [vmem:[%s244 + $0x78] sm:$0xff] %vm568, %v3712
      %3777 = vst.msk [vmem:[%s244 + $0x80] sm:$0xff] %vm568, %v3713
      %3778 = vst.msk [vmem:[%s244 + $0x88] sm:$0xff] %vm568, %v3714
      %3779 = vst.msk [vmem:[%s244 + $0x90] sm:$0xff] %vm568, %v3715
      %3780 = vst.msk [vmem:[%s244 + $0x98] sm:$0xff] %vm568, %v3716
      %3781 = vst.msk [vmem:[%s244 + $0xa0] sm:$0xff] %vm568, %v3717
      %3782 = vst.msk [vmem:[%s244 + $0xa8] sm:$0xff] %vm568, %v3718
      %3783 = vst.msk [vmem:[%s244 + $0xb0] sm:$0xff] %vm568, %v3719
      %3784 = vst.msk [vmem:[%s244 + $0xb8] sm:$0xff] %vm568, %v3720
      %3785 = vst.msk [vmem:[%s244 + $0xc0] sm:$0xff] %vm568, %v3721
      %3786 = vst.msk [vmem:[%s244 + $0xc8] sm:$0xff] %vm568, %v3722
      %3787 = vst.msk [vmem:[%s244 + $0xd0] sm:$0xff] %vm568, %v3723
      %3788 = vst.msk [vmem:[%s244 + $0xd8] sm:$0xff] %vm568, %v3724
      %3789 = vst.msk [vmem:[%s244 + $0xe0] sm:$0xff] %vm568, %v3725
      %3790 = vst.msk [vmem:[%s244 + $0xe8] sm:$0xff] %vm568, %v3726
      %3791 = vst.msk [vmem:[%s244 + $0xf0] sm:$0xff] %vm568, %v3727
      %3792 = vst.msk [vmem:[%s244 + $0xf8] sm:$0xff] %vm568, %v3728
      %3793 = vst.msk [vmem:[%s244 + $0x100] sm:$0xff] %vm568, %v3729
      %3794 = vst.msk [vmem:[%s244 + $0x108] sm:$0xff] %vm568, %v3730
      %3795 = vst.msk [vmem:[%s244 + $0x110] sm:$0xff] %vm568, %v3731
      %3796 = vst.msk [vmem:[%s244 + $0x118] sm:$0xff] %vm568, %v3732
      %3797 = vst.msk [vmem:[%s244 + $0x120] sm:$0xff] %vm568, %v3733
      %3798 = vst.msk [vmem:[%s244 + $0x128] sm:$0xff] %vm568, %v3734
      %3799 = vst.msk [vmem:[%s244 + $0x130] sm:$0xff] %vm568, %v3735
      %3800 = vst.msk [vmem:[%s244 + $0x138] sm:$0xff] %vm568, %v3736
      %3801 = vst.msk [vmem:[%s244 + $0x140] sm:$0xff] %vm568, %v3737
      %3802 = vst.msk [vmem:[%s244 + $0x148] sm:$0xff] %vm568, %v3738
      %3803 = vst.msk [vmem:[%s244 + $0x150] sm:$0xff] %vm568, %v3739
      %3804 = vst.msk [vmem:[%s244 + $0x158] sm:$0xff] %vm568, %v3740
      %3805 = vst.msk [vmem:[%s244 + $0x160] sm:$0xff] %vm568, %v3741
      %3806 = vst.msk [vmem:[%s244 + $0x168] sm:$0xff] %vm568, %v3742
      %3807 = vst.msk [vmem:[%s244 + $0x170] sm:$0xff] %vm568, %v3743
      %3808 = vst.msk [vmem:[%s244 + $0x178] sm:$0xff] %vm568, %v3744
      %3809 = vst.msk [vmem:[%s244 + $0x180] sm:$0xff] %vm568, %v3745
      %3810 = vst.msk [vmem:[%s244 + $0x188] sm:$0xff] %vm568, %v3746
      %3811 = vst.msk [vmem:[%s244 + $0x190] sm:$0xff] %vm568, %v3747
      %3812 = vst.msk [vmem:[%s244 + $0x198] sm:$0xff] %vm568, %v3748
      %3813 = vst.msk [vmem:[%s244 + $0x1a0] sm:$0xff] %vm568, %v3749
      %3814 = vst.msk [vmem:[%s244 + $0x1a8] sm:$0xff] %vm568, %v3750
      %3815 = vst.msk [vmem:[%s244 + $0x1b0] sm:$0xff] %vm568, %v3751
      %3816 = vst.msk [vmem:[%s244 + $0x1b8] sm:$0xff] %vm568, %v3752
      %3817 = vst.msk [vmem:[%s244 + $0x1c0] sm:$0xff] %vm568, %v3753
      %3818 = vst.msk [vmem:[%s244 + $0x1c8] sm:$0xff] %vm568, %v3754
      %3819 = vst.msk [vmem:[%s244 + $0x1d0] sm:$0xff] %vm568, %v3755
      %3820 = vst.msk [vmem:[%s244 + $0x1d8] sm:$0xff] %vm568, %v3756
      %3821 = vst.msk [vmem:[%s244 + $0x1e0] sm:$0xff] %vm568, %v3757
      %3822 = vst.msk [vmem:[%s244 + $0x1e8] sm:$0xff] %vm568, %v3758
      %3823 = vst.msk [vmem:[%s244 + $0x1f0] sm:$0xff] %vm568, %v3759
      %3824 = vst.msk [vmem:[%s244 + $0x1f8] sm:$0xff] %vm568, %v3760
      %p3825 = scmp.lt.s32.totalorder %s16, 1
      %s3826 = scalar_select %p3825, %s16, 1
      %s3827 = smul.addr %s3826, 64
      %s3828 = smul.addr %s3827, 8
      %s3829 = scalar_lea.vmem %s5, %s3828
      // Predicated region
      $region41: #{hr2o_nl_pallas.3} parent=39 // pred_check
        %p3830 = pneg %p149
      $region42: #{hr2o_nl_pallas.3} parent=39 // pred_check_branch
        %3832 = sbr.rel (%p3830) target = $region44
      $region43: #{hr2o_nl_pallas.3} parent=39 // pred_region
        _
      $region44: #{hr2o_nl_pallas.3} parent=39 // pred_fallthru
        _
    $region40: #{hr2o_nl_pallas.3} parent=5 // pred_fallthru
      _
    %p3833 = scmp.le.s32.totalorder 2, %s11
    // Predicated region
    $region45: #{hr2o_nl_pallas.3} parent=5 // pred_check
      %p3834 = pneg %p3833
    $region46: #{hr2o_nl_pallas.3} parent=5 // pred_check_branch
      %3836 = sbr.rel (%p3834) target = $region48
    $region47: #{hr2o_nl_pallas.3} parent=5 // pred_region
      %s3837 = ssub.s32 %s11, 2
      // Predicated region
      $region49: #{hr2o_nl_pallas.3} parent=47 // pred_check
        %p3838 = pneg %p155
      $region50: #{hr2o_nl_pallas.3} parent=47 // pred_check_branch
        %3840 = sbr.rel (%p3838) target = $region52
      $region51: #{hr2o_nl_pallas.3} parent=47 // pred_region
        %p3841 = scmp.lt.s32.totalorder %s17, 1
        %s3842 = scalar_select %p3841, %s17, 1
        %s3843 = smul.addr %s3842, 64
        %s3844 = smul.addr %s3843, 8
        %s3845 = scalar_lea.vmem %s5, %s3844
      $region52: #{hr2o_nl_pallas.3} parent=47 // pred_fallthru
        _
    $region48: #{hr2o_nl_pallas.3} parent=5 // pred_fallthru
      _
  $region6: #{hr2o_nl_pallas.3} parent=0 // loop_footer
    %s15 = sadd.s32 1, %s11
  $region7: #{hr2o_nl_pallas.3} parent=0 // loop_footer_branch
    %10 = sbr.rel target = $region3
  $region8: #{hr2o_nl_pallas.3} parent=0 // loop_exit
    _

// kernel: hr2o_nl_pallas.2
$region0: #{hr2o_nl_pallas.2}
  #allocation0 [shape = 'u32[]', space=smem, size = 0x4, offset = 0x4, fixed_abs, tag = 'smem constant byte address 0x4 - core index']
  #allocation1 [shape = 'u32[144,128]{1,0:T(1,128)}', space=vmem, size = 0x12000, scoped, tag = 'internal scratch']
  #allocation2 [shape = 'bf16[10,80,64]{2,1,0:T(16,128)(2,1)}', space=vmem, size = 0x32000, scoped, tag = 'scratch operand']
  #allocation3 [shape = 'bf16[512,576]{1,0:T(16,128)(2,1)}', space=vmem, size = 0xa0000, scoped, tag = 'scratch operand']
  %s0 = inlined_call_operand.vmem [shape: f32[2,8,8,8,64], index: 0, kind: input, shape index: {}]
  %s1 = inlined_call_operand.vmem [shape: f32[64,64], index: 1, kind: input, shape index: {}]
  %s2 = inlined_call_operand.vmem [shape: bf16[576,192], index: 2, kind: input, shape index: {}]
  %s3 = inlined_call_operand.vmem [shape: bf16[2,8,8,8,64], index: 3, kind: output, shape index: {0}]
  %s4 = inlined_call_operand.vmem [shape: f32[2,8,128], index: 4, kind: output, shape index: {1}]
  %5 = xla_tuple %s3, %s4
  %s6 = sld [smem:[#allocation0]]
  $region53: #{hr2o_nl_pallas.2} parent=0
    _
  %s8 = ssub.s32 1, %s6
  %s9 = scalar_select 0, %s8, %s6
  loop: start=0, step=1, limit=4
  $region2: #{hr2o_nl_pallas.2} parent=0 // loop_pre_header
    _
  $region3: #{hr2o_nl_pallas.2} parent=0 // loop_header
    %s11 = sphi 0, %s15
    %p12 = scmp.ge.s32.totalorder %s11, 4
    %s21 = sphi 0, %s23
    %s24 = sphi 0, %s21
    %s25 = sphi 0, %s24
    %s41 = sphi 0, %s25
    %s45 = sphi 0, %s45
    %s47 = sphi 0, %s45
    %s48 = sphi 0, %s47
    %s62 = sphi 0, %s48
    %s66 = sphi 0, %s66
    %s68 = sphi 0, %s66
    %s69 = sphi 0, %s68
    %s83 = sphi 0, %s69
    %s89 = sphi 0, %s91
    %s92 = sphi 0, %s89
    %s93 = sphi 0, %s92
    %s109 = sphi 0, %s93
    %s115 = sphi 0, %s117
    %s118 = sphi 0, %s115
    %s119 = sphi 0, %s118
    %s135 = sphi 0, %s119
  $region4: #{hr2o_nl_pallas.2} parent=0 // loop_header_branch
    %14 = sbr.rel (%p12) target = $region8
  $region5: #{hr2o_nl_pallas.2} parent=0 // loop_body
    %s16 = ssub.s32 %s11, 1
    %s17 = ssub.s32 %s11, 2
    %s18 = sadd.s32 %s11, 1
    %s19 = ssub.s32 %s11, %s18
    %p20 = scmp.eq.s32.totalorder %s19, 0
    %s22 = sadd.s32 %s21, 1
    %s23 = scalar_select %p20, %s21, %s22
    %p26 = pneg %p20
    %p27 = scmp.eq.s32.totalorder %s11, 1
    %p28 = por %p26, %p27
    %p29 = scmp.ne.s32.totalorder %s21, %s24
    %p30 = scmp.eq.s32.totalorder %s11, 0
    %p31 = por %p29, %p30
    %p32 = scmp.ne.s32.totalorder %s21, %s24
    %p33 = scmp.eq.s32.totalorder %s16, 1
    %p34 = por %p32, %p33
    %p35 = scmp.ne.s32.totalorder %s24, %s25
    %p36 = scmp.eq.s32.totalorder %s16, 0
    %p37 = por %p35, %p36
    %p38 = scmp.ne.s32.totalorder %s24, %s25
    %p39 = scmp.eq.s32.totalorder %s17, 1
    %p40 = por %p38, %p39
    %p42 = scmp.ne.s32.totalorder %s25, %s41
    %p43 = scmp.eq.s32.totalorder %s17, 0
    %p44 = por %p42, %p43
    %s46 = sadd.s32 %s45, 1
    %p49 = scmp.eq.s32.totalorder %s11, 1
    %p50 = scmp.ne.s32.totalorder %s45, %s47
    %p51 = scmp.eq.s32.totalorder %s11, 0
    %p52 = por %p50, %p51
    %p53 = scmp.ne.s32.totalorder %s45, %s47
    %p54 = scmp.eq.s32.totalorder %s16, 1
    %p55 = por %p53, %p54
    %p56 = scmp.ne.s32.totalorder %s47, %s48
    %p57 = scmp.eq.s32.totalorder %s16, 0
    %p58 = por %p56, %p57
    %p59 = scmp.ne.s32.totalorder %s47, %s48
    %p60 = scmp.eq.s32.totalorder %s17, 1
    %p61 = por %p59, %p60
    %p63 = scmp.ne.s32.totalorder %s48, %s62
    %p64 = scmp.eq.s32.totalorder %s17, 0
    %p65 = por %p63, %p64
    %s67 = sadd.s32 %s66, 1
    %p70 = scmp.eq.s32.totalorder %s11, 1
    %p71 = scmp.ne.s32.totalorder %s66, %s68
    %p72 = scmp.eq.s32.totalorder %s11, 0
    %p73 = por %p71, %p72
    %p74 = scmp.ne.s32.totalorder %s66, %s68
    %p75 = scmp.eq.s32.totalorder %s16, 1
    %p76 = por %p74, %p75
    %p77 = scmp.ne.s32.totalorder %s68, %s69
    %p78 = scmp.eq.s32.totalorder %s16, 0
    %p79 = por %p77, %p78
    %p80 = scmp.ne.s32.totalorder %s68, %s69
    %p81 = scmp.eq.s32.totalorder %s17, 1
    %p82 = por %p80, %p81
    %p84 = scmp.ne.s32.totalorder %s69, %s83
    %p85 = scmp.eq.s32.totalorder %s17, 0
    %p86 = por %p84, %p85
    %s87 = ssub.s32 %s11, %s18
    %p88 = scmp.eq.s32.totalorder %s87, 0
    %s90 = sadd.s32 %s89, 1
    %s91 = scalar_select %p88, %s89, %s90
    %p94 = pneg %p88
    %p95 = scmp.eq.s32.totalorder %s11, 1
    %p96 = por %p94, %p95
    %p97 = scmp.ne.s32.totalorder %s89, %s92
    %p98 = scmp.eq.s32.totalorder %s11, 0
    %p99 = por %p97, %p98
    %p100 = scmp.ne.s32.totalorder %s89, %s92
    %p101 = scmp.eq.s32.totalorder %s16, 1
    %p102 = por %p100, %p101
    %p103 = scmp.ne.s32.totalorder %s92, %s93
    %p104 = scmp.eq.s32.totalorder %s16, 0
    %p105 = por %p103, %p104
    %p106 = scmp.ne.s32.totalorder %s92, %s93
    %p107 = scmp.eq.s32.totalorder %s17, 1
    %p108 = por %p106, %p107
    %p110 = scmp.ne.s32.totalorder %s93, %s109
    %p111 = scmp.eq.s32.totalorder %s17, 0
    %p112 = por %p110, %p111
    %s113 = ssub.s32 %s11, %s18
    %p114 = scmp.eq.s32.totalorder %s113, 0
    %s116 = sadd.s32 %s115, 1
    %s117 = scalar_select %p114, %s115, %s116
    %p120 = pneg %p114
    %p121 = scmp.eq.s32.totalorder %s11, 1
    %p122 = por %p120, %p121
    %p123 = scmp.ne.s32.totalorder %s115, %s118
    %p124 = scmp.eq.s32.totalorder %s11, 0
    %p125 = por %p123, %p124
    %p126 = scmp.ne.s32.totalorder %s115, %s118
    %p127 = scmp.eq.s32.totalorder %s16, 1
    %p128 = por %p126, %p127
    %p129 = scmp.ne.s32.totalorder %s118, %s119
    %p130 = scmp.eq.s32.totalorder %s16, 0
    %p131 = por %p129, %p130
    %p132 = scmp.ne.s32.totalorder %s118, %s119
    %p133 = scmp.eq.s32.totalorder %s17, 1
    %p134 = por %p132, %p133
    %p136 = scmp.ne.s32.totalorder %s119, %s135
    %p137 = scmp.eq.s32.totalorder %s17, 0
    %p138 = por %p136, %p137
    %p139 = scmp.le.s32.totalorder 1, %s11
    %p140 = scmp.lt.s32.totalorder %s11, 3
    %p141 = pnand %p139, %p140
    %p142 = pneg %p141
    // Predicated region
    $region9: #{hr2o_nl_pallas.2} parent=5 // pred_check
      _
    $region10: #{hr2o_nl_pallas.2} parent=5 // pred_check_branch
      %144 = sbr.rel (%p141) target = $region12
    $region11: #{hr2o_nl_pallas.2} parent=5 // pred_region
      %s145 = ssub.s32 %s11, 1
      // Predicated region
      $region13: #{hr2o_nl_pallas.2} parent=11 // pred_check
        %p146 = pneg %p58
      $region14: #{hr2o_nl_pallas.2} parent=11 // pred_check_branch
        %148 = sbr.rel (%p146) target = $region16
      $region15: #{hr2o_nl_pallas.2} parent=11 // pred_region
        _
      $region16: #{hr2o_nl_pallas.2} parent=11 // pred_fallthru
        _
      // Predicated region
      $region17: #{hr2o_nl_pallas.2} parent=11 // pred_check
        %p149 = pneg %p79
      $region18: #{hr2o_nl_pallas.2} parent=11 // pred_check_branch
        %151 = sbr.rel (%p149) target = $region20
      $region19: #{hr2o_nl_pallas.2} parent=11 // pred_region
        _
      $region20: #{hr2o_nl_pallas.2} parent=11 // pred_fallthru
        _
    $region12: #{hr2o_nl_pallas.2} parent=5 // pred_fallthru
      _
    %p152 = scmp.lt.s32.totalorder %s11, 2
    // Predicated region
    $region21: #{hr2o_nl_pallas.2} parent=5 // pred_check
      %p153 = pneg %p152
    $region22: #{hr2o_nl_pallas.2} parent=5 // pred_check_branch
      %155 = sbr.rel (%p153) target = $region24
    $region23: #{hr2o_nl_pallas.2} parent=5 // pred_region
      // Predicated region
      $region25: #{hr2o_nl_pallas.2} parent=23 // pred_check
        %p156 = pneg %p31
      $region26: #{hr2o_nl_pallas.2} parent=23 // pred_check_branch
        %158 = sbr.rel (%p156) target = $region28
      $region27: #{hr2o_nl_pallas.2} parent=23 // pred_region
        %p159 = scmp.lt.s32.totalorder %s11, 1
        %s160 = scalar_select %p159, %s11, 1
        %s161 = smul.addr %s160, 64
        %s162 = smul.addr %s161, 8
        %s163 = scalar_lea.vmem %s0, %s162
      $region28: #{hr2o_nl_pallas.2} parent=23 // pred_fallthru
        _
    $region24: #{hr2o_nl_pallas.2} parent=5 // pred_fallthru
      _
    %p164 = scmp.le.s32.totalorder 1, %s11
    %p165 = scmp.lt.s32.totalorder %s11, 3
    %p166 = pnand %p164, %p165
    %p167 = pneg %p166
    // Predicated region
    $region29: #{hr2o_nl_pallas.2} parent=5 // pred_check
      _
    $region30: #{hr2o_nl_pallas.2} parent=5 // pred_check_branch
      %169 = sbr.rel (%p166) target = $region32
    $region31: #{hr2o_nl_pallas.2} parent=5 // pred_region
      %s170 = ssub.s32 %s11, 1
      %p171 = scmp.lt.s32.totalorder %s16, 1
      %s172 = scalar_select %p171, %s16, 1
      %s173 = smul.addr %s172, 64
      %s174 = smul.addr %s173, 8
      %s175 = scalar_lea.vmem %s0, %s174
      %p176 = pneg %p37
      %p177 = pneg %p34
      %p178 = pneg %p58
      %p179 = pneg %p55
      %p180 = pneg %p79
      %p181 = pneg %p76
      %p182 = pneg %p105
      %p183 = pneg %p102
      %p184 = scmp.lt.s32.totalorder %s16, 1
      %s185 = scalar_select %p184, %s16, 1
      %s186 = smul.addr %s185, 64
      %s187 = smul.addr %s186, 4
      %s188 = scalar_lea.vmem %s3, %s187
      %p189 = pneg %p131
      %p190 = pneg %p128
      %p191 = scmp.lt.s32.totalorder %s16, 1
      %s192 = scalar_select %p191, %s16, 1
      %s193 = smul.addr %s192, 8
      %s194 = scalar_lea.vmem %s4, %s193
      %p195 = scmp.lt.s32.totalorder %s16, 1
      %s196 = scalar_select %p195, %s16, 1
      %s197 = smul.addr %s196, 64
      %s198 = smul.addr %s197, 8
      %s199 = scalar_lea.vmem %s0, %s198
      %p200 = scmp.lt.s32.totalorder %s16, 1
      %s201 = scalar_select %p200, %s16, 1
      %s202 = smul.addr %s201, 64
      %s203 = smul.addr %s202, 4
      %s204 = scalar_lea.vmem %s3, %s203
      %p205 = scmp.lt.s32.totalorder %s16, 1
      %s206 = scalar_select %p205, %s16, 1
      %s207 = smul.addr %s206, 8
      %s208 = scalar_lea.vmem %s4, %s207
      %vm210 = vcmask 523264
      %211 = vst.msk [vmem:[#allocation2] sm:$0xff] %vm210, 0
      %212 = vst.msk [vmem:[#allocation2 + $0x8] sm:$0xff] %vm210, 0
      %213 = vst.msk [vmem:[#allocation2 + $0x10] sm:$0xff] %vm210, 0
      %214 = vst.msk [vmem:[#allocation2 + $0x18] sm:$0xff] %vm210, 0
      %215 = vst.msk [vmem:[#allocation2 + $0x20] sm:$0xff] %vm210, 0
      %s216 = scalar_lea.vmem [#allocation2], 360
      %217 = vst.msk [vmem:[%s216] sm:$0xff] %vm210, 0
      %218 = vst.msk [vmem:[%s216 + $0x8] sm:$0xff] %vm210, 0
      %219 = vst.msk [vmem:[%s216 + $0x10] sm:$0xff] %vm210, 0
      %220 = vst.msk [vmem:[%s216 + $0x18] sm:$0xff] %vm210, 0
      %221 = vst.msk [vmem:[%s216 + $0x20] sm:$0xff] %vm210, 0
      %vm222 = vcmask 519168
      %223 = vst.msk [vmem:[#allocation2] sm:$0xf] %vm222, 0
      %224 = vst.msk [vmem:[#allocation2 + $0x28] sm:$0xf] %vm222, 0
      %225 = vst.msk [vmem:[#allocation2 + $0x50] sm:$0xf] %vm222, 0
      %226 = vst.msk [vmem:[#allocation2 + $0x78] sm:$0xf] %vm222, 0
      %227 = vst.msk [vmem:[#allocation2 + $0xa0] sm:$0xf] %vm222, 0
      %228 = vst.msk [vmem:[#allocation2 + $0xc8] sm:$0xf] %vm222, 0
      %229 = vst.msk [vmem:[#allocation2 + $0xf0] sm:$0xf] %vm222, 0
      %230 = vst.msk [vmem:[#allocation2 + $0x118] sm:$0xf] %vm222, 0
      %231 = vst.msk [vmem:[#allocation2 + $0x140] sm:$0xf] %vm222, 0
      %232 = vst.msk [vmem:[#allocation2 + $0x168] sm:$0xf] %vm222, 0
      %vm233 = vcmask 523268
      %234 = vst.msk [vmem:[#allocation2 + $0x20] sm:$0xf0] %vm233, 0
      %235 = vst.msk [vmem:[#allocation2 + $0x48] sm:$0xf0] %vm233, 0
      %236 = vst.msk [vmem:[#allocation2 + $0x70] sm:$0xf0] %vm233, 0
      %237 = vst.msk [vmem:[#allocation2 + $0x98] sm:$0xf0] %vm233, 0
      %238 = vst.msk [vmem:[#allocation2 + $0xc0] sm:$0xf0] %vm233, 0
      %239 = vst.msk [vmem:[#allocation2 + $0xe8] sm:$0xf0] %vm233, 0
      %240 = vst.msk [vmem:[#allocation2 + $0x110] sm:$0xf0] %vm233, 0
      %241 = vst.msk [vmem:[#allocation2 + $0x138] sm:$0xf0] %vm233, 0
      %242 = vst.msk [vmem:[#allocation2 + $0x160] sm:$0xf0] %vm233, 0
      %243 = vst.msk [vmem:[#allocation2 + $0x188] sm:$0xf0] %vm233, 0
      %v244 = vld [vmem:[%s199] sm:$0xff]
      %v245 = vld [vmem:[%s199 + $0x8] sm:$0xff]
      %v246 = vld [vmem:[%s199 + $0x10] sm:$0xff]
      %v247 = vld [vmem:[%s199 + $0x18] sm:$0xff]
      %v248 = vld [vmem:[%s199 + $0x20] sm:$0xff]
      %v249 = vld [vmem:[%s199 + $0x28] sm:$0xff]
      %v250 = vld [vmem:[%s199 + $0x30] sm:$0xff]
      %v251 = vld [vmem:[%s199 + $0x38] sm:$0xff]
      %v252 = vld [vmem:[%s199 + $0x40] sm:$0xff]
      %v253 = vld [vmem:[%s199 + $0x48] sm:$0xff]
      %v254 = vld [vmem:[%s199 + $0x50] sm:$0xff]
      %v255 = vld [vmem:[%s199 + $0x58] sm:$0xff]
      %v256 = vld [vmem:[%s199 + $0x60] sm:$0xff]
      %v257 = vld [vmem:[%s199 + $0x68] sm:$0xff]
      %v258 = vld [vmem:[%s199 + $0x70] sm:$0xff]
      %v259 = vld [vmem:[%s199 + $0x78] sm:$0xff]
      %v260 = vld [vmem:[%s199 + $0x80] sm:$0xff]
      %v261 = vld [vmem:[%s199 + $0x88] sm:$0xff]
      %v262 = vld [vmem:[%s199 + $0x90] sm:$0xff]
      %v263 = vld [vmem:[%s199 + $0x98] sm:$0xff]
      %v264 = vld [vmem:[%s199 + $0xa0] sm:$0xff]
      %v265 = vld [vmem:[%s199 + $0xa8] sm:$0xff]
      %v266 = vld [vmem:[%s199 + $0xb0] sm:$0xff]
      %v267 = vld [vmem:[%s199 + $0xb8] sm:$0xff]
      %v268 = vld [vmem:[%s199 + $0xc0] sm:$0xff]
      %v269 = vld [vmem:[%s199 + $0xc8] sm:$0xff]
      %v270 = vld [vmem:[%s199 + $0xd0] sm:$0xff]
      %v271 = vld [vmem:[%s199 + $0xd8] sm:$0xff]
      %v272 = vld [vmem:[%s199 + $0xe0] sm:$0xff]
      %v273 = vld [vmem:[%s199 + $0xe8] sm:$0xff]
      %v274 = vld [vmem:[%s199 + $0xf0] sm:$0xff]
      %v275 = vld [vmem:[%s199 + $0xf8] sm:$0xff]
      %v276 = vld [vmem:[%s199 + $0x100] sm:$0xff]
      %v277 = vld [vmem:[%s199 + $0x108] sm:$0xff]
      %v278 = vld [vmem:[%s199 + $0x110] sm:$0xff]
      %v279 = vld [vmem:[%s199 + $0x118] sm:$0xff]
      %v280 = vld [vmem:[%s199 + $0x120] sm:$0xff]
      %v281 = vld [vmem:[%s199 + $0x128] sm:$0xff]
      %v282 = vld [vmem:[%s199 + $0x130] sm:$0xff]
      %v283 = vld [vmem:[%s199 + $0x138] sm:$0xff]
      %v284 = vld [vmem:[%s199 + $0x140] sm:$0xff]
      %v285 = vld [vmem:[%s199 + $0x148] sm:$0xff]
      %v286 = vld [vmem:[%s199 + $0x150] sm:$0xff]
      %v287 = vld [vmem:[%s199 + $0x158] sm:$0xff]
      %v288 = vld [vmem:[%s199 + $0x160] sm:$0xff]
      %v289 = vld [vmem:[%s199 + $0x168] sm:$0xff]
      %v290 = vld [vmem:[%s199 + $0x170] sm:$0xff]
      %v291 = vld [vmem:[%s199 + $0x178] sm:$0xff]
      %v292 = vld [vmem:[%s199 + $0x180] sm:$0xff]
      %v293 = vld [vmem:[%s199 + $0x188] sm:$0xff]
      %v294 = vld [vmem:[%s199 + $0x190] sm:$0xff]
      %v295 = vld [vmem:[%s199 + $0x198] sm:$0xff]
      %v296 = vld [vmem:[%s199 + $0x1a0] sm:$0xff]
      %v297 = vld [vmem:[%s199 + $0x1a8] sm:$0xff]
      %v298 = vld [vmem:[%s199 + $0x1b0] sm:$0xff]
      %v299 = vld [vmem:[%s199 + $0x1b8] sm:$0xff]
      %v300 = vld [vmem:[%s199 + $0x1c0] sm:$0xff]
      %v301 = vld [vmem:[%s199 + $0x1c8] sm:$0xff]
      %v302 = vld [vmem:[%s199 + $0x1d0] sm:$0xff]
      %v303 = vld [vmem:[%s199 + $0x1d8] sm:$0xff]
      %v304 = vld [vmem:[%s199 + $0x1e0] sm:$0xff]
      %v305 = vld [vmem:[%s199 + $0x1e8] sm:$0xff]
      %v306 = vld [vmem:[%s199 + $0x1f0] sm:$0xff]
      %v307 = vld [vmem:[%s199 + $0x1f8] sm:$0xff]
      %v308 = vpack.c.bf16 %v245, %v244
      %v309 = vpack.c.bf16 %v247, %v246
      %v310 = vpack.c.bf16 %v249, %v248
      %v311 = vpack.c.bf16 %v251, %v250
      %v312 = vpack.c.bf16 %v253, %v252
      %v313 = vpack.c.bf16 %v255, %v254
      %v314 = vpack.c.bf16 %v257, %v256
      %v315 = vpack.c.bf16 %v259, %v258
      %v316 = vpack.c.bf16 %v261, %v260
      %v317 = vpack.c.bf16 %v263, %v262
      %v318 = vpack.c.bf16 %v265, %v264
      %v319 = vpack.c.bf16 %v267, %v266
      %v320 = vpack.c.bf16 %v269, %v268
      %v321 = vpack.c.bf16 %v271, %v270
      %v322 = vpack.c.bf16 %v273, %v272
      %v323 = vpack.c.bf16 %v275, %v274
      %v324 = vpack.c.bf16 %v277, %v276
      %v325 = vpack.c.bf16 %v279, %v278
      %v326 = vpack.c.bf16 %v281, %v280
      %v327 = vpack.c.bf16 %v283, %v282
      %v328 = vpack.c.bf16 %v285, %v284
      %v329 = vpack.c.bf16 %v287, %v286
      %v330 = vpack.c.bf16 %v289, %v288
      %v331 = vpack.c.bf16 %v291, %v290
      %v332 = vpack.c.bf16 %v293, %v292
      %v333 = vpack.c.bf16 %v295, %v294
      %v334 = vpack.c.bf16 %v297, %v296
      %v335 = vpack.c.bf16 %v299, %v298
      %v336 = vpack.c.bf16 %v301, %v300
      %v337 = vpack.c.bf16 %v303, %v302
      %v338 = vpack.c.bf16 %v305, %v304
      %v339 = vpack.c.bf16 %v307, %v306
      %vm372 = vcmask 1043456
      %v373 = vrot.slane %v308, 4
      %v374 = vrot.slane %v309, 4
      %v375 = vsel %vm372, %v373, %v374
      %v376 = vrot.slane %v310, 4
      %v377 = vsel %vm372, %v374, %v376
      %v378 = vrot.slane %v311, 4
      %v379 = vsel %vm372, %v376, %v378
      %v380 = vrot.slane %v312, 4
      %v381 = vrot.slane %v313, 4
      %v382 = vsel %vm372, %v380, %v381
      %v383 = vrot.slane %v314, 4
      %v384 = vsel %vm372, %v381, %v383
      %v385 = vrot.slane %v315, 4
      %v386 = vsel %vm372, %v383, %v385
      %v387 = vrot.slane %v316, 4
      %v388 = vrot.slane %v317, 4
      %v389 = vsel %vm372, %v387, %v388
      %v390 = vrot.slane %v318, 4
      %v391 = vsel %vm372, %v388, %v390
      %v392 = vrot.slane %v319, 4
      %v393 = vsel %vm372, %v390, %v392
      %v394 = vrot.slane %v320, 4
      %v395 = vrot.slane %v321, 4
      %v396 = vsel %vm372, %v394, %v395
      %v397 = vrot.slane %v322, 4
      %v398 = vsel %vm372, %v395, %v397
      %v399 = vrot.slane %v323, 4
      %v400 = vsel %vm372, %v397, %v399
      %v401 = vrot.slane %v324, 4
      %v402 = vrot.slane %v325, 4
      %v403 = vsel %vm372, %v401, %v402
      %v404 = vrot.slane %v326, 4
      %v405 = vsel %vm372, %v402, %v404
      %v406 = vrot.slane %v327, 4
      %v407 = vsel %vm372, %v404, %v406
      %v408 = vrot.slane %v328, 4
      %v409 = vrot.slane %v329, 4
      %v410 = vsel %vm372, %v408, %v409
      %v411 = vrot.slane %v330, 4
      %v412 = vsel %vm372, %v409, %v411
      %v413 = vrot.slane %v331, 4
      %v414 = vsel %vm372, %v411, %v413
      %v415 = vrot.slane %v332, 4
      %v416 = vrot.slane %v333, 4
      %v417 = vsel %vm372, %v415, %v416
      %v418 = vrot.slane %v334, 4
      %v419 = vsel %vm372, %v416, %v418
      %v420 = vrot.slane %v335, 4
      %v421 = vsel %vm372, %v418, %v420
      %v422 = vrot.slane %v336, 4
      %v423 = vrot.slane %v337, 4
      %v424 = vsel %vm372, %v422, %v423
      %v425 = vrot.slane %v338, 4
      %v426 = vsel %vm372, %v423, %v425
      %v427 = vrot.slane %v339, 4
      %v428 = vsel %vm372, %v425, %v427
      %s469 = scalar_lea.vmem [#allocation2], 40
      %470 = vst.msk [vmem:[%s469] sm:$0xf0] %vm233, %v373
      %471 = vst.msk [vmem:[%s469 + $0x8] sm:$0xff] %vm210, %v375
      %472 = vst.msk [vmem:[%s469 + $0x10] sm:$0xff] %vm210, %v377
      %473 = vst.msk [vmem:[%s469 + $0x18] sm:$0xff] %vm210, %v379
      %474 = vst.msk [vmem:[%s469 + $0x20] sm:$0xf] %vm222, %v378
      %475 = vst.msk [vmem:[%s469 + $0x28] sm:$0xf0] %vm233, %v380
      %476 = vst.msk [vmem:[%s469 + $0x30] sm:$0xff] %vm210, %v382
      %477 = vst.msk [vmem:[%s469 + $0x38] sm:$0xff] %vm210, %v384
      %478 = vst.msk [vmem:[%s469 + $0x40] sm:$0xff] %vm210, %v386
      %479 = vst.msk [vmem:[%s469 + $0x48] sm:$0xf] %vm222, %v385
      %480 = vst.msk [vmem:[%s469 + $0x50] sm:$0xf0] %vm233, %v387
      %481 = vst.msk [vmem:[%s469 + $0x58] sm:$0xff] %vm210, %v389
      %482 = vst.msk [vmem:[%s469 + $0x60] sm:$0xff] %vm210, %v391
      %483 = vst.msk [vmem:[%s469 + $0x68] sm:$0xff] %vm210, %v393
      %484 = vst.msk [vmem:[%s469 + $0x70] sm:$0xf] %vm222, %v392
      %485 = vst.msk [vmem:[%s469 + $0x78] sm:$0xf0] %vm233, %v394
      %486 = vst.msk [vmem:[%s469 + $0x80] sm:$0xff] %vm210, %v396
      %487 = vst.msk [vmem:[%s469 + $0x88] sm:$0xff] %vm210, %v398
      %488 = vst.msk [vmem:[%s469 + $0x90] sm:$0xff] %vm210, %v400
      %489 = vst.msk [vmem:[%s469 + $0x98] sm:$0xf] %vm222, %v399
      %490 = vst.msk [vmem:[%s469 + $0xa0] sm:$0xf0] %vm233, %v401
      %491 = vst.msk [vmem:[%s469 + $0xa8] sm:$0xff] %vm210, %v403
      %492 = vst.msk [vmem:[%s469 + $0xb0] sm:$0xff] %vm210, %v405
      %493 = vst.msk [vmem:[%s469 + $0xb8] sm:$0xff] %vm210, %v407
      %494 = vst.msk [vmem:[%s469 + $0xc0] sm:$0xf] %vm222, %v406
      %495 = vst.msk [vmem:[%s469 + $0xc8] sm:$0xf0] %vm233, %v408
      %496 = vst.msk [vmem:[%s469 + $0xd0] sm:$0xff] %vm210, %v410
      %497 = vst.msk [vmem:[%s469 + $0xd8] sm:$0xff] %vm210, %v412
      %498 = vst.msk [vmem:[%s469 + $0xe0] sm:$0xff] %vm210, %v414
      %499 = vst.msk [vmem:[%s469 + $0xe8] sm:$0xf] %vm222, %v413
      %500 = vst.msk [vmem:[%s469 + $0xf0] sm:$0xf0] %vm233, %v415
      %501 = vst.msk [vmem:[%s469 + $0xf8] sm:$0xff] %vm210, %v417
      %502 = vst.msk [vmem:[%s469 + $0x100] sm:$0xff] %vm210, %v419
      %503 = vst.msk [vmem:[%s469 + $0x108] sm:$0xff] %vm210, %v421
      %504 = vst.msk [vmem:[%s469 + $0x110] sm:$0xf] %vm222, %v420
      %505 = vst.msk [vmem:[%s469 + $0x118] sm:$0xf0] %vm233, %v422
      %506 = vst.msk [vmem:[%s469 + $0x120] sm:$0xff] %vm210, %v424
      %507 = vst.msk [vmem:[%s469 + $0x128] sm:$0xff] %vm210, %v426
      %508 = vst.msk [vmem:[%s469 + $0x130] sm:$0xff] %vm210, %v428
      %509 = vst.msk [vmem:[%s469 + $0x138] sm:$0xf] %vm222, %v427
      %v510 = vld [vmem:[#allocation2] sm:$0xff]
      %v511 = vld [vmem:[#allocation2 + $0x8] sm:$0xff]
      %v512 = vld [vmem:[#allocation2 + $0x10] sm:$0xff]
      %v513 = vld [vmem:[#allocation2 + $0x18] sm:$0xff]
      %v514 = vld [vmem:[#allocation2 + $0x28] sm:$0xff]
      %v515 = vld [vmem:[#allocation2 + $0x30] sm:$0xff]
      %v516 = vld [vmem:[#allocation2 + $0x38] sm:$0xff]
      %v517 = vld [vmem:[#allocation2 + $0x40] sm:$0xff]
      %v518 = vld [vmem:[#allocation2 + $0x50] sm:$0xff]
      %v519 = vld [vmem:[#allocation2 + $0x58] sm:$0xff]
      %v520 = vld [vmem:[#allocation2 + $0x60] sm:$0xff]
      %v521 = vld [vmem:[#allocation2 + $0x68] sm:$0xff]
      %v522 = vld [vmem:[#allocation2 + $0x78] sm:$0xff]
      %v523 = vld [vmem:[#allocation2 + $0x80] sm:$0xff]
      %v524 = vld [vmem:[#allocation2 + $0x88] sm:$0xff]
      %v525 = vld [vmem:[#allocation2 + $0x90] sm:$0xff]
      %v526 = vld [vmem:[#allocation2 + $0xa0] sm:$0xff]
      %v527 = vld [vmem:[#allocation2 + $0xa8] sm:$0xff]
      %v528 = vld [vmem:[#allocation2 + $0xb0] sm:$0xff]
      %v529 = vld [vmem:[#allocation2 + $0xb8] sm:$0xff]
      %v530 = vld [vmem:[#allocation2 + $0xc8] sm:$0xff]
      %v531 = vld [vmem:[#allocation2 + $0xd0] sm:$0xff]
      %v532 = vld [vmem:[#allocation2 + $0xd8] sm:$0xff]
      %v533 = vld [vmem:[#allocation2 + $0xe0] sm:$0xff]
      %v534 = vld [vmem:[#allocation2 + $0xf0] sm:$0xff]
      %v535 = vld [vmem:[#allocation2 + $0xf8] sm:$0xff]
      %v536 = vld [vmem:[#allocation2 + $0x100] sm:$0xff]
      %v537 = vld [vmem:[#allocation2 + $0x108] sm:$0xff]
      %v538 = vld [vmem:[#allocation2 + $0x118] sm:$0xff]
      %v539 = vld [vmem:[#allocation2 + $0x120] sm:$0xff]
      %v540 = vld [vmem:[#allocation2 + $0x128] sm:$0xff]
      %v541 = vld [vmem:[#allocation2 + $0x130] sm:$0xff]
      %542 = vst.msk [vmem:[#allocation3] sm:$0xff] %vm210, %v510
      %543 = vst.msk [vmem:[#allocation3 + $0x28] sm:$0xff] %vm210, %v511
      %544 = vst.msk [vmem:[#allocation3 + $0x50] sm:$0xff] %vm210, %v512
      %545 = vst.msk [vmem:[#allocation3 + $0x78] sm:$0xff] %vm210, %v513
      %546 = vst.msk [vmem:[#allocation3 + $0xa0] sm:$0xff] %vm210, %v514
      %547 = vst.msk [vmem:[#allocation3 + $0xc8] sm:$0xff] %vm210, %v515
      %548 = vst.msk [vmem:[#allocation3 + $0xf0] sm:$0xff] %vm210, %v516
      %549 = vst.msk [vmem:[#allocation3 + $0x118] sm:$0xff] %vm210, %v517
      %550 = vst.msk [vmem:[#allocation3 + $0x140] sm:$0xff] %vm210, %v518
      %551 = vst.msk [vmem:[#allocation3 + $0x168] sm:$0xff] %vm210, %v519
      %552 = vst.msk [vmem:[#allocation3 + $0x190] sm:$0xff] %vm210, %v520
      %553 = vst.msk [vmem:[#allocation3 + $0x1b8] sm:$0xff] %vm210, %v521
      %554 = vst.msk [vmem:[#allocation3 + $0x1e0] sm:$0xff] %vm210, %v522
      %555 = vst.msk [vmem:[#allocation3 + $0x208] sm:$0xff] %vm210, %v523
      %556 = vst.msk [vmem:[#allocation3 + $0x230] sm:$0xff] %vm210, %v524
      %557 = vst.msk [vmem:[#allocation3 + $0x258] sm:$0xff] %vm210, %v525
      %558 = vst.msk [vmem:[#allocation3 + $0x280] sm:$0xff] %vm210, %v526
      %559 = vst.msk [vmem:[#allocation3 + $0x2a8] sm:$0xff] %vm210, %v527
      %560 = vst.msk [vmem:[#allocation3 + $0x2d0] sm:$0xff] %vm210, %v528
      %561 = vst.msk [vmem:[#allocation3 + $0x2f8] sm:$0xff] %vm210, %v529
      %562 = vst.msk [vmem:[#allocation3 + $0x320] sm:$0xff] %vm210, %v530
      %563 = vst.msk [vmem:[#allocation3 + $0x348] sm:$0xff] %vm210, %v531
      %564 = vst.msk [vmem:[#allocation3 + $0x370] sm:$0xff] %vm210, %v532
      %565 = vst.msk [vmem:[#allocation3 + $0x398] sm:$0xff] %vm210, %v533
      %566 = vst.msk [vmem:[#allocation3 + $0x3c0] sm:$0xff] %vm210, %v534
      %567 = vst.msk [vmem:[#allocation3 + $0x3e8] sm:$0xff] %vm210, %v535
      %568 = vst.msk [vmem:[#allocation3 + $0x410] sm:$0xff] %vm210, %v536
      %569 = vst.msk [vmem:[#allocation3 + $0x438] sm:$0xff] %vm210, %v537
      %570 = vst.msk [vmem:[#allocation3 + $0x460] sm:$0xff] %vm210, %v538
      %571 = vst.msk [vmem:[#allocation3 + $0x488] sm:$0xff] %vm210, %v539
      %572 = vst.msk [vmem:[#allocation3 + $0x4b0] sm:$0xff] %vm210, %v540
      %573 = vst.msk [vmem:[#allocation3 + $0x4d8] sm:$0xff] %vm210, %v541
      %v574 = vld [vmem:[#allocation2] sm:$0xf0]
      %v575 = vld [vmem:[#allocation2 + $0x8] sm:$0xff]
      %v576 = vld [vmem:[#allocation2 + $0x10] sm:$0xff]
      %v577 = vld [vmem:[#allocation2 + $0x18] sm:$0xff]
      %v578 = vld [vmem:[#allocation2 + $0x20] sm:$0xf]
      %v579 = vld [vmem:[#allocation2 + $0x28] sm:$0xf0]
      %v580 = vld [vmem:[#allocation2 + $0x30] sm:$0xff]
      %v581 = vld [vmem:[#allocation2 + $0x38] sm:$0xff]
      %v582 = vld [vmem:[#allocation2 + $0x40] sm:$0xff]
      %v583 = vld [vmem:[#allocation2 + $0x48] sm:$0xf]
      %v584 = vld [vmem:[#allocation2 + $0x50] sm:$0xf0]
      %v585 = vld [vmem:[#allocation2 + $0x58] sm:$0xff]
      %v586 = vld [vmem:[#allocation2 + $0x60] sm:$0xff]
      %v587 = vld [vmem:[#allocation2 + $0x68] sm:$0xff]
      %v588 = vld [vmem:[#allocation2 + $0x70] sm:$0xf]
      %v589 = vld [vmem:[#allocation2 + $0x78] sm:$0xf0]
      %v590 = vld [vmem:[#allocation2 + $0x80] sm:$0xff]
      %v591 = vld [vmem:[#allocation2 + $0x88] sm:$0xff]
      %v592 = vld [vmem:[#allocation2 + $0x90] sm:$0xff]
      %v593 = vld [vmem:[#allocation2 + $0x98] sm:$0xf]
      %v594 = vld [vmem:[#allocation2 + $0xa0] sm:$0xf0]
      %v595 = vld [vmem:[#allocation2 + $0xa8] sm:$0xff]
      %v596 = vld [vmem:[#allocation2 + $0xb0] sm:$0xff]
      %v597 = vld [vmem:[#allocation2 + $0xb8] sm:$0xff]
      %v598 = vld [vmem:[#allocation2 + $0xc0] sm:$0xf]
      %v599 = vld [vmem:[#allocation2 + $0xc8] sm:$0xf0]
      %v600 = vld [vmem:[#allocation2 + $0xd0] sm:$0xff]
      %v601 = vld [vmem:[#allocation2 + $0xd8] sm:$0xff]
      %v602 = vld [vmem:[#allocation2 + $0xe0] sm:$0xff]
      %v603 = vld [vmem:[#allocation2 + $0xe8] sm:$0xf]
      %v604 = vld [vmem:[#allocation2 + $0xf0] sm:$0xf0]
      %v605 = vld [vmem:[#allocation2 + $0xf8] sm:$0xff]
      %v606 = vld [vmem:[#allocation2 + $0x100] sm:$0xff]
      %v607 = vld [vmem:[#allocation2 + $0x108] sm:$0xff]
      %v608 = vld [vmem:[#allocation2 + $0x110] sm:$0xf]
      %v609 = vld [vmem:[#allocation2 + $0x118] sm:$0xf0]
      %v610 = vld [vmem:[#allocation2 + $0x120] sm:$0xff]
      %v611 = vld [vmem:[#allocation2 + $0x128] sm:$0xff]
      %v612 = vld [vmem:[#allocation2 + $0x130] sm:$0xff]
      %v613 = vld [vmem:[#allocation2 + $0x138] sm:$0xf]
      %v654 = vrot.slane %v574, 4
      %v655 = vrot.slane %v575, 4
      %v656 = vsel %vm372, %v654, %v655
      %v657 = vrot.slane %v576, 4
      %v658 = vsel %vm372, %v655, %v657
      %v659 = vrot.slane %v577, 4
      %v660 = vsel %vm372, %v657, %v659
      %v661 = vrot.slane %v578, 4
      %v662 = vsel %vm372, %v659, %v661
      %v663 = vrot.slane %v579, 4
      %v664 = vrot.slane %v580, 4
      %v665 = vsel %vm372, %v663, %v664
      %v666 = vrot.slane %v581, 4
      %v667 = vsel %vm372, %v664, %v666
      %v668 = vrot.slane %v582, 4
      %v669 = vsel %vm372, %v666, %v668
      %v670 = vrot.slane %v583, 4
      %v671 = vsel %vm372, %v668, %v670
      %v672 = vrot.slane %v584, 4
      %v673 = vrot.slane %v585, 4
      %v674 = vsel %vm372, %v672, %v673
      %v675 = vrot.slane %v586, 4
      %v676 = vsel %vm372, %v673, %v675
      %v677 = vrot.slane %v587, 4
      %v678 = vsel %vm372, %v675, %v677
      %v679 = vrot.slane %v588, 4
      %v680 = vsel %vm372, %v677, %v679
      %v681 = vrot.slane %v589, 4
      %v682 = vrot.slane %v590, 4
      %v683 = vsel %vm372, %v681, %v682
      %v684 = vrot.slane %v591, 4
      %v685 = vsel %vm372, %v682, %v684
      %v686 = vrot.slane %v592, 4
      %v687 = vsel %vm372, %v684, %v686
      %v688 = vrot.slane %v593, 4
      %v689 = vsel %vm372, %v686, %v688
      %v690 = vrot.slane %v594, 4
      %v691 = vrot.slane %v595, 4
      %v692 = vsel %vm372, %v690, %v691
      %v693 = vrot.slane %v596, 4
      %v694 = vsel %vm372, %v691, %v693
      %v695 = vrot.slane %v597, 4
      %v696 = vsel %vm372, %v693, %v695
      %v697 = vrot.slane %v598, 4
      %v698 = vsel %vm372, %v695, %v697
      %v699 = vrot.slane %v599, 4
      %v700 = vrot.slane %v600, 4
      %v701 = vsel %vm372, %v699, %v700
      %v702 = vrot.slane %v601, 4
      %v703 = vsel %vm372, %v700, %v702
      %v704 = vrot.slane %v602, 4
      %v705 = vsel %vm372, %v702, %v704
      %v706 = vrot.slane %v603, 4
      %v707 = vsel %vm372, %v704, %v706
      %v708 = vrot.slane %v604, 4
      %v709 = vrot.slane %v605, 4
      %v710 = vsel %vm372, %v708, %v709
      %v711 = vrot.slane %v606, 4
      %v712 = vsel %vm372, %v709, %v711
      %v713 = vrot.slane %v607, 4
      %v714 = vsel %vm372, %v711, %v713
      %v715 = vrot.slane %v608, 4
      %v716 = vsel %vm372, %v713, %v715
      %v717 = vrot.slane %v609, 4
      %v718 = vrot.slane %v610, 4
      %v719 = vsel %vm372, %v717, %v718
      %v720 = vrot.slane %v611, 4
      %v721 = vsel %vm372, %v718, %v720
      %v722 = vrot.slane %v612, 4
      %v723 = vsel %vm372, %v720, %v722
      %v724 = vrot.slane %v613, 4
      %v725 = vsel %vm372, %v722, %v724
      %726 = vrot.lane.b32.xlu0 %v656, 64
      %v727 = vpop.permute.xlu0 %726
      %728 = vrot.lane.b32.xlu0 %v658, 64
      %v729 = vpop.permute.xlu0 %728
      %730 = vrot.lane.b32.xlu0 %v660, 64
      %v731 = vpop.permute.xlu0 %730
      %732 = vrot.lane.b32.xlu0 %v662, 64
      %v733 = vpop.permute.xlu0 %732
      %734 = vrot.lane.b32.xlu0 %v665, 64
      %v735 = vpop.permute.xlu0 %734
      %736 = vrot.lane.b32.xlu0 %v667, 64
      %v737 = vpop.permute.xlu0 %736
      %738 = vrot.lane.b32.xlu0 %v669, 64
      %v739 = vpop.permute.xlu0 %738
      %740 = vrot.lane.b32.xlu0 %v671, 64
      %v741 = vpop.permute.xlu0 %740
      %742 = vrot.lane.b32.xlu0 %v674, 64
      %v743 = vpop.permute.xlu0 %742
      %744 = vrot.lane.b32.xlu0 %v676, 64
      %v745 = vpop.permute.xlu0 %744
      %746 = vrot.lane.b32.xlu0 %v678, 64
      %v747 = vpop.permute.xlu0 %746
      %748 = vrot.lane.b32.xlu0 %v680, 64
      %v749 = vpop.permute.xlu0 %748
      %750 = vrot.lane.b32.xlu0 %v683, 64
      %v751 = vpop.permute.xlu0 %750
      %752 = vrot.lane.b32.xlu0 %v685, 64
      %v753 = vpop.permute.xlu0 %752
      %754 = vrot.lane.b32.xlu0 %v687, 64
      %v755 = vpop.permute.xlu0 %754
      %756 = vrot.lane.b32.xlu0 %v689, 64
      %v757 = vpop.permute.xlu0 %756
      %758 = vrot.lane.b32.xlu0 %v692, 64
      %v759 = vpop.permute.xlu0 %758
      %760 = vrot.lane.b32.xlu0 %v694, 64
      %v761 = vpop.permute.xlu0 %760
      %762 = vrot.lane.b32.xlu0 %v696, 64
      %v763 = vpop.permute.xlu0 %762
      %764 = vrot.lane.b32.xlu0 %v698, 64
      %v765 = vpop.permute.xlu0 %764
      %766 = vrot.lane.b32.xlu0 %v701, 64
      %v767 = vpop.permute.xlu0 %766
      %768 = vrot.lane.b32.xlu0 %v703, 64
      %v769 = vpop.permute.xlu0 %768
      %770 = vrot.lane.b32.xlu0 %v705, 64
      %v771 = vpop.permute.xlu0 %770
      %772 = vrot.lane.b32.xlu0 %v707, 64
      %v773 = vpop.permute.xlu0 %772
      %774 = vrot.lane.b32.xlu0 %v710, 64
      %v775 = vpop.permute.xlu0 %774
      %776 = vrot.lane.b32.xlu0 %v712, 64
      %v777 = vpop.permute.xlu0 %776
      %778 = vrot.lane.b32.xlu0 %v714, 64
      %v779 = vpop.permute.xlu0 %778
      %780 = vrot.lane.b32.xlu0 %v716, 64
      %v781 = vpop.permute.xlu0 %780
      %782 = vrot.lane.b32.xlu0 %v719, 64
      %v783 = vpop.permute.xlu0 %782
      %784 = vrot.lane.b32.xlu0 %v721, 64
      %v785 = vpop.permute.xlu0 %784
      %786 = vrot.lane.b32.xlu0 %v723, 64
      %v787 = vpop.permute.xlu0 %786
      %788 = vrot.lane.b32.xlu0 %v725, 64
      %v789 = vpop.permute.xlu0 %788
      %vm822 = vcmask 1048064
      %823 = vst.msk [vmem:[#allocation3] sm:$0xff] %vm822, %v727
      %824 = vst.msk [vmem:[#allocation3 + $0x28] sm:$0xff] %vm822, %v729
      %825 = vst.msk [vmem:[#allocation3 + $0x50] sm:$0xff] %vm822, %v731
      %826 = vst.msk [vmem:[#allocation3 + $0x78] sm:$0xff] %vm822, %v733
      %827 = vst.msk [vmem:[#allocation3 + $0xa0] sm:$0xff] %vm822, %v735
      %828 = vst.msk [vmem:[#allocation3 + $0xc8] sm:$0xff] %vm822, %v737
      %829 = vst.msk [vmem:[#allocation3 + $0xf0] sm:$0xff] %vm822, %v739
      %830 = vst.msk [vmem:[#allocation3 + $0x118] sm:$0xff] %vm822, %v741
      %831 = vst.msk [vmem:[#allocation3 + $0x140] sm:$0xff] %vm822, %v743
      %832 = vst.msk [vmem:[#allocation3 + $0x168] sm:$0xff] %vm822, %v745
      %833 = vst.msk [vmem:[#allocation3 + $0x190] sm:$0xff] %vm822, %v747
      %834 = vst.msk [vmem:[#allocation3 + $0x1b8] sm:$0xff] %vm822, %v749
      %835 = vst.msk [vmem:[#allocation3 + $0x1e0] sm:$0xff] %vm822, %v751
      %836 = vst.msk [vmem:[#allocation3 + $0x208] sm:$0xff] %vm822, %v753
      %837 = vst.msk [vmem:[#allocation3 + $0x230] sm:$0xff] %vm822, %v755
      %838 = vst.msk [vmem:[#allocation3 + $0x258] sm:$0xff] %vm822, %v757
      %839 = vst.msk [vmem:[#allocation3 + $0x280] sm:$0xff] %vm822, %v759
      %840 = vst.msk [vmem:[#allocation3 + $0x2a8] sm:$0xff] %vm822, %v761
      %841 = vst.msk [vmem:[#allocation3 + $0x2d0] sm:$0xff] %vm822, %v763
      %842 = vst.msk [vmem:[#allocation3 + $0x2f8] sm:$0xff] %vm822, %v765
      %843 = vst.msk [vmem:[#allocation3 + $0x320] sm:$0xff] %vm822, %v767
      %844 = vst.msk [vmem:[#allocation3 + $0x348] sm:$0xff] %vm822, %v769
      %845 = vst.msk [vmem:[#allocation3 + $0x370] sm:$0xff] %vm822, %v771
      %846 = vst.msk [vmem:[#allocation3 + $0x398] sm:$0xff] %vm822, %v773
      %847 = vst.msk [vmem:[#allocation3 + $0x3c0] sm:$0xff] %vm822, %v775
      %848 = vst.msk [vmem:[#allocation3 + $0x3e8] sm:$0xff] %vm822, %v777
      %849 = vst.msk [vmem:[#allocation3 + $0x410] sm:$0xff] %vm822, %v779
      %850 = vst.msk [vmem:[#allocation3 + $0x438] sm:$0xff] %vm822, %v781
      %851 = vst.msk [vmem:[#allocation3 + $0x460] sm:$0xff] %vm822, %v783
      %852 = vst.msk [vmem:[#allocation3 + $0x488] sm:$0xff] %vm822, %v785
      %853 = vst.msk [vmem:[#allocation3 + $0x4b0] sm:$0xff] %vm822, %v787
      %854 = vst.msk [vmem:[#allocation3 + $0x4d8] sm:$0xff] %vm822, %v789
      %v855 = vld [vmem:[#allocation2 + $0x8] sm:$0xff]
      %v856 = vld [vmem:[#allocation2 + $0x10] sm:$0xff]
      %v857 = vld [vmem:[#allocation2 + $0x18] sm:$0xff]
      %v858 = vld [vmem:[#allocation2 + $0x20] sm:$0xff]
      %v859 = vld [vmem:[#allocation2 + $0x30] sm:$0xff]
      %v860 = vld [vmem:[#allocation2 + $0x38] sm:$0xff]
      %v861 = vld [vmem:[#allocation2 + $0x40] sm:$0xff]
      %v862 = vld [vmem:[#allocation2 + $0x48] sm:$0xff]
      %v863 = vld [vmem:[#allocation2 + $0x58] sm:$0xff]
      %v864 = vld [vmem:[#allocation2 + $0x60] sm:$0xff]
      %v865 = vld [vmem:[#allocation2 + $0x68] sm:$0xff]
      %v866 = vld [vmem:[#allocation2 + $0x70] sm:$0xff]
      %v867 = vld [vmem:[#allocation2 + $0x80] sm:$0xff]
      %v868 = vld [vmem:[#allocation2 + $0x88] sm:$0xff]
      %v869 = vld [vmem:[#allocation2 + $0x90] sm:$0xff]
      %v870 = vld [vmem:[#allocation2 + $0x98] sm:$0xff]
      %v871 = vld [vmem:[#allocation2 + $0xa8] sm:$0xff]
      %v872 = vld [vmem:[#allocation2 + $0xb0] sm:$0xff]
      %v873 = vld [vmem:[#allocation2 + $0xb8] sm:$0xff]
      %v874 = vld [vmem:[#allocation2 + $0xc0] sm:$0xff]
      %v875 = vld [vmem:[#allocation2 + $0xd0] sm:$0xff]
      %v876 = vld [vmem:[#allocation2 + $0xd8] sm:$0xff]
      %v877 = vld [vmem:[#allocation2 + $0xe0] sm:$0xff]
      %v878 = vld [vmem:[#allocation2 + $0xe8] sm:$0xff]
      %v879 = vld [vmem:[#allocation2 + $0xf8] sm:$0xff]
      %v880 = vld [vmem:[#allocation2 + $0x100] sm:$0xff]
      %v881 = vld [vmem:[#allocation2 + $0x108] sm:$0xff]
      %v882 = vld [vmem:[#allocation2 + $0x110] sm:$0xff]
      %v883 = vld [vmem:[#allocation2 + $0x120] sm:$0xff]
      %v884 = vld [vmem:[#allocation2 + $0x128] sm:$0xff]
      %v885 = vld [vmem:[#allocation2 + $0x130] sm:$0xff]
      %v886 = vld [vmem:[#allocation2 + $0x138] sm:$0xff]
      %887 = vst.msk [vmem:[#allocation3 + $0x8] sm:$0xff] %vm210, %v855
      %888 = vst.msk [vmem:[#allocation3 + $0x30] sm:$0xff] %vm210, %v856
      %889 = vst.msk [vmem:[#allocation3 + $0x58] sm:$0xff] %vm210, %v857
      %890 = vst.msk [vmem:[#allocation3 + $0x80] sm:$0xff] %vm210, %v858
      %891 = vst.msk [vmem:[#allocation3 + $0xa8] sm:$0xff] %vm210, %v859
      %892 = vst.msk [vmem:[#allocation3 + $0xd0] sm:$0xff] %vm210, %v860
      %893 = vst.msk [vmem:[#allocation3 + $0xf8] sm:$0xff] %vm210, %v861
      %894 = vst.msk [vmem:[#allocation3 + $0x120] sm:$0xff] %vm210, %v862
      %895 = vst.msk [vmem:[#allocation3 + $0x148] sm:$0xff] %vm210, %v863
      %896 = vst.msk [vmem:[#allocation3 + $0x170] sm:$0xff] %vm210, %v864
      %897 = vst.msk [vmem:[#allocation3 + $0x198] sm:$0xff] %vm210, %v865
      %898 = vst.msk [vmem:[#allocation3 + $0x1c0] sm:$0xff] %vm210, %v866
      %899 = vst.msk [vmem:[#allocation3 + $0x1e8] sm:$0xff] %vm210, %v867
      %900 = vst.msk [vmem:[#allocation3 + $0x210] sm:$0xff] %vm210, %v868
      %901 = vst.msk [vmem:[#allocation3 + $0x238] sm:$0xff] %vm210, %v869
      %902 = vst.msk [vmem:[#allocation3 + $0x260] sm:$0xff] %vm210, %v870
      %903 = vst.msk [vmem:[#allocation3 + $0x288] sm:$0xff] %vm210, %v871
      %904 = vst.msk [vmem:[#allocation3 + $0x2b0] sm:$0xff] %vm210, %v872
      %905 = vst.msk [vmem:[#allocation3 + $0x2d8] sm:$0xff] %vm210, %v873
      %906 = vst.msk [vmem:[#allocation3 + $0x300] sm:$0xff] %vm210, %v874
      %907 = vst.msk [vmem:[#allocation3 + $0x328] sm:$0xff] %vm210, %v875
      %908 = vst.msk [vmem:[#allocation3 + $0x350] sm:$0xff] %vm210, %v876
      %909 = vst.msk [vmem:[#allocation3 + $0x378] sm:$0xff] %vm210, %v877
      %910 = vst.msk [vmem:[#allocation3 + $0x3a0] sm:$0xff] %vm210, %v878
      %911 = vst.msk [vmem:[#allocation3 + $0x3c8] sm:$0xff] %vm210, %v879
      %912 = vst.msk [vmem:[#allocation3 + $0x3f0] sm:$0xff] %vm210, %v880
      %913 = vst.msk [vmem:[#allocation3 + $0x418] sm:$0xff] %vm210, %v881
      %914 = vst.msk [vmem:[#allocation3 + $0x440] sm:$0xff] %vm210, %v882
      %915 = vst.msk [vmem:[#allocation3 + $0x468] sm:$0xff] %vm210, %v883
      %916 = vst.msk [vmem:[#allocation3 + $0x490] sm:$0xff] %vm210, %v884
      %917 = vst.msk [vmem:[#allocation3 + $0x4b8] sm:$0xff] %vm210, %v885
      %918 = vst.msk [vmem:[#allocation3 + $0x4e0] sm:$0xff] %vm210, %v886
      %v919 = vld [vmem:[%s469] sm:$0xff]
      %v920 = vld [vmem:[%s469 + $0x8] sm:$0xff]
      %v921 = vld [vmem:[%s469 + $0x10] sm:$0xff]
      %v922 = vld [vmem:[%s469 + $0x18] sm:$0xff]
      %v923 = vld [vmem:[%s469 + $0x28] sm:$0xff]
      %v924 = vld [vmem:[%s469 + $0x30] sm:$0xff]
      %v925 = vld [vmem:[%s469 + $0x38] sm:$0xff]
      %v926 = vld [vmem:[%s469 + $0x40] sm:$0xff]
      %v927 = vld [vmem:[%s469 + $0x50] sm:$0xff]
      %v928 = vld [vmem:[%s469 + $0x58] sm:$0xff]
      %v929 = vld [vmem:[%s469 + $0x60] sm:$0xff]
      %v930 = vld [vmem:[%s469 + $0x68] sm:$0xff]
      %v931 = vld [vmem:[%s469 + $0x78] sm:$0xff]
      %v932 = vld [vmem:[%s469 + $0x80] sm:$0xff]
      %v933 = vld [vmem:[%s469 + $0x88] sm:$0xff]
      %v934 = vld [vmem:[%s469 + $0x90] sm:$0xff]
      %v935 = vld [vmem:[%s469 + $0xa0] sm:$0xff]
      %v936 = vld [vmem:[%s469 + $0xa8] sm:$0xff]
      %v937 = vld [vmem:[%s469 + $0xb0] sm:$0xff]
      %v938 = vld [vmem:[%s469 + $0xb8] sm:$0xff]
      %v939 = vld [vmem:[%s469 + $0xc8] sm:$0xff]
      %v940 = vld [vmem:[%s469 + $0xd0] sm:$0xff]
      %v941 = vld [vmem:[%s469 + $0xd8] sm:$0xff]
      %v942 = vld [vmem:[%s469 + $0xe0] sm:$0xff]
      %v943 = vld [vmem:[%s469 + $0xf0] sm:$0xff]
      %v944 = vld [vmem:[%s469 + $0xf8] sm:$0xff]
      %v945 = vld [vmem:[%s469 + $0x100] sm:$0xff]
      %v946 = vld [vmem:[%s469 + $0x108] sm:$0xff]
      %v947 = vld [vmem:[%s469 + $0x118] sm:$0xff]
      %v948 = vld [vmem:[%s469 + $0x120] sm:$0xff]
      %v949 = vld [vmem:[%s469 + $0x128] sm:$0xff]
      %v950 = vld [vmem:[%s469 + $0x130] sm:$0xff]
      %983 = vrot.lane.b32.xlu0 %v919, 64
      %v984 = vpop.permute.xlu0 %983
      %985 = vrot.lane.b32.xlu0 %v920, 64
      %v986 = vpop.permute.xlu0 %985
      %987 = vrot.lane.b32.xlu0 %v921, 64
      %v988 = vpop.permute.xlu0 %987
      %989 = vrot.lane.b32.xlu0 %v922, 64
      %v990 = vpop.permute.xlu0 %989
      %991 = vrot.lane.b32.xlu0 %v923, 64
      %v992 = vpop.permute.xlu0 %991
      %993 = vrot.lane.b32.xlu0 %v924, 64
      %v994 = vpop.permute.xlu0 %993
      %995 = vrot.lane.b32.xlu0 %v925, 64
      %v996 = vpop.permute.xlu0 %995
      %997 = vrot.lane.b32.xlu0 %v926, 64
      %v998 = vpop.permute.xlu0 %997
      %999 = vrot.lane.b32.xlu0 %v927, 64
      %v1000 = vpop.permute.xlu0 %999
      %1001 = vrot.lane.b32.xlu0 %v928, 64
      %v1002 = vpop.permute.xlu0 %1001
      %1003 = vrot.lane.b32.xlu0 %v929, 64
      %v1004 = vpop.permute.xlu0 %1003
      %1005 = vrot.lane.b32.xlu0 %v930, 64
      %v1006 = vpop.permute.xlu0 %1005
      %1007 = vrot.lane.b32.xlu0 %v931, 64
      %v1008 = vpop.permute.xlu0 %1007
      %1009 = vrot.lane.b32.xlu0 %v932, 64
      %v1010 = vpop.permute.xlu0 %1009
      %1011 = vrot.lane.b32.xlu0 %v933, 64
      %v1012 = vpop.permute.xlu0 %1011
      %1013 = vrot.lane.b32.xlu0 %v934, 64
      %v1014 = vpop.permute.xlu0 %1013
      %1015 = vrot.lane.b32.xlu0 %v935, 64
      %v1016 = vpop.permute.xlu0 %1015
      %1017 = vrot.lane.b32.xlu0 %v936, 64
      %v1018 = vpop.permute.xlu0 %1017
      %1019 = vrot.lane.b32.xlu0 %v937, 64
      %v1020 = vpop.permute.xlu0 %1019
      %1021 = vrot.lane.b32.xlu0 %v938, 64
      %v1022 = vpop.permute.xlu0 %1021
      %1023 = vrot.lane.b32.xlu0 %v939, 64
      %v1024 = vpop.permute.xlu0 %1023
      %1025 = vrot.lane.b32.xlu0 %v940, 64
      %v1026 = vpop.permute.xlu0 %1025
      %1027 = vrot.lane.b32.xlu0 %v941, 64
      %v1028 = vpop.permute.xlu0 %1027
      %1029 = vrot.lane.b32.xlu0 %v942, 64
      %v1030 = vpop.permute.xlu0 %1029
      %1031 = vrot.lane.b32.xlu0 %v943, 64
      %v1032 = vpop.permute.xlu0 %1031
      %1033 = vrot.lane.b32.xlu0 %v944, 64
      %v1034 = vpop.permute.xlu0 %1033
      %1035 = vrot.lane.b32.xlu0 %v945, 64
      %v1036 = vpop.permute.xlu0 %1035
      %1037 = vrot.lane.b32.xlu0 %v946, 64
      %v1038 = vpop.permute.xlu0 %1037
      %1039 = vrot.lane.b32.xlu0 %v947, 64
      %v1040 = vpop.permute.xlu0 %1039
      %1041 = vrot.lane.b32.xlu0 %v948, 64
      %v1042 = vpop.permute.xlu0 %1041
      %1043 = vrot.lane.b32.xlu0 %v949, 64
      %v1044 = vpop.permute.xlu0 %1043
      %1045 = vrot.lane.b32.xlu0 %v950, 64
      %v1046 = vpop.permute.xlu0 %1045
      %1079 = vst.msk [vmem:[#allocation3 + $0x8] sm:$0xff] %vm822, %v984
      %1080 = vst.msk [vmem:[#allocation3 + $0x30] sm:$0xff] %vm822, %v986
      %1081 = vst.msk [vmem:[#allocation3 + $0x58] sm:$0xff] %vm822, %v988
      %1082 = vst.msk [vmem:[#allocation3 + $0x80] sm:$0xff] %vm822, %v990
      %1083 = vst.msk [vmem:[#allocation3 + $0xa8] sm:$0xff] %vm822, %v992
      %1084 = vst.msk [vmem:[#allocation3 + $0xd0] sm:$0xff] %vm822, %v994
      %1085 = vst.msk [vmem:[#allocation3 + $0xf8] sm:$0xff] %vm822, %v996
      %1086 = vst.msk [vmem:[#allocation3 + $0x120] sm:$0xff] %vm822, %v998
      %1087 = vst.msk [vmem:[#allocation3 + $0x148] sm:$0xff] %vm822, %v1000
      %1088 = vst.msk [vmem:[#allocation3 + $0x170] sm:$0xff] %vm822, %v1002
      %1089 = vst.msk [vmem:[#allocation3 + $0x198] sm:$0xff] %vm822, %v1004
      %1090 = vst.msk [vmem:[#allocation3 + $0x1c0] sm:$0xff] %vm822, %v1006
      %1091 = vst.msk [vmem:[#allocation3 + $0x1e8] sm:$0xff] %vm822, %v1008
      %1092 = vst.msk [vmem:[#allocation3 + $0x210] sm:$0xff] %vm822, %v1010
      %1093 = vst.msk [vmem:[#allocation3 + $0x238] sm:$0xff] %vm822, %v1012
      %1094 = vst.msk [vmem:[#allocation3 + $0x260] sm:$0xff] %vm822, %v1014
      %1095 = vst.msk [vmem:[#allocation3 + $0x288] sm:$0xff] %vm822, %v1016
      %1096 = vst.msk [vmem:[#allocation3 + $0x2b0] sm:$0xff] %vm822, %v1018
      %1097 = vst.msk [vmem:[#allocation3 + $0x2d8] sm:$0xff] %vm822, %v1020
      %1098 = vst.msk [vmem:[#allocation3 + $0x300] sm:$0xff] %vm822, %v1022
      %1099 = vst.msk [vmem:[#allocation3 + $0x328] sm:$0xff] %vm822, %v1024
      %1100 = vst.msk [vmem:[#allocation3 + $0x350] sm:$0xff] %vm822, %v1026
      %1101 = vst.msk [vmem:[#allocation3 + $0x378] sm:$0xff] %vm822, %v1028
      %1102 = vst.msk [vmem:[#allocation3 + $0x3a0] sm:$0xff] %vm822, %v1030
      %1103 = vst.msk [vmem:[#allocation3 + $0x3c8] sm:$0xff] %vm822, %v1032
      %1104 = vst.msk [vmem:[#allocation3 + $0x3f0] sm:$0xff] %vm822, %v1034
      %1105 = vst.msk [vmem:[#allocation3 + $0x418] sm:$0xff] %vm822, %v1036
      %1106 = vst.msk [vmem:[#allocation3 + $0x440] sm:$0xff] %vm822, %v1038
      %1107 = vst.msk [vmem:[#allocation3 + $0x468] sm:$0xff] %vm822, %v1040
      %1108 = vst.msk [vmem:[#allocation3 + $0x490] sm:$0xff] %vm822, %v1042
      %1109 = vst.msk [vmem:[#allocation3 + $0x4b8] sm:$0xff] %vm822, %v1044
      %1110 = vst.msk [vmem:[#allocation3 + $0x4e0] sm:$0xff] %vm822, %v1046
      %v1111 = vld [vmem:[%s469] sm:$0xf0]
      %v1112 = vld [vmem:[%s469 + $0x8] sm:$0xff]
      %v1113 = vld [vmem:[%s469 + $0x10] sm:$0xff]
      %v1114 = vld [vmem:[%s469 + $0x18] sm:$0xff]
      %v1115 = vld [vmem:[%s469 + $0x20] sm:$0xf]
      %v1116 = vld [vmem:[%s469 + $0x28] sm:$0xf0]
      %v1117 = vld [vmem:[%s469 + $0x30] sm:$0xff]
      %v1118 = vld [vmem:[%s469 + $0x38] sm:$0xff]
      %v1119 = vld [vmem:[%s469 + $0x40] sm:$0xff]
      %v1120 = vld [vmem:[%s469 + $0x48] sm:$0xf]
      %v1121 = vld [vmem:[%s469 + $0x50] sm:$0xf0]
      %v1122 = vld [vmem:[%s469 + $0x58] sm:$0xff]
      %v1123 = vld [vmem:[%s469 + $0x60] sm:$0xff]
      %v1124 = vld [vmem:[%s469 + $0x68] sm:$0xff]
      %v1125 = vld [vmem:[%s469 + $0x70] sm:$0xf]
      %v1126 = vld [vmem:[%s469 + $0x78] sm:$0xf0]
      %v1127 = vld [vmem:[%s469 + $0x80] sm:$0xff]
      %v1128 = vld [vmem:[%s469 + $0x88] sm:$0xff]
      %v1129 = vld [vmem:[%s469 + $0x90] sm:$0xff]
      %v1130 = vld [vmem:[%s469 + $0x98] sm:$0xf]
      %v1131 = vld [vmem:[%s469 + $0xa0] sm:$0xf0]
      %v1132 = vld [vmem:[%s469 + $0xa8] sm:$0xff]
      %v1133 = vld [vmem:[%s469 + $0xb0] sm:$0xff]
      %v1134 = vld [vmem:[%s469 + $0xb8] sm:$0xff]
      %v1135 = vld [vmem:[%s469 + $0xc0] sm:$0xf]
      %v1136 = vld [vmem:[%s469 + $0xc8] sm:$0xf0]
      %v1137 = vld [vmem:[%s469 + $0xd0] sm:$0xff]
      %v1138 = vld [vmem:[%s469 + $0xd8] sm:$0xff]
      %v1139 = vld [vmem:[%s469 + $0xe0] sm:$0xff]
      %v1140 = vld [vmem:[%s469 + $0xe8] sm:$0xf]
      %v1141 = vld [vmem:[%s469 + $0xf0] sm:$0xf0]
      %v1142 = vld [vmem:[%s469 + $0xf8] sm:$0xff]
      %v1143 = vld [vmem:[%s469 + $0x100] sm:$0xff]
      %v1144 = vld [vmem:[%s469 + $0x108] sm:$0xff]
      %v1145 = vld [vmem:[%s469 + $0x110] sm:$0xf]
      %v1146 = vld [vmem:[%s469 + $0x118] sm:$0xf0]
      %v1147 = vld [vmem:[%s469 + $0x120] sm:$0xff]
      %v1148 = vld [vmem:[%s469 + $0x128] sm:$0xff]
      %v1149 = vld [vmem:[%s469 + $0x130] sm:$0xff]
      %v1150 = vld [vmem:[%s469 + $0x138] sm:$0xf]
      %v1191 = vrot.slane %v1111, 4
      %v1192 = vrot.slane %v1112, 4
      %v1193 = vsel %vm372, %v1191, %v1192
      %v1194 = vrot.slane %v1113, 4
      %v1195 = vsel %vm372, %v1192, %v1194
      %v1196 = vrot.slane %v1114, 4
      %v1197 = vsel %vm372, %v1194, %v1196
      %v1198 = vrot.slane %v1115, 4
      %v1199 = vsel %vm372, %v1196, %v1198
      %v1200 = vrot.slane %v1116, 4
      %v1201 = vrot.slane %v1117, 4
      %v1202 = vsel %vm372, %v1200, %v1201
      %v1203 = vrot.slane %v1118, 4
      %v1204 = vsel %vm372, %v1201, %v1203
      %v1205 = vrot.slane %v1119, 4
      %v1206 = vsel %vm372, %v1203, %v1205
      %v1207 = vrot.slane %v1120, 4
      %v1208 = vsel %vm372, %v1205, %v1207
      %v1209 = vrot.slane %v1121, 4
      %v1210 = vrot.slane %v1122, 4
      %v1211 = vsel %vm372, %v1209, %v1210
      %v1212 = vrot.slane %v1123, 4
      %v1213 = vsel %vm372, %v1210, %v1212
      %v1214 = vrot.slane %v1124, 4
      %v1215 = vsel %vm372, %v1212, %v1214
      %v1216 = vrot.slane %v1125, 4
      %v1217 = vsel %vm372, %v1214, %v1216
      %v1218 = vrot.slane %v1126, 4
      %v1219 = vrot.slane %v1127, 4
      %v1220 = vsel %vm372, %v1218, %v1219
      %v1221 = vrot.slane %v1128, 4
      %v1222 = vsel %vm372, %v1219, %v1221
      %v1223 = vrot.slane %v1129, 4
      %v1224 = vsel %vm372, %v1221, %v1223
      %v1225 = vrot.slane %v1130, 4
      %v1226 = vsel %vm372, %v1223, %v1225
      %v1227 = vrot.slane %v1131, 4
      %v1228 = vrot.slane %v1132, 4
      %v1229 = vsel %vm372, %v1227, %v1228
      %v1230 = vrot.slane %v1133, 4
      %v1231 = vsel %vm372, %v1228, %v1230
      %v1232 = vrot.slane %v1134, 4
      %v1233 = vsel %vm372, %v1230, %v1232
      %v1234 = vrot.slane %v1135, 4
      %v1235 = vsel %vm372, %v1232, %v1234
      %v1236 = vrot.slane %v1136, 4
      %v1237 = vrot.slane %v1137, 4
      %v1238 = vsel %vm372, %v1236, %v1237
      %v1239 = vrot.slane %v1138, 4
      %v1240 = vsel %vm372, %v1237, %v1239
      %v1241 = vrot.slane %v1139, 4
      %v1242 = vsel %vm372, %v1239, %v1241
      %v1243 = vrot.slane %v1140, 4
      %v1244 = vsel %vm372, %v1241, %v1243
      %v1245 = vrot.slane %v1141, 4
      %v1246 = vrot.slane %v1142, 4
      %v1247 = vsel %vm372, %v1245, %v1246
      %v1248 = vrot.slane %v1143, 4
      %v1249 = vsel %vm372, %v1246, %v1248
      %v1250 = vrot.slane %v1144, 4
      %v1251 = vsel %vm372, %v1248, %v1250
      %v1252 = vrot.slane %v1145, 4
      %v1253 = vsel %vm372, %v1250, %v1252
      %v1254 = vrot.slane %v1146, 4
      %v1255 = vrot.slane %v1147, 4
      %v1256 = vsel %vm372, %v1254, %v1255
      %v1257 = vrot.slane %v1148, 4
      %v1258 = vsel %vm372, %v1255, %v1257
      %v1259 = vrot.slane %v1149, 4
      %v1260 = vsel %vm372, %v1257, %v1259
      %v1261 = vrot.slane %v1150, 4
      %v1262 = vsel %vm372, %v1259, %v1261
      %1295 = vst.msk [vmem:[#allocation3 + $0x10] sm:$0xff] %vm210, %v1193
      %1296 = vst.msk [vmem:[#allocation3 + $0x38] sm:$0xff] %vm210, %v1195
      %1297 = vst.msk [vmem:[#allocation3 + $0x60] sm:$0xff] %vm210, %v1197
      %1298 = vst.msk [vmem:[#allocation3 + $0x88] sm:$0xff] %vm210, %v1199
      %1299 = vst.msk [vmem:[#allocation3 + $0xb0] sm:$0xff] %vm210, %v1202
      %1300 = vst.msk [vmem:[#allocation3 + $0xd8] sm:$0xff] %vm210, %v1204
      %1301 = vst.msk [vmem:[#allocation3 + $0x100] sm:$0xff] %vm210, %v1206
      %1302 = vst.msk [vmem:[#allocation3 + $0x128] sm:$0xff] %vm210, %v1208
      %1303 = vst.msk [vmem:[#allocation3 + $0x150] sm:$0xff] %vm210, %v1211
      %1304 = vst.msk [vmem:[#allocation3 + $0x178] sm:$0xff] %vm210, %v1213
      %1305 = vst.msk [vmem:[#allocation3 + $0x1a0] sm:$0xff] %vm210, %v1215
      %1306 = vst.msk [vmem:[#allocation3 + $0x1c8] sm:$0xff] %vm210, %v1217
      %1307 = vst.msk [vmem:[#allocation3 + $0x1f0] sm:$0xff] %vm210, %v1220
      %1308 = vst.msk [vmem:[#allocation3 + $0x218] sm:$0xff] %vm210, %v1222
      %1309 = vst.msk [vmem:[#allocation3 + $0x240] sm:$0xff] %vm210, %v1224
      %1310 = vst.msk [vmem:[#allocation3 + $0x268] sm:$0xff] %vm210, %v1226
      %1311 = vst.msk [vmem:[#allocation3 + $0x290] sm:$0xff] %vm210, %v1229
      %1312 = vst.msk [vmem:[#allocation3 + $0x2b8] sm:$0xff] %vm210, %v1231
      %1313 = vst.msk [vmem:[#allocation3 + $0x2e0] sm:$0xff] %vm210, %v1233
      %1314 = vst.msk [vmem:[#allocation3 + $0x308] sm:$0xff] %vm210, %v1235
      %1315 = vst.msk [vmem:[#allocation3 + $0x330] sm:$0xff] %vm210, %v1238
      %1316 = vst.msk [vmem:[#allocation3 + $0x358] sm:$0xff] %vm210, %v1240
      %1317 = vst.msk [vmem:[#allocation3 + $0x380] sm:$0xff] %vm210, %v1242
      %1318 = vst.msk [vmem:[#allocation3 + $0x3a8] sm:$0xff] %vm210, %v1244
      %1319 = vst.msk [vmem:[#allocation3 + $0x3d0] sm:$0xff] %vm210, %v1247
      %1320 = vst.msk [vmem:[#allocation3 + $0x3f8] sm:$0xff] %vm210, %v1249
      %1321 = vst.msk [vmem:[#allocation3 + $0x420] sm:$0xff] %vm210, %v1251
      %1322 = vst.msk [vmem:[#allocation3 + $0x448] sm:$0xff] %vm210, %v1253
      %1323 = vst.msk [vmem:[#allocation3 + $0x470] sm:$0xff] %vm210, %v1256
      %1324 = vst.msk [vmem:[#allocation3 + $0x498] sm:$0xff] %vm210, %v1258
      %1325 = vst.msk [vmem:[#allocation3 + $0x4c0] sm:$0xff] %vm210, %v1260
      %1326 = vst.msk [vmem:[#allocation3 + $0x4e8] sm:$0xff] %vm210, %v1262
      %v1327 = vld [vmem:[%s469 + $0x8] sm:$0xff]
      %v1328 = vld [vmem:[%s469 + $0x10] sm:$0xff]
      %v1329 = vld [vmem:[%s469 + $0x18] sm:$0xff]
      %v1330 = vld [vmem:[%s469 + $0x20] sm:$0xff]
      %v1331 = vld [vmem:[%s469 + $0x30] sm:$0xff]
      %v1332 = vld [vmem:[%s469 + $0x38] sm:$0xff]
      %v1333 = vld [vmem:[%s469 + $0x40] sm:$0xff]
      %v1334 = vld [vmem:[%s469 + $0x48] sm:$0xff]
      %v1335 = vld [vmem:[%s469 + $0x58] sm:$0xff]
      %v1336 = vld [vmem:[%s469 + $0x60] sm:$0xff]
      %v1337 = vld [vmem:[%s469 + $0x68] sm:$0xff]
      %v1338 = vld [vmem:[%s469 + $0x70] sm:$0xff]
      %v1339 = vld [vmem:[%s469 + $0x80] sm:$0xff]
      %v1340 = vld [vmem:[%s469 + $0x88] sm:$0xff]
      %v1341 = vld [vmem:[%s469 + $0x90] sm:$0xff]
      %v1342 = vld [vmem:[%s469 + $0x98] sm:$0xff]
      %v1343 = vld [vmem:[%s469 + $0xa8] sm:$0xff]
      %v1344 = vld [vmem:[%s469 + $0xb0] sm:$0xff]
      %v1345 = vld [vmem:[%s469 + $0xb8] sm:$0xff]
      %v1346 = vld [vmem:[%s469 + $0xc0] sm:$0xff]
      %v1347 = vld [vmem:[%s469 + $0xd0] sm:$0xff]
      %v1348 = vld [vmem:[%s469 + $0xd8] sm:$0xff]
      %v1349 = vld [vmem:[%s469 + $0xe0] sm:$0xff]
      %v1350 = vld [vmem:[%s469 + $0xe8] sm:$0xff]
      %v1351 = vld [vmem:[%s469 + $0xf8] sm:$0xff]
      %v1352 = vld [vmem:[%s469 + $0x100] sm:$0xff]
      %v1353 = vld [vmem:[%s469 + $0x108] sm:$0xff]
      %v1354 = vld [vmem:[%s469 + $0x110] sm:$0xff]
      %v1355 = vld [vmem:[%s469 + $0x120] sm:$0xff]
      %v1356 = vld [vmem:[%s469 + $0x128] sm:$0xff]
      %v1357 = vld [vmem:[%s469 + $0x130] sm:$0xff]
      %v1358 = vld [vmem:[%s469 + $0x138] sm:$0xff]
      %1391 = vrot.lane.b32.xlu0 %v1327, 64
      %v1392 = vpop.permute.xlu0 %1391
      %1393 = vrot.lane.b32.xlu0 %v1328, 64
      %v1394 = vpop.permute.xlu0 %1393
      %1395 = vrot.lane.b32.xlu0 %v1329, 64
      %v1396 = vpop.permute.xlu0 %1395
      %1397 = vrot.lane.b32.xlu0 %v1330, 64
      %v1398 = vpop.permute.xlu0 %1397
      %1399 = vrot.lane.b32.xlu0 %v1331, 64
      %v1400 = vpop.permute.xlu0 %1399
      %1401 = vrot.lane.b32.xlu0 %v1332, 64
      %v1402 = vpop.permute.xlu0 %1401
      %1403 = vrot.lane.b32.xlu0 %v1333, 64
      %v1404 = vpop.permute.xlu0 %1403
      %1405 = vrot.lane.b32.xlu0 %v1334, 64
      %v1406 = vpop.permute.xlu0 %1405
      %1407 = vrot.lane.b32.xlu0 %v1335, 64
      %v1408 = vpop.permute.xlu0 %1407
      %1409 = vrot.lane.b32.xlu0 %v1336, 64
      %v1410 = vpop.permute.xlu0 %1409
      %1411 = vrot.lane.b32.xlu0 %v1337, 64
      %v1412 = vpop.permute.xlu0 %1411
      %1413 = vrot.lane.b32.xlu0 %v1338, 64
      %v1414 = vpop.permute.xlu0 %1413
      %1415 = vrot.lane.b32.xlu0 %v1339, 64
      %v1416 = vpop.permute.xlu0 %1415
      %1417 = vrot.lane.b32.xlu0 %v1340, 64
      %v1418 = vpop.permute.xlu0 %1417
      %1419 = vrot.lane.b32.xlu0 %v1341, 64
      %v1420 = vpop.permute.xlu0 %1419
      %1421 = vrot.lane.b32.xlu0 %v1342, 64
      %v1422 = vpop.permute.xlu0 %1421
      %1423 = vrot.lane.b32.xlu0 %v1343, 64
      %v1424 = vpop.permute.xlu0 %1423
      %1425 = vrot.lane.b32.xlu0 %v1344, 64
      %v1426 = vpop.permute.xlu0 %1425
      %1427 = vrot.lane.b32.xlu0 %v1345, 64
      %v1428 = vpop.permute.xlu0 %1427
      %1429 = vrot.lane.b32.xlu0 %v1346, 64
      %v1430 = vpop.permute.xlu0 %1429
      %1431 = vrot.lane.b32.xlu0 %v1347, 64
      %v1432 = vpop.permute.xlu0 %1431
      %1433 = vrot.lane.b32.xlu0 %v1348, 64
      %v1434 = vpop.permute.xlu0 %1433
      %1435 = vrot.lane.b32.xlu0 %v1349, 64
      %v1436 = vpop.permute.xlu0 %1435
      %1437 = vrot.lane.b32.xlu0 %v1350, 64
      %v1438 = vpop.permute.xlu0 %1437
      %1439 = vrot.lane.b32.xlu0 %v1351, 64
      %v1440 = vpop.permute.xlu0 %1439
      %1441 = vrot.lane.b32.xlu0 %v1352, 64
      %v1442 = vpop.permute.xlu0 %1441
      %1443 = vrot.lane.b32.xlu0 %v1353, 64
      %v1444 = vpop.permute.xlu0 %1443
      %1445 = vrot.lane.b32.xlu0 %v1354, 64
      %v1446 = vpop.permute.xlu0 %1445
      %1447 = vrot.lane.b32.xlu0 %v1355, 64
      %v1448 = vpop.permute.xlu0 %1447
      %1449 = vrot.lane.b32.xlu0 %v1356, 64
      %v1450 = vpop.permute.xlu0 %1449
      %1451 = vrot.lane.b32.xlu0 %v1357, 64
      %v1452 = vpop.permute.xlu0 %1451
      %1453 = vrot.lane.b32.xlu0 %v1358, 64
      %v1454 = vpop.permute.xlu0 %1453
      %1487 = vst.msk [vmem:[#allocation3 + $0x10] sm:$0xff] %vm822, %v1392
      %1488 = vst.msk [vmem:[#allocation3 + $0x38] sm:$0xff] %vm822, %v1394
      %1489 = vst.msk [vmem:[#allocation3 + $0x60] sm:$0xff] %vm822, %v1396
      %1490 = vst.msk [vmem:[#allocation3 + $0x88] sm:$0xff] %vm822, %v1398
      %1491 = vst.msk [vmem:[#allocation3 + $0xb0] sm:$0xff] %vm822, %v1400
      %1492 = vst.msk [vmem:[#allocation3 + $0xd8] sm:$0xff] %vm822, %v1402
      %1493 = vst.msk [vmem:[#allocation3 + $0x100] sm:$0xff] %vm822, %v1404
      %1494 = vst.msk [vmem:[#allocation3 + $0x128] sm:$0xff] %vm822, %v1406
      %1495 = vst.msk [vmem:[#allocation3 + $0x150] sm:$0xff] %vm822, %v1408
      %1496 = vst.msk [vmem:[#allocation3 + $0x178] sm:$0xff] %vm822, %v1410
      %1497 = vst.msk [vmem:[#allocation3 + $0x1a0] sm:$0xff] %vm822, %v1412
      %1498 = vst.msk [vmem:[#allocation3 + $0x1c8] sm:$0xff] %vm822, %v1414
      %1499 = vst.msk [vmem:[#allocation3 + $0x1f0] sm:$0xff] %vm822, %v1416
      %1500 = vst.msk [vmem:[#allocation3 + $0x218] sm:$0xff] %vm822, %v1418
      %1501 = vst.msk [vmem:[#allocation3 + $0x240] sm:$0xff] %vm822, %v1420
      %1502 = vst.msk [vmem:[#allocation3 + $0x268] sm:$0xff] %vm822, %v1422
      %1503 = vst.msk [vmem:[#allocation3 + $0x290] sm:$0xff] %vm822, %v1424
      %1504 = vst.msk [vmem:[#allocation3 + $0x2b8] sm:$0xff] %vm822, %v1426
      %1505 = vst.msk [vmem:[#allocation3 + $0x2e0] sm:$0xff] %vm822, %v1428
      %1506 = vst.msk [vmem:[#allocation3 + $0x308] sm:$0xff] %vm822, %v1430
      %1507 = vst.msk [vmem:[#allocation3 + $0x330] sm:$0xff] %vm822, %v1432
      %1508 = vst.msk [vmem:[#allocation3 + $0x358] sm:$0xff] %vm822, %v1434
      %1509 = vst.msk [vmem:[#allocation3 + $0x380] sm:$0xff] %vm822, %v1436
      %1510 = vst.msk [vmem:[#allocation3 + $0x3a8] sm:$0xff] %vm822, %v1438
      %1511 = vst.msk [vmem:[#allocation3 + $0x3d0] sm:$0xff] %vm822, %v1440
      %1512 = vst.msk [vmem:[#allocation3 + $0x3f8] sm:$0xff] %vm822, %v1442
      %1513 = vst.msk [vmem:[#allocation3 + $0x420] sm:$0xff] %vm822, %v1444
      %1514 = vst.msk [vmem:[#allocation3 + $0x448] sm:$0xff] %vm822, %v1446
      %1515 = vst.msk [vmem:[#allocation3 + $0x470] sm:$0xff] %vm822, %v1448
      %1516 = vst.msk [vmem:[#allocation3 + $0x498] sm:$0xff] %vm822, %v1450
      %1517 = vst.msk [vmem:[#allocation3 + $0x4c0] sm:$0xff] %vm822, %v1452
      %1518 = vst.msk [vmem:[#allocation3 + $0x4e8] sm:$0xff] %vm822, %v1454
      %s1519 = scalar_lea.vmem [#allocation2], 80
      %v1520 = vld [vmem:[%s1519] sm:$0xff]
      %v1521 = vld [vmem:[%s1519 + $0x8] sm:$0xff]
      %v1522 = vld [vmem:[%s1519 + $0x10] sm:$0xff]
      %v1523 = vld [vmem:[%s1519 + $0x18] sm:$0xff]
      %v1524 = vld [vmem:[%s1519 + $0x28] sm:$0xff]
      %v1525 = vld [vmem:[%s1519 + $0x30] sm:$0xff]
      %v1526 = vld [vmem:[%s1519 + $0x38] sm:$0xff]
      %v1527 = vld [vmem:[%s1519 + $0x40] sm:$0xff]
      %v1528 = vld [vmem:[%s1519 + $0x50] sm:$0xff]
      %v1529 = vld [vmem:[%s1519 + $0x58] sm:$0xff]
      %v1530 = vld [vmem:[%s1519 + $0x60] sm:$0xff]
      %v1531 = vld [vmem:[%s1519 + $0x68] sm:$0xff]
      %v1532 = vld [vmem:[%s1519 + $0x78] sm:$0xff]
      %v1533 = vld [vmem:[%s1519 + $0x80] sm:$0xff]
      %v1534 = vld [vmem:[%s1519 + $0x88] sm:$0xff]
      %v1535 = vld [vmem:[%s1519 + $0x90] sm:$0xff]
      %v1536 = vld [vmem:[%s1519 + $0xa0] sm:$0xff]
      %v1537 = vld [vmem:[%s1519 + $0xa8] sm:$0xff]
      %v1538 = vld [vmem:[%s1519 + $0xb0] sm:$0xff]
      %v1539 = vld [vmem:[%s1519 + $0xb8] sm:$0xff]
      %v1540 = vld [vmem:[%s1519 + $0xc8] sm:$0xff]
      %v1541 = vld [vmem:[%s1519 + $0xd0] sm:$0xff]
      %v1542 = vld [vmem:[%s1519 + $0xd8] sm:$0xff]
      %v1543 = vld [vmem:[%s1519 + $0xe0] sm:$0xff]
      %v1544 = vld [vmem:[%s1519 + $0xf0] sm:$0xff]
      %v1545 = vld [vmem:[%s1519 + $0xf8] sm:$0xff]
      %v1546 = vld [vmem:[%s1519 + $0x100] sm:$0xff]
      %v1547 = vld [vmem:[%s1519 + $0x108] sm:$0xff]
      %v1548 = vld [vmem:[%s1519 + $0x118] sm:$0xff]
      %v1549 = vld [vmem:[%s1519 + $0x120] sm:$0xff]
      %v1550 = vld [vmem:[%s1519 + $0x128] sm:$0xff]
      %v1551 = vld [vmem:[%s1519 + $0x130] sm:$0xff]
      %1552 = vst.msk [vmem:[#allocation3 + $0x18] sm:$0xff] %vm210, %v1520
      %1553 = vst.msk [vmem:[#allocation3 + $0x40] sm:$0xff] %vm210, %v1521
      %1554 = vst.msk [vmem:[#allocation3 + $0x68] sm:$0xff] %vm210, %v1522
      %1555 = vst.msk [vmem:[#allocation3 + $0x90] sm:$0xff] %vm210, %v1523
      %1556 = vst.msk [vmem:[#allocation3 + $0xb8] sm:$0xff] %vm210, %v1524
      %1557 = vst.msk [vmem:[#allocation3 + $0xe0] sm:$0xff] %vm210, %v1525
      %1558 = vst.msk [vmem:[#allocation3 + $0x108] sm:$0xff] %vm210, %v1526
      %1559 = vst.msk [vmem:[#allocation3 + $0x130] sm:$0xff] %vm210, %v1527
      %1560 = vst.msk [vmem:[#allocation3 + $0x158] sm:$0xff] %vm210, %v1528
      %1561 = vst.msk [vmem:[#allocation3 + $0x180] sm:$0xff] %vm210, %v1529
      %1562 = vst.msk [vmem:[#allocation3 + $0x1a8] sm:$0xff] %vm210, %v1530
      %1563 = vst.msk [vmem:[#allocation3 + $0x1d0] sm:$0xff] %vm210, %v1531
      %1564 = vst.msk [vmem:[#allocation3 + $0x1f8] sm:$0xff] %vm210, %v1532
      %1565 = vst.msk [vmem:[#allocation3 + $0x220] sm:$0xff] %vm210, %v1533
      %1566 = vst.msk [vmem:[#allocation3 + $0x248] sm:$0xff] %vm210, %v1534
      %1567 = vst.msk [vmem:[#allocation3 + $0x270] sm:$0xff] %vm210, %v1535
      %1568 = vst.msk [vmem:[#allocation3 + $0x298] sm:$0xff] %vm210, %v1536
      %1569 = vst.msk [vmem:[#allocation3 + $0x2c0] sm:$0xff] %vm210, %v1537
      %1570 = vst.msk [vmem:[#allocation3 + $0x2e8] sm:$0xff] %vm210, %v1538
      %1571 = vst.msk [vmem:[#allocation3 + $0x310] sm:$0xff] %vm210, %v1539
      %1572 = vst.msk [vmem:[#allocation3 + $0x338] sm:$0xff] %vm210, %v1540
      %1573 = vst.msk [vmem:[#allocation3 + $0x360] sm:$0xff] %vm210, %v1541
      %1574 = vst.msk [vmem:[#allocation3 + $0x388] sm:$0xff] %vm210, %v1542
      %1575 = vst.msk [vmem:[#allocation3 + $0x3b0] sm:$0xff] %vm210, %v1543
      %1576 = vst.msk [vmem:[#allocation3 + $0x3d8] sm:$0xff] %vm210, %v1544
      %1577 = vst.msk [vmem:[#allocation3 + $0x400] sm:$0xff] %vm210, %v1545
      %1578 = vst.msk [vmem:[#allocation3 + $0x428] sm:$0xff] %vm210, %v1546
      %1579 = vst.msk [vmem:[#allocation3 + $0x450] sm:$0xff] %vm210, %v1547
      %1580 = vst.msk [vmem:[#allocation3 + $0x478] sm:$0xff] %vm210, %v1548
      %1581 = vst.msk [vmem:[#allocation3 + $0x4a0] sm:$0xff] %vm210, %v1549
      %1582 = vst.msk [vmem:[#allocation3 + $0x4c8] sm:$0xff] %vm210, %v1550
      %1583 = vst.msk [vmem:[#allocation3 + $0x4f0] sm:$0xff] %vm210, %v1551
      %v1584 = vld [vmem:[%s1519] sm:$0xf0]
      %v1585 = vld [vmem:[%s1519 + $0x8] sm:$0xff]
      %v1586 = vld [vmem:[%s1519 + $0x10] sm:$0xff]
      %v1587 = vld [vmem:[%s1519 + $0x18] sm:$0xff]
      %v1588 = vld [vmem:[%s1519 + $0x20] sm:$0xf]
      %v1589 = vld [vmem:[%s1519 + $0x28] sm:$0xf0]
      %v1590 = vld [vmem:[%s1519 + $0x30] sm:$0xff]
      %v1591 = vld [vmem:[%s1519 + $0x38] sm:$0xff]
      %v1592 = vld [vmem:[%s1519 + $0x40] sm:$0xff]
      %v1593 = vld [vmem:[%s1519 + $0x48] sm:$0xf]
      %v1594 = vld [vmem:[%s1519 + $0x50] sm:$0xf0]
      %v1595 = vld [vmem:[%s1519 + $0x58] sm:$0xff]
      %v1596 = vld [vmem:[%s1519 + $0x60] sm:$0xff]
      %v1597 = vld [vmem:[%s1519 + $0x68] sm:$0xff]
      %v1598 = vld [vmem:[%s1519 + $0x70] sm:$0xf]
      %v1599 = vld [vmem:[%s1519 + $0x78] sm:$0xf0]
      %v1600 = vld [vmem:[%s1519 + $0x80] sm:$0xff]
      %v1601 = vld [vmem:[%s1519 + $0x88] sm:$0xff]
      %v1602 = vld [vmem:[%s1519 + $0x90] sm:$0xff]
      %v1603 = vld [vmem:[%s1519 + $0x98] sm:$0xf]
      %v1604 = vld [vmem:[%s1519 + $0xa0] sm:$0xf0]
      %v1605 = vld [vmem:[%s1519 + $0xa8] sm:$0xff]
      %v1606 = vld [vmem:[%s1519 + $0xb0] sm:$0xff]
      %v1607 = vld [vmem:[%s1519 + $0xb8] sm:$0xff]
      %v1608 = vld [vmem:[%s1519 + $0xc0] sm:$0xf]
      %v1609 = vld [vmem:[%s1519 + $0xc8] sm:$0xf0]
      %v1610 = vld [vmem:[%s1519 + $0xd0] sm:$0xff]
      %v1611 = vld [vmem:[%s1519 + $0xd8] sm:$0xff]
      %v1612 = vld [vmem:[%s1519 + $0xe0] sm:$0xff]
      %v1613 = vld [vmem:[%s1519 + $0xe8] sm:$0xf]
      %v1614 = vld [vmem:[%s1519 + $0xf0] sm:$0xf0]
      %v1615 = vld [vmem:[%s1519 + $0xf8] sm:$0xff]
      %v1616 = vld [vmem:[%s1519 + $0x100] sm:$0xff]
      %v1617 = vld [vmem:[%s1519 + $0x108] sm:$0xff]
      %v1618 = vld [vmem:[%s1519 + $0x110] sm:$0xf]
      %v1619 = vld [vmem:[%s1519 + $0x118] sm:$0xf0]
      %v1620 = vld [vmem:[%s1519 + $0x120] sm:$0xff]
      %v1621 = vld [vmem:[%s1519 + $0x128] sm:$0xff]
      %v1622 = vld [vmem:[%s1519 + $0x130] sm:$0xff]
      %v1623 = vld [vmem:[%s1519 + $0x138] sm:$0xf]
      %v1664 = vrot.slane %v1584, 4
      %v1665 = vrot.slane %v1585, 4
      %v1666 = vsel %vm372, %v1664, %v1665
      %v1667 = vrot.slane %v1586, 4
      %v1668 = vsel %vm372, %v1665, %v1667
      %v1669 = vrot.slane %v1587, 4
      %v1670 = vsel %vm372, %v1667, %v1669
      %v1671 = vrot.slane %v1588, 4
      %v1672 = vsel %vm372, %v1669, %v1671
      %v1673 = vrot.slane %v1589, 4
      %v1674 = vrot.slane %v1590, 4
      %v1675 = vsel %vm372, %v1673, %v1674
      %v1676 = vrot.slane %v1591, 4
      %v1677 = vsel %vm372, %v1674, %v1676
      %v1678 = vrot.slane %v1592, 4
      %v1679 = vsel %vm372, %v1676, %v1678
      %v1680 = vrot.slane %v1593, 4
      %v1681 = vsel %vm372, %v1678, %v1680
      %v1682 = vrot.slane %v1594, 4
      %v1683 = vrot.slane %v1595, 4
      %v1684 = vsel %vm372, %v1682, %v1683
      %v1685 = vrot.slane %v1596, 4
      %v1686 = vsel %vm372, %v1683, %v1685
      %v1687 = vrot.slane %v1597, 4
      %v1688 = vsel %vm372, %v1685, %v1687
      %v1689 = vrot.slane %v1598, 4
      %v1690 = vsel %vm372, %v1687, %v1689
      %v1691 = vrot.slane %v1599, 4
      %v1692 = vrot.slane %v1600, 4
      %v1693 = vsel %vm372, %v1691, %v1692
      %v1694 = vrot.slane %v1601, 4
      %v1695 = vsel %vm372, %v1692, %v1694
      %v1696 = vrot.slane %v1602, 4
      %v1697 = vsel %vm372, %v1694, %v1696
      %v1698 = vrot.slane %v1603, 4
      %v1699 = vsel %vm372, %v1696, %v1698
      %v1700 = vrot.slane %v1604, 4
      %v1701 = vrot.slane %v1605, 4
      %v1702 = vsel %vm372, %v1700, %v1701
      %v1703 = vrot.slane %v1606, 4
      %v1704 = vsel %vm372, %v1701, %v1703
      %v1705 = vrot.slane %v1607, 4
      %v1706 = vsel %vm372, %v1703, %v1705
      %v1707 = vrot.slane %v1608, 4
      %v1708 = vsel %vm372, %v1705, %v1707
      %v1709 = vrot.slane %v1609, 4
      %v1710 = vrot.slane %v1610, 4
      %v1711 = vsel %vm372, %v1709, %v1710
      %v1712 = vrot.slane %v1611, 4
      %v1713 = vsel %vm372, %v1710, %v1712
      %v1714 = vrot.slane %v1612, 4
      %v1715 = vsel %vm372, %v1712, %v1714
      %v1716 = vrot.slane %v1613, 4
      %v1717 = vsel %vm372, %v1714, %v1716
      %v1718 = vrot.slane %v1614, 4
      %v1719 = vrot.slane %v1615, 4
      %v1720 = vsel %vm372, %v1718, %v1719
      %v1721 = vrot.slane %v1616, 4
      %v1722 = vsel %vm372, %v1719, %v1721
      %v1723 = vrot.slane %v1617, 4
      %v1724 = vsel %vm372, %v1721, %v1723
      %v1725 = vrot.slane %v1618, 4
      %v1726 = vsel %vm372, %v1723, %v1725
      %v1727 = vrot.slane %v1619, 4
      %v1728 = vrot.slane %v1620, 4
      %v1729 = vsel %vm372, %v1727, %v1728
      %v1730 = vrot.slane %v1621, 4
      %v1731 = vsel %vm372, %v1728, %v1730
      %v1732 = vrot.slane %v1622, 4
      %v1733 = vsel %vm372, %v1730, %v1732
      %v1734 = vrot.slane %v1623, 4
      %v1735 = vsel %vm372, %v1732, %v1734
      %1736 = vrot.lane.b32.xlu0 %v1666, 64
      %v1737 = vpop.permute.xlu0 %1736
      %1738 = vrot.lane.b32.xlu0 %v1668, 64
      %v1739 = vpop.permute.xlu0 %1738
      %1740 = vrot.lane.b32.xlu0 %v1670, 64
      %v1741 = vpop.permute.xlu0 %1740
      %1742 = vrot.lane.b32.xlu0 %v1672, 64
      %v1743 = vpop.permute.xlu0 %1742
      %1744 = vrot.lane.b32.xlu0 %v1675, 64
      %v1745 = vpop.permute.xlu0 %1744
      %1746 = vrot.lane.b32.xlu0 %v1677, 64
      %v1747 = vpop.permute.xlu0 %1746
      %1748 = vrot.lane.b32.xlu0 %v1679, 64
      %v1749 = vpop.permute.xlu0 %1748
      %1750 = vrot.lane.b32.xlu0 %v1681, 64
      %v1751 = vpop.permute.xlu0 %1750
      %1752 = vrot.lane.b32.xlu0 %v1684, 64
      %v1753 = vpop.permute.xlu0 %1752
      %1754 = vrot.lane.b32.xlu0 %v1686, 64
      %v1755 = vpop.permute.xlu0 %1754
      %1756 = vrot.lane.b32.xlu0 %v1688, 64
      %v1757 = vpop.permute.xlu0 %1756
      %1758 = vrot.lane.b32.xlu0 %v1690, 64
      %v1759 = vpop.permute.xlu0 %1758
      %1760 = vrot.lane.b32.xlu0 %v1693, 64
      %v1761 = vpop.permute.xlu0 %1760
      %1762 = vrot.lane.b32.xlu0 %v1695, 64
      %v1763 = vpop.permute.xlu0 %1762
      %1764 = vrot.lane.b32.xlu0 %v1697, 64
      %v1765 = vpop.permute.xlu0 %1764
      %1766 = vrot.lane.b32.xlu0 %v1699, 64
      %v1767 = vpop.permute.xlu0 %1766
      %1768 = vrot.lane.b32.xlu0 %v1702, 64
      %v1769 = vpop.permute.xlu0 %1768
      %1770 = vrot.lane.b32.xlu0 %v1704, 64
      %v1771 = vpop.permute.xlu0 %1770
      %1772 = vrot.lane.b32.xlu0 %v1706, 64
      %v1773 = vpop.permute.xlu0 %1772
      %1774 = vrot.lane.b32.xlu0 %v1708, 64
      %v1775 = vpop.permute.xlu0 %1774
      %1776 = vrot.lane.b32.xlu0 %v1711, 64
      %v1777 = vpop.permute.xlu0 %1776
      %1778 = vrot.lane.b32.xlu0 %v1713, 64
      %v1779 = vpop.permute.xlu0 %1778
      %1780 = vrot.lane.b32.xlu0 %v1715, 64
      %v1781 = vpop.permute.xlu0 %1780
      %1782 = vrot.lane.b32.xlu0 %v1717, 64
      %v1783 = vpop.permute.xlu0 %1782
      %1784 = vrot.lane.b32.xlu0 %v1720, 64
      %v1785 = vpop.permute.xlu0 %1784
      %1786 = vrot.lane.b32.xlu0 %v1722, 64
      %v1787 = vpop.permute.xlu0 %1786
      %1788 = vrot.lane.b32.xlu0 %v1724, 64
      %v1789 = vpop.permute.xlu0 %1788
      %1790 = vrot.lane.b32.xlu0 %v1726, 64
      %v1791 = vpop.permute.xlu0 %1790
      %1792 = vrot.lane.b32.xlu0 %v1729, 64
      %v1793 = vpop.permute.xlu0 %1792
      %1794 = vrot.lane.b32.xlu0 %v1731, 64
      %v1795 = vpop.permute.xlu0 %1794
      %1796 = vrot.lane.b32.xlu0 %v1733, 64
      %v1797 = vpop.permute.xlu0 %1796
      %1798 = vrot.lane.b32.xlu0 %v1735, 64
      %v1799 = vpop.permute.xlu0 %1798
      %1832 = vst.msk [vmem:[#allocation3 + $0x18] sm:$0xff] %vm822, %v1737
      %1833 = vst.msk [vmem:[#allocation3 + $0x40] sm:$0xff] %vm822, %v1739
      %1834 = vst.msk [vmem:[#allocation3 + $0x68] sm:$0xff] %vm822, %v1741
      %1835 = vst.msk [vmem:[#allocation3 + $0x90] sm:$0xff] %vm822, %v1743
      %1836 = vst.msk [vmem:[#allocation3 + $0xb8] sm:$0xff] %vm822, %v1745
      %1837 = vst.msk [vmem:[#allocation3 + $0xe0] sm:$0xff] %vm822, %v1747
      %1838 = vst.msk [vmem:[#allocation3 + $0x108] sm:$0xff] %vm822, %v1749
      %1839 = vst.msk [vmem:[#allocation3 + $0x130] sm:$0xff] %vm822, %v1751
      %1840 = vst.msk [vmem:[#allocation3 + $0x158] sm:$0xff] %vm822, %v1753
      %1841 = vst.msk [vmem:[#allocation3 + $0x180] sm:$0xff] %vm822, %v1755
      %1842 = vst.msk [vmem:[#allocation3 + $0x1a8] sm:$0xff] %vm822, %v1757
      %1843 = vst.msk [vmem:[#allocation3 + $0x1d0] sm:$0xff] %vm822, %v1759
      %1844 = vst.msk [vmem:[#allocation3 + $0x1f8] sm:$0xff] %vm822, %v1761
      %1845 = vst.msk [vmem:[#allocation3 + $0x220] sm:$0xff] %vm822, %v1763
      %1846 = vst.msk [vmem:[#allocation3 + $0x248] sm:$0xff] %vm822, %v1765
      %1847 = vst.msk [vmem:[#allocation3 + $0x270] sm:$0xff] %vm822, %v1767
      %1848 = vst.msk [vmem:[#allocation3 + $0x298] sm:$0xff] %vm822, %v1769
      %1849 = vst.msk [vmem:[#allocation3 + $0x2c0] sm:$0xff] %vm822, %v1771
      %1850 = vst.msk [vmem:[#allocation3 + $0x2e8] sm:$0xff] %vm822, %v1773
      %1851 = vst.msk [vmem:[#allocation3 + $0x310] sm:$0xff] %vm822, %v1775
      %1852 = vst.msk [vmem:[#allocation3 + $0x338] sm:$0xff] %vm822, %v1777
      %1853 = vst.msk [vmem:[#allocation3 + $0x360] sm:$0xff] %vm822, %v1779
      %1854 = vst.msk [vmem:[#allocation3 + $0x388] sm:$0xff] %vm822, %v1781
      %1855 = vst.msk [vmem:[#allocation3 + $0x3b0] sm:$0xff] %vm822, %v1783
      %1856 = vst.msk [vmem:[#allocation3 + $0x3d8] sm:$0xff] %vm822, %v1785
      %1857 = vst.msk [vmem:[#allocation3 + $0x400] sm:$0xff] %vm822, %v1787
      %1858 = vst.msk [vmem:[#allocation3 + $0x428] sm:$0xff] %vm822, %v1789
      %1859 = vst.msk [vmem:[#allocation3 + $0x450] sm:$0xff] %vm822, %v1791
      %1860 = vst.msk [vmem:[#allocation3 + $0x478] sm:$0xff] %vm822, %v1793
      %1861 = vst.msk [vmem:[#allocation3 + $0x4a0] sm:$0xff] %vm822, %v1795
      %1862 = vst.msk [vmem:[#allocation3 + $0x4c8] sm:$0xff] %vm822, %v1797
      %1863 = vst.msk [vmem:[#allocation3 + $0x4f0] sm:$0xff] %vm822, %v1799
      %v1864 = vld [vmem:[%s1519 + $0x8] sm:$0xff]
      %v1865 = vld [vmem:[%s1519 + $0x10] sm:$0xff]
      %v1866 = vld [vmem:[%s1519 + $0x18] sm:$0xff]
      %v1867 = vld [vmem:[%s1519 + $0x20] sm:$0xff]
      %v1868 = vld [vmem:[%s1519 + $0x30] sm:$0xff]
      %v1869 = vld [vmem:[%s1519 + $0x38] sm:$0xff]
      %v1870 = vld [vmem:[%s1519 + $0x40] sm:$0xff]
      %v1871 = vld [vmem:[%s1519 + $0x48] sm:$0xff]
      %v1872 = vld [vmem:[%s1519 + $0x58] sm:$0xff]
      %v1873 = vld [vmem:[%s1519 + $0x60] sm:$0xff]
      %v1874 = vld [vmem:[%s1519 + $0x68] sm:$0xff]
      %v1875 = vld [vmem:[%s1519 + $0x70] sm:$0xff]
      %v1876 = vld [vmem:[%s1519 + $0x80] sm:$0xff]
      %v1877 = vld [vmem:[%s1519 + $0x88] sm:$0xff]
      %v1878 = vld [vmem:[%s1519 + $0x90] sm:$0xff]
      %v1879 = vld [vmem:[%s1519 + $0x98] sm:$0xff]
      %v1880 = vld [vmem:[%s1519 + $0xa8] sm:$0xff]
      %v1881 = vld [vmem:[%s1519 + $0xb0] sm:$0xff]
      %v1882 = vld [vmem:[%s1519 + $0xb8] sm:$0xff]
      %v1883 = vld [vmem:[%s1519 + $0xc0] sm:$0xff]
      %v1884 = vld [vmem:[%s1519 + $0xd0] sm:$0xff]
      %v1885 = vld [vmem:[%s1519 + $0xd8] sm:$0xff]
      %v1886 = vld [vmem:[%s1519 + $0xe0] sm:$0xff]
      %v1887 = vld [vmem:[%s1519 + $0xe8] sm:$0xff]
      %v1888 = vld [vmem:[%s1519 + $0xf8] sm:$0xff]
      %v1889 = vld [vmem:[%s1519 + $0x100] sm:$0xff]
      %v1890 = vld [vmem:[%s1519 + $0x108] sm:$0xff]
      %v1891 = vld [vmem:[%s1519 + $0x110] sm:$0xff]
      %v1892 = vld [vmem:[%s1519 + $0x120] sm:$0xff]
      %v1893 = vld [vmem:[%s1519 + $0x128] sm:$0xff]
      %v1894 = vld [vmem:[%s1519 + $0x130] sm:$0xff]
      %v1895 = vld [vmem:[%s1519 + $0x138] sm:$0xff]
      %1896 = vst.msk [vmem:[#allocation3 + $0x20] sm:$0xff] %vm210, %v1864
      %1897 = vst.msk [vmem:[#allocation3 + $0x48] sm:$0xff] %vm210, %v1865
      %1898 = vst.msk [vmem:[#allocation3 + $0x70] sm:$0xff] %vm210, %v1866
      %1899 = vst.msk [vmem:[#allocation3 + $0x98] sm:$0xff] %vm210, %v1867
      %1900 = vst.msk [vmem:[#allocation3 + $0xc0] sm:$0xff] %vm210, %v1868
      %1901 = vst.msk [vmem:[#allocation3 + $0xe8] sm:$0xff] %vm210, %v1869
      %1902 = vst.msk [vmem:[#allocation3 + $0x110] sm:$0xff] %vm210, %v1870
      %1903 = vst.msk [vmem:[#allocation3 + $0x138] sm:$0xff] %vm210, %v1871
      %1904 = vst.msk [vmem:[#allocation3 + $0x160] sm:$0xff] %vm210, %v1872
      %1905 = vst.msk [vmem:[#allocation3 + $0x188] sm:$0xff] %vm210, %v1873
      %1906 = vst.msk [vmem:[#allocation3 + $0x1b0] sm:$0xff] %vm210, %v1874
      %1907 = vst.msk [vmem:[#allocation3 + $0x1d8] sm:$0xff] %vm210, %v1875
      %1908 = vst.msk [vmem:[#allocation3 + $0x200] sm:$0xff] %vm210, %v1876
      %1909 = vst.msk [vmem:[#allocation3 + $0x228] sm:$0xff] %vm210, %v1877
      %1910 = vst.msk [vmem:[#allocation3 + $0x250] sm:$0xff] %vm210, %v1878
      %1911 = vst.msk [vmem:[#allocation3 + $0x278] sm:$0xff] %vm210, %v1879
      %1912 = vst.msk [vmem:[#allocation3 + $0x2a0] sm:$0xff] %vm210, %v1880
      %1913 = vst.msk [vmem:[#allocation3 + $0x2c8] sm:$0xff] %vm210, %v1881
      %1914 = vst.msk [vmem:[#allocation3 + $0x2f0] sm:$0xff] %vm210, %v1882
      %1915 = vst.msk [vmem:[#allocation3 + $0x318] sm:$0xff] %vm210, %v1883
      %1916 = vst.msk [vmem:[#allocation3 + $0x340] sm:$0xff] %vm210, %v1884
      %1917 = vst.msk [vmem:[#allocation3 + $0x368] sm:$0xff] %vm210, %v1885
      %1918 = vst.msk [vmem:[#allocation3 + $0x390] sm:$0xff] %vm210, %v1886
      %1919 = vst.msk [vmem:[#allocation3 + $0x3b8] sm:$0xff] %vm210, %v1887
      %1920 = vst.msk [vmem:[#allocation3 + $0x3e0] sm:$0xff] %vm210, %v1888
      %1921 = vst.msk [vmem:[#allocation3 + $0x408] sm:$0xff] %vm210, %v1889
      %1922 = vst.msk [vmem:[#allocation3 + $0x430] sm:$0xff] %vm210, %v1890
      %1923 = vst.msk [vmem:[#allocation3 + $0x458] sm:$0xff] %vm210, %v1891
      %1924 = vst.msk [vmem:[#allocation3 + $0x480] sm:$0xff] %vm210, %v1892
      %1925 = vst.msk [vmem:[#allocation3 + $0x4a8] sm:$0xff] %vm210, %v1893
      %1926 = vst.msk [vmem:[#allocation3 + $0x4d0] sm:$0xff] %vm210, %v1894
      %1927 = vst.msk [vmem:[#allocation3 + $0x4f8] sm:$0xff] %vm210, %v1895
      %v1928 = vld [vmem:[#allocation3] sm:$0xff]
      %v1929 = vld [vmem:[#allocation3 + $0x8] sm:$0xff]
      %v1930 = vld [vmem:[#allocation3 + $0x10] sm:$0xff]
      %v1931 = vld [vmem:[#allocation3 + $0x18] sm:$0xff]
      %v1932 = vld [vmem:[#allocation3 + $0x20] sm:$0xff]
      %v1933 = vld [vmem:[#allocation3 + $0x28] sm:$0xff]
      %v1934 = vld [vmem:[#allocation3 + $0x30] sm:$0xff]
      %v1935 = vld [vmem:[#allocation3 + $0x38] sm:$0xff]
      %v1936 = vld [vmem:[#allocation3 + $0x40] sm:$0xff]
      %v1937 = vld [vmem:[#allocation3 + $0x48] sm:$0xff]
      %v1938 = vld [vmem:[#allocation3 + $0x50] sm:$0xff]
      %v1939 = vld [vmem:[#allocation3 + $0x58] sm:$0xff]
      %v1940 = vld [vmem:[#allocation3 + $0x60] sm:$0xff]
      %v1941 = vld [vmem:[#allocation3 + $0x68] sm:$0xff]
      %v1942 = vld [vmem:[#allocation3 + $0x70] sm:$0xff]
      %v1943 = vld [vmem:[#allocation3 + $0x78] sm:$0xff]
      %v1944 = vld [vmem:[#allocation3 + $0x80] sm:$0xff]
      %v1945 = vld [vmem:[#allocation3 + $0x88] sm:$0xff]
      %v1946 = vld [vmem:[#allocation3 + $0x90] sm:$0xff]
      %v1947 = vld [vmem:[#allocation3 + $0x98] sm:$0xff]
      %v1948 = vld [vmem:[#allocation3 + $0xa0] sm:$0xff]
      %v1949 = vld [vmem:[#allocation3 + $0xa8] sm:$0xff]
      %v1950 = vld [vmem:[#allocation3 + $0xb0] sm:$0xff]
      %v1951 = vld [vmem:[#allocation3 + $0xb8] sm:$0xff]
      %v1952 = vld [vmem:[#allocation3 + $0xc0] sm:$0xff]
      %v1953 = vld [vmem:[#allocation3 + $0xc8] sm:$0xff]
      %v1954 = vld [vmem:[#allocation3 + $0xd0] sm:$0xff]
      %v1955 = vld [vmem:[#allocation3 + $0xd8] sm:$0xff]
      %v1956 = vld [vmem:[#allocation3 + $0xe0] sm:$0xff]
      %v1957 = vld [vmem:[#allocation3 + $0xe8] sm:$0xff]
      %v1958 = vld [vmem:[#allocation3 + $0xf0] sm:$0xff]
      %v1959 = vld [vmem:[#allocation3 + $0xf8] sm:$0xff]
      %v1960 = vld [vmem:[#allocation3 + $0x100] sm:$0xff]
      %v1961 = vld [vmem:[#allocation3 + $0x108] sm:$0xff]
      %v1962 = vld [vmem:[#allocation3 + $0x110] sm:$0xff]
      %v1963 = vld [vmem:[#allocation3 + $0x118] sm:$0xff]
      %v1964 = vld [vmem:[#allocation3 + $0x120] sm:$0xff]
      %v1965 = vld [vmem:[#allocation3 + $0x128] sm:$0xff]
      %v1966 = vld [vmem:[#allocation3 + $0x130] sm:$0xff]
      %v1967 = vld [vmem:[#allocation3 + $0x138] sm:$0xff]
      %v1968 = vld [vmem:[#allocation3 + $0x140] sm:$0xff]
      %v1969 = vld [vmem:[#allocation3 + $0x148] sm:$0xff]
      %v1970 = vld [vmem:[#allocation3 + $0x150] sm:$0xff]
      %v1971 = vld [vmem:[#allocation3 + $0x158] sm:$0xff]
      %v1972 = vld [vmem:[#allocation3 + $0x160] sm:$0xff]
      %v1973 = vld [vmem:[#allocation3 + $0x168] sm:$0xff]
      %v1974 = vld [vmem:[#allocation3 + $0x170] sm:$0xff]
      %v1975 = vld [vmem:[#allocation3 + $0x178] sm:$0xff]
      %v1976 = vld [vmem:[#allocation3 + $0x180] sm:$0xff]
      %v1977 = vld [vmem:[#allocation3 + $0x188] sm:$0xff]
      %v1978 = vld [vmem:[#allocation3 + $0x190] sm:$0xff]
      %v1979 = vld [vmem:[#allocation3 + $0x198] sm:$0xff]
      %v1980 = vld [vmem:[#allocation3 + $0x1a0] sm:$0xff]
      %v1981 = vld [vmem:[#allocation3 + $0x1a8] sm:$0xff]
      %v1982 = vld [vmem:[#allocation3 + $0x1b0] sm:$0xff]
      %v1983 = vld [vmem:[#allocation3 + $0x1b8] sm:$0xff]
      %v1984 = vld [vmem:[#allocation3 + $0x1c0] sm:$0xff]
      %v1985 = vld [vmem:[#allocation3 + $0x1c8] sm:$0xff]
      %v1986 = vld [vmem:[#allocation3 + $0x1d0] sm:$0xff]
      %v1987 = vld [vmem:[#allocation3 + $0x1d8] sm:$0xff]
      %v1988 = vld [vmem:[#allocation3 + $0x1e0] sm:$0xff]
      %v1989 = vld [vmem:[#allocation3 + $0x1e8] sm:$0xff]
      %v1990 = vld [vmem:[#allocation3 + $0x1f0] sm:$0xff]
      %v1991 = vld [vmem:[#allocation3 + $0x1f8] sm:$0xff]
      %v1992 = vld [vmem:[#allocation3 + $0x200] sm:$0xff]
      %v1993 = vld [vmem:[#allocation3 + $0x208] sm:$0xff]
      %v1994 = vld [vmem:[#allocation3 + $0x210] sm:$0xff]
      %v1995 = vld [vmem:[#allocation3 + $0x218] sm:$0xff]
      %v1996 = vld [vmem:[#allocation3 + $0x220] sm:$0xff]
      %v1997 = vld [vmem:[#allocation3 + $0x228] sm:$0xff]
      %v1998 = vld [vmem:[#allocation3 + $0x230] sm:$0xff]
      %v1999 = vld [vmem:[#allocation3 + $0x238] sm:$0xff]
      %v2000 = vld [vmem:[#allocation3 + $0x240] sm:$0xff]
      %v2001 = vld [vmem:[#allocation3 + $0x248] sm:$0xff]
      %v2002 = vld [vmem:[#allocation3 + $0x250] sm:$0xff]
      %v2003 = vld [vmem:[#allocation3 + $0x258] sm:$0xff]
      %v2004 = vld [vmem:[#allocation3 + $0x260] sm:$0xff]
      %v2005 = vld [vmem:[#allocation3 + $0x268] sm:$0xff]
      %v2006 = vld [vmem:[#allocation3 + $0x270] sm:$0xff]
      %v2007 = vld [vmem:[#allocation3 + $0x278] sm:$0xff]
      %v2008 = vld [vmem:[#allocation3 + $0x280] sm:$0xff]
      %v2009 = vld [vmem:[#allocation3 + $0x288] sm:$0xff]
      %v2010 = vld [vmem:[#allocation3 + $0x290] sm:$0xff]
      %v2011 = vld [vmem:[#allocation3 + $0x298] sm:$0xff]
      %v2012 = vld [vmem:[#allocation3 + $0x2a0] sm:$0xff]
      %v2013 = vld [vmem:[#allocation3 + $0x2a8] sm:$0xff]
      %v2014 = vld [vmem:[#allocation3 + $0x2b0] sm:$0xff]
      %v2015 = vld [vmem:[#allocation3 + $0x2b8] sm:$0xff]
      %v2016 = vld [vmem:[#allocation3 + $0x2c0] sm:$0xff]
      %v2017 = vld [vmem:[#allocation3 + $0x2c8] sm:$0xff]
      %v2018 = vld [vmem:[#allocation3 + $0x2d0] sm:$0xff]
      %v2019 = vld [vmem:[#allocation3 + $0x2d8] sm:$0xff]
      %v2020 = vld [vmem:[#allocation3 + $0x2e0] sm:$0xff]
      %v2021 = vld [vmem:[#allocation3 + $0x2e8] sm:$0xff]
      %v2022 = vld [vmem:[#allocation3 + $0x2f0] sm:$0xff]
      %v2023 = vld [vmem:[#allocation3 + $0x2f8] sm:$0xff]
      %v2024 = vld [vmem:[#allocation3 + $0x300] sm:$0xff]
      %v2025 = vld [vmem:[#allocation3 + $0x308] sm:$0xff]
      %v2026 = vld [vmem:[#allocation3 + $0x310] sm:$0xff]
      %v2027 = vld [vmem:[#allocation3 + $0x318] sm:$0xff]
      %v2028 = vld [vmem:[#allocation3 + $0x320] sm:$0xff]
      %v2029 = vld [vmem:[#allocation3 + $0x328] sm:$0xff]
      %v2030 = vld [vmem:[#allocation3 + $0x330] sm:$0xff]
      %v2031 = vld [vmem:[#allocation3 + $0x338] sm:$0xff]
      %v2032 = vld [vmem:[#allocation3 + $0x340] sm:$0xff]
      %v2033 = vld [vmem:[#allocation3 + $0x348] sm:$0xff]
      %v2034 = vld [vmem:[#allocation3 + $0x350] sm:$0xff]
      %v2035 = vld [vmem:[#allocation3 + $0x358] sm:$0xff]
      %v2036 = vld [vmem:[#allocation3 + $0x360] sm:$0xff]
      %v2037 = vld [vmem:[#allocation3 + $0x368] sm:$0xff]
      %v2038 = vld [vmem:[#allocation3 + $0x370] sm:$0xff]
      %v2039 = vld [vmem:[#allocation3 + $0x378] sm:$0xff]
      %v2040 = vld [vmem:[#allocation3 + $0x380] sm:$0xff]
      %v2041 = vld [vmem:[#allocation3 + $0x388] sm:$0xff]
      %v2042 = vld [vmem:[#allocation3 + $0x390] sm:$0xff]
      %v2043 = vld [vmem:[#allocation3 + $0x398] sm:$0xff]
      %v2044 = vld [vmem:[#allocation3 + $0x3a0] sm:$0xff]
      %v2045 = vld [vmem:[#allocation3 + $0x3a8] sm:$0xff]
      %v2046 = vld [vmem:[#allocation3 + $0x3b0] sm:$0xff]
      %v2047 = vld [vmem:[#allocation3 + $0x3b8] sm:$0xff]
      %v2048 = vld [vmem:[#allocation3 + $0x3c0] sm:$0xff]
      %v2049 = vld [vmem:[#allocation3 + $0x3c8] sm:$0xff]
      %v2050 = vld [vmem:[#allocation3 + $0x3d0] sm:$0xff]
      %v2051 = vld [vmem:[#allocation3 + $0x3d8] sm:$0xff]
      %v2052 = vld [vmem:[#allocation3 + $0x3e0] sm:$0xff]
      %v2053 = vld [vmem:[#allocation3 + $0x3e8] sm:$0xff]
      %v2054 = vld [vmem:[#allocation3 + $0x3f0] sm:$0xff]
      %v2055 = vld [vmem:[#allocation3 + $0x3f8] sm:$0xff]
      %v2056 = vld [vmem:[#allocation3 + $0x400] sm:$0xff]
      %v2057 = vld [vmem:[#allocation3 + $0x408] sm:$0xff]
      %v2058 = vld [vmem:[#allocation3 + $0x410] sm:$0xff]
      %v2059 = vld [vmem:[#allocation3 + $0x418] sm:$0xff]
      %v2060 = vld [vmem:[#allocation3 + $0x420] sm:$0xff]
      %v2061 = vld [vmem:[#allocation3 + $0x428] sm:$0xff]
      %v2062 = vld [vmem:[#allocation3 + $0x430] sm:$0xff]
      %v2063 = vld [vmem:[#allocation3 + $0x438] sm:$0xff]
      %v2064 = vld [vmem:[#allocation3 + $0x440] sm:$0xff]
      %v2065 = vld [vmem:[#allocation3 + $0x448] sm:$0xff]
      %v2066 = vld [vmem:[#allocation3 + $0x450] sm:$0xff]
      %v2067 = vld [vmem:[#allocation3 + $0x458] sm:$0xff]
      %v2068 = vld [vmem:[#allocation3 + $0x460] sm:$0xff]
      %v2069 = vld [vmem:[#allocation3 + $0x468] sm:$0xff]
      %v2070 = vld [vmem:[#allocation3 + $0x470] sm:$0xff]
      %v2071 = vld [vmem:[#allocation3 + $0x478] sm:$0xff]
      %v2072 = vld [vmem:[#allocation3 + $0x480] sm:$0xff]
      %v2073 = vld [vmem:[#allocation3 + $0x488] sm:$0xff]
      %v2074 = vld [vmem:[#allocation3 + $0x490] sm:$0xff]
      %v2075 = vld [vmem:[#allocation3 + $0x498] sm:$0xff]
      %v2076 = vld [vmem:[#allocation3 + $0x4a0] sm:$0xff]
      %v2077 = vld [vmem:[#allocation3 + $0x4a8] sm:$0xff]
      %v2078 = vld [vmem:[#allocation3 + $0x4b0] sm:$0xff]
      %v2079 = vld [vmem:[#allocation3 + $0x4b8] sm:$0xff]
      %v2080 = vld [vmem:[#allocation3 + $0x4c0] sm:$0xff]
      %v2081 = vld [vmem:[#allocation3 + $0x4c8] sm:$0xff]
      %v2082 = vld [vmem:[#allocation3 + $0x4d0] sm:$0xff]
      %v2083 = vld [vmem:[#allocation3 + $0x4d8] sm:$0xff]
      %v2084 = vld [vmem:[#allocation3 + $0x4e0] sm:$0xff]
      %v2085 = vld [vmem:[#allocation3 + $0x4e8] sm:$0xff]
      %v2086 = vld [vmem:[#allocation3 + $0x4f0] sm:$0xff]
      %v2087 = vld [vmem:[#allocation3 + $0x4f8] sm:$0xff]
      %v2088 = vld [vmem:[%s2] sm:$0xff]
      %v2089 = vld [vmem:[%s2 + $0x8] sm:$0xff]
      %v2090 = vld [vmem:[%s2 + $0x10] sm:$0xff]
      %v2091 = vld [vmem:[%s2 + $0x18] sm:$0xff]
      %v2092 = vld [vmem:[%s2 + $0x20] sm:$0xff]
      %v2093 = vld [vmem:[%s2 + $0x28] sm:$0xff]
      %v2094 = vld [vmem:[%s2 + $0x30] sm:$0xff]
      %v2095 = vld [vmem:[%s2 + $0x38] sm:$0xff]
      %v2096 = vld [vmem:[%s2 + $0x40] sm:$0xff]
      %v2097 = vld [vmem:[%s2 + $0x48] sm:$0xff]
      %v2098 = vld [vmem:[%s2 + $0x50] sm:$0xff]
      %v2099 = vld [vmem:[%s2 + $0x58] sm:$0xff]
      %v2100 = vld [vmem:[%s2 + $0x60] sm:$0xff]
      %v2101 = vld [vmem:[%s2 + $0x68] sm:$0xff]
      %v2102 = vld [vmem:[%s2 + $0x70] sm:$0xff]
      %v2103 = vld [vmem:[%s2 + $0x78] sm:$0xff]
      %v2104 = vld [vmem:[%s2 + $0x80] sm:$0xff]
      %v2105 = vld [vmem:[%s2 + $0x88] sm:$0xff]
      %v2106 = vld [vmem:[%s2 + $0x90] sm:$0xff]
      %v2107 = vld [vmem:[%s2 + $0x98] sm:$0xff]
      %v2108 = vld [vmem:[%s2 + $0xa0] sm:$0xff]
      %v2109 = vld [vmem:[%s2 + $0xa8] sm:$0xff]
      %v2110 = vld [vmem:[%s2 + $0xb0] sm:$0xff]
      %v2111 = vld [vmem:[%s2 + $0xb8] sm:$0xff]
      %v2112 = vld [vmem:[%s2 + $0xc0] sm:$0xff]
      %v2113 = vld [vmem:[%s2 + $0xc8] sm:$0xff]
      %v2114 = vld [vmem:[%s2 + $0xd0] sm:$0xff]
      %v2115 = vld [vmem:[%s2 + $0xd8] sm:$0xff]
      %v2116 = vld [vmem:[%s2 + $0xe0] sm:$0xff]
      %v2117 = vld [vmem:[%s2 + $0xe8] sm:$0xff]
      %v2118 = vld [vmem:[%s2 + $0xf0] sm:$0xff]
      %v2119 = vld [vmem:[%s2 + $0xf8] sm:$0xff]
      %v2120 = vld [vmem:[%s2 + $0x100] sm:$0xff]
      %v2121 = vld [vmem:[%s2 + $0x108] sm:$0xff]
      %v2122 = vld [vmem:[%s2 + $0x110] sm:$0xff]
      %v2123 = vld [vmem:[%s2 + $0x118] sm:$0xff]
      %v2124 = vld [vmem:[%s2 + $0x120] sm:$0xff]
      %v2125 = vld [vmem:[%s2 + $0x128] sm:$0xff]
      %v2126 = vld [vmem:[%s2 + $0x130] sm:$0xff]
      %v2127 = vld [vmem:[%s2 + $0x138] sm:$0xff]
      %v2128 = vld [vmem:[%s2 + $0x140] sm:$0xff]
      %v2129 = vld [vmem:[%s2 + $0x148] sm:$0xff]
      %v2130 = vld [vmem:[%s2 + $0x150] sm:$0xff]
      %v2131 = vld [vmem:[%s2 + $0x158] sm:$0xff]
      %v2132 = vld [vmem:[%s2 + $0x160] sm:$0xff]
      %v2133 = vld [vmem:[%s2 + $0x168] sm:$0xff]
      %v2134 = vld [vmem:[%s2 + $0x170] sm:$0xff]
      %v2135 = vld [vmem:[%s2 + $0x178] sm:$0xff]
      %v2136 = vld [vmem:[%s2 + $0x180] sm:$0xff]
      %v2137 = vld [vmem:[%s2 + $0x188] sm:$0xff]
      %v2138 = vld [vmem:[%s2 + $0x190] sm:$0xff]
      %v2139 = vld [vmem:[%s2 + $0x198] sm:$0xff]
      %v2140 = vld [vmem:[%s2 + $0x1a0] sm:$0xff]
      %v2141 = vld [vmem:[%s2 + $0x1a8] sm:$0xff]
      %v2142 = vld [vmem:[%s2 + $0x1b0] sm:$0xff]
      %v2143 = vld [vmem:[%s2 + $0x1b8] sm:$0xff]
      %v2144 = vld [vmem:[%s2 + $0x1c0] sm:$0xff]
      %v2145 = vld [vmem:[%s2 + $0x1c8] sm:$0xff]
      %v2146 = vld [vmem:[%s2 + $0x1d0] sm:$0xff]
      %v2147 = vld [vmem:[%s2 + $0x1d8] sm:$0xff]
      %v2148 = vld [vmem:[%s2 + $0x1e0] sm:$0xff]
      %v2149 = vld [vmem:[%s2 + $0x1e8] sm:$0xff]
      %v2150 = vld [vmem:[%s2 + $0x1f0] sm:$0xff]
      %v2151 = vld [vmem:[%s2 + $0x1f8] sm:$0xff]
      %v2152 = vld [vmem:[%s2 + $0x200] sm:$0xff]
      %v2153 = vld [vmem:[%s2 + $0x208] sm:$0xff]
      %v2154 = vld [vmem:[%s2 + $0x210] sm:$0xff]
      %v2155 = vld [vmem:[%s2 + $0x218] sm:$0xff]
      %v2156 = vld [vmem:[%s2 + $0x220] sm:$0xff]
      %v2157 = vld [vmem:[%s2 + $0x228] sm:$0xff]
      %v2158 = vld [vmem:[%s2 + $0x230] sm:$0xff]
      %v2159 = vld [vmem:[%s2 + $0x238] sm:$0xff]
      %v2232 = vunpack.c.l.b16 %v2088
      %v2233 = vunpack.c.h.b16 %v2088
      %v2234 = vunpack.c.l.b16 %v2089
      %v2235 = vunpack.c.h.b16 %v2089
      %v2236 = vunpack.c.l.b16 %v2090
      %v2237 = vunpack.c.h.b16 %v2090
      %v2238 = vunpack.c.l.b16 %v2091
      %v2239 = vunpack.c.h.b16 %v2091
      %v2240 = vunpack.c.l.b16 %v2092
      %v2241 = vunpack.c.h.b16 %v2092
      %v2242 = vunpack.c.l.b16 %v2093
      %v2243 = vunpack.c.h.b16 %v2093
      %v2244 = vunpack.c.l.b16 %v2094
      %v2245 = vunpack.c.h.b16 %v2094
      %v2246 = vunpack.c.l.b16 %v2095
      %v2247 = vunpack.c.h.b16 %v2095
      %v2248 = vunpack.c.l.b16 %v2096
      %v2249 = vunpack.c.h.b16 %v2096
      %v2250 = vunpack.c.l.b16 %v2097
      %v2251 = vunpack.c.h.b16 %v2097
      %v2252 = vunpack.c.l.b16 %v2098
      %v2253 = vunpack.c.h.b16 %v2098
      %v2254 = vunpack.c.l.b16 %v2099
      %v2255 = vunpack.c.h.b16 %v2099
      %v2256 = vunpack.c.l.b16 %v2100
      %v2257 = vunpack.c.h.b16 %v2100
      %v2258 = vunpack.c.l.b16 %v2101
      %v2259 = vunpack.c.h.b16 %v2101
      %v2260 = vunpack.c.l.b16 %v2102
      %v2261 = vunpack.c.h.b16 %v2102
      %v2262 = vunpack.c.l.b16 %v2103
      %v2263 = vunpack.c.h.b16 %v2103
      %v2264 = vunpack.c.l.b16 %v2104
      %v2265 = vunpack.c.h.b16 %v2104
      %v2266 = vunpack.c.l.b16 %v2105
      %v2267 = vunpack.c.h.b16 %v2105
      %v2268 = vunpack.c.l.b16 %v2106
      %v2269 = vunpack.c.h.b16 %v2106
      %v2270 = vunpack.c.l.b16 %v2107
      %v2271 = vunpack.c.h.b16 %v2107
      %v2272 = vunpack.c.l.b16 %v2108
      %v2273 = vunpack.c.h.b16 %v2108
      %v2274 = vunpack.c.l.b16 %v2109
      %v2275 = vunpack.c.h.b16 %v2109
      %v2276 = vunpack.c.l.b16 %v2110
      %v2277 = vunpack.c.h.b16 %v2110
      %v2278 = vunpack.c.l.b16 %v2111
      %v2279 = vunpack.c.h.b16 %v2111
      %v2280 = vunpack.c.l.b16 %v2112
      %v2281 = vunpack.c.h.b16 %v2112
      %v2282 = vunpack.c.l.b16 %v2113
      %v2283 = vunpack.c.h.b16 %v2113
      %v2284 = vunpack.c.l.b16 %v2114
      %v2285 = vunpack.c.h.b16 %v2114
      %v2286 = vunpack.c.l.b16 %v2115
      %v2287 = vunpack.c.h.b16 %v2115
      %v2288 = vunpack.c.l.b16 %v2116
      %v2289 = vunpack.c.h.b16 %v2116
      %v2290 = vunpack.c.l.b16 %v2117
      %v2291 = vunpack.c.h.b16 %v2117
      %v2292 = vunpack.c.l.b16 %v2118
      %v2293 = vunpack.c.h.b16 %v2118
      %v2294 = vunpack.c.l.b16 %v2119
      %v2295 = vunpack.c.h.b16 %v2119
      %v2296 = vunpack.c.l.b16 %v2120
      %v2297 = vunpack.c.h.b16 %v2120
      %v2298 = vunpack.c.l.b16 %v2121
      %v2299 = vunpack.c.h.b16 %v2121
      %v2300 = vunpack.c.l.b16 %v2122
      %v2301 = vunpack.c.h.b16 %v2122
      %v2302 = vunpack.c.l.b16 %v2123
      %v2303 = vunpack.c.h.b16 %v2123
      %v2304 = vunpack.c.l.b16 %v2124
      %v2305 = vunpack.c.h.b16 %v2124
      %v2306 = vunpack.c.l.b16 %v2125
      %v2307 = vunpack.c.h.b16 %v2125
      %v2308 = vunpack.c.l.b16 %v2126
      %v2309 = vunpack.c.h.b16 %v2126
      %v2310 = vunpack.c.l.b16 %v2127
      %v2311 = vunpack.c.h.b16 %v2127
      %v2312 = vunpack.c.l.b16 %v2128
      %v2313 = vunpack.c.h.b16 %v2128
      %v2314 = vunpack.c.l.b16 %v2129
      %v2315 = vunpack.c.h.b16 %v2129
      %v2316 = vunpack.c.l.b16 %v2130
      %v2317 = vunpack.c.h.b16 %v2130
      %v2318 = vunpack.c.l.b16 %v2131
      %v2319 = vunpack.c.h.b16 %v2131
      %v2320 = vunpack.c.l.b16 %v2132
      %v2321 = vunpack.c.h.b16 %v2132
      %v2322 = vunpack.c.l.b16 %v2133
      %v2323 = vunpack.c.h.b16 %v2133
      %v2324 = vunpack.c.l.b16 %v2134
      %v2325 = vunpack.c.h.b16 %v2134
      %v2326 = vunpack.c.l.b16 %v2135
      %v2327 = vunpack.c.h.b16 %v2135
      %v2328 = vunpack.c.l.b16 %v2136
      %v2329 = vunpack.c.h.b16 %v2136
      %v2330 = vunpack.c.l.b16 %v2137
      %v2331 = vunpack.c.h.b16 %v2137
      %v2332 = vunpack.c.l.b16 %v2138
      %v2333 = vunpack.c.h.b16 %v2138
      %v2334 = vunpack.c.l.b16 %v2139
      %v2335 = vunpack.c.h.b16 %v2139
      %v2336 = vunpack.c.l.b16 %v2140
      %v2337 = vunpack.c.h.b16 %v2140
      %v2338 = vunpack.c.l.b16 %v2141
      %v2339 = vunpack.c.h.b16 %v2141
      %v2340 = vunpack.c.l.b16 %v2142
      %v2341 = vunpack.c.h.b16 %v2142
      %v2342 = vunpack.c.l.b16 %v2143
      %v2343 = vunpack.c.h.b16 %v2143
      %v2344 = vunpack.c.l.b16 %v2144
      %v2345 = vunpack.c.h.b16 %v2144
      %v2346 = vunpack.c.l.b16 %v2145
      %v2347 = vunpack.c.h.b16 %v2145
      %v2348 = vunpack.c.l.b16 %v2146
      %v2349 = vunpack.c.h.b16 %v2146
      %v2350 = vunpack.c.l.b16 %v2147
      %v2351 = vunpack.c.h.b16 %v2147
      %v2352 = vunpack.c.l.b16 %v2148
      %v2353 = vunpack.c.h.b16 %v2148
      %v2354 = vunpack.c.l.b16 %v2149
      %v2355 = vunpack.c.h.b16 %v2149
      %v2356 = vunpack.c.l.b16 %v2150
      %v2357 = vunpack.c.h.b16 %v2150
      %v2358 = vunpack.c.l.b16 %v2151
      %v2359 = vunpack.c.h.b16 %v2151
      %v2360 = vunpack.c.l.b16 %v2152
      %v2361 = vunpack.c.h.b16 %v2152
      %v2362 = vunpack.c.l.b16 %v2153
      %v2363 = vunpack.c.h.b16 %v2153
      %v2364 = vunpack.c.l.b16 %v2154
      %v2365 = vunpack.c.h.b16 %v2154
      %v2366 = vunpack.c.l.b16 %v2155
      %v2367 = vunpack.c.h.b16 %v2155
      %v2368 = vunpack.c.l.b16 %v2156
      %v2369 = vunpack.c.h.b16 %v2156
      %v2370 = vunpack.c.l.b16 %v2157
      %v2371 = vunpack.c.h.b16 %v2157
      %v2372 = vunpack.c.l.b16 %v2158
      %v2373 = vunpack.c.h.b16 %v2158
      %v2374 = vunpack.c.l.b16 %v2159
      %v2375 = vunpack.c.h.b16 %v2159
      %v2376 = vpack.c.b16 %v2234, %v2232
      %v2377 = vpack.c.b16 %v2235, %v2233
      %v2378 = vpack.c.b16 %v2238, %v2236
      %v2379 = vpack.c.b16 %v2239, %v2237
      %v2380 = vpack.c.b16 %v2242, %v2240
      %v2381 = vpack.c.b16 %v2243, %v2241
      %v2382 = vpack.c.b16 %v2246, %v2244
      %v2383 = vpack.c.b16 %v2247, %v2245
      %v2384 = vpack.c.b16 %v2250, %v2248
      %v2385 = vpack.c.b16 %v2251, %v2249
      %v2386 = vpack.c.b16 %v2254, %v2252
      %v2387 = vpack.c.b16 %v2255, %v2253
      %v2388 = vpack.c.b16 %v2258, %v2256
      %v2389 = vpack.c.b16 %v2259, %v2257
      %v2390 = vpack.c.b16 %v2262, %v2260
      %v2391 = vpack.c.b16 %v2263, %v2261
      %v2392 = vpack.c.b16 %v2266, %v2264
      %v2393 = vpack.c.b16 %v2267, %v2265
      %v2394 = vpack.c.b16 %v2270, %v2268
      %v2395 = vpack.c.b16 %v2271, %v2269
      %v2396 = vpack.c.b16 %v2274, %v2272
      %v2397 = vpack.c.b16 %v2275, %v2273
      %v2398 = vpack.c.b16 %v2278, %v2276
      %v2399 = vpack.c.b16 %v2279, %v2277
      %v2400 = vpack.c.b16 %v2282, %v2280
      %v2401 = vpack.c.b16 %v2283, %v2281
      %v2402 = vpack.c.b16 %v2286, %v2284
      %v2403 = vpack.c.b16 %v2287, %v2285
      %v2404 = vpack.c.b16 %v2290, %v2288
      %v2405 = vpack.c.b16 %v2291, %v2289
      %v2406 = vpack.c.b16 %v2294, %v2292
      %v2407 = vpack.c.b16 %v2295, %v2293
      %v2408 = vpack.c.b16 %v2298, %v2296
      %v2409 = vpack.c.b16 %v2299, %v2297
      %v2410 = vpack.c.b16 %v2302, %v2300
      %v2411 = vpack.c.b16 %v2303, %v2301
      %v2412 = vpack.c.b16 %v2306, %v2304
      %v2413 = vpack.c.b16 %v2307, %v2305
      %v2414 = vpack.c.b16 %v2310, %v2308
      %v2415 = vpack.c.b16 %v2311, %v2309
      %v2416 = vpack.c.b16 %v2314, %v2312
      %v2417 = vpack.c.b16 %v2315, %v2313
      %v2418 = vpack.c.b16 %v2318, %v2316
      %v2419 = vpack.c.b16 %v2319, %v2317
      %v2420 = vpack.c.b16 %v2322, %v2320
      %v2421 = vpack.c.b16 %v2323, %v2321
      %v2422 = vpack.c.b16 %v2326, %v2324
      %v2423 = vpack.c.b16 %v2327, %v2325
      %v2424 = vpack.c.b16 %v2330, %v2328
      %v2425 = vpack.c.b16 %v2331, %v2329
      %v2426 = vpack.c.b16 %v2334, %v2332
      %v2427 = vpack.c.b16 %v2335, %v2333
      %v2428 = vpack.c.b16 %v2338, %v2336
      %v2429 = vpack.c.b16 %v2339, %v2337
      %v2430 = vpack.c.b16 %v2342, %v2340
      %v2431 = vpack.c.b16 %v2343, %v2341
      %v2432 = vpack.c.b16 %v2346, %v2344
      %v2433 = vpack.c.b16 %v2347, %v2345
      %v2434 = vpack.c.b16 %v2350, %v2348
      %v2435 = vpack.c.b16 %v2351, %v2349
      %v2436 = vpack.c.b16 %v2354, %v2352
      %v2437 = vpack.c.b16 %v2355, %v2353
      %v2438 = vpack.c.b16 %v2358, %v2356
      %v2439 = vpack.c.b16 %v2359, %v2357
      %v2440 = vpack.c.b16 %v2362, %v2360
      %v2441 = vpack.c.b16 %v2363, %v2361
      %v2442 = vpack.c.b16 %v2366, %v2364
      %v2443 = vpack.c.b16 %v2367, %v2365
      %v2444 = vpack.c.b16 %v2370, %v2368
      %v2445 = vpack.c.b16 %v2371, %v2369
      %v2446 = vpack.c.b16 %v2374, %v2372
      %v2447 = vpack.c.b16 %v2375, %v2373
      %v2521 = vsel %vm210, %v1932, 0
      %v2524 = vsel %vm210, %v1937, 0
      %v2527 = vsel %vm210, %v1942, 0
      %v2530 = vsel %vm210, %v1947, 0
      %v2533 = vsel %vm210, %v1952, 0
      %v2536 = vsel %vm210, %v1957, 0
      %v2539 = vsel %vm210, %v1962, 0
      %v2542 = vsel %vm210, %v1967, 0
      %v2545 = vsel %vm210, %v1972, 0
      %v2548 = vsel %vm210, %v1977, 0
      %v2551 = vsel %vm210, %v1982, 0
      %v2554 = vsel %vm210, %v1987, 0
      %v2557 = vsel %vm210, %v1992, 0
      %v2560 = vsel %vm210, %v1997, 0
      %v2563 = vsel %vm210, %v2002, 0
      %v2566 = vsel %vm210, %v2007, 0
      %v2569 = vsel %vm210, %v2012, 0
      %v2572 = vsel %vm210, %v2017, 0
      %v2575 = vsel %vm210, %v2022, 0
      %v2578 = vsel %vm210, %v2027, 0
      %v2581 = vsel %vm210, %v2032, 0
      %v2584 = vsel %vm210, %v2037, 0
      %v2587 = vsel %vm210, %v2042, 0
      %v2590 = vsel %vm210, %v2047, 0
      %v2593 = vsel %vm210, %v2052, 0
      %v2596 = vsel %vm210, %v2057, 0
      %v2599 = vsel %vm210, %v2062, 0
      %v2602 = vsel %vm210, %v2067, 0
      %v2605 = vsel %vm210, %v2072, 0
      %v2608 = vsel %vm210, %v2077, 0
      %v2611 = vsel %vm210, %v2082, 0
      %v2614 = vsel %vm210, %v2087, 0
      %2616 = vmatprep.subr.bf16.mxu0 %v2377
      %2617 = vmatpush1.bf16.msra.mxu0 %v2376
      %2618 = vmatprep.subr.bf16.mxu0 %v2379
      %2619 = vmatpush1.bf16.msra.mxu0 %v2378
      %2620 = vmatprep.subr.bf16.mxu0 %v2381
      %2621 = vmatpush1.bf16.msra.mxu0 %v2380
      %2622 = vmatprep.subr.bf16.mxu0 %v2383
      %2623 = vmatpush1.bf16.msra.mxu0 %v2382
      %2624 = vmatprep.subr.bf16.mxu0 %v2385
      %2625 = vmatpush1.bf16.msra.mxu0 %v2384
      %2626 = vmatprep.subr.bf16.mxu0 %v2387
      %2627 = vmatpush1.bf16.msra.mxu0 %v2386
      %2628 = vmatprep.subr.bf16.mxu0 %v2389
      %2629 = vmatpush1.bf16.msra.mxu0 %v2388
      %2630 = vmatprep.subr.bf16.mxu0 %v2391
      %2631 = vmatpush1.bf16.msra.mxu0 %v2390
      %2632 = vmatprep.subr.bf16.mxu0 %v2393
      %2633 = vmatpush1.bf16.msra.mxu0 %v2392
      %2634 = vmatprep.subr.bf16.mxu0 %v2395
      %2635 = vmatpush1.bf16.msra.mxu0 %v2394
      %2636 = vmatprep.subr.bf16.mxu0 %v2397
      %2637 = vmatpush1.bf16.msra.mxu0 %v2396
      %2638 = vmatprep.subr.bf16.mxu0 %v2399
      %2639 = vmatpush1.bf16.msra.mxu0 %v2398
      %2640 = vmatprep.subr.bf16.mxu0 %v2401
      %2641 = vmatpush1.bf16.msra.mxu0 %v2400
      %2642 = vmatprep.subr.bf16.mxu0 %v2403
      %2643 = vmatpush1.bf16.msra.mxu0 %v2402
      %2644 = vmatprep.subr.bf16.mxu0 %v2405
      %2645 = vmatpush1.bf16.msra.mxu0 %v2404
      %2646 = vmatprep.subr.bf16.mxu0 %v2407
      %2647 = vmatpush1.bf16.msra.mxu0 %v2406
      %2648 = vmatprep.mubr.bf16.mxu0 %v1929
      %2649 = vmatmul.mubr.bf16.gmra.mrb[0].mxu0 %v1928
      %v2650 = vpop.f32.mrb[0].mxu0
      %v2651 = vadd.f32 0.0, %v2650
      %v2652 = vpop.f32.mrb[0].mxu0
      %v2653 = vadd.f32 0.0, %v2652
      %v2654 = vpop.f32.mrb[0].mxu0
      %v2655 = vadd.f32 0.0, %v2654
      %v2656 = vpop.f32.mrb[0].mxu0
      %v2657 = vadd.f32 0.0, %v2656
      %2658 = vmatprep.mubr.bf16.mxu0 %v1934
      %2659 = vmatmul.mubr.bf16.gmra.mrb[0].mxu0 %v1933
      %v2660 = vpop.f32.mrb[0].mxu0
      %v2661 = vadd.f32 0.0, %v2660
      %v2662 = vpop.f32.mrb[0].mxu0
      %v2663 = vadd.f32 0.0, %v2662
      %v2664 = vpop.f32.mrb[0].mxu0
      %v2665 = vadd.f32 0.0, %v2664
      %v2666 = vpop.f32.mrb[0].mxu0
      %v2667 = vadd.f32 0.0, %v2666
      %2668 = vmatprep.mubr.bf16.mxu0 %v1939
      %2669 = vmatmul.mubr.bf16.gmra.mrb[0].mxu0 %v1938
      %v2670 = vpop.f32.mrb[0].mxu0
      %v2671 = vadd.f32 0.0, %v2670
      %v2672 = vpop.f32.mrb[0].mxu0
      %v2673 = vadd.f32 0.0, %v2672
      %v2674 = vpop.f32.mrb[0].mxu0
      %v2675 = vadd.f32 0.0, %v2674
      %v2676 = vpop.f32.mrb[0].mxu0
      %v2677 = vadd.f32 0.0, %v2676
      %2678 = vmatprep.mubr.bf16.mxu0 %v1944
      %2679 = vmatmul.mubr.bf16.gmra.mrb[0].mxu0 %v1943
      %v2680 = vpop.f32.mrb[0].mxu0
      %v2681 = vadd.f32 0.0, %v2680
      %v2682 = vpop.f32.mrb[0].mxu0
      %v2683 = vadd.f32 0.0, %v2682
      %v2684 = vpop.f32.mrb[0].mxu0
      %v2685 = vadd.f32 0.0, %v2684
      %v2686 = vpop.f32.mrb[0].mxu0
      %v2687 = vadd.f32 0.0, %v2686
      %2688 = vmatprep.mubr.bf16.mxu0 %v1949
      %2689 = vmatmul.mubr.bf16.gmra.mrb[0].mxu0 %v1948
      %v2690 = vpop.f32.mrb[0].mxu0
      %v2691 = vadd.f32 0.0, %v2690
      %v2692 = vpop.f32.mrb[0].mxu0
      %v2693 = vadd.f32 0.0, %v2692
      %v2694 = vpop.f32.mrb[0].mxu0
      %v2695 = vadd.f32 0.0, %v2694
      %v2696 = vpop.f32.mrb[0].mxu0
      %v2697 = vadd.f32 0.0, %v2696
      %2698 = vmatprep.mubr.bf16.mxu0 %v1954
      %2699 = vmatmul.mubr.bf16.gmra.mrb[0].mxu0 %v1953
      %v2700 = vpop.f32.mrb[0].mxu0
      %v2701 = vadd.f32 0.0, %v2700
      %v2702 = vpop.f32.mrb[0].mxu0
      %v2703 = vadd.f32 0.0, %v2702
      %v2704 = vpop.f32.mrb[0].mxu0
      %v2705 = vadd.f32 0.0, %v2704
      %v2706 = vpop.f32.mrb[0].mxu0
      %v2707 = vadd.f32 0.0, %v2706
      %2708 = vmatprep.mubr.bf16.mxu0 %v1959
      %2709 = vmatmul.mubr.bf16.gmra.mrb[0].mxu0 %v1958
      %v2710 = vpop.f32.mrb[0].mxu0
      %v2711 = vadd.f32 0.0, %v2710
      %v2712 = vpop.f32.mrb[0].mxu0
      %v2713 = vadd.f32 0.0, %v2712
      %v2714 = vpop.f32.mrb[0].mxu0
      %v2715 = vadd.f32 0.0, %v2714
      %v2716 = vpop.f32.mrb[0].mxu0
      %v2717 = vadd.f32 0.0, %v2716
      %2718 = vmatprep.mubr.bf16.mxu0 %v1964
      %2719 = vmatmul.mubr.bf16.gmra.mrb[0].mxu0 %v1963
      %v2720 = vpop.f32.mrb[0].mxu0
      %v2721 = vadd.f32 0.0, %v2720
      %v2722 = vpop.f32.mrb[0].mxu0
      %v2723 = vadd.f32 0.0, %v2722
      %v2724 = vpop.f32.mrb[0].mxu0
      %v2725 = vadd.f32 0.0, %v2724
      %v2726 = vpop.f32.mrb[0].mxu0
      %v2727 = vadd.f32 0.0, %v2726
      %2728 = vmatprep.mubr.bf16.mxu0 %v1969
      %2729 = vmatmul.mubr.bf16.gmra.mrb[0].mxu0 %v1968
      %v2730 = vpop.f32.mrb[0].mxu0
      %v2731 = vadd.f32 0.0, %v2730
      %v2732 = vpop.f32.mrb[0].mxu0
      %v2733 = vadd.f32 0.0, %v2732
      %v2734 = vpop.f32.mrb[0].mxu0
      %v2735 = vadd.f32 0.0, %v2734
      %v2736 = vpop.f32.mrb[0].mxu0
      %v2737 = vadd.f32 0.0, %v2736
      %2738 = vmatprep.mubr.bf16.mxu0 %v1974
      %2739 = vmatmul.mubr.bf16.gmra.mrb[0].mxu0 %v1973
      %v2740 = vpop.f32.mrb[0].mxu0
      %v2741 = vadd.f32 0.0, %v2740
      %v2742 = vpop.f32.mrb[0].mxu0
      %v2743 = vadd.f32 0.0, %v2742
      %v2744 = vpop.f32.mrb[0].mxu0
      %v2745 = vadd.f32 0.0, %v2744
      %v2746 = vpop.f32.mrb[0].mxu0
      %v2747 = vadd.f32 0.0, %v2746
      %2748 = vmatprep.mubr.bf16.mxu0 %v1979
      %2749 = vmatmul.mubr.bf16.gmra.mrb[0].mxu0 %v1978
      %v2750 = vpop.f32.mrb[0].mxu0
      %v2751 = vadd.f32 0.0, %v2750
      %v2752 = vpop.f32.mrb[0].mxu0
      %v2753 = vadd.f32 0.0, %v2752
      %v2754 = vpop.f32.mrb[0].mxu0
      %v2755 = vadd.f32 0.0, %v2754
      %v2756 = vpop.f32.mrb[0].mxu0
      %v2757 = vadd.f32 0.0, %v2756
      %2758 = vmatprep.mubr.bf16.mxu0 %v1984
      %2759 = vmatmul.mubr.bf16.gmra.mrb[0].mxu0 %v1983
      %v2760 = vpop.f32.mrb[0].mxu0
      %v2761 = vadd.f32 0.0, %v2760
      %v2762 = vpop.f32.mrb[0].mxu0
      %v2763 = vadd.f32 0.0, %v2762
      %v2764 = vpop.f32.mrb[0].mxu0
      %v2765 = vadd.f32 0.0, %v2764
      %v2766 = vpop.f32.mrb[0].mxu0
      %v2767 = vadd.f32 0.0, %v2766
      %2768 = vmatprep.mubr.bf16.mxu0 %v1989
      %2769 = vmatmul.mubr.bf16.gmra.mrb[0].mxu0 %v1988
      %v2770 = vpop.f32.mrb[0].mxu0
      %v2771 = vadd.f32 0.0, %v2770
      %v2772 = vpop.f32.mrb[0].mxu0
      %v2773 = vadd.f32 0.0, %v2772
      %v2774 = vpop.f32.mrb[0].mxu0
      %v2775 = vadd.f32 0.0, %v2774
      %v2776 = vpop.f32.mrb[0].mxu0
      %v2777 = vadd.f32 0.0, %v2776
      %2778 = vmatprep.mubr.bf16.mxu0 %v1994
      %2779 = vmatmul.mubr.bf16.gmra.mrb[0].mxu0 %v1993
      %v2780 = vpop.f32.mrb[0].mxu0
      %v2781 = vadd.f32 0.0, %v2780
      %v2782 = vpop.f32.mrb[0].mxu0
      %v2783 = vadd.f32 0.0, %v2782
      %v2784 = vpop.f32.mrb[0].mxu0
      %v2785 = vadd.f32 0.0, %v2784
      %v2786 = vpop.f32.mrb[0].mxu0
      %v2787 = vadd.f32 0.0, %v2786
      %2788 = vmatprep.mubr.bf16.mxu0 %v1999
      %2789 = vmatmul.mubr.bf16.gmra.mrb[0].mxu0 %v1998
      %v2790 = vpop.f32.mrb[0].mxu0
      %v2791 = vadd.f32 0.0, %v2790
      %v2792 = vpop.f32.mrb[0].mxu0
      %v2793 = vadd.f32 0.0, %v2792
      %v2794 = vpop.f32.mrb[0].mxu0
      %v2795 = vadd.f32 0.0, %v2794
      %v2796 = vpop.f32.mrb[0].mxu0
      %v2797 = vadd.f32 0.0, %v2796
      %2798 = vmatprep.mubr.bf16.mxu0 %v2004
      %2799 = vmatmul.mubr.bf16.gmra.mrb[0].mxu0 %v2003
      %v2800 = vpop.f32.mrb[0].mxu0
      %v2801 = vadd.f32 0.0, %v2800
      %v2802 = vpop.f32.mrb[0].mxu0
      %v2803 = vadd.f32 0.0, %v2802
      %v2804 = vpop.f32.mrb[0].mxu0
      %v2805 = vadd.f32 0.0, %v2804
      %v2806 = vpop.f32.mrb[0].mxu0
      %v2807 = vadd.f32 0.0, %v2806
      %2808 = vmatprep.mubr.bf16.mxu0 %v2009
      %2809 = vmatmul.mubr.bf16.gmra.mrb[0].mxu0 %v2008
      %v2810 = vpop.f32.mrb[0].mxu0
      %v2811 = vadd.f32 0.0, %v2810
      %v2812 = vpop.f32.mrb[0].mxu0
      %v2813 = vadd.f32 0.0, %v2812
      %v2814 = vpop.f32.mrb[0].mxu0
      %v2815 = vadd.f32 0.0, %v2814
      %v2816 = vpop.f32.mrb[0].mxu0
      %v2817 = vadd.f32 0.0, %v2816
      %2818 = vmatprep.mubr.bf16.mxu0 %v2014
      %2819 = vmatmul.mubr.bf16.gmra.mrb[0].mxu0 %v2013
      %v2820 = vpop.f32.mrb[0].mxu0
      %v2821 = vadd.f32 0.0, %v2820
      %v2822 = vpop.f32.mrb[0].mxu0
      %v2823 = vadd.f32 0.0, %v2822
      %v2824 = vpop.f32.mrb[0].mxu0
      %v2825 = vadd.f32 0.0, %v2824
      %v2826 = vpop.f32.mrb[0].mxu0
      %v2827 = vadd.f32 0.0, %v2826
      %2828 = vmatprep.mubr.bf16.mxu0 %v2019
      %2829 = vmatmul.mubr.bf16.gmra.mrb[0].mxu0 %v2018
      %v2830 = vpop.f32.mrb[0].mxu0
      %v2831 = vadd.f32 0.0, %v2830
      %v2832 = vpop.f32.mrb[0].mxu0
      %v2833 = vadd.f32 0.0, %v2832
      %v2834 = vpop.f32.mrb[0].mxu0
      %v2835 = vadd.f32 0.0, %v2834
      %v2836 = vpop.f32.mrb[0].mxu0
      %v2837 = vadd.f32 0.0, %v2836
      %2838 = vmatprep.mubr.bf16.mxu0 %v2024
      %2839 = vmatmul.mubr.bf16.gmra.mrb[0].mxu0 %v2023
      %v2840 = vpop.f32.mrb[0].mxu0
      %v2841 = vadd.f32 0.0, %v2840
      %v2842 = vpop.f32.mrb[0].mxu0
      %v2843 = vadd.f32 0.0, %v2842
      %v2844 = vpop.f32.mrb[0].mxu0
      %v2845 = vadd.f32 0.0, %v2844
      %v2846 = vpop.f32.mrb[0].mxu0
      %v2847 = vadd.f32 0.0, %v2846
      %2848 = vmatprep.mubr.bf16.mxu0 %v2029
      %2849 = vmatmul.mubr.bf16.gmra.mrb[0].mxu0 %v2028
      %v2850 = vpop.f32.mrb[0].mxu0
      %v2851 = vadd.f32 0.0, %v2850
      %v2852 = vpop.f32.mrb[0].mxu0
      %v2853 = vadd.f32 0.0, %v2852
      %v2854 = vpop.f32.mrb[0].mxu0
      %v2855 = vadd.f32 0.0, %v2854
      %v2856 = vpop.f32.mrb[0].mxu0
      %v2857 = vadd.f32 0.0, %v2856
      %2858 = vmatprep.mubr.bf16.mxu0 %v2034
      %2859 = vmatmul.mubr.bf16.gmra.mrb[0].mxu0 %v2033
      %v2860 = vpop.f32.mrb[0].mxu0
      %v2861 = vadd.f32 0.0, %v2860
      %v2862 = vpop.f32.mrb[0].mxu0
      %v2863 = vadd.f32 0.0, %v2862
      %v2864 = vpop.f32.mrb[0].mxu0
      %v2865 = vadd.f32 0.0, %v2864
      %v2866 = vpop.f32.mrb[0].mxu0
      %v2867 = vadd.f32 0.0, %v2866
      %2868 = vmatprep.mubr.bf16.mxu0 %v2039
      %2869 = vmatmul.mubr.bf16.gmra.mrb[0].mxu0 %v2038
      %v2870 = vpop.f32.mrb[0].mxu0
      %v2871 = vadd.f32 0.0, %v2870
      %v2872 = vpop.f32.mrb[0].mxu0
      %v2873 = vadd.f32 0.0, %v2872
      %v2874 = vpop.f32.mrb[0].mxu0
      %v2875 = vadd.f32 0.0, %v2874
      %v2876 = vpop.f32.mrb[0].mxu0
      %v2877 = vadd.f32 0.0, %v2876
      %2878 = vmatprep.mubr.bf16.mxu0 %v2044
      %2879 = vmatmul.mubr.bf16.gmra.mrb[0].mxu0 %v2043
      %v2880 = vpop.f32.mrb[0].mxu0
      %v2881 = vadd.f32 0.0, %v2880
      %v2882 = vpop.f32.mrb[0].mxu0
      %v2883 = vadd.f32 0.0, %v2882
      %v2884 = vpop.f32.mrb[0].mxu0
      %v2885 = vadd.f32 0.0, %v2884
      %v2886 = vpop.f32.mrb[0].mxu0
      %v2887 = vadd.f32 0.0, %v2886
      %2888 = vmatprep.mubr.bf16.mxu0 %v2049
      %2889 = vmatmul.mubr.bf16.gmra.mrb[0].mxu0 %v2048
      %v2890 = vpop.f32.mrb[0].mxu0
      %v2891 = vadd.f32 0.0, %v2890
      %v2892 = vpop.f32.mrb[0].mxu0
      %v2893 = vadd.f32 0.0, %v2892
      %v2894 = vpop.f32.mrb[0].mxu0
      %v2895 = vadd.f32 0.0, %v2894
      %v2896 = vpop.f32.mrb[0].mxu0
      %v2897 = vadd.f32 0.0, %v2896
      %2898 = vmatprep.mubr.bf16.mxu0 %v2054
      %2899 = vmatmul.mubr.bf16.gmra.mrb[0].mxu0 %v2053
      %v2900 = vpop.f32.mrb[0].mxu0
      %v2901 = vadd.f32 0.0, %v2900
      %v2902 = vpop.f32.mrb[0].mxu0
      %v2903 = vadd.f32 0.0, %v2902
      %v2904 = vpop.f32.mrb[0].mxu0
      %v2905 = vadd.f32 0.0, %v2904
      %v2906 = vpop.f32.mrb[0].mxu0
      %v2907 = vadd.f32 0.0, %v2906
      %2908 = vmatprep.mubr.bf16.mxu0 %v2059
      %2909 = vmatmul.mubr.bf16.gmra.mrb[0].mxu0 %v2058
      %v2910 = vpop.f32.mrb[0].mxu0
      %v2911 = vadd.f32 0.0, %v2910
      %v2912 = vpop.f32.mrb[0].mxu0
      %v2913 = vadd.f32 0.0, %v2912
      %v2914 = vpop.f32.mrb[0].mxu0
      %v2915 = vadd.f32 0.0, %v2914
      %v2916 = vpop.f32.mrb[0].mxu0
      %v2917 = vadd.f32 0.0, %v2916
      %2918 = vmatprep.mubr.bf16.mxu0 %v2064
      %2919 = vmatmul.mubr.bf16.gmra.mrb[0].mxu0 %v2063
      %v2920 = vpop.f32.mrb[0].mxu0
      %v2921 = vadd.f32 0.0, %v2920
      %v2922 = vpop.f32.mrb[0].mxu0
      %v2923 = vadd.f32 0.0, %v2922
      %v2924 = vpop.f32.mrb[0].mxu0
      %v2925 = vadd.f32 0.0, %v2924
      %v2926 = vpop.f32.mrb[0].mxu0
      %v2927 = vadd.f32 0.0, %v2926
      %2928 = vmatprep.mubr.bf16.mxu0 %v2069
      %2929 = vmatmul.mubr.bf16.gmra.mrb[0].mxu0 %v2068
      %v2930 = vpop.f32.mrb[0].mxu0
      %v2931 = vadd.f32 0.0, %v2930
      %v2932 = vpop.f32.mrb[0].mxu0
      %v2933 = vadd.f32 0.0, %v2932
      %v2934 = vpop.f32.mrb[0].mxu0
      %v2935 = vadd.f32 0.0, %v2934
      %v2936 = vpop.f32.mrb[0].mxu0
      %v2937 = vadd.f32 0.0, %v2936
      %2938 = vmatprep.mubr.bf16.mxu0 %v2074
      %2939 = vmatmul.mubr.bf16.gmra.mrb[0].mxu0 %v2073
      %v2940 = vpop.f32.mrb[0].mxu0
      %v2941 = vadd.f32 0.0, %v2940
      %v2942 = vpop.f32.mrb[0].mxu0
      %v2943 = vadd.f32 0.0, %v2942
      %v2944 = vpop.f32.mrb[0].mxu0
      %v2945 = vadd.f32 0.0, %v2944
      %v2946 = vpop.f32.mrb[0].mxu0
      %v2947 = vadd.f32 0.0, %v2946
      %2948 = vmatprep.mubr.bf16.mxu0 %v2079
      %2949 = vmatmul.mubr.bf16.gmra.mrb[0].mxu0 %v2078
      %v2950 = vpop.f32.mrb[0].mxu0
      %v2951 = vadd.f32 0.0, %v2950
      %v2952 = vpop.f32.mrb[0].mxu0
      %v2953 = vadd.f32 0.0, %v2952
      %v2954 = vpop.f32.mrb[0].mxu0
      %v2955 = vadd.f32 0.0, %v2954
      %v2956 = vpop.f32.mrb[0].mxu0
      %v2957 = vadd.f32 0.0, %v2956
      %2958 = vmatprep.mubr.bf16.mxu0 %v2084
      %2959 = vmatmul.mubr.bf16.gmra.mrb[0].mxu0 %v2083
      %v2960 = vpop.f32.mrb[0].mxu0
      %v2961 = vadd.f32 0.0, %v2960
      %v2962 = vpop.f32.mrb[0].mxu0
      %v2963 = vadd.f32 0.0, %v2962
      %v2964 = vpop.f32.mrb[0].mxu0
      %v2965 = vadd.f32 0.0, %v2964
      %v2966 = vpop.f32.mrb[0].mxu0
      %v2967 = vadd.f32 0.0, %v2966
      %2968 = vdwg.mxu0
      %2969 = vmatprep.subr.bf16.mxu0 %v2409
      %2970 = vmatpush1.bf16.msra.mxu0 %v2408
      %2971 = vmatprep.subr.bf16.mxu0 %v2411
      %2972 = vmatpush1.bf16.msra.mxu0 %v2410
      %2973 = vmatprep.subr.bf16.mxu0 %v2413
      %2974 = vmatpush1.bf16.msra.mxu0 %v2412
      %2975 = vmatprep.subr.bf16.mxu0 %v2415
      %2976 = vmatpush1.bf16.msra.mxu0 %v2414
      %2977 = vmatprep.subr.bf16.mxu0 %v2417
      %2978 = vmatpush1.bf16.msra.mxu0 %v2416
      %2979 = vmatprep.subr.bf16.mxu0 %v2419
      %2980 = vmatpush1.bf16.msra.mxu0 %v2418
      %2981 = vmatprep.subr.bf16.mxu0 %v2421
      %2982 = vmatpush1.bf16.msra.mxu0 %v2420
      %2983 = vmatprep.subr.bf16.mxu0 %v2423
      %2984 = vmatpush1.bf16.msra.mxu0 %v2422
      %2985 = vmatprep.subr.bf16.mxu0 %v2425
      %2986 = vmatpush1.bf16.msra.mxu0 %v2424
      %2987 = vmatprep.subr.bf16.mxu0 %v2427
      %2988 = vmatpush1.bf16.msra.mxu0 %v2426
      %2989 = vmatprep.subr.bf16.mxu0 %v2429
      %2990 = vmatpush1.bf16.msra.mxu0 %v2428
      %2991 = vmatprep.subr.bf16.mxu0 %v2431
      %2992 = vmatpush1.bf16.msra.mxu0 %v2430
      %2993 = vmatprep.subr.bf16.mxu0 %v2433
      %2994 = vmatpush1.bf16.msra.mxu0 %v2432
      %2995 = vmatprep.subr.bf16.mxu0 %v2435
      %2996 = vmatpush1.bf16.msra.mxu0 %v2434
      %2997 = vmatprep.subr.bf16.mxu0 %v2437
      %2998 = vmatpush1.bf16.msra.mxu0 %v2436
      %2999 = vmatprep.subr.bf16.mxu0 %v2439
      %3000 = vmatpush1.bf16.msra.mxu0 %v2438
      %3001 = vmatprep.mubr.bf16.mxu0 %v1931
      %3002 = vmatmul.mubr.bf16.gmra.mrb[0].mxu0 %v1930
      %v3003 = vpop.f32.mrb[0].mxu0
      %v3004 = vadd.f32 %v2651, %v3003
      %v3005 = vpop.f32.mrb[0].mxu0
      %v3006 = vadd.f32 %v2653, %v3005
      %v3007 = vpop.f32.mrb[0].mxu0
      %v3008 = vadd.f32 %v2655, %v3007
      %v3009 = vpop.f32.mrb[0].mxu0
      %v3010 = vadd.f32 %v2657, %v3009
      %3011 = vmatprep.mubr.bf16.mxu0 %v1936
      %3012 = vmatmul.mubr.bf16.gmra.mrb[0].mxu0 %v1935
      %v3013 = vpop.f32.mrb[0].mxu0
      %v3014 = vadd.f32 %v2661, %v3013
      %v3015 = vpop.f32.mrb[0].mxu0
      %v3016 = vadd.f32 %v2663, %v3015
      %v3017 = vpop.f32.mrb[0].mxu0
      %v3018 = vadd.f32 %v2665, %v3017
      %v3019 = vpop.f32.mrb[0].mxu0
      %v3020 = vadd.f32 %v2667, %v3019
      %3021 = vmatprep.mubr.bf16.mxu0 %v1941
      %3022 = vmatmul.mubr.bf16.gmra.mrb[0].mxu0 %v1940
      %v3023 = vpop.f32.mrb[0].mxu0
      %v3024 = vadd.f32 %v2671, %v3023
      %v3025 = vpop.f32.mrb[0].mxu0
      %v3026 = vadd.f32 %v2673, %v3025
      %v3027 = vpop.f32.mrb[0].mxu0
      %v3028 = vadd.f32 %v2675, %v3027
      %v3029 = vpop.f32.mrb[0].mxu0
      %v3030 = vadd.f32 %v2677, %v3029
      %3031 = vmatprep.mubr.bf16.mxu0 %v1946
      %3032 = vmatmul.mubr.bf16.gmra.mrb[0].mxu0 %v1945
      %v3033 = vpop.f32.mrb[0].mxu0
      %v3034 = vadd.f32 %v2681, %v3033
      %v3035 = vpop.f32.mrb[0].mxu0
      %v3036 = vadd.f32 %v2683, %v3035
      %v3037 = vpop.f32.mrb[0].mxu0
      %v3038 = vadd.f32 %v2685, %v3037
      %v3039 = vpop.f32.mrb[0].mxu0
      %v3040 = vadd.f32 %v2687, %v3039
      %3041 = vmatprep.mubr.bf16.mxu0 %v1951
      %3042 = vmatmul.mubr.bf16.gmra.mrb[0].mxu0 %v1950
      %v3043 = vpop.f32.mrb[0].mxu0
      %v3044 = vadd.f32 %v2691, %v3043
      %v3045 = vpop.f32.mrb[0].mxu0
      %v3046 = vadd.f32 %v2693, %v3045
      %v3047 = vpop.f32.mrb[0].mxu0
      %v3048 = vadd.f32 %v2695, %v3047
      %v3049 = vpop.f32.mrb[0].mxu0
      %v3050 = vadd.f32 %v2697, %v3049
      %3051 = vmatprep.mubr.bf16.mxu0 %v1956
      %3052 = vmatmul.mubr.bf16.gmra.mrb[0].mxu0 %v1955
      %v3053 = vpop.f32.mrb[0].mxu0
      %v3054 = vadd.f32 %v2701, %v3053
      %v3055 = vpop.f32.mrb[0].mxu0
      %v3056 = vadd.f32 %v2703, %v3055
      %v3057 = vpop.f32.mrb[0].mxu0
      %v3058 = vadd.f32 %v2705, %v3057
      %v3059 = vpop.f32.mrb[0].mxu0
      %v3060 = vadd.f32 %v2707, %v3059
      %3061 = vmatprep.mubr.bf16.mxu0 %v1961
      %3062 = vmatmul.mubr.bf16.gmra.mrb[0].mxu0 %v1960
      %v3063 = vpop.f32.mrb[0].mxu0
      %v3064 = vadd.f32 %v2711, %v3063
      %v3065 = vpop.f32.mrb[0].mxu0
      %v3066 = vadd.f32 %v2713, %v3065
      %v3067 = vpop.f32.mrb[0].mxu0
      %v3068 = vadd.f32 %v2715, %v3067
      %v3069 = vpop.f32.mrb[0].mxu0
      %v3070 = vadd.f32 %v2717, %v3069
      %3071 = vmatprep.mubr.bf16.mxu0 %v1966
      %3072 = vmatmul.mubr.bf16.gmra.mrb[0].mxu0 %v1965
      %v3073 = vpop.f32.mrb[0].mxu0
      %v3074 = vadd.f32 %v2721, %v3073
      %v3075 = vpop.f32.mrb[0].mxu0
      %v3076 = vadd.f32 %v2723, %v3075
      %v3077 = vpop.f32.mrb[0].mxu0
      %v3078 = vadd.f32 %v2725, %v3077
      %v3079 = vpop.f32.mrb[0].mxu0
      %v3080 = vadd.f32 %v2727, %v3079
      %3081 = vmatprep.mubr.bf16.mxu0 %v1971
      %3082 = vmatmul.mubr.bf16.gmra.mrb[0].mxu0 %v1970
      %v3083 = vpop.f32.mrb[0].mxu0
      %v3084 = vadd.f32 %v2731, %v3083
      %v3085 = vpop.f32.mrb[0].mxu0
      %v3086 = vadd.f32 %v2733, %v3085
      %v3087 = vpop.f32.mrb[0].mxu0
      %v3088 = vadd.f32 %v2735, %v3087
      %v3089 = vpop.f32.mrb[0].mxu0
      %v3090 = vadd.f32 %v2737, %v3089
      %3091 = vmatprep.mubr.bf16.mxu0 %v1976
      %3092 = vmatmul.mubr.bf16.gmra.mrb[0].mxu0 %v1975
      %v3093 = vpop.f32.mrb[0].mxu0
      %v3094 = vadd.f32 %v2741, %v3093
      %v3095 = vpop.f32.mrb[0].mxu0
      %v3096 = vadd.f32 %v2743, %v3095
      %v3097 = vpop.f32.mrb[0].mxu0
      %v3098 = vadd.f32 %v2745, %v3097
      %v3099 = vpop.f32.mrb[0].mxu0
      %v3100 = vadd.f32 %v2747, %v3099
      %3101 = vmatprep.mubr.bf16.mxu0 %v1981
      %3102 = vmatmul.mubr.bf16.gmra.mrb[0].mxu0 %v1980
      %v3103 = vpop.f32.mrb[0].mxu0
      %v3104 = vadd.f32 %v2751, %v3103
      %v3105 = vpop.f32.mrb[0].mxu0
      %v3106 = vadd.f32 %v2753, %v3105
      %v3107 = vpop.f32.mrb[0].mxu0
      %v3108 = vadd.f32 %v2755, %v3107
      %v3109 = vpop.f32.mrb[0].mxu0
      %v3110 = vadd.f32 %v2757, %v3109
      %3111 = vmatprep.mubr.bf16.mxu0 %v1986
      %3112 = vmatmul.mubr.bf16.gmra.mrb[0].mxu0 %v1985
      %v3113 = vpop.f32.mrb[0].mxu0
      %v3114 = vadd.f32 %v2761, %v3113
      %v3115 = vpop.f32.mrb[0].mxu0
      %v3116 = vadd.f32 %v2763, %v3115
      %v3117 = vpop.f32.mrb[0].mxu0
      %v3118 = vadd.f32 %v2765, %v3117
      %v3119 = vpop.f32.mrb[0].mxu0
      %v3120 = vadd.f32 %v2767, %v3119
      %3121 = vmatprep.mubr.bf16.mxu0 %v1991
      %3122 = vmatmul.mubr.bf16.gmra.mrb[0].mxu0 %v1990
      %v3123 = vpop.f32.mrb[0].mxu0
      %v3124 = vadd.f32 %v2771, %v3123
      %v3125 = vpop.f32.mrb[0].mxu0
      %v3126 = vadd.f32 %v2773, %v3125
      %v3127 = vpop.f32.mrb[0].mxu0
      %v3128 = vadd.f32 %v2775, %v3127
      %v3129 = vpop.f32.mrb[0].mxu0
      %v3130 = vadd.f32 %v2777, %v3129
      %3131 = vmatprep.mubr.bf16.mxu0 %v1996
      %3132 = vmatmul.mubr.bf16.gmra.mrb[0].mxu0 %v1995
      %v3133 = vpop.f32.mrb[0].mxu0
      %v3134 = vadd.f32 %v2781, %v3133
      %v3135 = vpop.f32.mrb[0].mxu0
      %v3136 = vadd.f32 %v2783, %v3135
      %v3137 = vpop.f32.mrb[0].mxu0
      %v3138 = vadd.f32 %v2785, %v3137
      %v3139 = vpop.f32.mrb[0].mxu0
      %v3140 = vadd.f32 %v2787, %v3139
      %3141 = vmatprep.mubr.bf16.mxu0 %v2001
      %3142 = vmatmul.mubr.bf16.gmra.mrb[0].mxu0 %v2000
      %v3143 = vpop.f32.mrb[0].mxu0
      %v3144 = vadd.f32 %v2791, %v3143
      %v3145 = vpop.f32.mrb[0].mxu0
      %v3146 = vadd.f32 %v2793, %v3145
      %v3147 = vpop.f32.mrb[0].mxu0
      %v3148 = vadd.f32 %v2795, %v3147
      %v3149 = vpop.f32.mrb[0].mxu0
      %v3150 = vadd.f32 %v2797, %v3149
      %3151 = vmatprep.mubr.bf16.mxu0 %v2006
      %3152 = vmatmul.mubr.bf16.gmra.mrb[0].mxu0 %v2005
      %v3153 = vpop.f32.mrb[0].mxu0
      %v3154 = vadd.f32 %v2801, %v3153
      %v3155 = vpop.f32.mrb[0].mxu0
      %v3156 = vadd.f32 %v2803, %v3155
      %v3157 = vpop.f32.mrb[0].mxu0
      %v3158 = vadd.f32 %v2805, %v3157
      %v3159 = vpop.f32.mrb[0].mxu0
      %v3160 = vadd.f32 %v2807, %v3159
      %3161 = vmatprep.mubr.bf16.mxu0 %v2011
      %3162 = vmatmul.mubr.bf16.gmra.mrb[0].mxu0 %v2010
      %v3163 = vpop.f32.mrb[0].mxu0
      %v3164 = vadd.f32 %v2811, %v3163
      %v3165 = vpop.f32.mrb[0].mxu0
      %v3166 = vadd.f32 %v2813, %v3165
      %v3167 = vpop.f32.mrb[0].mxu0
      %v3168 = vadd.f32 %v2815, %v3167
      %v3169 = vpop.f32.mrb[0].mxu0
      %v3170 = vadd.f32 %v2817, %v3169
      %3171 = vmatprep.mubr.bf16.mxu0 %v2016
      %3172 = vmatmul.mubr.bf16.gmra.mrb[0].mxu0 %v2015
      %v3173 = vpop.f32.mrb[0].mxu0
      %v3174 = vadd.f32 %v2821, %v3173
      %v3175 = vpop.f32.mrb[0].mxu0
      %v3176 = vadd.f32 %v2823, %v3175
      %v3177 = vpop.f32.mrb[0].mxu0
      %v3178 = vadd.f32 %v2825, %v3177
      %v3179 = vpop.f32.mrb[0].mxu0
      %v3180 = vadd.f32 %v2827, %v3179
      %3181 = vmatprep.mubr.bf16.mxu0 %v2021
      %3182 = vmatmul.mubr.bf16.gmra.mrb[0].mxu0 %v2020
      %v3183 = vpop.f32.mrb[0].mxu0
      %v3184 = vadd.f32 %v2831, %v3183
      %v3185 = vpop.f32.mrb[0].mxu0
      %v3186 = vadd.f32 %v2833, %v3185
      %v3187 = vpop.f32.mrb[0].mxu0
      %v3188 = vadd.f32 %v2835, %v3187
      %v3189 = vpop.f32.mrb[0].mxu0
      %v3190 = vadd.f32 %v2837, %v3189
      %3191 = vmatprep.mubr.bf16.mxu0 %v2026
      %3192 = vmatmul.mubr.bf16.gmra.mrb[0].mxu0 %v2025
      %v3193 = vpop.f32.mrb[0].mxu0
      %v3194 = vadd.f32 %v2841, %v3193
      %v3195 = vpop.f32.mrb[0].mxu0
      %v3196 = vadd.f32 %v2843, %v3195
      %v3197 = vpop.f32.mrb[0].mxu0
      %v3198 = vadd.f32 %v2845, %v3197
      %v3199 = vpop.f32.mrb[0].mxu0
      %v3200 = vadd.f32 %v2847, %v3199
      %3201 = vmatprep.mubr.bf16.mxu0 %v2031
      %3202 = vmatmul.mubr.bf16.gmra.mrb[0].mxu0 %v2030
      %v3203 = vpop.f32.mrb[0].mxu0
      %v3204 = vadd.f32 %v2851, %v3203
      %v3205 = vpop.f32.mrb[0].mxu0
      %v3206 = vadd.f32 %v2853, %v3205
      %v3207 = vpop.f32.mrb[0].mxu0
      %v3208 = vadd.f32 %v2855, %v3207
      %v3209 = vpop.f32.mrb[0].mxu0
      %v3210 = vadd.f32 %v2857, %v3209
      %3211 = vmatprep.mubr.bf16.mxu0 %v2036
      %3212 = vmatmul.mubr.bf16.gmra.mrb[0].mxu0 %v2035
      %v3213 = vpop.f32.mrb[0].mxu0
      %v3214 = vadd.f32 %v2861, %v3213
      %v3215 = vpop.f32.mrb[0].mxu0
      %v3216 = vadd.f32 %v2863, %v3215
      %v3217 = vpop.f32.mrb[0].mxu0
      %v3218 = vadd.f32 %v2865, %v3217
      %v3219 = vpop.f32.mrb[0].mxu0
      %v3220 = vadd.f32 %v2867, %v3219
      %3221 = vmatprep.mubr.bf16.mxu0 %v2041
      %3222 = vmatmul.mubr.bf16.gmra.mrb[0].mxu0 %v2040
      %v3223 = vpop.f32.mrb[0].mxu0
      %v3224 = vadd.f32 %v2871, %v3223
      %v3225 = vpop.f32.mrb[0].mxu0
      %v3226 = vadd.f32 %v2873, %v3225
      %v3227 = vpop.f32.mrb[0].mxu0
      %v3228 = vadd.f32 %v2875, %v3227
      %v3229 = vpop.f32.mrb[0].mxu0
      %v3230 = vadd.f32 %v2877, %v3229
      %3231 = vmatprep.mubr.bf16.mxu0 %v2046
      %3232 = vmatmul.mubr.bf16.gmra.mrb[0].mxu0 %v2045
      %v3233 = vpop.f32.mrb[0].mxu0
      %v3234 = vadd.f32 %v2881, %v3233
      %v3235 = vpop.f32.mrb[0].mxu0
      %v3236 = vadd.f32 %v2883, %v3235
      %v3237 = vpop.f32.mrb[0].mxu0
      %v3238 = vadd.f32 %v2885, %v3237
      %v3239 = vpop.f32.mrb[0].mxu0
      %v3240 = vadd.f32 %v2887, %v3239
      %3241 = vmatprep.mubr.bf16.mxu0 %v2051
      %3242 = vmatmul.mubr.bf16.gmra.mrb[0].mxu0 %v2050
      %v3243 = vpop.f32.mrb[0].mxu0
      %v3244 = vadd.f32 %v2891, %v3243
      %v3245 = vpop.f32.mrb[0].mxu0
      %v3246 = vadd.f32 %v2893, %v3245
      %v3247 = vpop.f32.mrb[0].mxu0
      %v3248 = vadd.f32 %v2895, %v3247
      %v3249 = vpop.f32.mrb[0].mxu0
      %v3250 = vadd.f32 %v2897, %v3249
      %3251 = vmatprep.mubr.bf16.mxu0 %v2056
      %3252 = vmatmul.mubr.bf16.gmra.mrb[0].mxu0 %v2055
      %v3253 = vpop.f32.mrb[0].mxu0
      %v3254 = vadd.f32 %v2901, %v3253
      %v3255 = vpop.f32.mrb[0].mxu0
      %v3256 = vadd.f32 %v2903, %v3255
      %v3257 = vpop.f32.mrb[0].mxu0
      %v3258 = vadd.f32 %v2905, %v3257
      %v3259 = vpop.f32.mrb[0].mxu0
      %v3260 = vadd.f32 %v2907, %v3259
      %3261 = vmatprep.mubr.bf16.mxu0 %v2061
      %3262 = vmatmul.mubr.bf16.gmra.mrb[0].mxu0 %v2060
      %v3263 = vpop.f32.mrb[0].mxu0
      %v3264 = vadd.f32 %v2911, %v3263
      %v3265 = vpop.f32.mrb[0].mxu0
      %v3266 = vadd.f32 %v2913, %v3265
      %v3267 = vpop.f32.mrb[0].mxu0
      %v3268 = vadd.f32 %v2915, %v3267
      %v3269 = vpop.f32.mrb[0].mxu0
      %v3270 = vadd.f32 %v2917, %v3269
      %3271 = vmatprep.mubr.bf16.mxu0 %v2066
      %3272 = vmatmul.mubr.bf16.gmra.mrb[0].mxu0 %v2065
      %v3273 = vpop.f32.mrb[0].mxu0
      %v3274 = vadd.f32 %v2921, %v3273
      %v3275 = vpop.f32.mrb[0].mxu0
      %v3276 = vadd.f32 %v2923, %v3275
      %v3277 = vpop.f32.mrb[0].mxu0
      %v3278 = vadd.f32 %v2925, %v3277
      %v3279 = vpop.f32.mrb[0].mxu0
      %v3280 = vadd.f32 %v2927, %v3279
      %3281 = vmatprep.mubr.bf16.mxu0 %v2071
      %3282 = vmatmul.mubr.bf16.gmra.mrb[0].mxu0 %v2070
      %v3283 = vpop.f32.mrb[0].mxu0
      %v3284 = vadd.f32 %v2931, %v3283
      %v3285 = vpop.f32.mrb[0].mxu0
      %v3286 = vadd.f32 %v2933, %v3285
      %v3287 = vpop.f32.mrb[0].mxu0
      %v3288 = vadd.f32 %v2935, %v3287
      %v3289 = vpop.f32.mrb[0].mxu0
      %v3290 = vadd.f32 %v2937, %v3289
      %3291 = vmatprep.mubr.bf16.mxu0 %v2076
      %3292 = vmatmul.mubr.bf16.gmra.mrb[0].mxu0 %v2075
      %v3293 = vpop.f32.mrb[0].mxu0
      %v3294 = vadd.f32 %v2941, %v3293
      %v3295 = vpop.f32.mrb[0].mxu0
      %v3296 = vadd.f32 %v2943, %v3295
      %v3297 = vpop.f32.mrb[0].mxu0
      %v3298 = vadd.f32 %v2945, %v3297
      %v3299 = vpop.f32.mrb[0].mxu0
      %v3300 = vadd.f32 %v2947, %v3299
      %3301 = vmatprep.mubr.bf16.mxu0 %v2081
      %3302 = vmatmul.mubr.bf16.gmra.mrb[0].mxu0 %v2080
      %v3303 = vpop.f32.mrb[0].mxu0
      %v3304 = vadd.f32 %v2951, %v3303
      %v3305 = vpop.f32.mrb[0].mxu0
      %v3306 = vadd.f32 %v2953, %v3305
      %v3307 = vpop.f32.mrb[0].mxu0
      %v3308 = vadd.f32 %v2955, %v3307
      %v3309 = vpop.f32.mrb[0].mxu0
      %v3310 = vadd.f32 %v2957, %v3309
      %3311 = vmatprep.mubr.bf16.mxu0 %v2086
      %3312 = vmatmul.mubr.bf16.gmra.mrb[0].mxu0 %v2085
      %v3313 = vpop.f32.mrb[0].mxu0
      %v3314 = vadd.f32 %v2961, %v3313
      %v3315 = vpop.f32.mrb[0].mxu0
      %v3316 = vadd.f32 %v2963, %v3315
      %v3317 = vpop.f32.mrb[0].mxu0
      %v3318 = vadd.f32 %v2965, %v3317
      %v3319 = vpop.f32.mrb[0].mxu0
      %v3320 = vadd.f32 %v2967, %v3319
      %3321 = vdwg.mxu0
      %3322 = vmatprep.subr.bf16.mxu0 %v2441
      %3323 = vmatpush1.bf16.msra.mxu0 %v2440
      %3324 = vmatprep.subr.bf16.mxu0 %v2443
      %3325 = vmatpush1.bf16.msra.mxu0 %v2442
      %3326 = vmatprep.subr.bf16.mxu0 %v2445
      %3327 = vmatpush1.bf16.msra.mxu0 %v2444
      %3328 = vmatprep.subr.bf16.mxu0 %v2447
      %3329 = vmatpush1.bf16.msra.mxu0 %v2446
      %3330 = vmatprep.subr.bf16.mxu0 0
      %3331 = vmatpush1.bf16.msra.mxu0 0
      %3332 = vmatprep.subr.bf16.mxu0 0
      %3333 = vmatpush1.bf16.msra.mxu0 0
      %3334 = vmatprep.subr.bf16.mxu0 0
      %3335 = vmatpush1.bf16.msra.mxu0 0
      %3336 = vmatprep.subr.bf16.mxu0 0
      %3337 = vmatpush1.bf16.msra.mxu0 0
      %3338 = vmatprep.subr.bf16.mxu0 0
      %3339 = vmatpush1.bf16.msra.mxu0 0
      %3340 = vmatprep.subr.bf16.mxu0 0
      %3341 = vmatpush1.bf16.msra.mxu0 0
      %3342 = vmatprep.subr.bf16.mxu0 0
      %3343 = vmatpush1.bf16.msra.mxu0 0
      %3344 = vmatprep.subr.bf16.mxu0 0
      %3345 = vmatpush1.bf16.msra.mxu0 0
      %3346 = vmatprep.subr.bf16.mxu0 0
      %3347 = vmatpush1.bf16.msra.mxu0 0
      %3348 = vmatprep.subr.bf16.mxu0 0
      %3349 = vmatpush1.bf16.msra.mxu0 0
      %3350 = vmatprep.subr.bf16.mxu0 0
      %3351 = vmatpush1.bf16.msra.mxu0 0
      %3352 = vmatprep.subr.bf16.mxu0 0
      %3353 = vmatpush1.bf16.msra.mxu0 0
      %3354 = vmatprep.mubr.bf16.mxu0 0
      %3355 = vmatmul.mubr.bf16.gmra.mrb[0].mxu0 %v2521
      %v3356 = vpop.f32.mrb[0].mxu0
      %v3357 = vadd.f32 %v3004, %v3356
      %v3358 = vpop.f32.mrb[0].mxu0
      %v3359 = vadd.f32 %v3006, %v3358
      %v3360 = vpop.f32.mrb[0].mxu0
      %v3361 = vadd.f32 %v3008, %v3360
      %v3362 = vpop.f32.mrb[0].mxu0
      %v3363 = vadd.f32 %v3010, %v3362
      %3364 = vmatprep.mubr.bf16.mxu0 0
      %3365 = vmatmul.mubr.bf16.gmra.mrb[0].mxu0 %v2524
      %v3366 = vpop.f32.mrb[0].mxu0
      %v3367 = vadd.f32 %v3014, %v3366
      %v3368 = vpop.f32.mrb[0].mxu0
      %v3369 = vadd.f32 %v3016, %v3368
      %v3370 = vpop.f32.mrb[0].mxu0
      %v3371 = vadd.f32 %v3018, %v3370
      %v3372 = vpop.f32.mrb[0].mxu0
      %v3373 = vadd.f32 %v3020, %v3372
      %3374 = vmatprep.mubr.bf16.mxu0 0
      %3375 = vmatmul.mubr.bf16.gmra.mrb[0].mxu0 %v2527
      %v3376 = vpop.f32.mrb[0].mxu0
      %v3377 = vadd.f32 %v3024, %v3376
      %v3378 = vpop.f32.mrb[0].mxu0
      %v3379 = vadd.f32 %v3026, %v3378
      %v3380 = vpop.f32.mrb[0].mxu0
      %v3381 = vadd.f32 %v3028, %v3380
      %v3382 = vpop.f32.mrb[0].mxu0
      %v3383 = vadd.f32 %v3030, %v3382
      %3384 = vmatprep.mubr.bf16.mxu0 0
      %3385 = vmatmul.mubr.bf16.gmra.mrb[0].mxu0 %v2530
      %v3386 = vpop.f32.mrb[0].mxu0
      %v3387 = vadd.f32 %v3034, %v3386
      %v3388 = vpop.f32.mrb[0].mxu0
      %v3389 = vadd.f32 %v3036, %v3388
      %v3390 = vpop.f32.mrb[0].mxu0
      %v3391 = vadd.f32 %v3038, %v3390
      %v3392 = vpop.f32.mrb[0].mxu0
      %v3393 = vadd.f32 %v3040, %v3392
      %3394 = vmatprep.mubr.bf16.mxu0 0
      %3395 = vmatmul.mubr.bf16.gmra.mrb[0].mxu0 %v2533
      %v3396 = vpop.f32.mrb[0].mxu0
      %v3397 = vadd.f32 %v3044, %v3396
      %v3398 = vpop.f32.mrb[0].mxu0
      %v3399 = vadd.f32 %v3046, %v3398
      %v3400 = vpop.f32.mrb[0].mxu0
      %v3401 = vadd.f32 %v3048, %v3400
      %v3402 = vpop.f32.mrb[0].mxu0
      %v3403 = vadd.f32 %v3050, %v3402
      %3404 = vmatprep.mubr.bf16.mxu0 0
      %3405 = vmatmul.mubr.bf16.gmra.mrb[0].mxu0 %v2536
      %v3406 = vpop.f32.mrb[0].mxu0
      %v3407 = vadd.f32 %v3054, %v3406
      %v3408 = vpop.f32.mrb[0].mxu0
      %v3409 = vadd.f32 %v3056, %v3408
      %v3410 = vpop.f32.mrb[0].mxu0
      %v3411 = vadd.f32 %v3058, %v3410
      %v3412 = vpop.f32.mrb[0].mxu0
      %v3413 = vadd.f32 %v3060, %v3412
      %3414 = vmatprep.mubr.bf16.mxu0 0
      %3415 = vmatmul.mubr.bf16.gmra.mrb[0].mxu0 %v2539
      %v3416 = vpop.f32.mrb[0].mxu0
      %v3417 = vadd.f32 %v3064, %v3416
      %v3418 = vpop.f32.mrb[0].mxu0
      %v3419 = vadd.f32 %v3066, %v3418
      %v3420 = vpop.f32.mrb[0].mxu0
      %v3421 = vadd.f32 %v3068, %v3420
      %v3422 = vpop.f32.mrb[0].mxu0
      %v3423 = vadd.f32 %v3070, %v3422
      %3424 = vmatprep.mubr.bf16.mxu0 0
      %3425 = vmatmul.mubr.bf16.gmra.mrb[0].mxu0 %v2542
      %v3426 = vpop.f32.mrb[0].mxu0
      %v3427 = vadd.f32 %v3074, %v3426
      %v3428 = vpop.f32.mrb[0].mxu0
      %v3429 = vadd.f32 %v3076, %v3428
      %v3430 = vpop.f32.mrb[0].mxu0
      %v3431 = vadd.f32 %v3078, %v3430
      %v3432 = vpop.f32.mrb[0].mxu0
      %v3433 = vadd.f32 %v3080, %v3432
      %3434 = vmatprep.mubr.bf16.mxu0 0
      %3435 = vmatmul.mubr.bf16.gmra.mrb[0].mxu0 %v2545
      %v3436 = vpop.f32.mrb[0].mxu0
      %v3437 = vadd.f32 %v3084, %v3436
      %v3438 = vpop.f32.mrb[0].mxu0
      %v3439 = vadd.f32 %v3086, %v3438
      %v3440 = vpop.f32.mrb[0].mxu0
      %v3441 = vadd.f32 %v3088, %v3440
      %v3442 = vpop.f32.mrb[0].mxu0
      %v3443 = vadd.f32 %v3090, %v3442
      %3444 = vmatprep.mubr.bf16.mxu0 0
      %3445 = vmatmul.mubr.bf16.gmra.mrb[0].mxu0 %v2548
      %v3446 = vpop.f32.mrb[0].mxu0
      %v3447 = vadd.f32 %v3094, %v3446
      %v3448 = vpop.f32.mrb[0].mxu0
      %v3449 = vadd.f32 %v3096, %v3448
      %v3450 = vpop.f32.mrb[0].mxu0
      %v3451 = vadd.f32 %v3098, %v3450
      %v3452 = vpop.f32.mrb[0].mxu0
      %v3453 = vadd.f32 %v3100, %v3452
      %3454 = vmatprep.mubr.bf16.mxu0 0
      %3455 = vmatmul.mubr.bf16.gmra.mrb[0].mxu0 %v2551
      %v3456 = vpop.f32.mrb[0].mxu0
      %v3457 = vadd.f32 %v3104, %v3456
      %v3458 = vpop.f32.mrb[0].mxu0
      %v3459 = vadd.f32 %v3106, %v3458
      %v3460 = vpop.f32.mrb[0].mxu0
      %v3461 = vadd.f32 %v3108, %v3460
      %v3462 = vpop.f32.mrb[0].mxu0
      %v3463 = vadd.f32 %v3110, %v3462
      %3464 = vmatprep.mubr.bf16.mxu0 0
      %3465 = vmatmul.mubr.bf16.gmra.mrb[0].mxu0 %v2554
      %v3466 = vpop.f32.mrb[0].mxu0
      %v3467 = vadd.f32 %v3114, %v3466
      %v3468 = vpop.f32.mrb[0].mxu0
      %v3469 = vadd.f32 %v3116, %v3468
      %v3470 = vpop.f32.mrb[0].mxu0
      %v3471 = vadd.f32 %v3118, %v3470
      %v3472 = vpop.f32.mrb[0].mxu0
      %v3473 = vadd.f32 %v3120, %v3472
      %3474 = vmatprep.mubr.bf16.mxu0 0
      %3475 = vmatmul.mubr.bf16.gmra.mrb[0].mxu0 %v2557
      %v3476 = vpop.f32.mrb[0].mxu0
      %v3477 = vadd.f32 %v3124, %v3476
      %v3478 = vpop.f32.mrb[0].mxu0
      %v3479 = vadd.f32 %v3126, %v3478
      %v3480 = vpop.f32.mrb[0].mxu0
      %v3481 = vadd.f32 %v3128, %v3480
      %v3482 = vpop.f32.mrb[0].mxu0
      %v3483 = vadd.f32 %v3130, %v3482
      %3484 = vmatprep.mubr.bf16.mxu0 0
      %3485 = vmatmul.mubr.bf16.gmra.mrb[0].mxu0 %v2560
      %v3486 = vpop.f32.mrb[0].mxu0
      %v3487 = vadd.f32 %v3134, %v3486
      %v3488 = vpop.f32.mrb[0].mxu0
      %v3489 = vadd.f32 %v3136, %v3488
      %v3490 = vpop.f32.mrb[0].mxu0
      %v3491 = vadd.f32 %v3138, %v3490
      %v3492 = vpop.f32.mrb[0].mxu0
      %v3493 = vadd.f32 %v3140, %v3492
      %3494 = vmatprep.mubr.bf16.mxu0 0
      %3495 = vmatmul.mubr.bf16.gmra.mrb[0].mxu0 %v2563
      %v3496 = vpop.f32.mrb[0].mxu0
      %v3497 = vadd.f32 %v3144, %v3496
      %v3498 = vpop.f32.mrb[0].mxu0
      %v3499 = vadd.f32 %v3146, %v3498
      %v3500 = vpop.f32.mrb[0].mxu0
      %v3501 = vadd.f32 %v3148, %v3500
      %v3502 = vpop.f32.mrb[0].mxu0
      %v3503 = vadd.f32 %v3150, %v3502
      %3504 = vmatprep.mubr.bf16.mxu0 0
      %3505 = vmatmul.mubr.bf16.gmra.mrb[0].mxu0 %v2566
      %v3506 = vpop.f32.mrb[0].mxu0
      %v3507 = vadd.f32 %v3154, %v3506
      %v3508 = vpop.f32.mrb[0].mxu0
      %v3509 = vadd.f32 %v3156, %v3508
      %v3510 = vpop.f32.mrb[0].mxu0
      %v3511 = vadd.f32 %v3158, %v3510
      %v3512 = vpop.f32.mrb[0].mxu0
      %v3513 = vadd.f32 %v3160, %v3512
      %3514 = vmatprep.mubr.bf16.mxu0 0
      %3515 = vmatmul.mubr.bf16.gmra.mrb[0].mxu0 %v2569
      %v3516 = vpop.f32.mrb[0].mxu0
      %v3517 = vadd.f32 %v3164, %v3516
      %v3518 = vpop.f32.mrb[0].mxu0
      %v3519 = vadd.f32 %v3166, %v3518
      %v3520 = vpop.f32.mrb[0].mxu0
      %v3521 = vadd.f32 %v3168, %v3520
      %v3522 = vpop.f32.mrb[0].mxu0
      %v3523 = vadd.f32 %v3170, %v3522
      %3524 = vmatprep.mubr.bf16.mxu0 0
      %3525 = vmatmul.mubr.bf16.gmra.mrb[0].mxu0 %v2572
      %v3526 = vpop.f32.mrb[0].mxu0
      %v3527 = vadd.f32 %v3174, %v3526
      %v3528 = vpop.f32.mrb[0].mxu0
      %v3529 = vadd.f32 %v3176, %v3528
      %v3530 = vpop.f32.mrb[0].mxu0
      %v3531 = vadd.f32 %v3178, %v3530
      %v3532 = vpop.f32.mrb[0].mxu0
      %v3533 = vadd.f32 %v3180, %v3532
      %3534 = vmatprep.mubr.bf16.mxu0 0
      %3535 = vmatmul.mubr.bf16.gmra.mrb[0].mxu0 %v2575
      %v3536 = vpop.f32.mrb[0].mxu0
      %v3537 = vadd.f32 %v3184, %v3536
      %v3538 = vpop.f32.mrb[0].mxu0
      %v3539 = vadd.f32 %v3186, %v3538
      %v3540 = vpop.f32.mrb[0].mxu0
      %v3541 = vadd.f32 %v3188, %v3540
      %v3542 = vpop.f32.mrb[0].mxu0
      %v3543 = vadd.f32 %v3190, %v3542
      %3544 = vmatprep.mubr.bf16.mxu0 0
      %3545 = vmatmul.mubr.bf16.gmra.mrb[0].mxu0 %v2578
      %v3546 = vpop.f32.mrb[0].mxu0
      %v3547 = vadd.f32 %v3194, %v3546
      %v3548 = vpop.f32.mrb[0].mxu0
      %v3549 = vadd.f32 %v3196, %v3548
      %v3550 = vpop.f32.mrb[0].mxu0
      %v3551 = vadd.f32 %v3198, %v3550
      %v3552 = vpop.f32.mrb[0].mxu0
      %v3553 = vadd.f32 %v3200, %v3552
      %3554 = vmatprep.mubr.bf16.mxu0 0
      %3555 = vmatmul.mubr.bf16.gmra.mrb[0].mxu0 %v2581
      %v3556 = vpop.f32.mrb[0].mxu0
      %v3557 = vadd.f32 %v3204, %v3556
      %v3558 = vpop.f32.mrb[0].mxu0
      %v3559 = vadd.f32 %v3206, %v3558
      %v3560 = vpop.f32.mrb[0].mxu0
      %v3561 = vadd.f32 %v3208, %v3560
      %v3562 = vpop.f32.mrb[0].mxu0
      %v3563 = vadd.f32 %v3210, %v3562
      %3564 = vmatprep.mubr.bf16.mxu0 0
      %3565 = vmatmul.mubr.bf16.gmra.mrb[0].mxu0 %v2584
      %v3566 = vpop.f32.mrb[0].mxu0
      %v3567 = vadd.f32 %v3214, %v3566
      %v3568 = vpop.f32.mrb[0].mxu0
      %v3569 = vadd.f32 %v3216, %v3568
      %v3570 = vpop.f32.mrb[0].mxu0
      %v3571 = vadd.f32 %v3218, %v3570
      %v3572 = vpop.f32.mrb[0].mxu0
      %v3573 = vadd.f32 %v3220, %v3572
      %3574 = vmatprep.mubr.bf16.mxu0 0
      %3575 = vmatmul.mubr.bf16.gmra.mrb[0].mxu0 %v2587
      %v3576 = vpop.f32.mrb[0].mxu0
      %v3577 = vadd.f32 %v3224, %v3576
      %v3578 = vpop.f32.mrb[0].mxu0
      %v3579 = vadd.f32 %v3226, %v3578
      %v3580 = vpop.f32.mrb[0].mxu0
      %v3581 = vadd.f32 %v3228, %v3580
      %v3582 = vpop.f32.mrb[0].mxu0
      %v3583 = vadd.f32 %v3230, %v3582
      %3584 = vmatprep.mubr.bf16.mxu0 0
      %3585 = vmatmul.mubr.bf16.gmra.mrb[0].mxu0 %v2590
      %v3586 = vpop.f32.mrb[0].mxu0
      %v3587 = vadd.f32 %v3234, %v3586
      %v3588 = vpop.f32.mrb[0].mxu0
      %v3589 = vadd.f32 %v3236, %v3588
      %v3590 = vpop.f32.mrb[0].mxu0
      %v3591 = vadd.f32 %v3238, %v3590
      %v3592 = vpop.f32.mrb[0].mxu0
      %v3593 = vadd.f32 %v3240, %v3592
      %3594 = vmatprep.mubr.bf16.mxu0 0
      %3595 = vmatmul.mubr.bf16.gmra.mrb[0].mxu0 %v2593
      %v3596 = vpop.f32.mrb[0].mxu0
      %v3597 = vadd.f32 %v3244, %v3596
      %v3598 = vpop.f32.mrb[0].mxu0
      %v3599 = vadd.f32 %v3246, %v3598
      %v3600 = vpop.f32.mrb[0].mxu0
      %v3601 = vadd.f32 %v3248, %v3600
      %v3602 = vpop.f32.mrb[0].mxu0
      %v3603 = vadd.f32 %v3250, %v3602
      %3604 = vmatprep.mubr.bf16.mxu0 0
      %3605 = vmatmul.mubr.bf16.gmra.mrb[0].mxu0 %v2596
      %v3606 = vpop.f32.mrb[0].mxu0
      %v3607 = vadd.f32 %v3254, %v3606
      %v3608 = vpop.f32.mrb[0].mxu0
      %v3609 = vadd.f32 %v3256, %v3608
      %v3610 = vpop.f32.mrb[0].mxu0
      %v3611 = vadd.f32 %v3258, %v3610
      %v3612 = vpop.f32.mrb[0].mxu0
      %v3613 = vadd.f32 %v3260, %v3612
      %3614 = vmatprep.mubr.bf16.mxu0 0
      %3615 = vmatmul.mubr.bf16.gmra.mrb[0].mxu0 %v2599
      %v3616 = vpop.f32.mrb[0].mxu0
      %v3617 = vadd.f32 %v3264, %v3616
      %v3618 = vpop.f32.mrb[0].mxu0
      %v3619 = vadd.f32 %v3266, %v3618
      %v3620 = vpop.f32.mrb[0].mxu0
      %v3621 = vadd.f32 %v3268, %v3620
      %v3622 = vpop.f32.mrb[0].mxu0
      %v3623 = vadd.f32 %v3270, %v3622
      %3624 = vmatprep.mubr.bf16.mxu0 0
      %3625 = vmatmul.mubr.bf16.gmra.mrb[0].mxu0 %v2602
      %v3626 = vpop.f32.mrb[0].mxu0
      %v3627 = vadd.f32 %v3274, %v3626
      %v3628 = vpop.f32.mrb[0].mxu0
      %v3629 = vadd.f32 %v3276, %v3628
      %v3630 = vpop.f32.mrb[0].mxu0
      %v3631 = vadd.f32 %v3278, %v3630
      %v3632 = vpop.f32.mrb[0].mxu0
      %v3633 = vadd.f32 %v3280, %v3632
      %3634 = vmatprep.mubr.bf16.mxu0 0
      %3635 = vmatmul.mubr.bf16.gmra.mrb[0].mxu0 %v2605
      %v3636 = vpop.f32.mrb[0].mxu0
      %v3637 = vadd.f32 %v3284, %v3636
      %v3638 = vpop.f32.mrb[0].mxu0
      %v3639 = vadd.f32 %v3286, %v3638
      %v3640 = vpop.f32.mrb[0].mxu0
      %v3641 = vadd.f32 %v3288, %v3640
      %v3642 = vpop.f32.mrb[0].mxu0
      %v3643 = vadd.f32 %v3290, %v3642
      %3644 = vmatprep.mubr.bf16.mxu0 0
      %3645 = vmatmul.mubr.bf16.gmra.mrb[0].mxu0 %v2608
      %v3646 = vpop.f32.mrb[0].mxu0
      %v3647 = vadd.f32 %v3294, %v3646
      %v3648 = vpop.f32.mrb[0].mxu0
      %v3649 = vadd.f32 %v3296, %v3648
      %v3650 = vpop.f32.mrb[0].mxu0
      %v3651 = vadd.f32 %v3298, %v3650
      %v3652 = vpop.f32.mrb[0].mxu0
      %v3653 = vadd.f32 %v3300, %v3652
      %3654 = vmatprep.mubr.bf16.mxu0 0
      %3655 = vmatmul.mubr.bf16.gmra.mrb[0].mxu0 %v2611
      %v3656 = vpop.f32.mrb[0].mxu0
      %v3657 = vadd.f32 %v3304, %v3656
      %v3658 = vpop.f32.mrb[0].mxu0
      %v3659 = vadd.f32 %v3306, %v3658
      %v3660 = vpop.f32.mrb[0].mxu0
      %v3661 = vadd.f32 %v3308, %v3660
      %v3662 = vpop.f32.mrb[0].mxu0
      %v3663 = vadd.f32 %v3310, %v3662
      %3664 = vmatprep.mubr.bf16.mxu0 0
      %3665 = vmatmul.mubr.bf16.gmra.mrb[0].mxu0 %v2614
      %v3666 = vpop.f32.mrb[0].mxu0
      %v3667 = vadd.f32 %v3314, %v3666
      %v3668 = vpop.f32.mrb[0].mxu0
      %v3669 = vadd.f32 %v3316, %v3668
      %v3670 = vpop.f32.mrb[0].mxu0
      %v3671 = vadd.f32 %v3318, %v3670
      %v3672 = vpop.f32.mrb[0].mxu0
      %v3673 = vadd.f32 %v3320, %v3672
      %3674 = vdwg.mxu0
      %v3675 = vpack.c.bf16 %v3361, %v3357
      %v3676 = vpack.c.bf16 %v3363, %v3359
      %v3677 = vpack.c.bf16 %v3371, %v3367
      %v3678 = vpack.c.bf16 %v3373, %v3369
      %v3679 = vpack.c.bf16 %v3381, %v3377
      %v3680 = vpack.c.bf16 %v3383, %v3379
      %v3681 = vpack.c.bf16 %v3391, %v3387
      %v3682 = vpack.c.bf16 %v3393, %v3389
      %v3683 = vpack.c.bf16 %v3401, %v3397
      %v3684 = vpack.c.bf16 %v3403, %v3399
      %v3685 = vpack.c.bf16 %v3411, %v3407
      %v3686 = vpack.c.bf16 %v3413, %v3409
      %v3687 = vpack.c.bf16 %v3421, %v3417
      %v3688 = vpack.c.bf16 %v3423, %v3419
      %v3689 = vpack.c.bf16 %v3431, %v3427
      %v3690 = vpack.c.bf16 %v3433, %v3429
      %v3691 = vpack.c.bf16 %v3441, %v3437
      %v3692 = vpack.c.bf16 %v3443, %v3439
      %v3693 = vpack.c.bf16 %v3451, %v3447
      %v3694 = vpack.c.bf16 %v3453, %v3449
      %v3695 = vpack.c.bf16 %v3461, %v3457
      %v3696 = vpack.c.bf16 %v3463, %v3459
      %v3697 = vpack.c.bf16 %v3471, %v3467
      %v3698 = vpack.c.bf16 %v3473, %v3469
      %v3699 = vpack.c.bf16 %v3481, %v3477
      %v3700 = vpack.c.bf16 %v3483, %v3479
      %v3701 = vpack.c.bf16 %v3491, %v3487
      %v3702 = vpack.c.bf16 %v3493, %v3489
      %v3703 = vpack.c.bf16 %v3501, %v3497
      %v3704 = vpack.c.bf16 %v3503, %v3499
      %v3705 = vpack.c.bf16 %v3511, %v3507
      %v3706 = vpack.c.bf16 %v3513, %v3509
      %v3707 = vpack.c.bf16 %v3521, %v3517
      %v3708 = vpack.c.bf16 %v3523, %v3519
      %v3709 = vpack.c.bf16 %v3531, %v3527
      %v3710 = vpack.c.bf16 %v3533, %v3529
      %v3711 = vpack.c.bf16 %v3541, %v3537
      %v3712 = vpack.c.bf16 %v3543, %v3539
      %v3713 = vpack.c.bf16 %v3551, %v3547
      %v3714 = vpack.c.bf16 %v3553, %v3549
      %v3715 = vpack.c.bf16 %v3561, %v3557
      %v3716 = vpack.c.bf16 %v3563, %v3559
      %v3717 = vpack.c.bf16 %v3571, %v3567
      %v3718 = vpack.c.bf16 %v3573, %v3569
      %v3719 = vpack.c.bf16 %v3581, %v3577
      %v3720 = vpack.c.bf16 %v3583, %v3579
      %v3721 = vpack.c.bf16 %v3591, %v3587
      %v3722 = vpack.c.bf16 %v3593, %v3589
      %v3723 = vpack.c.bf16 %v3601, %v3597
      %v3724 = vpack.c.bf16 %v3603, %v3599
      %v3725 = vpack.c.bf16 %v3611, %v3607
      %v3726 = vpack.c.bf16 %v3613, %v3609
      %v3727 = vpack.c.bf16 %v3621, %v3617
      %v3728 = vpack.c.bf16 %v3623, %v3619
      %v3729 = vpack.c.bf16 %v3631, %v3627
      %v3730 = vpack.c.bf16 %v3633, %v3629
      %v3731 = vpack.c.bf16 %v3641, %v3637
      %v3732 = vpack.c.bf16 %v3643, %v3639
      %v3733 = vpack.c.bf16 %v3651, %v3647
      %v3734 = vpack.c.bf16 %v3653, %v3649
      %v3735 = vpack.c.bf16 %v3661, %v3657
      %v3736 = vpack.c.bf16 %v3663, %v3659
      %v3737 = vpack.c.bf16 %v3671, %v3667
      %v3738 = vpack.c.bf16 %v3673, %v3669
      %3743 = vrot.lane.b32.xlu0 %v3675, 64
      %v3744 = vpop.permute.xlu0 %3743
      %3745 = vrot.lane.b32.xlu0 %v3677, 64
      %v3746 = vpop.permute.xlu0 %3745
      %3747 = vrot.lane.b32.xlu0 %v3679, 64
      %v3748 = vpop.permute.xlu0 %3747
      %3749 = vrot.lane.b32.xlu0 %v3681, 64
      %v3750 = vpop.permute.xlu0 %3749
      %v3752 = vsel %vm210, %v3675, 0
      %v3755 = vsel %vm210, %v3677, 0
      %v3758 = vsel %vm210, %v3679, 0
      %v3761 = vsel %vm210, %v3681, 0
      %v3764 = vsel %vm210, %v3744, 0
      %v3767 = vsel %vm210, %v3746, 0
      %v3770 = vsel %vm210, %v3748, 0
      %v3773 = vsel %vm210, %v3750, 0
      %3775 = vmatprep.subr.bf16.mxu0 0
      %3776 = vmatpush1.bf16.xpose.msra.mxu0 %v3764
      %3777 = vmatprep.subr.bf16.mxu0 0
      %3778 = vmatpush1.bf16.xpose.msra.mxu0 %v3767
      %3779 = vmatprep.subr.bf16.mxu0 0
      %3780 = vmatpush1.bf16.xpose.msra.mxu0 %v3770
      %3781 = vmatprep.subr.bf16.mxu0 0
      %3782 = vmatpush1.bf16.xpose.msra.mxu0 %v3773
      %3783 = vmatprep.subr.bf16.mxu0 0
      %3784 = vmatpush1.bf16.xpose.msra.mxu0 0
      %3785 = vmatprep.subr.bf16.mxu0 0
      %3786 = vmatpush1.bf16.xpose.msra.mxu0 0
      %3787 = vmatprep.subr.bf16.mxu0 0
      %3788 = vmatpush1.bf16.xpose.msra.mxu0 0
      %3789 = vmatprep.subr.bf16.mxu0 0
      %3790 = vmatpush1.bf16.xpose.msra.mxu0 0
      %3791 = vmatprep.subr.bf16.mxu0 0
      %3792 = vmatpush1.bf16.xpose.msra.mxu0 0
      %3793 = vmatprep.subr.bf16.mxu0 0
      %3794 = vmatpush1.bf16.xpose.msra.mxu0 0
      %3795 = vmatprep.subr.bf16.mxu0 0
      %3796 = vmatpush1.bf16.xpose.msra.mxu0 0
      %3797 = vmatprep.subr.bf16.mxu0 0
      %3798 = vmatpush1.bf16.xpose.msra.mxu0 0
      %3799 = vmatprep.subr.bf16.mxu0 0
      %3800 = vmatpush1.bf16.xpose.msra.mxu0 0
      %3801 = vmatprep.subr.bf16.mxu0 0
      %3802 = vmatpush1.bf16.xpose.msra.mxu0 0
      %3803 = vmatprep.subr.bf16.mxu0 0
      %3804 = vmatpush1.bf16.xpose.msra.mxu0 0
      %3805 = vmatprep.subr.bf16.mxu0 0
      %3806 = vmatpush1.bf16.xpose.msra.mxu0 0
      %3807 = vmatprep.mubr.bf16.mxu0 0
      %3808 = vmatmul.mubr.bf16.gmra.mrb[0].mxu0 %v3752
      %v3809 = vpop.f32.mrb[0].mxu0
      %v3810 = vadd.f32 0.0, %v3809
      %v3811 = vpop.f32.mrb[0].mxu0
      %v3812 = vpop.f32.mrb[0].mxu0
      %v3813 = vadd.f32 0.0, %v3812
      %v3814 = vpop.f32.mrb[0].mxu0
      %3815 = vmatprep.mubr.bf16.mxu0 0
      %3816 = vmatmul.mubr.bf16.gmra.mrb[0].mxu0 %v3755
      %v3817 = vpop.f32.mrb[0].mxu0
      %v3818 = vadd.f32 0.0, %v3817
      %v3819 = vpop.f32.mrb[0].mxu0
      %v3820 = vpop.f32.mrb[0].mxu0
      %v3821 = vadd.f32 0.0, %v3820
      %v3822 = vpop.f32.mrb[0].mxu0
      %3823 = vmatprep.mubr.bf16.mxu0 0
      %3824 = vmatmul.mubr.bf16.gmra.mrb[0].mxu0 %v3758
      %v3825 = vpop.f32.mrb[0].mxu0
      %v3826 = vadd.f32 0.0, %v3825
      %v3827 = vpop.f32.mrb[0].mxu0
      %v3828 = vpop.f32.mrb[0].mxu0
      %v3829 = vadd.f32 0.0, %v3828
      %v3830 = vpop.f32.mrb[0].mxu0
      %3831 = vmatprep.mubr.bf16.mxu0 0
      %3832 = vmatmul.mubr.bf16.gmra.mrb[0].mxu0 %v3761
      %v3833 = vpop.f32.mrb[0].mxu0
      %v3834 = vadd.f32 0.0, %v3833
      %v3835 = vpop.f32.mrb[0].mxu0
      %v3836 = vpop.f32.mrb[0].mxu0
      %v3837 = vadd.f32 0.0, %v3836
      %v3838 = vpop.f32.mrb[0].mxu0
      %3839 = vdwg.mxu0
      %3844 = vrot.lane.b32.xlu0 %v3683, 64
      %v3845 = vpop.permute.xlu0 %3844
      %3846 = vrot.lane.b32.xlu0 %v3685, 64
      %v3847 = vpop.permute.xlu0 %3846
      %3848 = vrot.lane.b32.xlu0 %v3687, 64
      %v3849 = vpop.permute.xlu0 %3848
      %3850 = vrot.lane.b32.xlu0 %v3689, 64
      %v3851 = vpop.permute.xlu0 %3850
      %v3853 = vsel %vm210, %v3683, 0
      %v3856 = vsel %vm210, %v3685, 0
      %v3859 = vsel %vm210, %v3687, 0
      %v3862 = vsel %vm210, %v3689, 0
      %v3865 = vsel %vm210, %v3845, 0
      %v3868 = vsel %vm210, %v3847, 0
      %v3871 = vsel %vm210, %v3849, 0
      %v3874 = vsel %vm210, %v3851, 0
      %3876 = vmatprep.subr.bf16.mxu0 0
      %3877 = vmatpush1.bf16.xpose.msra.mxu0 %v3865
      %3878 = vmatprep.subr.bf16.mxu0 0
      %3879 = vmatpush1.bf16.xpose.msra.mxu0 %v3868
      %3880 = vmatprep.subr.bf16.mxu0 0
      %3881 = vmatpush1.bf16.xpose.msra.mxu0 %v3871
      %3882 = vmatprep.subr.bf16.mxu0 0
      %3883 = vmatpush1.bf16.xpose.msra.mxu0 %v3874
      %3884 = vmatprep.subr.bf16.mxu0 0
      %3885 = vmatpush1.bf16.xpose.msra.mxu0 0
      %3886 = vmatprep.subr.bf16.mxu0 0
      %3887 = vmatpush1.bf16.xpose.msra.mxu0 0
      %3888 = vmatprep.subr.bf16.mxu0 0
      %3889 = vmatpush1.bf16.xpose.msra.mxu0 0
      %3890 = vmatprep.subr.bf16.mxu0 0
      %3891 = vmatpush1.bf16.xpose.msra.mxu0 0
      %3892 = vmatprep.subr.bf16.mxu0 0
      %3893 = vmatpush1.bf16.xpose.msra.mxu0 0
      %3894 = vmatprep.subr.bf16.mxu0 0
      %3895 = vmatpush1.bf16.xpose.msra.mxu0 0
      %3896 = vmatprep.subr.bf16.mxu0 0
      %3897 = vmatpush1.bf16.xpose.msra.mxu0 0
      %3898 = vmatprep.subr.bf16.mxu0 0
      %3899 = vmatpush1.bf16.xpose.msra.mxu0 0
      %3900 = vmatprep.subr.bf16.mxu0 0
      %3901 = vmatpush1.bf16.xpose.msra.mxu0 0
      %3902 = vmatprep.subr.bf16.mxu0 0
      %3903 = vmatpush1.bf16.xpose.msra.mxu0 0
      %3904 = vmatprep.subr.bf16.mxu0 0
      %3905 = vmatpush1.bf16.xpose.msra.mxu0 0
      %3906 = vmatprep.subr.bf16.mxu0 0
      %3907 = vmatpush1.bf16.xpose.msra.mxu0 0
      %3908 = vmatprep.mubr.bf16.mxu0 0
      %3909 = vmatmul.mubr.bf16.gmra.mrb[0].mxu0 %v3853
      %v3910 = vpop.f32.mrb[0].mxu0
      %v3911 = vadd.f32 0.0, %v3910
      %v3912 = vpop.f32.mrb[0].mxu0
      %v3913 = vpop.f32.mrb[0].mxu0
      %v3914 = vadd.f32 0.0, %v3913
      %v3915 = vpop.f32.mrb[0].mxu0
      %3916 = vmatprep.mubr.bf16.mxu0 0
      %3917 = vmatmul.mubr.bf16.gmra.mrb[0].mxu0 %v3856
      %v3918 = vpop.f32.mrb[0].mxu0
      %v3919 = vadd.f32 0.0, %v3918
      %v3920 = vpop.f32.mrb[0].mxu0
      %v3921 = vpop.f32.mrb[0].mxu0
      %v3922 = vadd.f32 0.0, %v3921
      %v3923 = vpop.f32.mrb[0].mxu0
      %3924 = vmatprep.mubr.bf16.mxu0 0
      %3925 = vmatmul.mubr.bf16.gmra.mrb[0].mxu0 %v3859
      %v3926 = vpop.f32.mrb[0].mxu0
      %v3927 = vadd.f32 0.0, %v3926
      %v3928 = vpop.f32.mrb[0].mxu0
      %v3929 = vpop.f32.mrb[0].mxu0
      %v3930 = vadd.f32 0.0, %v3929
      %v3931 = vpop.f32.mrb[0].mxu0
      %3932 = vmatprep.mubr.bf16.mxu0 0
      %3933 = vmatmul.mubr.bf16.gmra.mrb[0].mxu0 %v3862
      %v3934 = vpop.f32.mrb[0].mxu0
      %v3935 = vadd.f32 0.0, %v3934
      %v3936 = vpop.f32.mrb[0].mxu0
      %v3937 = vpop.f32.mrb[0].mxu0
      %v3938 = vadd.f32 0.0, %v3937
      %v3939 = vpop.f32.mrb[0].mxu0
      %3940 = vdwg.mxu0
      %3945 = vrot.lane.b32.xlu0 %v3691, 64
      %v3946 = vpop.permute.xlu0 %3945
      %3947 = vrot.lane.b32.xlu0 %v3693, 64
      %v3948 = vpop.permute.xlu0 %3947
      %3949 = vrot.lane.b32.xlu0 %v3695, 64
      %v3950 = vpop.permute.xlu0 %3949
      %3951 = vrot.lane.b32.xlu0 %v3697, 64
      %v3952 = vpop.permute.xlu0 %3951
      %v3954 = vsel %vm210, %v3691, 0
      %v3957 = vsel %vm210, %v3693, 0
      %v3960 = vsel %vm210, %v3695, 0
      %v3963 = vsel %vm210, %v3697, 0
      %v3966 = vsel %vm210, %v3946, 0
      %v3969 = vsel %vm210, %v3948, 0
      %v3972 = vsel %vm210, %v3950, 0
      %v3975 = vsel %vm210, %v3952, 0
      %3977 = vmatprep.subr.bf16.mxu0 0
      %3978 = vmatpush1.bf16.xpose.msra.mxu0 %v3966
      %3979 = vmatprep.subr.bf16.mxu0 0
      %3980 = vmatpush1.bf16.xpose.msra.mxu0 %v3969
      %3981 = vmatprep.subr.bf16.mxu0 0
      %3982 = vmatpush1.bf16.xpose.msra.mxu0 %v3972
      %3983 = vmatprep.subr.bf16.mxu0 0
      %3984 = vmatpush1.bf16.xpose.msra.mxu0 %v3975
      %3985 = vmatprep.subr.bf16.mxu0 0
      %3986 = vmatpush1.bf16.xpose.msra.mxu0 0
      %3987 = vmatprep.subr.bf16.mxu0 0
      %3988 = vmatpush1.bf16.xpose.msra.mxu0 0
      %3989 = vmatprep.subr.bf16.mxu0 0
      %3990 = vmatpush1.bf16.xpose.msra.mxu0 0
      %3991 = vmatprep.subr.bf16.mxu0 0
      %3992 = vmatpush1.bf16.xpose.msra.mxu0 0
      %3993 = vmatprep.subr.bf16.mxu0 0
      %3994 = vmatpush1.bf16.xpose.msra.mxu0 0
      %3995 = vmatprep.subr.bf16.mxu0 0
      %3996 = vmatpush1.bf16.xpose.msra.mxu0 0
      %3997 = vmatprep.subr.bf16.mxu0 0
      %3998 = vmatpush1.bf16.xpose.msra.mxu0 0
      %3999 = vmatprep.subr.bf16.mxu0 0
      %4000 = vmatpush1.bf16.xpose.msra.mxu0 0
      %4001 = vmatprep.subr.bf16.mxu0 0
      %4002 = vmatpush1.bf16.xpose.msra.mxu0 0
      %4003 = vmatprep.subr.bf16.mxu0 0
      %4004 = vmatpush1.bf16.xpose.msra.mxu0 0
      %4005 = vmatprep.subr.bf16.mxu0 0
      %4006 = vmatpush1.bf16.xpose.msra.mxu0 0
      %4007 = vmatprep.subr.bf16.mxu0 0
      %4008 = vmatpush1.bf16.xpose.msra.mxu0 0
      %4009 = vmatprep.mubr.bf16.mxu0 0
      %4010 = vmatmul.mubr.bf16.gmra.mrb[0].mxu0 %v3954
      %v4011 = vpop.f32.mrb[0].mxu0
      %v4012 = vadd.f32 0.0, %v4011
      %v4013 = vpop.f32.mrb[0].mxu0
      %v4014 = vpop.f32.mrb[0].mxu0
      %v4015 = vadd.f32 0.0, %v4014
      %v4016 = vpop.f32.mrb[0].mxu0
      %4017 = vmatprep.mubr.bf16.mxu0 0
      %4018 = vmatmul.mubr.bf16.gmra.mrb[0].mxu0 %v3957
      %v4019 = vpop.f32.mrb[0].mxu0
      %v4020 = vadd.f32 0.0, %v4019
      %v4021 = vpop.f32.mrb[0].mxu0
      %v4022 = vpop.f32.mrb[0].mxu0
      %v4023 = vadd.f32 0.0, %v4022
      %v4024 = vpop.f32.mrb[0].mxu0
      %4025 = vmatprep.mubr.bf16.mxu0 0
      %4026 = vmatmul.mubr.bf16.gmra.mrb[0].mxu0 %v3960
      %v4027 = vpop.f32.mrb[0].mxu0
      %v4028 = vadd.f32 0.0, %v4027
      %v4029 = vpop.f32.mrb[0].mxu0
      %v4030 = vpop.f32.mrb[0].mxu0
      %v4031 = vadd.f32 0.0, %v4030
      %v4032 = vpop.f32.mrb[0].mxu0
      %4033 = vmatprep.mubr.bf16.mxu0 0
      %4034 = vmatmul.mubr.bf16.gmra.mrb[0].mxu0 %v3963
      %v4035 = vpop.f32.mrb[0].mxu0
      %v4036 = vadd.f32 0.0, %v4035
      %v4037 = vpop.f32.mrb[0].mxu0
      %v4038 = vpop.f32.mrb[0].mxu0
      %v4039 = vadd.f32 0.0, %v4038
      %v4040 = vpop.f32.mrb[0].mxu0
      %4041 = vdwg.mxu0
      %4046 = vrot.lane.b32.xlu0 %v3699, 64
      %v4047 = vpop.permute.xlu0 %4046
      %4048 = vrot.lane.b32.xlu0 %v3701, 64
      %v4049 = vpop.permute.xlu0 %4048
      %4050 = vrot.lane.b32.xlu0 %v3703, 64
      %v4051 = vpop.permute.xlu0 %4050
      %4052 = vrot.lane.b32.xlu0 %v3705, 64
      %v4053 = vpop.permute.xlu0 %4052
      %v4055 = vsel %vm210, %v3699, 0
      %v4058 = vsel %vm210, %v3701, 0
      %v4061 = vsel %vm210, %v3703, 0
      %v4064 = vsel %vm210, %v3705, 0
      %v4067 = vsel %vm210, %v4047, 0
      %v4070 = vsel %vm210, %v4049, 0
      %v4073 = vsel %vm210, %v4051, 0
      %v4076 = vsel %vm210, %v4053, 0
      %4078 = vmatprep.subr.bf16.mxu0 0
      %4079 = vmatpush1.bf16.xpose.msra.mxu0 %v4067
      %4080 = vmatprep.subr.bf16.mxu0 0
      %4081 = vmatpush1.bf16.xpose.msra.mxu0 %v4070
      %4082 = vmatprep.subr.bf16.mxu0 0
      %4083 = vmatpush1.bf16.xpose.msra.mxu0 %v4073
      %4084 = vmatprep.subr.bf16.mxu0 0
      %4085 = vmatpush1.bf16.xpose.msra.mxu0 %v4076
      %4086 = vmatprep.subr.bf16.mxu0 0
      %4087 = vmatpush1.bf16.xpose.msra.mxu0 0
      %4088 = vmatprep.subr.bf16.mxu0 0
      %4089 = vmatpush1.bf16.xpose.msra.mxu0 0
      %4090 = vmatprep.subr.bf16.mxu0 0
      %4091 = vmatpush1.bf16.xpose.msra.mxu0 0
      %4092 = vmatprep.subr.bf16.mxu0 0
      %4093 = vmatpush1.bf16.xpose.msra.mxu0 0
      %4094 = vmatprep.subr.bf16.mxu0 0
      %4095 = vmatpush1.bf16.xpose.msra.mxu0 0
      %4096 = vmatprep.subr.bf16.mxu0 0
      %4097 = vmatpush1.bf16.xpose.msra.mxu0 0
      %4098 = vmatprep.subr.bf16.mxu0 0
      %4099 = vmatpush1.bf16.xpose.msra.mxu0 0
      %4100 = vmatprep.subr.bf16.mxu0 0
      %4101 = vmatpush1.bf16.xpose.msra.mxu0 0
      %4102 = vmatprep.subr.bf16.mxu0 0
      %4103 = vmatpush1.bf16.xpose.msra.mxu0 0
      %4104 = vmatprep.subr.bf16.mxu0 0
      %4105 = vmatpush1.bf16.xpose.msra.mxu0 0
      %4106 = vmatprep.subr.bf16.mxu0 0
      %4107 = vmatpush1.bf16.xpose.msra.mxu0 0
      %4108 = vmatprep.subr.bf16.mxu0 0
      %4109 = vmatpush1.bf16.xpose.msra.mxu0 0
      %4110 = vmatprep.mubr.bf16.mxu0 0
      %4111 = vmatmul.mubr.bf16.gmra.mrb[0].mxu0 %v4055
      %v4112 = vpop.f32.mrb[0].mxu0
      %v4113 = vadd.f32 0.0, %v4112
      %v4114 = vpop.f32.mrb[0].mxu0
      %v4115 = vpop.f32.mrb[0].mxu0
      %v4116 = vadd.f32 0.0, %v4115
      %v4117 = vpop.f32.mrb[0].mxu0
      %4118 = vmatprep.mubr.bf16.mxu0 0
      %4119 = vmatmul.mubr.bf16.gmra.mrb[0].mxu0 %v4058
      %v4120 = vpop.f32.mrb[0].mxu0
      %v4121 = vadd.f32 0.0, %v4120
      %v4122 = vpop.f32.mrb[0].mxu0
      %v4123 = vpop.f32.mrb[0].mxu0
      %v4124 = vadd.f32 0.0, %v4123
      %v4125 = vpop.f32.mrb[0].mxu0
      %4126 = vmatprep.mubr.bf16.mxu0 0
      %4127 = vmatmul.mubr.bf16.gmra.mrb[0].mxu0 %v4061
      %v4128 = vpop.f32.mrb[0].mxu0
      %v4129 = vadd.f32 0.0, %v4128
      %v4130 = vpop.f32.mrb[0].mxu0
      %v4131 = vpop.f32.mrb[0].mxu0
      %v4132 = vadd.f32 0.0, %v4131
      %v4133 = vpop.f32.mrb[0].mxu0
      %4134 = vmatprep.mubr.bf16.mxu0 0
      %4135 = vmatmul.mubr.bf16.gmra.mrb[0].mxu0 %v4064
      %v4136 = vpop.f32.mrb[0].mxu0
      %v4137 = vadd.f32 0.0, %v4136
      %v4138 = vpop.f32.mrb[0].mxu0
      %v4139 = vpop.f32.mrb[0].mxu0
      %v4140 = vadd.f32 0.0, %v4139
      %v4141 = vpop.f32.mrb[0].mxu0
      %4142 = vdwg.mxu0
      %4147 = vrot.lane.b32.xlu0 %v3707, 64
      %v4148 = vpop.permute.xlu0 %4147
      %4149 = vrot.lane.b32.xlu0 %v3709, 64
      %v4150 = vpop.permute.xlu0 %4149
      %4151 = vrot.lane.b32.xlu0 %v3711, 64
      %v4152 = vpop.permute.xlu0 %4151
      %4153 = vrot.lane.b32.xlu0 %v3713, 64
      %v4154 = vpop.permute.xlu0 %4153
      %v4156 = vsel %vm210, %v3707, 0
      %v4159 = vsel %vm210, %v3709, 0
      %v4162 = vsel %vm210, %v3711, 0
      %v4165 = vsel %vm210, %v3713, 0
      %v4168 = vsel %vm210, %v4148, 0
      %v4171 = vsel %vm210, %v4150, 0
      %v4174 = vsel %vm210, %v4152, 0
      %v4177 = vsel %vm210, %v4154, 0
      %4179 = vmatprep.subr.bf16.mxu0 0
      %4180 = vmatpush1.bf16.xpose.msra.mxu0 %v4168
      %4181 = vmatprep.subr.bf16.mxu0 0
      %4182 = vmatpush1.bf16.xpose.msra.mxu0 %v4171
      %4183 = vmatprep.subr.bf16.mxu0 0
      %4184 = vmatpush1.bf16.xpose.msra.mxu0 %v4174
      %4185 = vmatprep.subr.bf16.mxu0 0
      %4186 = vmatpush1.bf16.xpose.msra.mxu0 %v4177
      %4187 = vmatprep.subr.bf16.mxu0 0
      %4188 = vmatpush1.bf16.xpose.msra.mxu0 0
      %4189 = vmatprep.subr.bf16.mxu0 0
      %4190 = vmatpush1.bf16.xpose.msra.mxu0 0
      %4191 = vmatprep.subr.bf16.mxu0 0
      %4192 = vmatpush1.bf16.xpose.msra.mxu0 0
      %4193 = vmatprep.subr.bf16.mxu0 0
      %4194 = vmatpush1.bf16.xpose.msra.mxu0 0
      %4195 = vmatprep.subr.bf16.mxu0 0
      %4196 = vmatpush1.bf16.xpose.msra.mxu0 0
      %4197 = vmatprep.subr.bf16.mxu0 0
      %4198 = vmatpush1.bf16.xpose.msra.mxu0 0
      %4199 = vmatprep.subr.bf16.mxu0 0
      %4200 = vmatpush1.bf16.xpose.msra.mxu0 0
      %4201 = vmatprep.subr.bf16.mxu0 0
      %4202 = vmatpush1.bf16.xpose.msra.mxu0 0
      %4203 = vmatprep.subr.bf16.mxu0 0
      %4204 = vmatpush1.bf16.xpose.msra.mxu0 0
      %4205 = vmatprep.subr.bf16.mxu0 0
      %4206 = vmatpush1.bf16.xpose.msra.mxu0 0
      %4207 = vmatprep.subr.bf16.mxu0 0
      %4208 = vmatpush1.bf16.xpose.msra.mxu0 0
      %4209 = vmatprep.subr.bf16.mxu0 0
      %4210 = vmatpush1.bf16.xpose.msra.mxu0 0
      %4211 = vmatprep.mubr.bf16.mxu0 0
      %4212 = vmatmul.mubr.bf16.gmra.mrb[0].mxu0 %v4156
      %v4213 = vpop.f32.mrb[0].mxu0
      %v4214 = vadd.f32 0.0, %v4213
      %v4215 = vpop.f32.mrb[0].mxu0
      %v4216 = vpop.f32.mrb[0].mxu0
      %v4217 = vadd.f32 0.0, %v4216
      %v4218 = vpop.f32.mrb[0].mxu0
      %4219 = vmatprep.mubr.bf16.mxu0 0
      %4220 = vmatmul.mubr.bf16.gmra.mrb[0].mxu0 %v4159
      %v4221 = vpop.f32.mrb[0].mxu0
      %v4222 = vadd.f32 0.0, %v4221
      %v4223 = vpop.f32.mrb[0].mxu0
      %v4224 = vpop.f32.mrb[0].mxu0
      %v4225 = vadd.f32 0.0, %v4224
      %v4226 = vpop.f32.mrb[0].mxu0
      %4227 = vmatprep.mubr.bf16.mxu0 0
      %4228 = vmatmul.mubr.bf16.gmra.mrb[0].mxu0 %v4162
      %v4229 = vpop.f32.mrb[0].mxu0
      %v4230 = vadd.f32 0.0, %v4229
      %v4231 = vpop.f32.mrb[0].mxu0
      %v4232 = vpop.f32.mrb[0].mxu0
      %v4233 = vadd.f32 0.0, %v4232
      %v4234 = vpop.f32.mrb[0].mxu0
      %4235 = vmatprep.mubr.bf16.mxu0 0
      %4236 = vmatmul.mubr.bf16.gmra.mrb[0].mxu0 %v4165
      %v4237 = vpop.f32.mrb[0].mxu0
      %v4238 = vadd.f32 0.0, %v4237
      %v4239 = vpop.f32.mrb[0].mxu0
      %v4240 = vpop.f32.mrb[0].mxu0
      %v4241 = vadd.f32 0.0, %v4240
      %v4242 = vpop.f32.mrb[0].mxu0
      %4243 = vdwg.mxu0
      %4248 = vrot.lane.b32.xlu0 %v3715, 64
      %v4249 = vpop.permute.xlu0 %4248
      %4250 = vrot.lane.b32.xlu0 %v3717, 64
      %v4251 = vpop.permute.xlu0 %4250
      %4252 = vrot.lane.b32.xlu0 %v3719, 64
      %v4253 = vpop.permute.xlu0 %4252
      %4254 = vrot.lane.b32.xlu0 %v3721, 64
      %v4255 = vpop.permute.xlu0 %4254
      %v4257 = vsel %vm210, %v3715, 0
      %v4260 = vsel %vm210, %v3717, 0
      %v4263 = vsel %vm210, %v3719, 0
      %v4266 = vsel %vm210, %v3721, 0
      %v4269 = vsel %vm210, %v4249, 0
      %v4272 = vsel %vm210, %v4251, 0
      %v4275 = vsel %vm210, %v4253, 0
      %v4278 = vsel %vm210, %v4255, 0
      %4280 = vmatprep.subr.bf16.mxu0 0
      %4281 = vmatpush1.bf16.xpose.msra.mxu0 %v4269
      %4282 = vmatprep.subr.bf16.mxu0 0
      %4283 = vmatpush1.bf16.xpose.msra.mxu0 %v4272
      %4284 = vmatprep.subr.bf16.mxu0 0
      %4285 = vmatpush1.bf16.xpose.msra.mxu0 %v4275
      %4286 = vmatprep.subr.bf16.mxu0 0
      %4287 = vmatpush1.bf16.xpose.msra.mxu0 %v4278
      %4288 = vmatprep.subr.bf16.mxu0 0
      %4289 = vmatpush1.bf16.xpose.msra.mxu0 0
      %4290 = vmatprep.subr.bf16.mxu0 0
      %4291 = vmatpush1.bf16.xpose.msra.mxu0 0
      %4292 = vmatprep.subr.bf16.mxu0 0
      %4293 = vmatpush1.bf16.xpose.msra.mxu0 0
      %4294 = vmatprep.subr.bf16.mxu0 0
      %4295 = vmatpush1.bf16.xpose.msra.mxu0 0
      %4296 = vmatprep.subr.bf16.mxu0 0
      %4297 = vmatpush1.bf16.xpose.msra.mxu0 0
      %4298 = vmatprep.subr.bf16.mxu0 0
      %4299 = vmatpush1.bf16.xpose.msra.mxu0 0
      %4300 = vmatprep.subr.bf16.mxu0 0
      %4301 = vmatpush1.bf16.xpose.msra.mxu0 0
      %4302 = vmatprep.subr.bf16.mxu0 0
      %4303 = vmatpush1.bf16.xpose.msra.mxu0 0
      %4304 = vmatprep.subr.bf16.mxu0 0
      %4305 = vmatpush1.bf16.xpose.msra.mxu0 0
      %4306 = vmatprep.subr.bf16.mxu0 0
      %4307 = vmatpush1.bf16.xpose.msra.mxu0 0
      %4308 = vmatprep.subr.bf16.mxu0 0
      %4309 = vmatpush1.bf16.xpose.msra.mxu0 0
      %4310 = vmatprep.subr.bf16.mxu0 0
      %4311 = vmatpush1.bf16.xpose.msra.mxu0 0
      %4312 = vmatprep.mubr.bf16.mxu0 0
      %4313 = vmatmul.mubr.bf16.gmra.mrb[0].mxu0 %v4257
      %v4314 = vpop.f32.mrb[0].mxu0
      %v4315 = vadd.f32 0.0, %v4314
      %v4316 = vpop.f32.mrb[0].mxu0
      %v4317 = vpop.f32.mrb[0].mxu0
      %v4318 = vadd.f32 0.0, %v4317
      %v4319 = vpop.f32.mrb[0].mxu0
      %4320 = vmatprep.mubr.bf16.mxu0 0
      %4321 = vmatmul.mubr.bf16.gmra.mrb[0].mxu0 %v4260
      %v4322 = vpop.f32.mrb[0].mxu0
      %v4323 = vadd.f32 0.0, %v4322
      %v4324 = vpop.f32.mrb[0].mxu0
      %v4325 = vpop.f32.mrb[0].mxu0
      %v4326 = vadd.f32 0.0, %v4325
      %v4327 = vpop.f32.mrb[0].mxu0
      %4328 = vmatprep.mubr.bf16.mxu0 0
      %4329 = vmatmul.mubr.bf16.gmra.mrb[0].mxu0 %v4263
      %v4330 = vpop.f32.mrb[0].mxu0
      %v4331 = vadd.f32 0.0, %v4330
      %v4332 = vpop.f32.mrb[0].mxu0
      %v4333 = vpop.f32.mrb[0].mxu0
      %v4334 = vadd.f32 0.0, %v4333
      %v4335 = vpop.f32.mrb[0].mxu0
      %4336 = vmatprep.mubr.bf16.mxu0 0
      %4337 = vmatmul.mubr.bf16.gmra.mrb[0].mxu0 %v4266
      %v4338 = vpop.f32.mrb[0].mxu0
      %v4339 = vadd.f32 0.0, %v4338
      %v4340 = vpop.f32.mrb[0].mxu0
      %v4341 = vpop.f32.mrb[0].mxu0
      %v4342 = vadd.f32 0.0, %v4341
      %v4343 = vpop.f32.mrb[0].mxu0
      %4344 = vdwg.mxu0
      %4349 = vrot.lane.b32.xlu0 %v3723, 64
      %v4350 = vpop.permute.xlu0 %4349
      %4351 = vrot.lane.b32.xlu0 %v3725, 64
      %v4352 = vpop.permute.xlu0 %4351
      %4353 = vrot.lane.b32.xlu0 %v3727, 64
      %v4354 = vpop.permute.xlu0 %4353
      %4355 = vrot.lane.b32.xlu0 %v3729, 64
      %v4356 = vpop.permute.xlu0 %4355
      %v4358 = vsel %vm210, %v3723, 0
      %v4361 = vsel %vm210, %v3725, 0
      %v4364 = vsel %vm210, %v3727, 0
      %v4367 = vsel %vm210, %v3729, 0
      %v4370 = vsel %vm210, %v4350, 0
      %v4373 = vsel %vm210, %v4352, 0
      %v4376 = vsel %vm210, %v4354, 0
      %v4379 = vsel %vm210, %v4356, 0
      %4381 = vmatprep.subr.bf16.mxu0 0
      %4382 = vmatpush1.bf16.xpose.msra.mxu0 %v4370
      %4383 = vmatprep.subr.bf16.mxu0 0
      %4384 = vmatpush1.bf16.xpose.msra.mxu0 %v4373
      %4385 = vmatprep.subr.bf16.mxu0 0
      %4386 = vmatpush1.bf16.xpose.msra.mxu0 %v4376
      %4387 = vmatprep.subr.bf16.mxu0 0
      %4388 = vmatpush1.bf16.xpose.msra.mxu0 %v4379
      %4389 = vmatprep.subr.bf16.mxu0 0
      %4390 = vmatpush1.bf16.xpose.msra.mxu0 0
      %4391 = vmatprep.subr.bf16.mxu0 0
      %4392 = vmatpush1.bf16.xpose.msra.mxu0 0
      %4393 = vmatprep.subr.bf16.mxu0 0
      %4394 = vmatpush1.bf16.xpose.msra.mxu0 0
      %4395 = vmatprep.subr.bf16.mxu0 0
      %4396 = vmatpush1.bf16.xpose.msra.mxu0 0
      %4397 = vmatprep.subr.bf16.mxu0 0
      %4398 = vmatpush1.bf16.xpose.msra.mxu0 0
      %4399 = vmatprep.subr.bf16.mxu0 0
      %4400 = vmatpush1.bf16.xpose.msra.mxu0 0
      %4401 = vmatprep.subr.bf16.mxu0 0
      %4402 = vmatpush1.bf16.xpose.msra.mxu0 0
      %4403 = vmatprep.subr.bf16.mxu0 0
      %4404 = vmatpush1.bf16.xpose.msra.mxu0 0
      %4405 = vmatprep.subr.bf16.mxu0 0
      %4406 = vmatpush1.bf16.xpose.msra.mxu0 0
      %4407 = vmatprep.subr.bf16.mxu0 0
      %4408 = vmatpush1.bf16.xpose.msra.mxu0 0
      %4409 = vmatprep.subr.bf16.mxu0 0
      %4410 = vmatpush1.bf16.xpose.msra.mxu0 0
      %4411 = vmatprep.subr.bf16.mxu0 0
      %4412 = vmatpush1.bf16.xpose.msra.mxu0 0
      %4413 = vmatprep.mubr.bf16.mxu0 0
      %4414 = vmatmul.mubr.bf16.gmra.mrb[0].mxu0 %v4358
      %v4415 = vpop.f32.mrb[0].mxu0
      %v4416 = vadd.f32 0.0, %v4415
      %v4417 = vpop.f32.mrb[0].mxu0
      %v4418 = vpop.f32.mrb[0].mxu0
      %v4419 = vadd.f32 0.0, %v4418
      %v4420 = vpop.f32.mrb[0].mxu0
      %4421 = vmatprep.mubr.bf16.mxu0 0
      %4422 = vmatmul.mubr.bf16.gmra.mrb[0].mxu0 %v4361
      %v4423 = vpop.f32.mrb[0].mxu0
      %v4424 = vadd.f32 0.0, %v4423
      %v4425 = vpop.f32.mrb[0].mxu0
      %v4426 = vpop.f32.mrb[0].mxu0
      %v4427 = vadd.f32 0.0, %v4426
      %v4428 = vpop.f32.mrb[0].mxu0
      %4429 = vmatprep.mubr.bf16.mxu0 0
      %4430 = vmatmul.mubr.bf16.gmra.mrb[0].mxu0 %v4364
      %v4431 = vpop.f32.mrb[0].mxu0
      %v4432 = vadd.f32 0.0, %v4431
      %v4433 = vpop.f32.mrb[0].mxu0
      %v4434 = vpop.f32.mrb[0].mxu0
      %v4435 = vadd.f32 0.0, %v4434
      %v4436 = vpop.f32.mrb[0].mxu0
      %4437 = vmatprep.mubr.bf16.mxu0 0
      %4438 = vmatmul.mubr.bf16.gmra.mrb[0].mxu0 %v4367
      %v4439 = vpop.f32.mrb[0].mxu0
      %v4440 = vadd.f32 0.0, %v4439
      %v4441 = vpop.f32.mrb[0].mxu0
      %v4442 = vpop.f32.mrb[0].mxu0
      %v4443 = vadd.f32 0.0, %v4442
      %v4444 = vpop.f32.mrb[0].mxu0
      %4445 = vdwg.mxu0
      %4450 = vrot.lane.b32.xlu0 %v3731, 64
      %v4451 = vpop.permute.xlu0 %4450
      %4452 = vrot.lane.b32.xlu0 %v3733, 64
      %v4453 = vpop.permute.xlu0 %4452
      %4454 = vrot.lane.b32.xlu0 %v3735, 64
      %v4455 = vpop.permute.xlu0 %4454
      %4456 = vrot.lane.b32.xlu0 %v3737, 64
      %v4457 = vpop.permute.xlu0 %4456
      %v4459 = vsel %vm210, %v3731, 0
      %v4462 = vsel %vm210, %v3733, 0
      %v4465 = vsel %vm210, %v3735, 0
      %v4468 = vsel %vm210, %v3737, 0
      %v4471 = vsel %vm210, %v4451, 0
      %v4474 = vsel %vm210, %v4453, 0
      %v4477 = vsel %vm210, %v4455, 0
      %v4480 = vsel %vm210, %v4457, 0
      %4482 = vmatprep.subr.bf16.mxu0 0
      %4483 = vmatpush1.bf16.xpose.msra.mxu0 %v4471
      %4484 = vmatprep.subr.bf16.mxu0 0
      %4485 = vmatpush1.bf16.xpose.msra.mxu0 %v4474
      %4486 = vmatprep.subr.bf16.mxu0 0
      %4487 = vmatpush1.bf16.xpose.msra.mxu0 %v4477
      %4488 = vmatprep.subr.bf16.mxu0 0
      %4489 = vmatpush1.bf16.xpose.msra.mxu0 %v4480
      %4490 = vmatprep.subr.bf16.mxu0 0
      %4491 = vmatpush1.bf16.xpose.msra.mxu0 0
      %4492 = vmatprep.subr.bf16.mxu0 0
      %4493 = vmatpush1.bf16.xpose.msra.mxu0 0
      %4494 = vmatprep.subr.bf16.mxu0 0
      %4495 = vmatpush1.bf16.xpose.msra.mxu0 0
      %4496 = vmatprep.subr.bf16.mxu0 0
      %4497 = vmatpush1.bf16.xpose.msra.mxu0 0
      %4498 = vmatprep.subr.bf16.mxu0 0
      %4499 = vmatpush1.bf16.xpose.msra.mxu0 0
      %4500 = vmatprep.subr.bf16.mxu0 0
      %4501 = vmatpush1.bf16.xpose.msra.mxu0 0
      %4502 = vmatprep.subr.bf16.mxu0 0
      %4503 = vmatpush1.bf16.xpose.msra.mxu0 0
      %4504 = vmatprep.subr.bf16.mxu0 0
      %4505 = vmatpush1.bf16.xpose.msra.mxu0 0
      %4506 = vmatprep.subr.bf16.mxu0 0
      %4507 = vmatpush1.bf16.xpose.msra.mxu0 0
      %4508 = vmatprep.subr.bf16.mxu0 0
      %4509 = vmatpush1.bf16.xpose.msra.mxu0 0
      %4510 = vmatprep.subr.bf16.mxu0 0
      %4511 = vmatpush1.bf16.xpose.msra.mxu0 0
      %4512 = vmatprep.subr.bf16.mxu0 0
      %4513 = vmatpush1.bf16.xpose.msra.mxu0 0
      %4514 = vmatprep.mubr.bf16.mxu0 0
      %4515 = vmatmul.mubr.bf16.gmra.mrb[0].mxu0 %v4459
      %v4516 = vpop.f32.mrb[0].mxu0
      %v4517 = vadd.f32 0.0, %v4516
      %v4518 = vpop.f32.mrb[0].mxu0
      %v4519 = vpop.f32.mrb[0].mxu0
      %v4520 = vadd.f32 0.0, %v4519
      %v4521 = vpop.f32.mrb[0].mxu0
      %4522 = vmatprep.mubr.bf16.mxu0 0
      %4523 = vmatmul.mubr.bf16.gmra.mrb[0].mxu0 %v4462
      %v4524 = vpop.f32.mrb[0].mxu0
      %v4525 = vadd.f32 0.0, %v4524
      %v4526 = vpop.f32.mrb[0].mxu0
      %v4527 = vpop.f32.mrb[0].mxu0
      %v4528 = vadd.f32 0.0, %v4527
      %v4529 = vpop.f32.mrb[0].mxu0
      %4530 = vmatprep.mubr.bf16.mxu0 0
      %4531 = vmatmul.mubr.bf16.gmra.mrb[0].mxu0 %v4465
      %v4532 = vpop.f32.mrb[0].mxu0
      %v4533 = vadd.f32 0.0, %v4532
      %v4534 = vpop.f32.mrb[0].mxu0
      %v4535 = vpop.f32.mrb[0].mxu0
      %v4536 = vadd.f32 0.0, %v4535
      %v4537 = vpop.f32.mrb[0].mxu0
      %4538 = vmatprep.mubr.bf16.mxu0 0
      %4539 = vmatmul.mubr.bf16.gmra.mrb[0].mxu0 %v4468
      %v4540 = vpop.f32.mrb[0].mxu0
      %v4541 = vadd.f32 0.0, %v4540
      %v4542 = vpop.f32.mrb[0].mxu0
      %v4543 = vpop.f32.mrb[0].mxu0
      %v4544 = vadd.f32 0.0, %v4543
      %v4545 = vpop.f32.mrb[0].mxu0
      %4546 = vdwg.mxu0
      %v4547 = vmul.f32 %v3810, 0.125
      %v4548 = vmul.f32 %v3813, 0.125
      %v4549 = vmul.f32 %v3818, 0.125
      %v4550 = vmul.f32 %v3821, 0.125
      %v4551 = vmul.f32 %v3826, 0.125
      %v4552 = vmul.f32 %v3829, 0.125
      %v4553 = vmul.f32 %v3834, 0.125
      %v4554 = vmul.f32 %v3837, 0.125
      %v4555 = vmul.f32 %v3911, 0.125
      %v4556 = vmul.f32 %v3914, 0.125
      %v4557 = vmul.f32 %v3919, 0.125
      %v4558 = vmul.f32 %v3922, 0.125
      %v4559 = vmul.f32 %v3927, 0.125
      %v4560 = vmul.f32 %v3930, 0.125
      %v4561 = vmul.f32 %v3935, 0.125
      %v4562 = vmul.f32 %v3938, 0.125
      %v4563 = vmul.f32 %v4012, 0.125
      %v4564 = vmul.f32 %v4015, 0.125
      %v4565 = vmul.f32 %v4020, 0.125
      %v4566 = vmul.f32 %v4023, 0.125
      %v4567 = vmul.f32 %v4028, 0.125
      %v4568 = vmul.f32 %v4031, 0.125
      %v4569 = vmul.f32 %v4036, 0.125
      %v4570 = vmul.f32 %v4039, 0.125
      %v4571 = vmul.f32 %v4113, 0.125
      %v4572 = vmul.f32 %v4116, 0.125
      %v4573 = vmul.f32 %v4121, 0.125
      %v4574 = vmul.f32 %v4124, 0.125
      %v4575 = vmul.f32 %v4129, 0.125
      %v4576 = vmul.f32 %v4132, 0.125
      %v4577 = vmul.f32 %v4137, 0.125
      %v4578 = vmul.f32 %v4140, 0.125
      %v4579 = vmul.f32 %v4214, 0.125
      %v4580 = vmul.f32 %v4217, 0.125
      %v4581 = vmul.f32 %v4222, 0.125
      %v4582 = vmul.f32 %v4225, 0.125
      %v4583 = vmul.f32 %v4230, 0.125
      %v4584 = vmul.f32 %v4233, 0.125
      %v4585 = vmul.f32 %v4238, 0.125
      %v4586 = vmul.f32 %v4241, 0.125
      %v4587 = vmul.f32 %v4315, 0.125
      %v4588 = vmul.f32 %v4318, 0.125
      %v4589 = vmul.f32 %v4323, 0.125
      %v4590 = vmul.f32 %v4326, 0.125
      %v4591 = vmul.f32 %v4331, 0.125
      %v4592 = vmul.f32 %v4334, 0.125
      %v4593 = vmul.f32 %v4339, 0.125
      %v4594 = vmul.f32 %v4342, 0.125
      %v4595 = vmul.f32 %v4416, 0.125
      %v4596 = vmul.f32 %v4419, 0.125
      %v4597 = vmul.f32 %v4424, 0.125
      %v4598 = vmul.f32 %v4427, 0.125
      %v4599 = vmul.f32 %v4432, 0.125
      %v4600 = vmul.f32 %v4435, 0.125
      %v4601 = vmul.f32 %v4440, 0.125
      %v4602 = vmul.f32 %v4443, 0.125
      %v4603 = vmul.f32 %v4517, 0.125
      %v4604 = vmul.f32 %v4520, 0.125
      %v4605 = vmul.f32 %v4525, 0.125
      %v4606 = vmul.f32 %v4528, 0.125
      %v4607 = vmul.f32 %v4533, 0.125
      %v4608 = vmul.f32 %v4536, 0.125
      %v4609 = vmul.f32 %v4541, 0.125
      %v4610 = vmul.f32 %v4544, 0.125
      %v4611 = vld [vmem:[%s1] sm:$0xff]
      %v4612 = vld [vmem:[%s1 + $0x8] sm:$0xff]
      %v4613 = vld [vmem:[%s1 + $0x10] sm:$0xff]
      %v4614 = vld [vmem:[%s1 + $0x18] sm:$0xff]
      %v4615 = vld [vmem:[%s1 + $0x20] sm:$0xff]
      %v4616 = vld [vmem:[%s1 + $0x28] sm:$0xff]
      %v4617 = vld [vmem:[%s1 + $0x30] sm:$0xff]
      %v4618 = vld [vmem:[%s1 + $0x38] sm:$0xff]
      %v4619 = vadd.f32 %v4547, %v4611
      %v4620 = vadd.f32 %v4548, %v4612
      %v4621 = vadd.f32 %v4549, %v4613
      %v4622 = vadd.f32 %v4550, %v4614
      %v4623 = vadd.f32 %v4551, %v4615
      %v4624 = vadd.f32 %v4552, %v4616
      %v4625 = vadd.f32 %v4553, %v4617
      %v4626 = vadd.f32 %v4554, %v4618
      %v4627 = vadd.f32 %v4555, %v4611
      %v4628 = vadd.f32 %v4556, %v4612
      %v4629 = vadd.f32 %v4557, %v4613
      %v4630 = vadd.f32 %v4558, %v4614
      %v4631 = vadd.f32 %v4559, %v4615
      %v4632 = vadd.f32 %v4560, %v4616
      %v4633 = vadd.f32 %v4561, %v4617
      %v4634 = vadd.f32 %v4562, %v4618
      %v4635 = vadd.f32 %v4563, %v4611
      %v4636 = vadd.f32 %v4564, %v4612
      %v4637 = vadd.f32 %v4565, %v4613
      %v4638 = vadd.f32 %v4566, %v4614
      %v4639 = vadd.f32 %v4567, %v4615
      %v4640 = vadd.f32 %v4568, %v4616
      %v4641 = vadd.f32 %v4569, %v4617
      %v4642 = vadd.f32 %v4570, %v4618
      %v4643 = vadd.f32 %v4571, %v4611
      %v4644 = vadd.f32 %v4572, %v4612
      %v4645 = vadd.f32 %v4573, %v4613
      %v4646 = vadd.f32 %v4574, %v4614
      %v4647 = vadd.f32 %v4575, %v4615
      %v4648 = vadd.f32 %v4576, %v4616
      %v4649 = vadd.f32 %v4577, %v4617
      %v4650 = vadd.f32 %v4578, %v4618
      %v4651 = vadd.f32 %v4579, %v4611
      %v4652 = vadd.f32 %v4580, %v4612
      %v4653 = vadd.f32 %v4581, %v4613
      %v4654 = vadd.f32 %v4582, %v4614
      %v4655 = vadd.f32 %v4583, %v4615
      %v4656 = vadd.f32 %v4584, %v4616
      %v4657 = vadd.f32 %v4585, %v4617
      %v4658 = vadd.f32 %v4586, %v4618
      %v4659 = vadd.f32 %v4587, %v4611
      %v4660 = vadd.f32 %v4588, %v4612
      %v4661 = vadd.f32 %v4589, %v4613
      %v4662 = vadd.f32 %v4590, %v4614
      %v4663 = vadd.f32 %v4591, %v4615
      %v4664 = vadd.f32 %v4592, %v4616
      %v4665 = vadd.f32 %v4593, %v4617
      %v4666 = vadd.f32 %v4594, %v4618
      %v4667 = vadd.f32 %v4595, %v4611
      %v4668 = vadd.f32 %v4596, %v4612
      %v4669 = vadd.f32 %v4597, %v4613
      %v4670 = vadd.f32 %v4598, %v4614
      %v4671 = vadd.f32 %v4599, %v4615
      %v4672 = vadd.f32 %v4600, %v4616
      %v4673 = vadd.f32 %v4601, %v4617
      %v4674 = vadd.f32 %v4602, %v4618
      %v4675 = vadd.f32 %v4603, %v4611
      %v4676 = vadd.f32 %v4604, %v4612
      %v4677 = vadd.f32 %v4605, %v4613
      %v4678 = vadd.f32 %v4606, %v4614
      %v4679 = vadd.f32 %v4607, %v4615
      %v4680 = vadd.f32 %v4608, %v4616
      %v4681 = vadd.f32 %v4609, %v4617
      %v4682 = vadd.f32 %v4610, %v4618
      %v4683 = vsel %vm210, %v4619, -inf
      %4684 = vmax.xlane.f32.xlu0 %v4683
      %v4685 = vpop.xlane.xlu0 %4684
      %v4686 = vsel %vm210, %v4620, -inf
      %4687 = vmax.xlane.f32.xlu0 %v4686
      %v4688 = vpop.xlane.xlu0 %4687
      %v4689 = vsel %vm210, %v4621, -inf
      %4690 = vmax.xlane.f32.xlu0 %v4689
      %v4691 = vpop.xlane.xlu0 %4690
      %v4692 = vsel %vm210, %v4622, -inf
      %4693 = vmax.xlane.f32.xlu0 %v4692
      %v4694 = vpop.xlane.xlu0 %4693
      %v4695 = vsel %vm210, %v4623, -inf
      %4696 = vmax.xlane.f32.xlu0 %v4695
      %v4697 = vpop.xlane.xlu0 %4696
      %v4698 = vsel %vm210, %v4624, -inf
      %4699 = vmax.xlane.f32.xlu0 %v4698
      %v4700 = vpop.xlane.xlu0 %4699
      %v4701 = vsel %vm210, %v4625, -inf
      %4702 = vmax.xlane.f32.xlu0 %v4701
      %v4703 = vpop.xlane.xlu0 %4702
      %v4704 = vsel %vm210, %v4626, -inf
      %4705 = vmax.xlane.f32.xlu0 %v4704
      %v4706 = vpop.xlane.xlu0 %4705
      %v4707 = vsel %vm210, %v4627, -inf
      %4708 = vmax.xlane.f32.xlu0 %v4707
      %v4709 = vpop.xlane.xlu0 %4708
      %v4710 = vsel %vm210, %v4628, -inf
      %4711 = vmax.xlane.f32.xlu0 %v4710
      %v4712 = vpop.xlane.xlu0 %4711
      %v4713 = vsel %vm210, %v4629, -inf
      %4714 = vmax.xlane.f32.xlu0 %v4713
      %v4715 = vpop.xlane.xlu0 %4714
      %v4716 = vsel %vm210, %v4630, -inf
      %4717 = vmax.xlane.f32.xlu0 %v4716
      %v4718 = vpop.xlane.xlu0 %4717
      %v4719 = vsel %vm210, %v4631, -inf
      %4720 = vmax.xlane.f32.xlu0 %v4719
      %v4721 = vpop.xlane.xlu0 %4720
      %v4722 = vsel %vm210, %v4632, -inf
      %4723 = vmax.xlane.f32.xlu0 %v4722
      %v4724 = vpop.xlane.xlu0 %4723
      %v4725 = vsel %vm210, %v4633, -inf
      %4726 = vmax.xlane.f32.xlu0 %v4725
      %v4727 = vpop.xlane.xlu0 %4726
      %v4728 = vsel %vm210, %v4634, -inf
      %4729 = vmax.xlane.f32.xlu0 %v4728
      %v4730 = vpop.xlane.xlu0 %4729
      %v4731 = vsel %vm210, %v4635, -inf
      %4732 = vmax.xlane.f32.xlu0 %v4731
      %v4733 = vpop.xlane.xlu0 %4732
      %v4734 = vsel %vm210, %v4636, -inf
      %4735 = vmax.xlane.f32.xlu0 %v4734
      %v4736 = vpop.xlane.xlu0 %4735
      %v4737 = vsel %vm210, %v4637, -inf
      %4738 = vmax.xlane.f32.xlu0 %v4737
      %v4739 = vpop.xlane.xlu0 %4738
      %v4740 = vsel %vm210, %v4638, -inf
      %4741 = vmax.xlane.f32.xlu0 %v4740
      %v4742 = vpop.xlane.xlu0 %4741
      %v4743 = vsel %vm210, %v4639, -inf
      %4744 = vmax.xlane.f32.xlu0 %v4743
      %v4745 = vpop.xlane.xlu0 %4744
      %v4746 = vsel %vm210, %v4640, -inf
      %4747 = vmax.xlane.f32.xlu0 %v4746
      %v4748 = vpop.xlane.xlu0 %4747
      %v4749 = vsel %vm210, %v4641, -inf
      %4750 = vmax.xlane.f32.xlu0 %v4749
      %v4751 = vpop.xlane.xlu0 %4750
      %v4752 = vsel %vm210, %v4642, -inf
      %4753 = vmax.xlane.f32.xlu0 %v4752
      %v4754 = vpop.xlane.xlu0 %4753
      %v4755 = vsel %vm210, %v4643, -inf
      %4756 = vmax.xlane.f32.xlu0 %v4755
      %v4757 = vpop.xlane.xlu0 %4756
      %v4758 = vsel %vm210, %v4644, -inf
      %4759 = vmax.xlane.f32.xlu0 %v4758
      %v4760 = vpop.xlane.xlu0 %4759
      %v4761 = vsel %vm210, %v4645, -inf
      %4762 = vmax.xlane.f32.xlu0 %v4761
      %v4763 = vpop.xlane.xlu0 %4762
      %v4764 = vsel %vm210, %v4646, -inf
      %4765 = vmax.xlane.f32.xlu0 %v4764
      %v4766 = vpop.xlane.xlu0 %4765
      %v4767 = vsel %vm210, %v4647, -inf
      %4768 = vmax.xlane.f32.xlu0 %v4767
      %v4769 = vpop.xlane.xlu0 %4768
      %v4770 = vsel %vm210, %v4648, -inf
      %4771 = vmax.xlane.f32.xlu0 %v4770
      %v4772 = vpop.xlane.xlu0 %4771
      %v4773 = vsel %vm210, %v4649, -inf
      %4774 = vmax.xlane.f32.xlu0 %v4773
      %v4775 = vpop.xlane.xlu0 %4774
      %v4776 = vsel %vm210, %v4650, -inf
      %4777 = vmax.xlane.f32.xlu0 %v4776
      %v4778 = vpop.xlane.xlu0 %4777
      %v4779 = vsel %vm210, %v4651, -inf
      %4780 = vmax.xlane.f32.xlu0 %v4779
      %v4781 = vpop.xlane.xlu0 %4780
      %v4782 = vsel %vm210, %v4652, -inf
      %4783 = vmax.xlane.f32.xlu0 %v4782
      %v4784 = vpop.xlane.xlu0 %4783
      %v4785 = vsel %vm210, %v4653, -inf
      %4786 = vmax.xlane.f32.xlu0 %v4785
      %v4787 = vpop.xlane.xlu0 %4786
      %v4788 = vsel %vm210, %v4654, -inf
      %4789 = vmax.xlane.f32.xlu0 %v4788
      %v4790 = vpop.xlane.xlu0 %4789
      %v4791 = vsel %vm210, %v4655, -inf
      %4792 = vmax.xlane.f32.xlu0 %v4791
      %v4793 = vpop.xlane.xlu0 %4792
      %v4794 = vsel %vm210, %v4656, -inf
      %4795 = vmax.xlane.f32.xlu0 %v4794
      %v4796 = vpop.xlane.xlu0 %4795
      %v4797 = vsel %vm210, %v4657, -inf
      %4798 = vmax.xlane.f32.xlu0 %v4797
      %v4799 = vpop.xlane.xlu0 %4798
      %v4800 = vsel %vm210, %v4658, -inf
      %4801 = vmax.xlane.f32.xlu0 %v4800
      %v4802 = vpop.xlane.xlu0 %4801
      %v4803 = vsel %vm210, %v4659, -inf
      %4804 = vmax.xlane.f32.xlu0 %v4803
      %v4805 = vpop.xlane.xlu0 %4804
      %v4806 = vsel %vm210, %v4660, -inf
      %4807 = vmax.xlane.f32.xlu0 %v4806
      %v4808 = vpop.xlane.xlu0 %4807
      %v4809 = vsel %vm210, %v4661, -inf
      %4810 = vmax.xlane.f32.xlu0 %v4809
      %v4811 = vpop.xlane.xlu0 %4810
      %v4812 = vsel %vm210, %v4662, -inf
      %4813 = vmax.xlane.f32.xlu0 %v4812
      %v4814 = vpop.xlane.xlu0 %4813
      %v4815 = vsel %vm210, %v4663, -inf
      %4816 = vmax.xlane.f32.xlu0 %v4815
      %v4817 = vpop.xlane.xlu0 %4816
      %v4818 = vsel %vm210, %v4664, -inf
      %4819 = vmax.xlane.f32.xlu0 %v4818
      %v4820 = vpop.xlane.xlu0 %4819
      %v4821 = vsel %vm210, %v4665, -inf
      %4822 = vmax.xlane.f32.xlu0 %v4821
      %v4823 = vpop.xlane.xlu0 %4822
      %v4824 = vsel %vm210, %v4666, -inf
      %4825 = vmax.xlane.f32.xlu0 %v4824
      %v4826 = vpop.xlane.xlu0 %4825
      %v4827 = vsel %vm210, %v4667, -inf
      %4828 = vmax.xlane.f32.xlu0 %v4827
      %v4829 = vpop.xlane.xlu0 %4828
      %v4830 = vsel %vm210, %v4668, -inf
      %4831 = vmax.xlane.f32.xlu0 %v4830
      %v4832 = vpop.xlane.xlu0 %4831
      %v4833 = vsel %vm210, %v4669, -inf
      %4834 = vmax.xlane.f32.xlu0 %v4833
      %v4835 = vpop.xlane.xlu0 %4834
      %v4836 = vsel %vm210, %v4670, -inf
      %4837 = vmax.xlane.f32.xlu0 %v4836
      %v4838 = vpop.xlane.xlu0 %4837
      %v4839 = vsel %vm210, %v4671, -inf
      %4840 = vmax.xlane.f32.xlu0 %v4839
      %v4841 = vpop.xlane.xlu0 %4840
      %v4842 = vsel %vm210, %v4672, -inf
      %4843 = vmax.xlane.f32.xlu0 %v4842
      %v4844 = vpop.xlane.xlu0 %4843
      %v4845 = vsel %vm210, %v4673, -inf
      %4846 = vmax.xlane.f32.xlu0 %v4845
      %v4847 = vpop.xlane.xlu0 %4846
      %v4848 = vsel %vm210, %v4674, -inf
      %4849 = vmax.xlane.f32.xlu0 %v4848
      %v4850 = vpop.xlane.xlu0 %4849
      %v4851 = vsel %vm210, %v4675, -inf
      %4852 = vmax.xlane.f32.xlu0 %v4851
      %v4853 = vpop.xlane.xlu0 %4852
      %v4854 = vsel %vm210, %v4676, -inf
      %4855 = vmax.xlane.f32.xlu0 %v4854
      %v4856 = vpop.xlane.xlu0 %4855
      %v4857 = vsel %vm210, %v4677, -inf
      %4858 = vmax.xlane.f32.xlu0 %v4857
      %v4859 = vpop.xlane.xlu0 %4858
      %v4860 = vsel %vm210, %v4678, -inf
      %4861 = vmax.xlane.f32.xlu0 %v4860
      %v4862 = vpop.xlane.xlu0 %4861
      %v4863 = vsel %vm210, %v4679, -inf
      %4864 = vmax.xlane.f32.xlu0 %v4863
      %v4865 = vpop.xlane.xlu0 %4864
      %v4866 = vsel %vm210, %v4680, -inf
      %4867 = vmax.xlane.f32.xlu0 %v4866
      %v4868 = vpop.xlane.xlu0 %4867
      %v4869 = vsel %vm210, %v4681, -inf
      %4870 = vmax.xlane.f32.xlu0 %v4869
      %v4871 = vpop.xlane.xlu0 %4870
      %v4872 = vsel %vm210, %v4682, -inf
      %4873 = vmax.xlane.f32.xlu0 %v4872
      %v4874 = vpop.xlane.xlu0 %4873
      %v4875 = vsub.f32 %v4619, %v4685
      %v4876 = vsub.f32 %v4620, %v4688
      %v4877 = vsub.f32 %v4621, %v4691
      %v4878 = vsub.f32 %v4622, %v4694
      %v4879 = vsub.f32 %v4623, %v4697
      %v4880 = vsub.f32 %v4624, %v4700
      %v4881 = vsub.f32 %v4625, %v4703
      %v4882 = vsub.f32 %v4626, %v4706
      %v4883 = vsub.f32 %v4627, %v4709
      %v4884 = vsub.f32 %v4628, %v4712
      %v4885 = vsub.f32 %v4629, %v4715
      %v4886 = vsub.f32 %v4630, %v4718
      %v4887 = vsub.f32 %v4631, %v4721
      %v4888 = vsub.f32 %v4632, %v4724
      %v4889 = vsub.f32 %v4633, %v4727
      %v4890 = vsub.f32 %v4634, %v4730
      %v4891 = vsub.f32 %v4635, %v4733
      %v4892 = vsub.f32 %v4636, %v4736
      %v4893 = vsub.f32 %v4637, %v4739
      %v4894 = vsub.f32 %v4638, %v4742
      %v4895 = vsub.f32 %v4639, %v4745
      %v4896 = vsub.f32 %v4640, %v4748
      %v4897 = vsub.f32 %v4641, %v4751
      %v4898 = vsub.f32 %v4642, %v4754
      %v4899 = vsub.f32 %v4643, %v4757
      %v4900 = vsub.f32 %v4644, %v4760
      %v4901 = vsub.f32 %v4645, %v4763
      %v4902 = vsub.f32 %v4646, %v4766
      %v4903 = vsub.f32 %v4647, %v4769
      %v4904 = vsub.f32 %v4648, %v4772
      %v4905 = vsub.f32 %v4649, %v4775
      %v4906 = vsub.f32 %v4650, %v4778
      %v4907 = vsub.f32 %v4651, %v4781
      %v4908 = vsub.f32 %v4652, %v4784
      %v4909 = vsub.f32 %v4653, %v4787
      %v4910 = vsub.f32 %v4654, %v4790
      %v4911 = vsub.f32 %v4655, %v4793
      %v4912 = vsub.f32 %v4656, %v4796
      %v4913 = vsub.f32 %v4657, %v4799
      %v4914 = vsub.f32 %v4658, %v4802
      %v4915 = vsub.f32 %v4659, %v4805
      %v4916 = vsub.f32 %v4660, %v4808
      %v4917 = vsub.f32 %v4661, %v4811
      %v4918 = vsub.f32 %v4662, %v4814
      %v4919 = vsub.f32 %v4663, %v4817
      %v4920 = vsub.f32 %v4664, %v4820
      %v4921 = vsub.f32 %v4665, %v4823
      %v4922 = vsub.f32 %v4666, %v4826
      %v4923 = vsub.f32 %v4667, %v4829
      %v4924 = vsub.f32 %v4668, %v4832
      %v4925 = vsub.f32 %v4669, %v4835
      %v4926 = vsub.f32 %v4670, %v4838
      %v4927 = vsub.f32 %v4671, %v4841
      %v4928 = vsub.f32 %v4672, %v4844
      %v4929 = vsub.f32 %v4673, %v4847
      %v4930 = vsub.f32 %v4674, %v4850
      %v4931 = vsub.f32 %v4675, %v4853
      %v4932 = vsub.f32 %v4676, %v4856
      %v4933 = vsub.f32 %v4677, %v4859
      %v4934 = vsub.f32 %v4678, %v4862
      %v4935 = vsub.f32 %v4679, %v4865
      %v4936 = vsub.f32 %v4680, %v4868
      %v4937 = vsub.f32 %v4681, %v4871
      %v4938 = vsub.f32 %v4682, %v4874
      %v4939 = vmul.f32 %v4875, 1.442695
      %v4940 = vpow.pop %v4939
      %v4941 = vmul.f32 %v4876, 1.442695
      %v4942 = vpow.pop %v4941
      %v4943 = vmul.f32 %v4877, 1.442695
      %v4944 = vpow.pop %v4943
      %v4945 = vmul.f32 %v4878, 1.442695
      %v4946 = vpow.pop %v4945
      %v4947 = vmul.f32 %v4879, 1.442695
      %v4948 = vpow.pop %v4947
      %v4949 = vmul.f32 %v4880, 1.442695
      %v4950 = vpow.pop %v4949
      %v4951 = vmul.f32 %v4881, 1.442695
      %v4952 = vpow.pop %v4951
      %v4953 = vmul.f32 %v4882, 1.442695
      %v4954 = vpow.pop %v4953
      %v4955 = vmul.f32 %v4883, 1.442695
      %v4956 = vpow.pop %v4955
      %v4957 = vmul.f32 %v4884, 1.442695
      %v4958 = vpow.pop %v4957
      %v4959 = vmul.f32 %v4885, 1.442695
      %v4960 = vpow.pop %v4959
      %v4961 = vmul.f32 %v4886, 1.442695
      %v4962 = vpow.pop %v4961
      %v4963 = vmul.f32 %v4887, 1.442695
      %v4964 = vpow.pop %v4963
      %v4965 = vmul.f32 %v4888, 1.442695
      %v4966 = vpow.pop %v4965
      %v4967 = vmul.f32 %v4889, 1.442695
      %v4968 = vpow.pop %v4967
      %v4969 = vmul.f32 %v4890, 1.442695
      %v4970 = vpow.pop %v4969
      %v4971 = vmul.f32 %v4891, 1.442695
      %v4972 = vpow.pop %v4971
      %v4973 = vmul.f32 %v4892, 1.442695
      %v4974 = vpow.pop %v4973
      %v4975 = vmul.f32 %v4893, 1.442695
      %v4976 = vpow.pop %v4975
      %v4977 = vmul.f32 %v4894, 1.442695
      %v4978 = vpow.pop %v4977
      %v4979 = vmul.f32 %v4895, 1.442695
      %v4980 = vpow.pop %v4979
      %v4981 = vmul.f32 %v4896, 1.442695
      %v4982 = vpow.pop %v4981
      %v4983 = vmul.f32 %v4897, 1.442695
      %v4984 = vpow.pop %v4983
      %v4985 = vmul.f32 %v4898, 1.442695
      %v4986 = vpow.pop %v4985
      %v4987 = vmul.f32 %v4899, 1.442695
      %v4988 = vpow.pop %v4987
      %v4989 = vmul.f32 %v4900, 1.442695
      %v4990 = vpow.pop %v4989
      %v4991 = vmul.f32 %v4901, 1.442695
      %v4992 = vpow.pop %v4991
      %v4993 = vmul.f32 %v4902, 1.442695
      %v4994 = vpow.pop %v4993
      %v4995 = vmul.f32 %v4903, 1.442695
      %v4996 = vpow.pop %v4995
      %v4997 = vmul.f32 %v4904, 1.442695
      %v4998 = vpow.pop %v4997
      %v4999 = vmul.f32 %v4905, 1.442695
      %v5000 = vpow.pop %v4999
      %v5001 = vmul.f32 %v4906, 1.442695
      %v5002 = vpow.pop %v5001
      %v5003 = vmul.f32 %v4907, 1.442695
      %v5004 = vpow.pop %v5003
      %v5005 = vmul.f32 %v4908, 1.442695
      %v5006 = vpow.pop %v5005
      %v5007 = vmul.f32 %v4909, 1.442695
      %v5008 = vpow.pop %v5007
      %v5009 = vmul.f32 %v4910, 1.442695
      %v5010 = vpow.pop %v5009
      %v5011 = vmul.f32 %v4911, 1.442695
      %v5012 = vpow.pop %v5011
      %v5013 = vmul.f32 %v4912, 1.442695
      %v5014 = vpow.pop %v5013
      %v5015 = vmul.f32 %v4913, 1.442695
      %v5016 = vpow.pop %v5015
      %v5017 = vmul.f32 %v4914, 1.442695
      %v5018 = vpow.pop %v5017
      %v5019 = vmul.f32 %v4915, 1.442695
      %v5020 = vpow.pop %v5019
      %v5021 = vmul.f32 %v4916, 1.442695
      %v5022 = vpow.pop %v5021
      %v5023 = vmul.f32 %v4917, 1.442695
      %v5024 = vpow.pop %v5023
      %v5025 = vmul.f32 %v4918, 1.442695
      %v5026 = vpow.pop %v5025
      %v5027 = vmul.f32 %v4919, 1.442695
      %v5028 = vpow.pop %v5027
      %v5029 = vmul.f32 %v4920, 1.442695
      %v5030 = vpow.pop %v5029
      %v5031 = vmul.f32 %v4921, 1.442695
      %v5032 = vpow.pop %v5031
      %v5033 = vmul.f32 %v4922, 1.442695
      %v5034 = vpow.pop %v5033
      %v5035 = vmul.f32 %v4923, 1.442695
      %v5036 = vpow.pop %v5035
      %v5037 = vmul.f32 %v4924, 1.442695
      %v5038 = vpow.pop %v5037
      %v5039 = vmul.f32 %v4925, 1.442695
      %v5040 = vpow.pop %v5039
      %v5041 = vmul.f32 %v4926, 1.442695
      %v5042 = vpow.pop %v5041
      %v5043 = vmul.f32 %v4927, 1.442695
      %v5044 = vpow.pop %v5043
      %v5045 = vmul.f32 %v4928, 1.442695
      %v5046 = vpow.pop %v5045
      %v5047 = vmul.f32 %v4929, 1.442695
      %v5048 = vpow.pop %v5047
      %v5049 = vmul.f32 %v4930, 1.442695
      %v5050 = vpow.pop %v5049
      %v5051 = vmul.f32 %v4931, 1.442695
      %v5052 = vpow.pop %v5051
      %v5053 = vmul.f32 %v4932, 1.442695
      %v5054 = vpow.pop %v5053
      %v5055 = vmul.f32 %v4933, 1.442695
      %v5056 = vpow.pop %v5055
      %v5057 = vmul.f32 %v4934, 1.442695
      %v5058 = vpow.pop %v5057
      %v5059 = vmul.f32 %v4935, 1.442695
      %v5060 = vpow.pop %v5059
      %v5061 = vmul.f32 %v4936, 1.442695
      %v5062 = vpow.pop %v5061
      %v5063 = vmul.f32 %v4937, 1.442695
      %v5064 = vpow.pop %v5063
      %v5065 = vmul.f32 %v4938, 1.442695
      %v5066 = vpow.pop %v5065
      %v5067 = vsel %vm210, %v4940, 0.0
      %5068 = vadd.xlane.f32.xlu0 %v5067
      %v5069 = vpop.xlane.xlu0 %5068
      %v5070 = vsel %vm210, %v4942, 0.0
      %5071 = vadd.xlane.f32.xlu0 %v5070
      %v5072 = vpop.xlane.xlu0 %5071
      %v5073 = vsel %vm210, %v4944, 0.0
      %5074 = vadd.xlane.f32.xlu0 %v5073
      %v5075 = vpop.xlane.xlu0 %5074
      %v5076 = vsel %vm210, %v4946, 0.0
      %5077 = vadd.xlane.f32.xlu0 %v5076
      %v5078 = vpop.xlane.xlu0 %5077
      %v5079 = vsel %vm210, %v4948, 0.0
      %5080 = vadd.xlane.f32.xlu0 %v5079
      %v5081 = vpop.xlane.xlu0 %5080
      %v5082 = vsel %vm210, %v4950, 0.0
      %5083 = vadd.xlane.f32.xlu0 %v5082
      %v5084 = vpop.xlane.xlu0 %5083
      %v5085 = vsel %vm210, %v4952, 0.0
      %5086 = vadd.xlane.f32.xlu0 %v5085
      %v5087 = vpop.xlane.xlu0 %5086
      %v5088 = vsel %vm210, %v4954, 0.0
      %5089 = vadd.xlane.f32.xlu0 %v5088
      %v5090 = vpop.xlane.xlu0 %5089
      %v5091 = vsel %vm210, %v4956, 0.0
      %5092 = vadd.xlane.f32.xlu0 %v5091
      %v5093 = vpop.xlane.xlu0 %5092
      %v5094 = vsel %vm210, %v4958, 0.0
      %5095 = vadd.xlane.f32.xlu0 %v5094
      %v5096 = vpop.xlane.xlu0 %5095
      %v5097 = vsel %vm210, %v4960, 0.0
      %5098 = vadd.xlane.f32.xlu0 %v5097
      %v5099 = vpop.xlane.xlu0 %5098
      %v5100 = vsel %vm210, %v4962, 0.0
      %5101 = vadd.xlane.f32.xlu0 %v5100
      %v5102 = vpop.xlane.xlu0 %5101
      %v5103 = vsel %vm210, %v4964, 0.0
      %5104 = vadd.xlane.f32.xlu0 %v5103
      %v5105 = vpop.xlane.xlu0 %5104
      %v5106 = vsel %vm210, %v4966, 0.0
      %5107 = vadd.xlane.f32.xlu0 %v5106
      %v5108 = vpop.xlane.xlu0 %5107
      %v5109 = vsel %vm210, %v4968, 0.0
      %5110 = vadd.xlane.f32.xlu0 %v5109
      %v5111 = vpop.xlane.xlu0 %5110
      %v5112 = vsel %vm210, %v4970, 0.0
      %5113 = vadd.xlane.f32.xlu0 %v5112
      %v5114 = vpop.xlane.xlu0 %5113
      %v5115 = vsel %vm210, %v4972, 0.0
      %5116 = vadd.xlane.f32.xlu0 %v5115
      %v5117 = vpop.xlane.xlu0 %5116
      %v5118 = vsel %vm210, %v4974, 0.0
      %5119 = vadd.xlane.f32.xlu0 %v5118
      %v5120 = vpop.xlane.xlu0 %5119
      %v5121 = vsel %vm210, %v4976, 0.0
      %5122 = vadd.xlane.f32.xlu0 %v5121
      %v5123 = vpop.xlane.xlu0 %5122
      %v5124 = vsel %vm210, %v4978, 0.0
      %5125 = vadd.xlane.f32.xlu0 %v5124
      %v5126 = vpop.xlane.xlu0 %5125
      %v5127 = vsel %vm210, %v4980, 0.0
      %5128 = vadd.xlane.f32.xlu0 %v5127
      %v5129 = vpop.xlane.xlu0 %5128
      %v5130 = vsel %vm210, %v4982, 0.0
      %5131 = vadd.xlane.f32.xlu0 %v5130
      %v5132 = vpop.xlane.xlu0 %5131
      %v5133 = vsel %vm210, %v4984, 0.0
      %5134 = vadd.xlane.f32.xlu0 %v5133
      %v5135 = vpop.xlane.xlu0 %5134
      %v5136 = vsel %vm210, %v4986, 0.0
      %5137 = vadd.xlane.f32.xlu0 %v5136
      %v5138 = vpop.xlane.xlu0 %5137
      %v5139 = vsel %vm210, %v4988, 0.0
      %5140 = vadd.xlane.f32.xlu0 %v5139
      %v5141 = vpop.xlane.xlu0 %5140
      %v5142 = vsel %vm210, %v4990, 0.0
      %5143 = vadd.xlane.f32.xlu0 %v5142
      %v5144 = vpop.xlane.xlu0 %5143
      %v5145 = vsel %vm210, %v4992, 0.0
      %5146 = vadd.xlane.f32.xlu0 %v5145
      %v5147 = vpop.xlane.xlu0 %5146
      %v5148 = vsel %vm210, %v4994, 0.0
      %5149 = vadd.xlane.f32.xlu0 %v5148
      %v5150 = vpop.xlane.xlu0 %5149
      %v5151 = vsel %vm210, %v4996, 0.0
      %5152 = vadd.xlane.f32.xlu0 %v5151
      %v5153 = vpop.xlane.xlu0 %5152
      %v5154 = vsel %vm210, %v4998, 0.0
      %5155 = vadd.xlane.f32.xlu0 %v5154
      %v5156 = vpop.xlane.xlu0 %5155
      %v5157 = vsel %vm210, %v5000, 0.0
      %5158 = vadd.xlane.f32.xlu0 %v5157
      %v5159 = vpop.xlane.xlu0 %5158
      %v5160 = vsel %vm210, %v5002, 0.0
      %5161 = vadd.xlane.f32.xlu0 %v5160
      %v5162 = vpop.xlane.xlu0 %5161
      %v5163 = vsel %vm210, %v5004, 0.0
      %5164 = vadd.xlane.f32.xlu0 %v5163
      %v5165 = vpop.xlane.xlu0 %5164
      %v5166 = vsel %vm210, %v5006, 0.0
      %5167 = vadd.xlane.f32.xlu0 %v5166
      %v5168 = vpop.xlane.xlu0 %5167
      %v5169 = vsel %vm210, %v5008, 0.0
      %5170 = vadd.xlane.f32.xlu0 %v5169
      %v5171 = vpop.xlane.xlu0 %5170
      %v5172 = vsel %vm210, %v5010, 0.0
      %5173 = vadd.xlane.f32.xlu0 %v5172
      %v5174 = vpop.xlane.xlu0 %5173
      %v5175 = vsel %vm210, %v5012, 0.0
      %5176 = vadd.xlane.f32.xlu0 %v5175
      %v5177 = vpop.xlane.xlu0 %5176
      %v5178 = vsel %vm210, %v5014, 0.0
      %5179 = vadd.xlane.f32.xlu0 %v5178
      %v5180 = vpop.xlane.xlu0 %5179
      %v5181 = vsel %vm210, %v5016, 0.0
      %5182 = vadd.xlane.f32.xlu0 %v5181
      %v5183 = vpop.xlane.xlu0 %5182
      %v5184 = vsel %vm210, %v5018, 0.0
      %5185 = vadd.xlane.f32.xlu0 %v5184
      %v5186 = vpop.xlane.xlu0 %5185
      %v5187 = vsel %vm210, %v5020, 0.0
      %5188 = vadd.xlane.f32.xlu0 %v5187
      %v5189 = vpop.xlane.xlu0 %5188
      %v5190 = vsel %vm210, %v5022, 0.0
      %5191 = vadd.xlane.f32.xlu0 %v5190
      %v5192 = vpop.xlane.xlu0 %5191
      %v5193 = vsel %vm210, %v5024, 0.0
      %5194 = vadd.xlane.f32.xlu0 %v5193
      %v5195 = vpop.xlane.xlu0 %5194
      %v5196 = vsel %vm210, %v5026, 0.0
      %5197 = vadd.xlane.f32.xlu0 %v5196
      %v5198 = vpop.xlane.xlu0 %5197
      %v5199 = vsel %vm210, %v5028, 0.0
      %5200 = vadd.xlane.f32.xlu0 %v5199
      %v5201 = vpop.xlane.xlu0 %5200
      %v5202 = vsel %vm210, %v5030, 0.0
      %5203 = vadd.xlane.f32.xlu0 %v5202
      %v5204 = vpop.xlane.xlu0 %5203
      %v5205 = vsel %vm210, %v5032, 0.0
      %5206 = vadd.xlane.f32.xlu0 %v5205
      %v5207 = vpop.xlane.xlu0 %5206
      %v5208 = vsel %vm210, %v5034, 0.0
      %5209 = vadd.xlane.f32.xlu0 %v5208
      %v5210 = vpop.xlane.xlu0 %5209
      %v5211 = vsel %vm210, %v5036, 0.0
      %5212 = vadd.xlane.f32.xlu0 %v5211
      %v5213 = vpop.xlane.xlu0 %5212
      %v5214 = vsel %vm210, %v5038, 0.0
      %5215 = vadd.xlane.f32.xlu0 %v5214
      %v5216 = vpop.xlane.xlu0 %5215
      %v5217 = vsel %vm210, %v5040, 0.0
      %5218 = vadd.xlane.f32.xlu0 %v5217
      %v5219 = vpop.xlane.xlu0 %5218
      %v5220 = vsel %vm210, %v5042, 0.0
      %5221 = vadd.xlane.f32.xlu0 %v5220
      %v5222 = vpop.xlane.xlu0 %5221
      %v5223 = vsel %vm210, %v5044, 0.0
      %5224 = vadd.xlane.f32.xlu0 %v5223
      %v5225 = vpop.xlane.xlu0 %5224
      %v5226 = vsel %vm210, %v5046, 0.0
      %5227 = vadd.xlane.f32.xlu0 %v5226
      %v5228 = vpop.xlane.xlu0 %5227
      %v5229 = vsel %vm210, %v5048, 0.0
      %5230 = vadd.xlane.f32.xlu0 %v5229
      %v5231 = vpop.xlane.xlu0 %5230
      %v5232 = vsel %vm210, %v5050, 0.0
      %5233 = vadd.xlane.f32.xlu0 %v5232
      %v5234 = vpop.xlane.xlu0 %5233
      %v5235 = vsel %vm210, %v5052, 0.0
      %5236 = vadd.xlane.f32.xlu0 %v5235
      %v5237 = vpop.xlane.xlu0 %5236
      %v5238 = vsel %vm210, %v5054, 0.0
      %5239 = vadd.xlane.f32.xlu0 %v5238
      %v5240 = vpop.xlane.xlu0 %5239
      %v5241 = vsel %vm210, %v5056, 0.0
      %5242 = vadd.xlane.f32.xlu0 %v5241
      %v5243 = vpop.xlane.xlu0 %5242
      %v5244 = vsel %vm210, %v5058, 0.0
      %5245 = vadd.xlane.f32.xlu0 %v5244
      %v5246 = vpop.xlane.xlu0 %5245
      %v5247 = vsel %vm210, %v5060, 0.0
      %5248 = vadd.xlane.f32.xlu0 %v5247
      %v5249 = vpop.xlane.xlu0 %5248
      %v5250 = vsel %vm210, %v5062, 0.0
      %5251 = vadd.xlane.f32.xlu0 %v5250
      %v5252 = vpop.xlane.xlu0 %5251
      %v5253 = vsel %vm210, %v5064, 0.0
      %5254 = vadd.xlane.f32.xlu0 %v5253
      %v5255 = vpop.xlane.xlu0 %5254
      %v5256 = vsel %vm210, %v5066, 0.0
      %5257 = vadd.xlane.f32.xlu0 %v5256
      %v5258 = vpop.xlane.xlu0 %5257
      %v5259 = vrcp.pop %v5069
      %v5260 = vrcp.pop %v5072
      %v5261 = vrcp.pop %v5075
      %v5262 = vrcp.pop %v5078
      %v5263 = vrcp.pop %v5081
      %v5264 = vrcp.pop %v5084
      %v5265 = vrcp.pop %v5087
      %v5266 = vrcp.pop %v5090
      %v5267 = vrcp.pop %v5093
      %v5268 = vrcp.pop %v5096
      %v5269 = vrcp.pop %v5099
      %v5270 = vrcp.pop %v5102
      %v5271 = vrcp.pop %v5105
      %v5272 = vrcp.pop %v5108
      %v5273 = vrcp.pop %v5111
      %v5274 = vrcp.pop %v5114
      %v5275 = vrcp.pop %v5117
      %v5276 = vrcp.pop %v5120
      %v5277 = vrcp.pop %v5123
      %v5278 = vrcp.pop %v5126
      %v5279 = vrcp.pop %v5129
      %v5280 = vrcp.pop %v5132
      %v5281 = vrcp.pop %v5135
      %v5282 = vrcp.pop %v5138
      %v5283 = vrcp.pop %v5141
      %v5284 = vrcp.pop %v5144
      %v5285 = vrcp.pop %v5147
      %v5286 = vrcp.pop %v5150
      %v5287 = vrcp.pop %v5153
      %v5288 = vrcp.pop %v5156
      %v5289 = vrcp.pop %v5159
      %v5290 = vrcp.pop %v5162
      %v5291 = vrcp.pop %v5165
      %v5292 = vrcp.pop %v5168
      %v5293 = vrcp.pop %v5171
      %v5294 = vrcp.pop %v5174
      %v5295 = vrcp.pop %v5177
      %v5296 = vrcp.pop %v5180
      %v5297 = vrcp.pop %v5183
      %v5298 = vrcp.pop %v5186
      %v5299 = vrcp.pop %v5189
      %v5300 = vrcp.pop %v5192
      %v5301 = vrcp.pop %v5195
      %v5302 = vrcp.pop %v5198
      %v5303 = vrcp.pop %v5201
      %v5304 = vrcp.pop %v5204
      %v5305 = vrcp.pop %v5207
      %v5306 = vrcp.pop %v5210
      %v5307 = vrcp.pop %v5213
      %v5308 = vrcp.pop %v5216
      %v5309 = vrcp.pop %v5219
      %v5310 = vrcp.pop %v5222
      %v5311 = vrcp.pop %v5225
      %v5312 = vrcp.pop %v5228
      %v5313 = vrcp.pop %v5231
      %v5314 = vrcp.pop %v5234
      %v5315 = vrcp.pop %v5237
      %v5316 = vrcp.pop %v5240
      %v5317 = vrcp.pop %v5243
      %v5318 = vrcp.pop %v5246
      %v5319 = vrcp.pop %v5249
      %v5320 = vrcp.pop %v5252
      %v5321 = vrcp.pop %v5255
      %v5322 = vrcp.pop %v5258
      %v5323 = vmul.f32 %v4940, %v5259
      %v5324 = vmul.f32 %v4942, %v5260
      %v5325 = vmul.f32 %v4944, %v5261
      %v5326 = vmul.f32 %v4946, %v5262
      %v5327 = vmul.f32 %v4948, %v5263
      %v5328 = vmul.f32 %v4950, %v5264
      %v5329 = vmul.f32 %v4952, %v5265
      %v5330 = vmul.f32 %v4954, %v5266
      %v5331 = vmul.f32 %v4956, %v5267
      %v5332 = vmul.f32 %v4958, %v5268
      %v5333 = vmul.f32 %v4960, %v5269
      %v5334 = vmul.f32 %v4962, %v5270
      %v5335 = vmul.f32 %v4964, %v5271
      %v5336 = vmul.f32 %v4966, %v5272
      %v5337 = vmul.f32 %v4968, %v5273
      %v5338 = vmul.f32 %v4970, %v5274
      %v5339 = vmul.f32 %v4972, %v5275
      %v5340 = vmul.f32 %v4974, %v5276
      %v5341 = vmul.f32 %v4976, %v5277
      %v5342 = vmul.f32 %v4978, %v5278
      %v5343 = vmul.f32 %v4980, %v5279
      %v5344 = vmul.f32 %v4982, %v5280
      %v5345 = vmul.f32 %v4984, %v5281
      %v5346 = vmul.f32 %v4986, %v5282
      %v5347 = vmul.f32 %v4988, %v5283
      %v5348 = vmul.f32 %v4990, %v5284
      %v5349 = vmul.f32 %v4992, %v5285
      %v5350 = vmul.f32 %v4994, %v5286
      %v5351 = vmul.f32 %v4996, %v5287
      %v5352 = vmul.f32 %v4998, %v5288
      %v5353 = vmul.f32 %v5000, %v5289
      %v5354 = vmul.f32 %v5002, %v5290
      %v5355 = vmul.f32 %v5004, %v5291
      %v5356 = vmul.f32 %v5006, %v5292
      %v5357 = vmul.f32 %v5008, %v5293
      %v5358 = vmul.f32 %v5010, %v5294
      %v5359 = vmul.f32 %v5012, %v5295
      %v5360 = vmul.f32 %v5014, %v5296
      %v5361 = vmul.f32 %v5016, %v5297
      %v5362 = vmul.f32 %v5018, %v5298
      %v5363 = vmul.f32 %v5020, %v5299
      %v5364 = vmul.f32 %v5022, %v5300
      %v5365 = vmul.f32 %v5024, %v5301
      %v5366 = vmul.f32 %v5026, %v5302
      %v5367 = vmul.f32 %v5028, %v5303
      %v5368 = vmul.f32 %v5030, %v5304
      %v5369 = vmul.f32 %v5032, %v5305
      %v5370 = vmul.f32 %v5034, %v5306
      %v5371 = vmul.f32 %v5036, %v5307
      %v5372 = vmul.f32 %v5038, %v5308
      %v5373 = vmul.f32 %v5040, %v5309
      %v5374 = vmul.f32 %v5042, %v5310
      %v5375 = vmul.f32 %v5044, %v5311
      %v5376 = vmul.f32 %v5046, %v5312
      %v5377 = vmul.f32 %v5048, %v5313
      %v5378 = vmul.f32 %v5050, %v5314
      %v5379 = vmul.f32 %v5052, %v5315
      %v5380 = vmul.f32 %v5054, %v5316
      %v5381 = vmul.f32 %v5056, %v5317
      %v5382 = vmul.f32 %v5058, %v5318
      %v5383 = vmul.f32 %v5060, %v5319
      %v5384 = vmul.f32 %v5062, %v5320
      %v5385 = vmul.f32 %v5064, %v5321
      %v5386 = vmul.f32 %v5066, %v5322
      %v5387 = vpack.c.bf16 %v5324, %v5323
      %v5388 = vpack.c.bf16 %v5326, %v5325
      %v5389 = vpack.c.bf16 %v5328, %v5327
      %v5390 = vpack.c.bf16 %v5330, %v5329
      %v5391 = vpack.c.bf16 %v5332, %v5331
      %v5392 = vpack.c.bf16 %v5334, %v5333
      %v5393 = vpack.c.bf16 %v5336, %v5335
      %v5394 = vpack.c.bf16 %v5338, %v5337
      %v5395 = vpack.c.bf16 %v5340, %v5339
      %v5396 = vpack.c.bf16 %v5342, %v5341
      %v5397 = vpack.c.bf16 %v5344, %v5343
      %v5398 = vpack.c.bf16 %v5346, %v5345
      %v5399 = vpack.c.bf16 %v5348, %v5347
      %v5400 = vpack.c.bf16 %v5350, %v5349
      %v5401 = vpack.c.bf16 %v5352, %v5351
      %v5402 = vpack.c.bf16 %v5354, %v5353
      %v5403 = vpack.c.bf16 %v5356, %v5355
      %v5404 = vpack.c.bf16 %v5358, %v5357
      %v5405 = vpack.c.bf16 %v5360, %v5359
      %v5406 = vpack.c.bf16 %v5362, %v5361
      %v5407 = vpack.c.bf16 %v5364, %v5363
      %v5408 = vpack.c.bf16 %v5366, %v5365
      %v5409 = vpack.c.bf16 %v5368, %v5367
      %v5410 = vpack.c.bf16 %v5370, %v5369
      %v5411 = vpack.c.bf16 %v5372, %v5371
      %v5412 = vpack.c.bf16 %v5374, %v5373
      %v5413 = vpack.c.bf16 %v5376, %v5375
      %v5414 = vpack.c.bf16 %v5378, %v5377
      %v5415 = vpack.c.bf16 %v5380, %v5379
      %v5416 = vpack.c.bf16 %v5382, %v5381
      %v5417 = vpack.c.bf16 %v5384, %v5383
      %v5418 = vpack.c.bf16 %v5386, %v5385
      %v5420 = vsel %vm210, %v5387, 0
      %v5423 = vsel %vm210, %v5388, 0
      %v5426 = vsel %vm210, %v5389, 0
      %v5429 = vsel %vm210, %v5390, 0
      %5431 = vmatprep.subr.bf16.mxu0 0
      %5432 = vmatpush1.bf16.msra.mxu0 %v3676
      %5433 = vmatprep.subr.bf16.mxu0 0
      %5434 = vmatpush1.bf16.msra.mxu0 %v3678
      %5435 = vmatprep.subr.bf16.mxu0 0
      %5436 = vmatpush1.bf16.msra.mxu0 %v3680
      %5437 = vmatprep.subr.bf16.mxu0 0
      %5438 = vmatpush1.bf16.msra.mxu0 %v3682
      %5439 = vmatprep.subr.bf16.mxu0 0
      %5440 = vmatpush1.bf16.msra.mxu0 0
      %5441 = vmatprep.subr.bf16.mxu0 0
      %5442 = vmatpush1.bf16.msra.mxu0 0
      %5443 = vmatprep.subr.bf16.mxu0 0
      %5444 = vmatpush1.bf16.msra.mxu0 0
      %5445 = vmatprep.subr.bf16.mxu0 0
      %5446 = vmatpush1.bf16.msra.mxu0 0
      %5447 = vmatprep.subr.bf16.mxu0 0
      %5448 = vmatpush1.bf16.msra.mxu0 0
      %5449 = vmatprep.subr.bf16.mxu0 0
      %5450 = vmatpush1.bf16.msra.mxu0 0
      %5451 = vmatprep.subr.bf16.mxu0 0
      %5452 = vmatpush1.bf16.msra.mxu0 0
      %5453 = vmatprep.subr.bf16.mxu0 0
      %5454 = vmatpush1.bf16.msra.mxu0 0
      %5455 = vmatprep.subr.bf16.mxu0 0
      %5456 = vmatpush1.bf16.msra.mxu0 0
      %5457 = vmatprep.subr.bf16.mxu0 0
      %5458 = vmatpush1.bf16.msra.mxu0 0
      %5459 = vmatprep.subr.bf16.mxu0 0
      %5460 = vmatpush1.bf16.msra.mxu0 0
      %5461 = vmatprep.subr.bf16.mxu0 0
      %5462 = vmatpush1.bf16.msra.mxu0 0
      %5463 = vmatprep.mubr.bf16.mxu0 0
      %5464 = vmatmul.mubr.bf16.gmra.mrb[0].mxu0 %v5420
      %v5465 = vpop.f32.mrb[0].mxu0
      %v5466 = vadd.f32 0.0, %v5465
      %v5467 = vpop.f32.mrb[0].mxu0
      %v5468 = vpop.f32.mrb[0].mxu0
      %v5469 = vadd.f32 0.0, %v5468
      %v5470 = vpop.f32.mrb[0].mxu0
      %5471 = vmatprep.mubr.bf16.mxu0 0
      %5472 = vmatmul.mubr.bf16.gmra.mrb[0].mxu0 %v5423
      %v5473 = vpop.f32.mrb[0].mxu0
      %v5474 = vadd.f32 0.0, %v5473
      %v5475 = vpop.f32.mrb[0].mxu0
      %v5476 = vpop.f32.mrb[0].mxu0
      %v5477 = vadd.f32 0.0, %v5476
      %v5478 = vpop.f32.mrb[0].mxu0
      %5479 = vmatprep.mubr.bf16.mxu0 0
      %5480 = vmatmul.mubr.bf16.gmra.mrb[0].mxu0 %v5426
      %v5481 = vpop.f32.mrb[0].mxu0
      %v5482 = vadd.f32 0.0, %v5481
      %v5483 = vpop.f32.mrb[0].mxu0
      %v5484 = vpop.f32.mrb[0].mxu0
      %v5485 = vadd.f32 0.0, %v5484
      %v5486 = vpop.f32.mrb[0].mxu0
      %5487 = vmatprep.mubr.bf16.mxu0 0
      %5488 = vmatmul.mubr.bf16.gmra.mrb[0].mxu0 %v5429
      %v5489 = vpop.f32.mrb[0].mxu0
      %v5490 = vadd.f32 0.0, %v5489
      %v5491 = vpop.f32.mrb[0].mxu0
      %v5492 = vpop.f32.mrb[0].mxu0
      %v5493 = vadd.f32 0.0, %v5492
      %v5494 = vpop.f32.mrb[0].mxu0
      %5495 = vdwg.mxu0
      %v5497 = vsel %vm210, %v5391, 0
      %v5500 = vsel %vm210, %v5392, 0
      %v5503 = vsel %vm210, %v5393, 0
      %v5506 = vsel %vm210, %v5394, 0
      %5508 = vmatprep.subr.bf16.mxu0 0
      %5509 = vmatpush1.bf16.msra.mxu0 %v3684
      %5510 = vmatprep.subr.bf16.mxu0 0
      %5511 = vmatpush1.bf16.msra.mxu0 %v3686
      %5512 = vmatprep.subr.bf16.mxu0 0
      %5513 = vmatpush1.bf16.msra.mxu0 %v3688
      %5514 = vmatprep.subr.bf16.mxu0 0
      %5515 = vmatpush1.bf16.msra.mxu0 %v3690
      %5516 = vmatprep.subr.bf16.mxu0 0
      %5517 = vmatpush1.bf16.msra.mxu0 0
      %5518 = vmatprep.subr.bf16.mxu0 0
      %5519 = vmatpush1.bf16.msra.mxu0 0
      %5520 = vmatprep.subr.bf16.mxu0 0
      %5521 = vmatpush1.bf16.msra.mxu0 0
      %5522 = vmatprep.subr.bf16.mxu0 0
      %5523 = vmatpush1.bf16.msra.mxu0 0
      %5524 = vmatprep.subr.bf16.mxu0 0
      %5525 = vmatpush1.bf16.msra.mxu0 0
      %5526 = vmatprep.subr.bf16.mxu0 0
      %5527 = vmatpush1.bf16.msra.mxu0 0
      %5528 = vmatprep.subr.bf16.mxu0 0
      %5529 = vmatpush1.bf16.msra.mxu0 0
      %5530 = vmatprep.subr.bf16.mxu0 0
      %5531 = vmatpush1.bf16.msra.mxu0 0
      %5532 = vmatprep.subr.bf16.mxu0 0
      %5533 = vmatpush1.bf16.msra.mxu0 0
      %5534 = vmatprep.subr.bf16.mxu0 0
      %5535 = vmatpush1.bf16.msra.mxu0 0
      %5536 = vmatprep.subr.bf16.mxu0 0
      %5537 = vmatpush1.bf16.msra.mxu0 0
      %5538 = vmatprep.subr.bf16.mxu0 0
      %5539 = vmatpush1.bf16.msra.mxu0 0
      %5540 = vmatprep.mubr.bf16.mxu0 0
      %5541 = vmatmul.mubr.bf16.gmra.mrb[0].mxu0 %v5497
      %v5542 = vpop.f32.mrb[0].mxu0
      %v5543 = vadd.f32 0.0, %v5542
      %v5544 = vpop.f32.mrb[0].mxu0
      %v5545 = vpop.f32.mrb[0].mxu0
      %v5546 = vadd.f32 0.0, %v5545
      %v5547 = vpop.f32.mrb[0].mxu0
      %5548 = vmatprep.mubr.bf16.mxu0 0
      %5549 = vmatmul.mubr.bf16.gmra.mrb[0].mxu0 %v5500
      %v5550 = vpop.f32.mrb[0].mxu0
      %v5551 = vadd.f32 0.0, %v5550
      %v5552 = vpop.f32.mrb[0].mxu0
      %v5553 = vpop.f32.mrb[0].mxu0
      %v5554 = vadd.f32 0.0, %v5553
      %v5555 = vpop.f32.mrb[0].mxu0
      %5556 = vmatprep.mubr.bf16.mxu0 0
      %5557 = vmatmul.mubr.bf16.gmra.mrb[0].mxu0 %v5503
      %v5558 = vpop.f32.mrb[0].mxu0
      %v5559 = vadd.f32 0.0, %v5558
      %v5560 = vpop.f32.mrb[0].mxu0
      %v5561 = vpop.f32.mrb[0].mxu0
      %v5562 = vadd.f32 0.0, %v5561
      %v5563 = vpop.f32.mrb[0].mxu0
      %5564 = vmatprep.mubr.bf16.mxu0 0
      %5565 = vmatmul.mubr.bf16.gmra.mrb[0].mxu0 %v5506
      %v5566 = vpop.f32.mrb[0].mxu0
      %v5567 = vadd.f32 0.0, %v5566
      %v5568 = vpop.f32.mrb[0].mxu0
      %v5569 = vpop.f32.mrb[0].mxu0
      %v5570 = vadd.f32 0.0, %v5569
      %v5571 = vpop.f32.mrb[0].mxu0
      %5572 = vdwg.mxu0
      %v5574 = vsel %vm210, %v5395, 0
      %v5577 = vsel %vm210, %v5396, 0
      %v5580 = vsel %vm210, %v5397, 0
      %v5583 = vsel %vm210, %v5398, 0
      %5585 = vmatprep.subr.bf16.mxu0 0
      %5586 = vmatpush1.bf16.msra.mxu0 %v3692
      %5587 = vmatprep.subr.bf16.mxu0 0
      %5588 = vmatpush1.bf16.msra.mxu0 %v3694
      %5589 = vmatprep.subr.bf16.mxu0 0
      %5590 = vmatpush1.bf16.msra.mxu0 %v3696
      %5591 = vmatprep.subr.bf16.mxu0 0
      %5592 = vmatpush1.bf16.msra.mxu0 %v3698
      %5593 = vmatprep.subr.bf16.mxu0 0
      %5594 = vmatpush1.bf16.msra.mxu0 0
      %5595 = vmatprep.subr.bf16.mxu0 0
      %5596 = vmatpush1.bf16.msra.mxu0 0
      %5597 = vmatprep.subr.bf16.mxu0 0
      %5598 = vmatpush1.bf16.msra.mxu0 0
      %5599 = vmatprep.subr.bf16.mxu0 0
      %5600 = vmatpush1.bf16.msra.mxu0 0
      %5601 = vmatprep.subr.bf16.mxu0 0
      %5602 = vmatpush1.bf16.msra.mxu0 0
      %5603 = vmatprep.subr.bf16.mxu0 0
      %5604 = vmatpush1.bf16.msra.mxu0 0
      %5605 = vmatprep.subr.bf16.mxu0 0
      %5606 = vmatpush1.bf16.msra.mxu0 0
      %5607 = vmatprep.subr.bf16.mxu0 0
      %5608 = vmatpush1.bf16.msra.mxu0 0
      %5609 = vmatprep.subr.bf16.mxu0 0
      %5610 = vmatpush1.bf16.msra.mxu0 0
      %5611 = vmatprep.subr.bf16.mxu0 0
      %5612 = vmatpush1.bf16.msra.mxu0 0
      %5613 = vmatprep.subr.bf16.mxu0 0
      %5614 = vmatpush1.bf16.msra.mxu0 0
      %5615 = vmatprep.subr.bf16.mxu0 0
      %5616 = vmatpush1.bf16.msra.mxu0 0
      %5617 = vmatprep.mubr.bf16.mxu0 0
      %5618 = vmatmul.mubr.bf16.gmra.mrb[0].mxu0 %v5574
      %v5619 = vpop.f32.mrb[0].mxu0
      %v5620 = vadd.f32 0.0, %v5619
      %v5621 = vpop.f32.mrb[0].mxu0
      %v5622 = vpop.f32.mrb[0].mxu0
      %v5623 = vadd.f32 0.0, %v5622
      %v5624 = vpop.f32.mrb[0].mxu0
      %5625 = vmatprep.mubr.bf16.mxu0 0
      %5626 = vmatmul.mubr.bf16.gmra.mrb[0].mxu0 %v5577
      %v5627 = vpop.f32.mrb[0].mxu0
      %v5628 = vadd.f32 0.0, %v5627
      %v5629 = vpop.f32.mrb[0].mxu0
      %v5630 = vpop.f32.mrb[0].mxu0
      %v5631 = vadd.f32 0.0, %v5630
      %v5632 = vpop.f32.mrb[0].mxu0
      %5633 = vmatprep.mubr.bf16.mxu0 0
      %5634 = vmatmul.mubr.bf16.gmra.mrb[0].mxu0 %v5580
      %v5635 = vpop.f32.mrb[0].mxu0
      %v5636 = vadd.f32 0.0, %v5635
      %v5637 = vpop.f32.mrb[0].mxu0
      %v5638 = vpop.f32.mrb[0].mxu0
      %v5639 = vadd.f32 0.0, %v5638
      %v5640 = vpop.f32.mrb[0].mxu0
      %5641 = vmatprep.mubr.bf16.mxu0 0
      %5642 = vmatmul.mubr.bf16.gmra.mrb[0].mxu0 %v5583
      %v5643 = vpop.f32.mrb[0].mxu0
      %v5644 = vadd.f32 0.0, %v5643
      %v5645 = vpop.f32.mrb[0].mxu0
      %v5646 = vpop.f32.mrb[0].mxu0
      %v5647 = vadd.f32 0.0, %v5646
      %v5648 = vpop.f32.mrb[0].mxu0
      %5649 = vdwg.mxu0
      %v5651 = vsel %vm210, %v5399, 0
      %v5654 = vsel %vm210, %v5400, 0
      %v5657 = vsel %vm210, %v5401, 0
      %v5660 = vsel %vm210, %v5402, 0
      %5662 = vmatprep.subr.bf16.mxu0 0
      %5663 = vmatpush1.bf16.msra.mxu0 %v3700
      %5664 = vmatprep.subr.bf16.mxu0 0
      %5665 = vmatpush1.bf16.msra.mxu0 %v3702
      %5666 = vmatprep.subr.bf16.mxu0 0
      %5667 = vmatpush1.bf16.msra.mxu0 %v3704
      %5668 = vmatprep.subr.bf16.mxu0 0
      %5669 = vmatpush1.bf16.msra.mxu0 %v3706
      %5670 = vmatprep.subr.bf16.mxu0 0
      %5671 = vmatpush1.bf16.msra.mxu0 0
      %5672 = vmatprep.subr.bf16.mxu0 0
      %5673 = vmatpush1.bf16.msra.mxu0 0
      %5674 = vmatprep.subr.bf16.mxu0 0
      %5675 = vmatpush1.bf16.msra.mxu0 0
      %5676 = vmatprep.subr.bf16.mxu0 0
      %5677 = vmatpush1.bf16.msra.mxu0 0
      %5678 = vmatprep.subr.bf16.mxu0 0
      %5679 = vmatpush1.bf16.msra.mxu0 0
      %5680 = vmatprep.subr.bf16.mxu0 0
      %5681 = vmatpush1.bf16.msra.mxu0 0
      %5682 = vmatprep.subr.bf16.mxu0 0
      %5683 = vmatpush1.bf16.msra.mxu0 0
      %5684 = vmatprep.subr.bf16.mxu0 0
      %5685 = vmatpush1.bf16.msra.mxu0 0
      %5686 = vmatprep.subr.bf16.mxu0 0
      %5687 = vmatpush1.bf16.msra.mxu0 0
      %5688 = vmatprep.subr.bf16.mxu0 0
      %5689 = vmatpush1.bf16.msra.mxu0 0
      %5690 = vmatprep.subr.bf16.mxu0 0
      %5691 = vmatpush1.bf16.msra.mxu0 0
      %5692 = vmatprep.subr.bf16.mxu0 0
      %5693 = vmatpush1.bf16.msra.mxu0 0
      %5694 = vmatprep.mubr.bf16.mxu0 0
      %5695 = vmatmul.mubr.bf16.gmra.mrb[0].mxu0 %v5651
      %v5696 = vpop.f32.mrb[0].mxu0
      %v5697 = vadd.f32 0.0, %v5696
      %v5698 = vpop.f32.mrb[0].mxu0
      %v5699 = vpop.f32.mrb[0].mxu0
      %v5700 = vadd.f32 0.0, %v5699
      %v5701 = vpop.f32.mrb[0].mxu0
      %5702 = vmatprep.mubr.bf16.mxu0 0
      %5703 = vmatmul.mubr.bf16.gmra.mrb[0].mxu0 %v5654
      %v5704 = vpop.f32.mrb[0].mxu0
      %v5705 = vadd.f32 0.0, %v5704
      %v5706 = vpop.f32.mrb[0].mxu0
      %v5707 = vpop.f32.mrb[0].mxu0
      %v5708 = vadd.f32 0.0, %v5707
      %v5709 = vpop.f32.mrb[0].mxu0
      %5710 = vmatprep.mubr.bf16.mxu0 0
      %5711 = vmatmul.mubr.bf16.gmra.mrb[0].mxu0 %v5657
      %v5712 = vpop.f32.mrb[0].mxu0
      %v5713 = vadd.f32 0.0, %v5712
      %v5714 = vpop.f32.mrb[0].mxu0
      %v5715 = vpop.f32.mrb[0].mxu0
      %v5716 = vadd.f32 0.0, %v5715
      %v5717 = vpop.f32.mrb[0].mxu0
      %5718 = vmatprep.mubr.bf16.mxu0 0
      %5719 = vmatmul.mubr.bf16.gmra.mrb[0].mxu0 %v5660
      %v5720 = vpop.f32.mrb[0].mxu0
      %v5721 = vadd.f32 0.0, %v5720
      %v5722 = vpop.f32.mrb[0].mxu0
      %v5723 = vpop.f32.mrb[0].mxu0
      %v5724 = vadd.f32 0.0, %v5723
      %v5725 = vpop.f32.mrb[0].mxu0
      %5726 = vdwg.mxu0
      %v5728 = vsel %vm210, %v5403, 0
      %v5731 = vsel %vm210, %v5404, 0
      %v5734 = vsel %vm210, %v5405, 0
      %v5737 = vsel %vm210, %v5406, 0
      %5739 = vmatprep.subr.bf16.mxu0 0
      %5740 = vmatpush1.bf16.msra.mxu0 %v3708
      %5741 = vmatprep.subr.bf16.mxu0 0
      %5742 = vmatpush1.bf16.msra.mxu0 %v3710
      %5743 = vmatprep.subr.bf16.mxu0 0
      %5744 = vmatpush1.bf16.msra.mxu0 %v3712
      %5745 = vmatprep.subr.bf16.mxu0 0
      %5746 = vmatpush1.bf16.msra.mxu0 %v3714
      %5747 = vmatprep.subr.bf16.mxu0 0
      %5748 = vmatpush1.bf16.msra.mxu0 0
      %5749 = vmatprep.subr.bf16.mxu0 0
      %5750 = vmatpush1.bf16.msra.mxu0 0
      %5751 = vmatprep.subr.bf16.mxu0 0
      %5752 = vmatpush1.bf16.msra.mxu0 0
      %5753 = vmatprep.subr.bf16.mxu0 0
      %5754 = vmatpush1.bf16.msra.mxu0 0
      %5755 = vmatprep.subr.bf16.mxu0 0
      %5756 = vmatpush1.bf16.msra.mxu0 0
      %5757 = vmatprep.subr.bf16.mxu0 0
      %5758 = vmatpush1.bf16.msra.mxu0 0
      %5759 = vmatprep.subr.bf16.mxu0 0
      %5760 = vmatpush1.bf16.msra.mxu0 0
      %5761 = vmatprep.subr.bf16.mxu0 0
      %5762 = vmatpush1.bf16.msra.mxu0 0
      %5763 = vmatprep.subr.bf16.mxu0 0
      %5764 = vmatpush1.bf16.msra.mxu0 0
      %5765 = vmatprep.subr.bf16.mxu0 0
      %5766 = vmatpush1.bf16.msra.mxu0 0
      %5767 = vmatprep.subr.bf16.mxu0 0
      %5768 = vmatpush1.bf16.msra.mxu0 0
      %5769 = vmatprep.subr.bf16.mxu0 0
      %5770 = vmatpush1.bf16.msra.mxu0 0
      %5771 = vmatprep.mubr.bf16.mxu0 0
      %5772 = vmatmul.mubr.bf16.gmra.mrb[0].mxu0 %v5728
      %v5773 = vpop.f32.mrb[0].mxu0
      %v5774 = vadd.f32 0.0, %v5773
      %v5775 = vpop.f32.mrb[0].mxu0
      %v5776 = vpop.f32.mrb[0].mxu0
      %v5777 = vadd.f32 0.0, %v5776
      %v5778 = vpop.f32.mrb[0].mxu0
      %5779 = vmatprep.mubr.bf16.mxu0 0
      %5780 = vmatmul.mubr.bf16.gmra.mrb[0].mxu0 %v5731
      %v5781 = vpop.f32.mrb[0].mxu0
      %v5782 = vadd.f32 0.0, %v5781
      %v5783 = vpop.f32.mrb[0].mxu0
      %v5784 = vpop.f32.mrb[0].mxu0
      %v5785 = vadd.f32 0.0, %v5784
      %v5786 = vpop.f32.mrb[0].mxu0
      %5787 = vmatprep.mubr.bf16.mxu0 0
      %5788 = vmatmul.mubr.bf16.gmra.mrb[0].mxu0 %v5734
      %v5789 = vpop.f32.mrb[0].mxu0
      %v5790 = vadd.f32 0.0, %v5789
      %v5791 = vpop.f32.mrb[0].mxu0
      %v5792 = vpop.f32.mrb[0].mxu0
      %v5793 = vadd.f32 0.0, %v5792
      %v5794 = vpop.f32.mrb[0].mxu0
      %5795 = vmatprep.mubr.bf16.mxu0 0
      %5796 = vmatmul.mubr.bf16.gmra.mrb[0].mxu0 %v5737
      %v5797 = vpop.f32.mrb[0].mxu0
      %v5798 = vadd.f32 0.0, %v5797
      %v5799 = vpop.f32.mrb[0].mxu0
      %v5800 = vpop.f32.mrb[0].mxu0
      %v5801 = vadd.f32 0.0, %v5800
      %v5802 = vpop.f32.mrb[0].mxu0
      %5803 = vdwg.mxu0
      %v5805 = vsel %vm210, %v5407, 0
      %v5808 = vsel %vm210, %v5408, 0
      %v5811 = vsel %vm210, %v5409, 0
      %v5814 = vsel %vm210, %v5410, 0
      %5816 = vmatprep.subr.bf16.mxu0 0
      %5817 = vmatpush1.bf16.msra.mxu0 %v3716
      %5818 = vmatprep.subr.bf16.mxu0 0
      %5819 = vmatpush1.bf16.msra.mxu0 %v3718
      %5820 = vmatprep.subr.bf16.mxu0 0
      %5821 = vmatpush1.bf16.msra.mxu0 %v3720
      %5822 = vmatprep.subr.bf16.mxu0 0
      %5823 = vmatpush1.bf16.msra.mxu0 %v3722
      %5824 = vmatprep.subr.bf16.mxu0 0
      %5825 = vmatpush1.bf16.msra.mxu0 0
      %5826 = vmatprep.subr.bf16.mxu0 0
      %5827 = vmatpush1.bf16.msra.mxu0 0
      %5828 = vmatprep.subr.bf16.mxu0 0
      %5829 = vmatpush1.bf16.msra.mxu0 0
      %5830 = vmatprep.subr.bf16.mxu0 0
      %5831 = vmatpush1.bf16.msra.mxu0 0
      %5832 = vmatprep.subr.bf16.mxu0 0
      %5833 = vmatpush1.bf16.msra.mxu0 0
      %5834 = vmatprep.subr.bf16.mxu0 0
      %5835 = vmatpush1.bf16.msra.mxu0 0
      %5836 = vmatprep.subr.bf16.mxu0 0
      %5837 = vmatpush1.bf16.msra.mxu0 0
      %5838 = vmatprep.subr.bf16.mxu0 0
      %5839 = vmatpush1.bf16.msra.mxu0 0
      %5840 = vmatprep.subr.bf16.mxu0 0
      %5841 = vmatpush1.bf16.msra.mxu0 0
      %5842 = vmatprep.subr.bf16.mxu0 0
      %5843 = vmatpush1.bf16.msra.mxu0 0
      %5844 = vmatprep.subr.bf16.mxu0 0
      %5845 = vmatpush1.bf16.msra.mxu0 0
      %5846 = vmatprep.subr.bf16.mxu0 0
      %5847 = vmatpush1.bf16.msra.mxu0 0
      %5848 = vmatprep.mubr.bf16.mxu0 0
      %5849 = vmatmul.mubr.bf16.gmra.mrb[0].mxu0 %v5805
      %v5850 = vpop.f32.mrb[0].mxu0
      %v5851 = vadd.f32 0.0, %v5850
      %v5852 = vpop.f32.mrb[0].mxu0
      %v5853 = vpop.f32.mrb[0].mxu0
      %v5854 = vadd.f32 0.0, %v5853
      %v5855 = vpop.f32.mrb[0].mxu0
      %5856 = vmatprep.mubr.bf16.mxu0 0
      %5857 = vmatmul.mubr.bf16.gmra.mrb[0].mxu0 %v5808
      %v5858 = vpop.f32.mrb[0].mxu0
      %v5859 = vadd.f32 0.0, %v5858
      %v5860 = vpop.f32.mrb[0].mxu0
      %v5861 = vpop.f32.mrb[0].mxu0
      %v5862 = vadd.f32 0.0, %v5861
      %v5863 = vpop.f32.mrb[0].mxu0
      %5864 = vmatprep.mubr.bf16.mxu0 0
      %5865 = vmatmul.mubr.bf16.gmra.mrb[0].mxu0 %v5811
      %v5866 = vpop.f32.mrb[0].mxu0
      %v5867 = vadd.f32 0.0, %v5866
      %v5868 = vpop.f32.mrb[0].mxu0
      %v5869 = vpop.f32.mrb[0].mxu0
      %v5870 = vadd.f32 0.0, %v5869
      %v5871 = vpop.f32.mrb[0].mxu0
      %5872 = vmatprep.mubr.bf16.mxu0 0
      %5873 = vmatmul.mubr.bf16.gmra.mrb[0].mxu0 %v5814
      %v5874 = vpop.f32.mrb[0].mxu0
      %v5875 = vadd.f32 0.0, %v5874
      %v5876 = vpop.f32.mrb[0].mxu0
      %v5877 = vpop.f32.mrb[0].mxu0
      %v5878 = vadd.f32 0.0, %v5877
      %v5879 = vpop.f32.mrb[0].mxu0
      %5880 = vdwg.mxu0
      %v5882 = vsel %vm210, %v5411, 0
      %v5885 = vsel %vm210, %v5412, 0
      %v5888 = vsel %vm210, %v5413, 0
      %v5891 = vsel %vm210, %v5414, 0
      %5893 = vmatprep.subr.bf16.mxu0 0
      %5894 = vmatpush1.bf16.msra.mxu0 %v3724
      %5895 = vmatprep.subr.bf16.mxu0 0
      %5896 = vmatpush1.bf16.msra.mxu0 %v3726
      %5897 = vmatprep.subr.bf16.mxu0 0
      %5898 = vmatpush1.bf16.msra.mxu0 %v3728
      %5899 = vmatprep.subr.bf16.mxu0 0
      %5900 = vmatpush1.bf16.msra.mxu0 %v3730
      %5901 = vmatprep.subr.bf16.mxu0 0
      %5902 = vmatpush1.bf16.msra.mxu0 0
      %5903 = vmatprep.subr.bf16.mxu0 0
      %5904 = vmatpush1.bf16.msra.mxu0 0
      %5905 = vmatprep.subr.bf16.mxu0 0
      %5906 = vmatpush1.bf16.msra.mxu0 0
      %5907 = vmatprep.subr.bf16.mxu0 0
      %5908 = vmatpush1.bf16.msra.mxu0 0
      %5909 = vmatprep.subr.bf16.mxu0 0
      %5910 = vmatpush1.bf16.msra.mxu0 0
      %5911 = vmatprep.subr.bf16.mxu0 0
      %5912 = vmatpush1.bf16.msra.mxu0 0
      %5913 = vmatprep.subr.bf16.mxu0 0
      %5914 = vmatpush1.bf16.msra.mxu0 0
      %5915 = vmatprep.subr.bf16.mxu0 0
      %5916 = vmatpush1.bf16.msra.mxu0 0
      %5917 = vmatprep.subr.bf16.mxu0 0
      %5918 = vmatpush1.bf16.msra.mxu0 0
      %5919 = vmatprep.subr.bf16.mxu0 0
      %5920 = vmatpush1.bf16.msra.mxu0 0
      %5921 = vmatprep.subr.bf16.mxu0 0
      %5922 = vmatpush1.bf16.msra.mxu0 0
      %5923 = vmatprep.subr.bf16.mxu0 0
      %5924 = vmatpush1.bf16.msra.mxu0 0
      %5925 = vmatprep.mubr.bf16.mxu0 0
      %5926 = vmatmul.mubr.bf16.gmra.mrb[0].mxu0 %v5882
      %v5927 = vpop.f32.mrb[0].mxu0
      %v5928 = vadd.f32 0.0, %v5927
      %v5929 = vpop.f32.mrb[0].mxu0
      %v5930 = vpop.f32.mrb[0].mxu0
      %v5931 = vadd.f32 0.0, %v5930
      %v5932 = vpop.f32.mrb[0].mxu0
      %5933 = vmatprep.mubr.bf16.mxu0 0
      %5934 = vmatmul.mubr.bf16.gmra.mrb[0].mxu0 %v5885
      %v5935 = vpop.f32.mrb[0].mxu0
      %v5936 = vadd.f32 0.0, %v5935
      %v5937 = vpop.f32.mrb[0].mxu0
      %v5938 = vpop.f32.mrb[0].mxu0
      %v5939 = vadd.f32 0.0, %v5938
      %v5940 = vpop.f32.mrb[0].mxu0
      %5941 = vmatprep.mubr.bf16.mxu0 0
      %5942 = vmatmul.mubr.bf16.gmra.mrb[0].mxu0 %v5888
      %v5943 = vpop.f32.mrb[0].mxu0
      %v5944 = vadd.f32 0.0, %v5943
      %v5945 = vpop.f32.mrb[0].mxu0
      %v5946 = vpop.f32.mrb[0].mxu0
      %v5947 = vadd.f32 0.0, %v5946
      %v5948 = vpop.f32.mrb[0].mxu0
      %5949 = vmatprep.mubr.bf16.mxu0 0
      %5950 = vmatmul.mubr.bf16.gmra.mrb[0].mxu0 %v5891
      %v5951 = vpop.f32.mrb[0].mxu0
      %v5952 = vadd.f32 0.0, %v5951
      %v5953 = vpop.f32.mrb[0].mxu0
      %v5954 = vpop.f32.mrb[0].mxu0
      %v5955 = vadd.f32 0.0, %v5954
      %v5956 = vpop.f32.mrb[0].mxu0
      %5957 = vdwg.mxu0
      %v5959 = vsel %vm210, %v5415, 0
      %v5962 = vsel %vm210, %v5416, 0
      %v5965 = vsel %vm210, %v5417, 0
      %v5968 = vsel %vm210, %v5418, 0
      %5970 = vmatprep.subr.bf16.mxu0 0
      %5971 = vmatpush1.bf16.msra.mxu0 %v3732
      %5972 = vmatprep.subr.bf16.mxu0 0
      %5973 = vmatpush1.bf16.msra.mxu0 %v3734
      %5974 = vmatprep.subr.bf16.mxu0 0
      %5975 = vmatpush1.bf16.msra.mxu0 %v3736
      %5976 = vmatprep.subr.bf16.mxu0 0
      %5977 = vmatpush1.bf16.msra.mxu0 %v3738
      %5978 = vmatprep.subr.bf16.mxu0 0
      %5979 = vmatpush1.bf16.msra.mxu0 0
      %5980 = vmatprep.subr.bf16.mxu0 0
      %5981 = vmatpush1.bf16.msra.mxu0 0
      %5982 = vmatprep.subr.bf16.mxu0 0
      %5983 = vmatpush1.bf16.msra.mxu0 0
      %5984 = vmatprep.subr.bf16.mxu0 0
      %5985 = vmatpush1.bf16.msra.mxu0 0
      %5986 = vmatprep.subr.bf16.mxu0 0
      %5987 = vmatpush1.bf16.msra.mxu0 0
      %5988 = vmatprep.subr.bf16.mxu0 0
      %5989 = vmatpush1.bf16.msra.mxu0 0
      %5990 = vmatprep.subr.bf16.mxu0 0
      %5991 = vmatpush1.bf16.msra.mxu0 0
      %5992 = vmatprep.subr.bf16.mxu0 0
      %5993 = vmatpush1.bf16.msra.mxu0 0
      %5994 = vmatprep.subr.bf16.mxu0 0
      %5995 = vmatpush1.bf16.msra.mxu0 0
      %5996 = vmatprep.subr.bf16.mxu0 0
      %5997 = vmatpush1.bf16.msra.mxu0 0
      %5998 = vmatprep.subr.bf16.mxu0 0
      %5999 = vmatpush1.bf16.msra.mxu0 0
      %6000 = vmatprep.subr.bf16.mxu0 0
      %6001 = vmatpush1.bf16.msra.mxu0 0
      %6002 = vmatprep.mubr.bf16.mxu0 0
      %6003 = vmatmul.mubr.bf16.gmra.mrb[0].mxu0 %v5959
      %v6004 = vpop.f32.mrb[0].mxu0
      %v6005 = vadd.f32 0.0, %v6004
      %v6006 = vpop.f32.mrb[0].mxu0
      %v6007 = vpop.f32.mrb[0].mxu0
      %v6008 = vadd.f32 0.0, %v6007
      %v6009 = vpop.f32.mrb[0].mxu0
      %6010 = vmatprep.mubr.bf16.mxu0 0
      %6011 = vmatmul.mubr.bf16.gmra.mrb[0].mxu0 %v5962
      %v6012 = vpop.f32.mrb[0].mxu0
      %v6013 = vadd.f32 0.0, %v6012
      %v6014 = vpop.f32.mrb[0].mxu0
      %v6015 = vpop.f32.mrb[0].mxu0
      %v6016 = vadd.f32 0.0, %v6015
      %v6017 = vpop.f32.mrb[0].mxu0
      %6018 = vmatprep.mubr.bf16.mxu0 0
      %6019 = vmatmul.mubr.bf16.gmra.mrb[0].mxu0 %v5965
      %v6020 = vpop.f32.mrb[0].mxu0
      %v6021 = vadd.f32 0.0, %v6020
      %v6022 = vpop.f32.mrb[0].mxu0
      %v6023 = vpop.f32.mrb[0].mxu0
      %v6024 = vadd.f32 0.0, %v6023
      %v6025 = vpop.f32.mrb[0].mxu0
      %6026 = vmatprep.mubr.bf16.mxu0 0
      %6027 = vmatmul.mubr.bf16.gmra.mrb[0].mxu0 %v5968
      %v6028 = vpop.f32.mrb[0].mxu0
      %v6029 = vadd.f32 0.0, %v6028
      %v6030 = vpop.f32.mrb[0].mxu0
      %v6031 = vpop.f32.mrb[0].mxu0
      %v6032 = vadd.f32 0.0, %v6031
      %v6033 = vpop.f32.mrb[0].mxu0
      %6034 = vdwg.mxu0
      %v6035 = vsel %vm210, %v5466, 0.0
      %v6036 = vsel %vm210, %v5469, 0.0
      %v6037 = vadd.f32 %v6035, %v6036
      %v6038 = vsel %vm210, %v5474, 0.0
      %v6039 = vadd.f32 %v6037, %v6038
      %v6040 = vsel %vm210, %v5477, 0.0
      %v6041 = vadd.f32 %v6039, %v6040
      %v6042 = vsel %vm210, %v5482, 0.0
      %v6043 = vadd.f32 %v6041, %v6042
      %v6044 = vsel %vm210, %v5485, 0.0
      %v6045 = vadd.f32 %v6043, %v6044
      %v6046 = vsel %vm210, %v5490, 0.0
      %v6047 = vadd.f32 %v6045, %v6046
      %v6048 = vsel %vm210, %v5493, 0.0
      %v6049 = vadd.f32 %v6047, %v6048
      %v6050 = vsel %vm210, %v5543, 0.0
      %v6051 = vadd.f32 %v6049, %v6050
      %v6052 = vsel %vm210, %v5546, 0.0
      %v6053 = vadd.f32 %v6051, %v6052
      %v6054 = vsel %vm210, %v5551, 0.0
      %v6055 = vadd.f32 %v6053, %v6054
      %v6056 = vsel %vm210, %v5554, 0.0
      %v6057 = vadd.f32 %v6055, %v6056
      %v6058 = vsel %vm210, %v5559, 0.0
      %v6059 = vadd.f32 %v6057, %v6058
      %v6060 = vsel %vm210, %v5562, 0.0
      %v6061 = vadd.f32 %v6059, %v6060
      %v6062 = vsel %vm210, %v5567, 0.0
      %v6063 = vadd.f32 %v6061, %v6062
      %v6064 = vsel %vm210, %v5570, 0.0
      %v6065 = vadd.f32 %v6063, %v6064
      %v6066 = vsel %vm210, %v5620, 0.0
      %v6067 = vadd.f32 %v6065, %v6066
      %v6068 = vsel %vm210, %v5623, 0.0
      %v6069 = vadd.f32 %v6067, %v6068
      %v6070 = vsel %vm210, %v5628, 0.0
      %v6071 = vadd.f32 %v6069, %v6070
      %v6072 = vsel %vm210, %v5631, 0.0
      %v6073 = vadd.f32 %v6071, %v6072
      %v6074 = vsel %vm210, %v5636, 0.0
      %v6075 = vadd.f32 %v6073, %v6074
      %v6076 = vsel %vm210, %v5639, 0.0
      %v6077 = vadd.f32 %v6075, %v6076
      %v6078 = vsel %vm210, %v5644, 0.0
      %v6079 = vadd.f32 %v6077, %v6078
      %v6080 = vsel %vm210, %v5647, 0.0
      %v6081 = vadd.f32 %v6079, %v6080
      %v6082 = vsel %vm210, %v5697, 0.0
      %v6083 = vadd.f32 %v6081, %v6082
      %v6084 = vsel %vm210, %v5700, 0.0
      %v6085 = vadd.f32 %v6083, %v6084
      %v6086 = vsel %vm210, %v5705, 0.0
      %v6087 = vadd.f32 %v6085, %v6086
      %v6088 = vsel %vm210, %v5708, 0.0
      %v6089 = vadd.f32 %v6087, %v6088
      %v6090 = vsel %vm210, %v5713, 0.0
      %v6091 = vadd.f32 %v6089, %v6090
      %v6092 = vsel %vm210, %v5716, 0.0
      %v6093 = vadd.f32 %v6091, %v6092
      %v6094 = vsel %vm210, %v5721, 0.0
      %v6095 = vadd.f32 %v6093, %v6094
      %v6096 = vsel %vm210, %v5724, 0.0
      %v6097 = vadd.f32 %v6095, %v6096
      %v6098 = vsel %vm210, %v5774, 0.0
      %v6099 = vadd.f32 %v6097, %v6098
      %v6100 = vsel %vm210, %v5777, 0.0
      %v6101 = vadd.f32 %v6099, %v6100
      %v6102 = vsel %vm210, %v5782, 0.0
      %v6103 = vadd.f32 %v6101, %v6102
      %v6104 = vsel %vm210, %v5785, 0.0
      %v6105 = vadd.f32 %v6103, %v6104
      %v6106 = vsel %vm210, %v5790, 0.0
      %v6107 = vadd.f32 %v6105, %v6106
      %v6108 = vsel %vm210, %v5793, 0.0
      %v6109 = vadd.f32 %v6107, %v6108
      %v6110 = vsel %vm210, %v5798, 0.0
      %v6111 = vadd.f32 %v6109, %v6110
      %v6112 = vsel %vm210, %v5801, 0.0
      %v6113 = vadd.f32 %v6111, %v6112
      %v6114 = vsel %vm210, %v5851, 0.0
      %v6115 = vadd.f32 %v6113, %v6114
      %v6116 = vsel %vm210, %v5854, 0.0
      %v6117 = vadd.f32 %v6115, %v6116
      %v6118 = vsel %vm210, %v5859, 0.0
      %v6119 = vadd.f32 %v6117, %v6118
      %v6120 = vsel %vm210, %v5862, 0.0
      %v6121 = vadd.f32 %v6119, %v6120
      %v6122 = vsel %vm210, %v5867, 0.0
      %v6123 = vadd.f32 %v6121, %v6122
      %v6124 = vsel %vm210, %v5870, 0.0
      %v6125 = vadd.f32 %v6123, %v6124
      %v6126 = vsel %vm210, %v5875, 0.0
      %v6127 = vadd.f32 %v6125, %v6126
      %v6128 = vsel %vm210, %v5878, 0.0
      %v6129 = vadd.f32 %v6127, %v6128
      %v6130 = vsel %vm210, %v5928, 0.0
      %v6131 = vadd.f32 %v6129, %v6130
      %v6132 = vsel %vm210, %v5931, 0.0
      %v6133 = vadd.f32 %v6131, %v6132
      %v6134 = vsel %vm210, %v5936, 0.0
      %v6135 = vadd.f32 %v6133, %v6134
      %v6136 = vsel %vm210, %v5939, 0.0
      %v6137 = vadd.f32 %v6135, %v6136
      %v6138 = vsel %vm210, %v5944, 0.0
      %v6139 = vadd.f32 %v6137, %v6138
      %v6140 = vsel %vm210, %v5947, 0.0
      %v6141 = vadd.f32 %v6139, %v6140
      %v6142 = vsel %vm210, %v5952, 0.0
      %v6143 = vadd.f32 %v6141, %v6142
      %v6144 = vsel %vm210, %v5955, 0.0
      %v6145 = vadd.f32 %v6143, %v6144
      %v6146 = vsel %vm210, %v6005, 0.0
      %v6147 = vadd.f32 %v6145, %v6146
      %v6148 = vsel %vm210, %v6008, 0.0
      %v6149 = vadd.f32 %v6147, %v6148
      %v6150 = vsel %vm210, %v6013, 0.0
      %v6151 = vadd.f32 %v6149, %v6150
      %v6152 = vsel %vm210, %v6016, 0.0
      %v6153 = vadd.f32 %v6151, %v6152
      %v6154 = vsel %vm210, %v6021, 0.0
      %v6155 = vadd.f32 %v6153, %v6154
      %v6156 = vsel %vm210, %v6024, 0.0
      %v6157 = vadd.f32 %v6155, %v6156
      %v6158 = vsel %vm210, %v6029, 0.0
      %v6159 = vadd.f32 %v6157, %v6158
      %v6160 = vsel %vm210, %v6032, 0.0
      %v6161 = vadd.f32 %v6159, %v6160
      %6162 = vst.msk [vmem:[%s208] sm:$0xff] %vm210, %v6161
      %v6163 = vmul.f32 %v5466, %v5466
      %v6164 = vmul.f32 %v5469, %v5469
      %v6165 = vmul.f32 %v5474, %v5474
      %v6166 = vmul.f32 %v5477, %v5477
      %v6167 = vmul.f32 %v5482, %v5482
      %v6168 = vmul.f32 %v5485, %v5485
      %v6169 = vmul.f32 %v5490, %v5490
      %v6170 = vmul.f32 %v5493, %v5493
      %v6171 = vmul.f32 %v5543, %v5543
      %v6172 = vmul.f32 %v5546, %v5546
      %v6173 = vmul.f32 %v5551, %v5551
      %v6174 = vmul.f32 %v5554, %v5554
      %v6175 = vmul.f32 %v5559, %v5559
      %v6176 = vmul.f32 %v5562, %v5562
      %v6177 = vmul.f32 %v5567, %v5567
      %v6178 = vmul.f32 %v5570, %v5570
      %v6179 = vmul.f32 %v5620, %v5620
      %v6180 = vmul.f32 %v5623, %v5623
      %v6181 = vmul.f32 %v5628, %v5628
      %v6182 = vmul.f32 %v5631, %v5631
      %v6183 = vmul.f32 %v5636, %v5636
      %v6184 = vmul.f32 %v5639, %v5639
      %v6185 = vmul.f32 %v5644, %v5644
      %v6186 = vmul.f32 %v5647, %v5647
      %v6187 = vmul.f32 %v5697, %v5697
      %v6188 = vmul.f32 %v5700, %v5700
      %v6189 = vmul.f32 %v5705, %v5705
      %v6190 = vmul.f32 %v5708, %v5708
      %v6191 = vmul.f32 %v5713, %v5713
      %v6192 = vmul.f32 %v5716, %v5716
      %v6193 = vmul.f32 %v5721, %v5721
      %v6194 = vmul.f32 %v5724, %v5724
      %v6195 = vmul.f32 %v5774, %v5774
      %v6196 = vmul.f32 %v5777, %v5777
      %v6197 = vmul.f32 %v5782, %v5782
      %v6198 = vmul.f32 %v5785, %v5785
      %v6199 = vmul.f32 %v5790, %v5790
      %v6200 = vmul.f32 %v5793, %v5793
      %v6201 = vmul.f32 %v5798, %v5798
      %v6202 = vmul.f32 %v5801, %v5801
      %v6203 = vmul.f32 %v5851, %v5851
      %v6204 = vmul.f32 %v5854, %v5854
      %v6205 = vmul.f32 %v5859, %v5859
      %v6206 = vmul.f32 %v5862, %v5862
      %v6207 = vmul.f32 %v5867, %v5867
      %v6208 = vmul.f32 %v5870, %v5870
      %v6209 = vmul.f32 %v5875, %v5875
      %v6210 = vmul.f32 %v5878, %v5878
      %v6211 = vmul.f32 %v5928, %v5928
      %v6212 = vmul.f32 %v5931, %v5931
      %v6213 = vmul.f32 %v5936, %v5936
      %v6214 = vmul.f32 %v5939, %v5939
      %v6215 = vmul.f32 %v5944, %v5944
      %v6216 = vmul.f32 %v5947, %v5947
      %v6217 = vmul.f32 %v5952, %v5952
      %v6218 = vmul.f32 %v5955, %v5955
      %v6219 = vmul.f32 %v6005, %v6005
      %v6220 = vmul.f32 %v6008, %v6008
      %v6221 = vmul.f32 %v6013, %v6013
      %v6222 = vmul.f32 %v6016, %v6016
      %v6223 = vmul.f32 %v6021, %v6021
      %v6224 = vmul.f32 %v6024, %v6024
      %v6225 = vmul.f32 %v6029, %v6029
      %v6226 = vmul.f32 %v6032, %v6032
      %v6227 = vsel %vm210, %v6163, 0.0
      %v6228 = vsel %vm210, %v6164, 0.0
      %v6229 = vadd.f32 %v6227, %v6228
      %v6230 = vsel %vm210, %v6165, 0.0
      %v6231 = vadd.f32 %v6229, %v6230
      %v6232 = vsel %vm210, %v6166, 0.0
      %v6233 = vadd.f32 %v6231, %v6232
      %v6234 = vsel %vm210, %v6167, 0.0
      %v6235 = vadd.f32 %v6233, %v6234
      %v6236 = vsel %vm210, %v6168, 0.0
      %v6237 = vadd.f32 %v6235, %v6236
      %v6238 = vsel %vm210, %v6169, 0.0
      %v6239 = vadd.f32 %v6237, %v6238
      %v6240 = vsel %vm210, %v6170, 0.0
      %v6241 = vadd.f32 %v6239, %v6240
      %v6242 = vsel %vm210, %v6171, 0.0
      %v6243 = vadd.f32 %v6241, %v6242
      %v6244 = vsel %vm210, %v6172, 0.0
      %v6245 = vadd.f32 %v6243, %v6244
      %v6246 = vsel %vm210, %v6173, 0.0
      %v6247 = vadd.f32 %v6245, %v6246
      %v6248 = vsel %vm210, %v6174, 0.0
      %v6249 = vadd.f32 %v6247, %v6248
      %v6250 = vsel %vm210, %v6175, 0.0
      %v6251 = vadd.f32 %v6249, %v6250
      %v6252 = vsel %vm210, %v6176, 0.0
      %v6253 = vadd.f32 %v6251, %v6252
      %v6254 = vsel %vm210, %v6177, 0.0
      %v6255 = vadd.f32 %v6253, %v6254
      %v6256 = vsel %vm210, %v6178, 0.0
      %v6257 = vadd.f32 %v6255, %v6256
      %v6258 = vsel %vm210, %v6179, 0.0
      %v6259 = vadd.f32 %v6257, %v6258
      %v6260 = vsel %vm210, %v6180, 0.0
      %v6261 = vadd.f32 %v6259, %v6260
      %v6262 = vsel %vm210, %v6181, 0.0
      %v6263 = vadd.f32 %v6261, %v6262
      %v6264 = vsel %vm210, %v6182, 0.0
      %v6265 = vadd.f32 %v6263, %v6264
      %v6266 = vsel %vm210, %v6183, 0.0
      %v6267 = vadd.f32 %v6265, %v6266
      %v6268 = vsel %vm210, %v6184, 0.0
      %v6269 = vadd.f32 %v6267, %v6268
      %v6270 = vsel %vm210, %v6185, 0.0
      %v6271 = vadd.f32 %v6269, %v6270
      %v6272 = vsel %vm210, %v6186, 0.0
      %v6273 = vadd.f32 %v6271, %v6272
      %v6274 = vsel %vm210, %v6187, 0.0
      %v6275 = vadd.f32 %v6273, %v6274
      %v6276 = vsel %vm210, %v6188, 0.0
      %v6277 = vadd.f32 %v6275, %v6276
      %v6278 = vsel %vm210, %v6189, 0.0
      %v6279 = vadd.f32 %v6277, %v6278
      %v6280 = vsel %vm210, %v6190, 0.0
      %v6281 = vadd.f32 %v6279, %v6280
      %v6282 = vsel %vm210, %v6191, 0.0
      %v6283 = vadd.f32 %v6281, %v6282
      %v6284 = vsel %vm210, %v6192, 0.0
      %v6285 = vadd.f32 %v6283, %v6284
      %v6286 = vsel %vm210, %v6193, 0.0
      %v6287 = vadd.f32 %v6285, %v6286
      %v6288 = vsel %vm210, %v6194, 0.0
      %v6289 = vadd.f32 %v6287, %v6288
      %v6290 = vsel %vm210, %v6195, 0.0
      %v6291 = vadd.f32 %v6289, %v6290
      %v6292 = vsel %vm210, %v6196, 0.0
      %v6293 = vadd.f32 %v6291, %v6292
      %v6294 = vsel %vm210, %v6197, 0.0
      %v6295 = vadd.f32 %v6293, %v6294
      %v6296 = vsel %vm210, %v6198, 0.0
      %v6297 = vadd.f32 %v6295, %v6296
      %v6298 = vsel %vm210, %v6199, 0.0
      %v6299 = vadd.f32 %v6297, %v6298
      %v6300 = vsel %vm210, %v6200, 0.0
      %v6301 = vadd.f32 %v6299, %v6300
      %v6302 = vsel %vm210, %v6201, 0.0
      %v6303 = vadd.f32 %v6301, %v6302
      %v6304 = vsel %vm210, %v6202, 0.0
      %v6305 = vadd.f32 %v6303, %v6304
      %v6306 = vsel %vm210, %v6203, 0.0
      %v6307 = vadd.f32 %v6305, %v6306
      %v6308 = vsel %vm210, %v6204, 0.0
      %v6309 = vadd.f32 %v6307, %v6308
      %v6310 = vsel %vm210, %v6205, 0.0
      %v6311 = vadd.f32 %v6309, %v6310
      %v6312 = vsel %vm210, %v6206, 0.0
      %v6313 = vadd.f32 %v6311, %v6312
      %v6314 = vsel %vm210, %v6207, 0.0
      %v6315 = vadd.f32 %v6313, %v6314
      %v6316 = vsel %vm210, %v6208, 0.0
      %v6317 = vadd.f32 %v6315, %v6316
      %v6318 = vsel %vm210, %v6209, 0.0
      %v6319 = vadd.f32 %v6317, %v6318
      %v6320 = vsel %vm210, %v6210, 0.0
      %v6321 = vadd.f32 %v6319, %v6320
      %v6322 = vsel %vm210, %v6211, 0.0
      %v6323 = vadd.f32 %v6321, %v6322
      %v6324 = vsel %vm210, %v6212, 0.0
      %v6325 = vadd.f32 %v6323, %v6324
      %v6326 = vsel %vm210, %v6213, 0.0
      %v6327 = vadd.f32 %v6325, %v6326
      %v6328 = vsel %vm210, %v6214, 0.0
      %v6329 = vadd.f32 %v6327, %v6328
      %v6330 = vsel %vm210, %v6215, 0.0
      %v6331 = vadd.f32 %v6329, %v6330
      %v6332 = vsel %vm210, %v6216, 0.0
      %v6333 = vadd.f32 %v6331, %v6332
      %v6334 = vsel %vm210, %v6217, 0.0
      %v6335 = vadd.f32 %v6333, %v6334
      %v6336 = vsel %vm210, %v6218, 0.0
      %v6337 = vadd.f32 %v6335, %v6336
      %v6338 = vsel %vm210, %v6219, 0.0
      %v6339 = vadd.f32 %v6337, %v6338
      %v6340 = vsel %vm210, %v6220, 0.0
      %v6341 = vadd.f32 %v6339, %v6340
      %v6342 = vsel %vm210, %v6221, 0.0
      %v6343 = vadd.f32 %v6341, %v6342
      %v6344 = vsel %vm210, %v6222, 0.0
      %v6345 = vadd.f32 %v6343, %v6344
      %v6346 = vsel %vm210, %v6223, 0.0
      %v6347 = vadd.f32 %v6345, %v6346
      %v6348 = vsel %vm210, %v6224, 0.0
      %v6349 = vadd.f32 %v6347, %v6348
      %v6350 = vsel %vm210, %v6225, 0.0
      %v6351 = vadd.f32 %v6349, %v6350
      %v6352 = vsel %vm210, %v6226, 0.0
      %v6353 = vadd.f32 %v6351, %v6352
      %6355 = vrot.lane.b32.xlu0 %v6353, 64
      %v6356 = vpop.permute.xlu0 %6355
      %6358 = vst.msk [vmem:[%s208] sm:$0xff] %vm822, %v6356
      %v6359 = vpack.c.bf16 %v5466, %v5466
      %v6360 = vpack.c.bf16 %v5469, %v5469
      %v6361 = vpack.c.bf16 %v5474, %v5474
      %v6362 = vpack.c.bf16 %v5477, %v5477
      %v6363 = vpack.c.bf16 %v5482, %v5482
      %v6364 = vpack.c.bf16 %v5485, %v5485
      %v6365 = vpack.c.bf16 %v5490, %v5490
      %v6366 = vpack.c.bf16 %v5493, %v5493
      %v6367 = vpack.c.bf16 %v5543, %v5543
      %v6368 = vpack.c.bf16 %v5546, %v5546
      %v6369 = vpack.c.bf16 %v5551, %v5551
      %v6370 = vpack.c.bf16 %v5554, %v5554
      %v6371 = vpack.c.bf16 %v5559, %v5559
      %v6372 = vpack.c.bf16 %v5562, %v5562
      %v6373 = vpack.c.bf16 %v5567, %v5567
      %v6374 = vpack.c.bf16 %v5570, %v5570
      %v6375 = vpack.c.bf16 %v5620, %v5620
      %v6376 = vpack.c.bf16 %v5623, %v5623
      %v6377 = vpack.c.bf16 %v5628, %v5628
      %v6378 = vpack.c.bf16 %v5631, %v5631
      %v6379 = vpack.c.bf16 %v5636, %v5636
      %v6380 = vpack.c.bf16 %v5639, %v5639
      %v6381 = vpack.c.bf16 %v5644, %v5644
      %v6382 = vpack.c.bf16 %v5647, %v5647
      %v6383 = vpack.c.bf16 %v5697, %v5697
      %v6384 = vpack.c.bf16 %v5700, %v5700
      %v6385 = vpack.c.bf16 %v5705, %v5705
      %v6386 = vpack.c.bf16 %v5708, %v5708
      %v6387 = vpack.c.bf16 %v5713, %v5713
      %v6388 = vpack.c.bf16 %v5716, %v5716
      %v6389 = vpack.c.bf16 %v5721, %v5721
      %v6390 = vpack.c.bf16 %v5724, %v5724
      %v6391 = vpack.c.bf16 %v5774, %v5774
      %v6392 = vpack.c.bf16 %v5777, %v5777
      %v6393 = vpack.c.bf16 %v5782, %v5782
      %v6394 = vpack.c.bf16 %v5785, %v5785
      %v6395 = vpack.c.bf16 %v5790, %v5790
      %v6396 = vpack.c.bf16 %v5793, %v5793
      %v6397 = vpack.c.bf16 %v5798, %v5798
      %v6398 = vpack.c.bf16 %v5801, %v5801
      %v6399 = vpack.c.bf16 %v5851, %v5851
      %v6400 = vpack.c.bf16 %v5854, %v5854
      %v6401 = vpack.c.bf16 %v5859, %v5859
      %v6402 = vpack.c.bf16 %v5862, %v5862
      %v6403 = vpack.c.bf16 %v5867, %v5867
      %v6404 = vpack.c.bf16 %v5870, %v5870
      %v6405 = vpack.c.bf16 %v5875, %v5875
      %v6406 = vpack.c.bf16 %v5878, %v5878
      %v6407 = vpack.c.bf16 %v5928, %v5928
      %v6408 = vpack.c.bf16 %v5931, %v5931
      %v6409 = vpack.c.bf16 %v5936, %v5936
      %v6410 = vpack.c.bf16 %v5939, %v5939
      %v6411 = vpack.c.bf16 %v5944, %v5944
      %v6412 = vpack.c.bf16 %v5947, %v5947
      %v6413 = vpack.c.bf16 %v5952, %v5952
      %v6414 = vpack.c.bf16 %v5955, %v5955
      %v6415 = vpack.c.bf16 %v6005, %v6005
      %v6416 = vpack.c.bf16 %v6008, %v6008
      %v6417 = vpack.c.bf16 %v6013, %v6013
      %v6418 = vpack.c.bf16 %v6016, %v6016
      %v6419 = vpack.c.bf16 %v6021, %v6021
      %v6420 = vpack.c.bf16 %v6024, %v6024
      %v6421 = vpack.c.bf16 %v6029, %v6029
      %v6422 = vpack.c.bf16 %v6032, %v6032
      %6423 = vst.msk [vmem:[%s204] sm:$0xf] %vm222, %v6359
      %6424 = vst.msk [vmem:[%s204 + $0x4] sm:$0xf] %vm222, %v6360
      %6425 = vst.msk [vmem:[%s204 + $0x8] sm:$0xf] %vm222, %v6361
      %6426 = vst.msk [vmem:[%s204 + $0xc] sm:$0xf] %vm222, %v6362
      %6427 = vst.msk [vmem:[%s204 + $0x10] sm:$0xf] %vm222, %v6363
      %6428 = vst.msk [vmem:[%s204 + $0x14] sm:$0xf] %vm222, %v6364
      %6429 = vst.msk [vmem:[%s204 + $0x18] sm:$0xf] %vm222, %v6365
      %6430 = vst.msk [vmem:[%s204 + $0x1c] sm:$0xf] %vm222, %v6366
      %6431 = vst.msk [vmem:[%s204 + $0x20] sm:$0xf] %vm222, %v6367
      %6432 = vst.msk [vmem:[%s204 + $0x24] sm:$0xf] %vm222, %v6368
      %6433 = vst.msk [vmem:[%s204 + $0x28] sm:$0xf] %vm222, %v6369
      %6434 = vst.msk [vmem:[%s204 + $0x2c] sm:$0xf] %vm222, %v6370
      %6435 = vst.msk [vmem:[%s204 + $0x30] sm:$0xf] %vm222, %v6371
      %6436 = vst.msk [vmem:[%s204 + $0x34] sm:$0xf] %vm222, %v6372
      %6437 = vst.msk [vmem:[%s204 + $0x38] sm:$0xf] %vm222, %v6373
      %6438 = vst.msk [vmem:[%s204 + $0x3c] sm:$0xf] %vm222, %v6374
      %6439 = vst.msk [vmem:[%s204 + $0x40] sm:$0xf] %vm222, %v6375
      %6440 = vst.msk [vmem:[%s204 + $0x44] sm:$0xf] %vm222, %v6376
      %6441 = vst.msk [vmem:[%s204 + $0x48] sm:$0xf] %vm222, %v6377
      %6442 = vst.msk [vmem:[%s204 + $0x4c] sm:$0xf] %vm222, %v6378
      %6443 = vst.msk [vmem:[%s204 + $0x50] sm:$0xf] %vm222, %v6379
      %6444 = vst.msk [vmem:[%s204 + $0x54] sm:$0xf] %vm222, %v6380
      %6445 = vst.msk [vmem:[%s204 + $0x58] sm:$0xf] %vm222, %v6381
      %6446 = vst.msk [vmem:[%s204 + $0x5c] sm:$0xf] %vm222, %v6382
      %6447 = vst.msk [vmem:[%s204 + $0x60] sm:$0xf] %vm222, %v6383
      %6448 = vst.msk [vmem:[%s204 + $0x64] sm:$0xf] %vm222, %v6384
      %6449 = vst.msk [vmem:[%s204 + $0x68] sm:$0xf] %vm222, %v6385
      %6450 = vst.msk [vmem:[%s204 + $0x6c] sm:$0xf] %vm222, %v6386
      %6451 = vst.msk [vmem:[%s204 + $0x70] sm:$0xf] %vm222, %v6387
      %6452 = vst.msk [vmem:[%s204 + $0x74] sm:$0xf] %vm222, %v6388
      %6453 = vst.msk [vmem:[%s204 + $0x78] sm:$0xf] %vm222, %v6389
      %6454 = vst.msk [vmem:[%s204 + $0x7c] sm:$0xf] %vm222, %v6390
      %6455 = vst.msk [vmem:[%s204 + $0x80] sm:$0xf] %vm222, %v6391
      %6456 = vst.msk [vmem:[%s204 + $0x84] sm:$0xf] %vm222, %v6392
      %6457 = vst.msk [vmem:[%s204 + $0x88] sm:$0xf] %vm222, %v6393
      %6458 = vst.msk [vmem:[%s204 + $0x8c] sm:$0xf] %vm222, %v6394
      %6459 = vst.msk [vmem:[%s204 + $0x90] sm:$0xf] %vm222, %v6395
      %6460 = vst.msk [vmem:[%s204 + $0x94] sm:$0xf] %vm222, %v6396
      %6461 = vst.msk [vmem:[%s204 + $0x98] sm:$0xf] %vm222, %v6397
      %6462 = vst.msk [vmem:[%s204 + $0x9c] sm:$0xf] %vm222, %v6398
      %6463 = vst.msk [vmem:[%s204 + $0xa0] sm:$0xf] %vm222, %v6399
      %6464 = vst.msk [vmem:[%s204 + $0xa4] sm:$0xf] %vm222, %v6400
      %6465 = vst.msk [vmem:[%s204 + $0xa8] sm:$0xf] %vm222, %v6401
      %6466 = vst.msk [vmem:[%s204 + $0xac] sm:$0xf] %vm222, %v6402
      %6467 = vst.msk [vmem:[%s204 + $0xb0] sm:$0xf] %vm222, %v6403
      %6468 = vst.msk [vmem:[%s204 + $0xb4] sm:$0xf] %vm222, %v6404
      %6469 = vst.msk [vmem:[%s204 + $0xb8] sm:$0xf] %vm222, %v6405
      %6470 = vst.msk [vmem:[%s204 + $0xbc] sm:$0xf] %vm222, %v6406
      %6471 = vst.msk [vmem:[%s204 + $0xc0] sm:$0xf] %vm222, %v6407
      %6472 = vst.msk [vmem:[%s204 + $0xc4] sm:$0xf] %vm222, %v6408
      %6473 = vst.msk [vmem:[%s204 + $0xc8] sm:$0xf] %vm222, %v6409
      %6474 = vst.msk [vmem:[%s204 + $0xcc] sm:$0xf] %vm222, %v6410
      %6475 = vst.msk [vmem:[%s204 + $0xd0] sm:$0xf] %vm222, %v6411
      %6476 = vst.msk [vmem:[%s204 + $0xd4] sm:$0xf] %vm222, %v6412
      %6477 = vst.msk [vmem:[%s204 + $0xd8] sm:$0xf] %vm222, %v6413
      %6478 = vst.msk [vmem:[%s204 + $0xdc] sm:$0xf] %vm222, %v6414
      %6479 = vst.msk [vmem:[%s204 + $0xe0] sm:$0xf] %vm222, %v6415
      %6480 = vst.msk [vmem:[%s204 + $0xe4] sm:$0xf] %vm222, %v6416
      %6481 = vst.msk [vmem:[%s204 + $0xe8] sm:$0xf] %vm222, %v6417
      %6482 = vst.msk [vmem:[%s204 + $0xec] sm:$0xf] %vm222, %v6418
      %6483 = vst.msk [vmem:[%s204 + $0xf0] sm:$0xf] %vm222, %v6419
      %6484 = vst.msk [vmem:[%s204 + $0xf4] sm:$0xf] %vm222, %v6420
      %6485 = vst.msk [vmem:[%s204 + $0xf8] sm:$0xf] %vm222, %v6421
      %6486 = vst.msk [vmem:[%s204 + $0xfc] sm:$0xf] %vm222, %v6422
      %p6487 = scmp.lt.s32.totalorder %s16, 1
      %s6488 = scalar_select %p6487, %s16, 1
      %s6489 = smul.addr %s6488, 64
      %s6490 = smul.addr %s6489, 4
      %s6491 = scalar_lea.vmem %s3, %s6490
      %p6492 = scmp.lt.s32.totalorder %s16, 1
      %s6493 = scalar_select %p6492, %s16, 1
      %s6494 = smul.addr %s6493, 8
      %s6495 = scalar_lea.vmem %s4, %s6494
      // Predicated region
      $region33: #{hr2o_nl_pallas.2} parent=31 // pred_check
        %p6496 = pneg %p102
      $region34: #{hr2o_nl_pallas.2} parent=31 // pred_check_branch
        %6498 = sbr.rel (%p6496) target = $region36
      $region35: #{hr2o_nl_pallas.2} parent=31 // pred_region
        _
      $region36: #{hr2o_nl_pallas.2} parent=31 // pred_fallthru
        _
      // Predicated region
      $region37: #{hr2o_nl_pallas.2} parent=31 // pred_check
        %p6499 = pneg %p128
      $region38: #{hr2o_nl_pallas.2} parent=31 // pred_check_branch
        %6501 = sbr.rel (%p6499) target = $region40
      $region39: #{hr2o_nl_pallas.2} parent=31 // pred_region
        _
      $region40: #{hr2o_nl_pallas.2} parent=31 // pred_fallthru
        _
    $region32: #{hr2o_nl_pallas.2} parent=5 // pred_fallthru
      _
    %p6502 = scmp.le.s32.totalorder 2, %s11
    // Predicated region
    $region41: #{hr2o_nl_pallas.2} parent=5 // pred_check
      %p6503 = pneg %p6502
    $region42: #{hr2o_nl_pallas.2} parent=5 // pred_check_branch
      %6505 = sbr.rel (%p6503) target = $region44
    $region43: #{hr2o_nl_pallas.2} parent=5 // pred_region
      %s6506 = ssub.s32 %s11, 2
      // Predicated region
      $region45: #{hr2o_nl_pallas.2} parent=43 // pred_check
        %p6507 = pneg %p108
      $region46: #{hr2o_nl_pallas.2} parent=43 // pred_check_branch
        %6509 = sbr.rel (%p6507) target = $region48
      $region47: #{hr2o_nl_pallas.2} parent=43 // pred_region
        %p6510 = scmp.lt.s32.totalorder %s17, 1
        %s6511 = scalar_select %p6510, %s17, 1
        %s6512 = smul.addr %s6511, 64
        %s6513 = smul.addr %s6512, 4
        %s6514 = scalar_lea.vmem %s3, %s6513
      $region48: #{hr2o_nl_pallas.2} parent=43 // pred_fallthru
        _
      // Predicated region
      $region49: #{hr2o_nl_pallas.2} parent=43 // pred_check
        %p6515 = pneg %p134
      $region50: #{hr2o_nl_pallas.2} parent=43 // pred_check_branch
        %6517 = sbr.rel (%p6515) target = $region52
      $region51: #{hr2o_nl_pallas.2} parent=43 // pred_region
        %p6518 = scmp.lt.s32.totalorder %s17, 1
        %s6519 = scalar_select %p6518, %s17, 1
        %s6520 = smul.addr %s6519, 8
        %s6521 = scalar_lea.vmem %s4, %s6520
      $region52: #{hr2o_nl_pallas.2} parent=43 // pred_fallthru
        _
    $region44: #{hr2o_nl_pallas.2} parent=5 // pred_fallthru
      _
  $region6: #{hr2o_nl_pallas.2} parent=0 // loop_footer
    %s15 = sadd.s32 1, %s11
  $region7: #{hr2o_nl_pallas.2} parent=0 // loop_footer_branch
    %10 = sbr.rel target = $region3
  $region8: #{hr2o_nl_pallas.2} parent=0 // loop_exit
    _

</llo_original>
